<compile_context>
chip_gen: v5e
topology: v5e:2x2
jax: 0.10.0
libtpu: 0.0.40
codegen_flags: <defaults>
</compile_context>

<pallas_src>
import functools

import jax
import jax.numpy as jnp
from jax.experimental import pallas as pl
from jax.experimental.pallas import tpu as pltpu

F32 = jnp.float32
_VMEM = pl.BlockSpec(memory_space=pltpu.MemorySpace.VMEM)
_CPARAMS = pltpu.CompilerParams(vmem_limit_bytes=32 * 1024 * 1024)


def _relu(x):
    return jnp.maximum(x, 0.0)


# ---------------------------------------------------------------------------
# Kernel 1 (stem): Conv1d(C_in, 64, k=12, s=4) + ReLU + MaxPool1d(2, 4)
# Input rows are "pool groups": 16 consecutive samples x C_in channels folded
# onto the lane axis, so both conv taps of the pooled output are static lane
# slices feeding a (rows, 12*C_in) @ (12*C_in, 64) matmul.
# ---------------------------------------------------------------------------
def _stem_kernel(x_ref, w_ref, b_ref, o_ref, *, c_in):
    w = w_ref[...]                      # (12*c_in, 64), rows ordered (k, c)
    b = b_ref[...]                      # (1, 64)
    win = 12 * c_in
    a0 = jnp.dot(x_ref[:, 0:win], w, preferred_element_type=F32)
    a1 = jnp.dot(x_ref[:, 4 * c_in:4 * c_in + win], w, preferred_element_type=F32)
    # max(ReLU(a0+b), ReLU(a1+b)) == ReLU(max(a0, a1) + b)
    o_ref[...] = _relu(jnp.maximum(a0, a1) + b)


# ---------------------------------------------------------------------------
# Kernel 2 (trunk): Conv1d(64,192,k=4,s=4)+ReLU + MaxPool1d(4,4)
#                   + Conv1d(192,384,3,p=1)+ReLU + Conv1d(384,256,3,p=1)+ReLU
#                   + Conv1d(256,256,3,p=1)+ReLU
# Input rows are pool2 groups: 16 conv1/pool1 outputs x 64 channels folded on
# the lane axis (1024 lanes). Padded activations live in VMEM scratch with a
# one-row zero halo so the K=3 convs are plain shifted-slice matmuls.
# ---------------------------------------------------------------------------
def _trunk_kernel(h_ref, w2_ref, b2_ref, w3_ref, b3_ref, w4_ref, b4_ref,
                  w5_ref, b5_ref, o_ref, s2_ref, s3_ref, s4_ref,
                  *, n_batch, l_mid):
    lp = l_mid + 2
    w2 = w2_ref[...]                    # (256, 192), rows ordered (k, c)
    b2 = b2_ref[...]
    b3 = b3_ref[...]
    b4 = b4_ref[...]
    b5 = b5_ref[...]
    for n in range(n_batch):
        h = h_ref[n]                    # (l_mid, 1024)
        base = n * lp
        # conv2(k=4,s=4) + ReLU + MaxPool(4,4): 4 lane-chunks -> matmul -> max
        z = jnp.dot(h[:, 0:256], w2, preferred_element_type=F32)
        for q in range(1, 4):
            z = jnp.maximum(
                z, jnp.dot(h[:, q * 256:(q + 1) * 256], w2,
                           preferred_element_type=F32))
        p2 = _relu(z + b2)              # (l_mid, 192)

        s2_ref[base:base + 1, :] = jnp.zeros((1, 192), F32)
        s2_ref[base + lp - 1:base + lp, :] = jnp.zeros((1, 192), F32)
        s2_ref[base + 1:base + 1 + l_mid, :] = p2

        # conv3 (k=3, pad=1) + ReLU
        y = jnp.dot(s2_ref[base:base + l_mid, :], w3_ref[0],
                    preferred_element_type=F32)
        y = y + jnp.dot(s2_ref[base + 1:base + 1 + l_mid, :], w3_ref[1],
                        preferred_element_type=F32)
        y = y + jnp.dot(s2_ref[base + 2:base + 2 + l_mid, :], w3_ref[2],
                        preferred_element_type=F32)
        y3 = _relu(y + b3)              # (l_mid, 384)

        s3_ref[base:base + 1, :] = jnp.zeros((1, 384), F32)
        s3_ref[base + lp - 1:base + lp, :] = jnp.zeros((1, 384), F32)
        s3_ref[base + 1:base + 1 + l_mid, :] = y3

        # conv4 (k=3, pad=1) + ReLU
        y = jnp.dot(s3_ref[base:base + l_mid, :], w4_ref[0],
                    preferred_element_type=F32)
        y = y + jnp.dot(s3_ref[base + 1:base + 1 + l_mid, :], w4_ref[1],
                        preferred_element_type=F32)
        y = y + jnp.dot(s3_ref[base + 2:base + 2 + l_mid, :], w4_ref[2],
                        preferred_element_type=F32)
        y4 = _relu(y + b4)              # (l_mid, 256)

        s4_ref[base:base + 1, :] = jnp.zeros((1, 256), F32)
        s4_ref[base + lp - 1:base + lp, :] = jnp.zeros((1, 256), F32)
        s4_ref[base + 1:base + 1 + l_mid, :] = y4

        # conv5 (k=3, pad=1) + ReLU
        y = jnp.dot(s4_ref[base:base + l_mid, :], w5_ref[0],
                    preferred_element_type=F32)
        y = y + jnp.dot(s4_ref[base + 1:base + 1 + l_mid, :], w5_ref[1],
                        preferred_element_type=F32)
        y = y + jnp.dot(s4_ref[base + 2:base + 2 + l_mid, :], w5_ref[2],
                        preferred_element_type=F32)
        o_ref[n] = _relu(y + b5)        # (l_mid, 256)


# ---------------------------------------------------------------------------
# Kernel 3 (head): MaxPool1d(4,4) + AdaptiveAvgPool1d(6) + Linear(1536,512)
#                  + ReLU + Linear(512,128) + ReLU + Linear(128,num_classes)
# Input rows are pool3 groups (4 conv5 outputs x 256 channels on lanes).
# The fc3 output is padded to 128 lanes (lane-dense store); sliced outside.
# ---------------------------------------------------------------------------
def _head_kernel(h_ref, wf1_ref, bf1_ref, wf2_ref, bf2_ref, wf3_ref, bf3_ref,
                 o_ref, *, pool_k, l_in, n_bins):
    h = h_ref[...]                      # (N, l_in, pool_k*256)
    p = h[:, :, 0:256]
    for r in range(1, pool_k):
        p = jnp.maximum(p, h[:, :, r * 256:(r + 1) * 256])   # MaxPool(4,4)

    # AdaptiveAvgPool1d(n_bins) + fc1 accumulated per time-bin (no flatten).
    acc = jnp.zeros((h.shape[0], wf1_ref.shape[2]), F32)
    for i in range(n_bins):
        s = (i * l_in) // n_bins
        e = -((-(i + 1) * l_in) // n_bins)                    # ceil
        bin_i = jnp.mean(p[:, s:e, :], axis=1)                # (N, 256)
        acc = acc + jnp.dot(bin_i, wf1_ref[i], preferred_element_type=F32)
    x1 = _relu(acc + bf1_ref[...])                            # (N, 512)
    x2 = _relu(jnp.dot(x1, wf2_ref[...], preferred_element_type=F32)
               + bf2_ref[...])                                # (N, 128)
    o_ref[...] = (jnp.dot(x2, wf3_ref[...], preferred_element_type=F32)
                  + bf3_ref[...])                             # (N, 128) padded


# ---------------------------------------------------------------------------
# Parameter init (PyTorch layout, PyTorch-default-like uniform bounds) + repack
# ---------------------------------------------------------------------------
def _uniform(key, shape, fan_in):
    bound = 1.0 / float(fan_in) ** 0.5
    return jax.random.uniform(key, shape, F32, -bound, bound)


def init_params(key, num_classes=2, inp_channels=3):
    ks = jax.random.split(key, 16)
    return {
        "conv1_w": _uniform(ks[0], (64, inp_channels, 12), inp_channels * 12),
        "conv1_b": _uniform(ks[1], (64,), inp_channels * 12),
        "conv2_w": _uniform(ks[2], (192, 64, 4), 64 * 4),
        "conv2_b": _uniform(ks[3], (192,), 64 * 4),
        "conv3_w": _uniform(ks[4], (384, 192, 3), 192 * 3),
        "conv3_b": _uniform(ks[5], (384,), 192 * 3),
        "conv4_w": _uniform(ks[6], (256, 384, 3), 384 * 3),
        "conv4_b": _uniform(ks[7], (256,), 384 * 3),
        "conv5_w": _uniform(ks[8], (256, 256, 3), 256 * 3),
        "conv5_b": _uniform(ks[9], (256,), 256 * 3),
        "fc1_w": _uniform(ks[10], (512, 256 * 6), 256 * 6),
        "fc1_b": _uniform(ks[11], (512,), 256 * 6),
        "fc2_w": _uniform(ks[12], (128, 512), 512),
        "fc2_b": _uniform(ks[13], (128,), 512),
        "fc3_w": _uniform(ks[14], (num_classes, 128), 128),
        "fc3_b": _uniform(ks[15], (num_classes,), 128),
    }


def pack_params(p, num_classes):
    """Repack PyTorch-layout weights into kernel-friendly lane-dense layouts."""
    assert num_classes <= 128
    c_in = p["conv1_w"].shape[1]
    kp = {}
    # conv1: rows ordered (k, c) to match the (position, channel) lane folding
    kp["w1"] = jnp.transpose(p["conv1_w"], (2, 1, 0)).reshape(12 * c_in, 64)
    kp["b1"] = p["conv1_b"].reshape(1, 64)
    # conv2: rows ordered (k, c)
    kp["w2"] = jnp.transpose(p["conv2_w"], (2, 1, 0)).reshape(4 * 64, 192)
    kp["b2"] = p["conv2_b"].reshape(1, 192)
    for i, name in ((3, "conv3"), (4, "conv4"), (5, "conv5")):
        kp[f"w{i}"] = jnp.transpose(p[f"{name}_w"], (2, 1, 0))   # (3, C_in, C_out)
        kp[f"b{i}"] = p[f"{name}_b"].reshape(1, -1)
    # fc1: torch flatten order is (channel, time) -> per-time-bin (6, 256, 512)
    kp["wf1"] = jnp.transpose(p["fc1_w"].reshape(512, 256, 6), (2, 1, 0))
    kp["bf1"] = p["fc1_b"].reshape(1, 512)
    kp["wf2"] = jnp.transpose(p["fc2_w"])                        # (512, 128)
    kp["bf2"] = p["fc2_b"].reshape(1, 128)
    # fc3 padded to 128 output lanes (lane-dense final store)
    wf3 = jnp.transpose(p["fc3_w"])                              # (128, num_classes)
    kp["wf3"] = jnp.pad(wf3, ((0, 0), (0, 128 - num_classes)))
    kp["bf3"] = jnp.pad(p["fc3_b"], (0, 128 - num_classes)).reshape(1, 128)
    return kp


# ---------------------------------------------------------------------------
# Forward pass == Conv_Classifier.forward (eval mode; Dropout == identity)
# ---------------------------------------------------------------------------
def conv_classifier_forward(kp, x, num_classes):
    n, c_in, length = x.shape
    l1 = (length - 12) // 4 + 1        # conv1 (k=12, s=4)
    m1 = (l1 - 2) // 4 + 1             # maxpool(2, 4)
    l3 = (m1 - 4) // 4 + 1             # conv2 (k=4, s=4)
    m2 = (l3 - 4) // 4 + 1             # maxpool(4, 4)
    m3 = (m2 - 4) // 4 + 1             # maxpool(4, 4) after conv3/4/5
    assert m3 >= 1, "input length too short for this architecture"

    # ---- stem: conv1 + ReLU + pool1 (NLC, 16 samples folded onto lanes) ----
    x_nlc = jnp.transpose(x, (0, 2, 1)).reshape(n, length * c_in)
    xa = x_nlc[:, :16 * m1 * c_in].reshape(n * m1, 16 * c_in)
    ya = pl.pallas_call(
        functools.partial(_stem_kernel, c_in=c_in),
        out_shape=jax.ShapeDtypeStruct((n * m1, 64), F32),
        in_specs=[_VMEM] * 3,
        out_specs=_VMEM,
        compiler_params=_CPARAMS,
    )(xa, kp["w1"], kp["b1"])

    # ---- trunk: conv2+ReLU+pool2 + conv3/4/5(+ReLU), fused in VMEM ---------
    h2 = ya.reshape(n, m1, 64)[:, :16 * m2, :].reshape(n, m2, 16 * 64)
    y5 = pl.pallas_call(
        functools.partial(_trunk_kernel, n_batch=n, l_mid=m2),
        out_shape=jax.ShapeDtypeStruct((n, m2, 256), F32),
        in_specs=[_VMEM] * 9,
        out_specs=_VMEM,
        scratch_shapes=[
            pltpu.VMEM((n * (m2 + 2), 192), F32),
            pltpu.VMEM((n * (m2 + 2), 384), F32),
            pltpu.VMEM((n * (m2 + 2), 256), F32),
        ],
        compiler_params=_CPARAMS,
    )(h2, kp["w2"], kp["b2"], kp["w3"], kp["b3"], kp["w4"], kp["b4"],
      kp["w5"], kp["b5"])

    # ---- head: pool3 + adaptive avgpool(6) + fc1/fc2/fc3 -------------------
    hf = y5[:, :4 * m3, :].reshape(n, m3, 4 * 256)
    logits_pad = pl.pallas_call(
        functools.partial(_head_kernel, pool_k=4, l_in=m3, n_bins=6),
        out_shape=jax.ShapeDtypeStruct((n, 128), F32),
        in_specs=[_VMEM] * 7,
        out_specs=_VMEM,
        compiler_params=_CPARAMS,
    )(hf, kp["wf1"], kp["bf1"], kp["wf2"], kp["bf2"], kp["wf3"], kp["bf3"])

    return logits_pad[:, :num_classes]


if __name__ == "__main__":
    key = jax.random.PRNGKey(0)
    k_param, k_x = jax.random.split(key)

    num_classes, inp_channels = 2, 3
    # L=6152 is the smallest-ish length that leaves 6 positions after the
    # aggressive conv/pool downsampling (so AdaptiveAvgPool1d(6) is well posed).
    batch, length = 2, 6152
    x = jax.random.normal(k_x, (batch, inp_channels, length), F32)

    params = init_params(k_param, num_classes=num_classes, inp_channels=inp_channels)
    kparams = pack_params(params, num_classes)

    fwd = jax.jit(functools.partial(conv_classifier_forward, num_classes=num_classes))
    out = fwd(kparams, x)
    out = jax.block_until_ready(out)

    assert out.shape == (batch, num_classes), out.shape
    assert bool(jnp.all(jnp.isfinite(out)))
    print("KERNEL_OK")
</pallas_src>

<mosaic_0001>
module attributes {stable_mosaic.version = 11 : i64} {
  func.func @_stem_kernel(%arg0: memref<768x48xf32, #tpu.memory_space<vmem>>, %arg1: memref<36x64xf32, #tpu.memory_space<vmem>>, %arg2: memref<1x64xf32, #tpu.memory_space<vmem>>, %arg3: memref<768x64xf32, #tpu.memory_space<vmem>>) attributes {dimension_semantics = [], scalar_prefetch = 0 : i64, scratch_operands = 0 : i64, tpu.core_type = #tpu.core_type<tc>} {
    %c0 = arith.constant 0 : index
    %c0_0 = arith.constant 0 : index
    %0 = vector.load %arg1[%c0, %c0_0] : memref<36x64xf32, #tpu.memory_space<vmem>>, vector<36x64xf32>
    %c0_1 = arith.constant 0 : index
    %c0_2 = arith.constant 0 : index
    %1 = vector.load %arg2[%c0_1, %c0_2] : memref<1x64xf32, #tpu.memory_space<vmem>>, vector<1x64xf32>
    %c0_3 = arith.constant 0 : index
    %c0_4 = arith.constant 0 : index
    %2 = vector.load %arg0[%c0_3, %c0_4] : memref<768x48xf32, #tpu.memory_space<vmem>>, vector<768x36xf32>
    %cst = arith.constant dense<0.000000e+00> : vector<768x64xf32>
    %3 = tpu.matmul %2, %0, %cst {dimension_numbers = #tpu.dot_dimension_numbers<[1], [0], [0], [1], [0, 0, 1, 1], [], []>} : vector<768x36xf32>, vector<36x64xf32>, vector<768x64xf32> -> vector<768x64xf32>
    %c0_5 = arith.constant 0 : index
    %c12 = arith.constant 12 : index
    %4 = vector.load %arg0[%c0_5, %c12] : memref<768x48xf32, #tpu.memory_space<vmem>>, vector<768x36xf32>
    %cst_6 = arith.constant dense<0.000000e+00> : vector<768x64xf32>
    %5 = tpu.matmul %4, %0, %cst_6 {dimension_numbers = #tpu.dot_dimension_numbers<[1], [0], [0], [1], [0, 0, 1, 1], [], []>} : vector<768x36xf32>, vector<36x64xf32>, vector<768x64xf32> -> vector<768x64xf32>
    %6 = arith.maximumf %3, %5 : vector<768x64xf32>
    %7 = vector.broadcast %1 : vector<1x64xf32> to vector<768x64xf32>
    %8 = arith.addf %6, %7 : vector<768x64xf32>
    %cst_7 = arith.constant 0.000000e+00 : f32
    %9 = vector.broadcast %cst_7 : f32 to vector<768x64xf32>
    %10 = arith.maximumf %8, %9 : vector<768x64xf32>
    %c0_8 = arith.constant 0 : index
    %c0_9 = arith.constant 0 : index
    %11 = vector.load %arg3[%c0_8, %c0_9] : memref<768x64xf32, #tpu.memory_space<vmem>>, vector<768x64xf32>
    tpu.vector_store %arg3[%c0_8, %c0_9], %10 {strides = array<i32>} : memref<768x64xf32, #tpu.memory_space<vmem>>, vector<768x64xf32>,
    return
  }
}

module attributes {stable_mosaic.version = 11 : i64} {
  func.func @_trunk_kernel(%arg0: memref<2x24x1024xf32, #tpu.memory_space<vmem>>, %arg1: memref<256x192xf32, #tpu.memory_space<vmem>>, %arg2: memref<1x192xf32, #tpu.memory_space<vmem>>, %arg3: memref<3x192x384xf32, #tpu.memory_space<vmem>>, %arg4: memref<1x384xf32, #tpu.memory_space<vmem>>, %arg5: memref<3x384x256xf32, #tpu.memory_space<vmem>>, %arg6: memref<1x256xf32, #tpu.memory_space<vmem>>, %arg7: memref<3x256x256xf32, #tpu.memory_space<vmem>>, %arg8: memref<1x256xf32, #tpu.memory_space<vmem>>, %arg9: memref<2x24x256xf32, #tpu.memory_space<vmem>>, %arg10: memref<52x192xf32, #tpu.memory_space<vmem>>, %arg11: memref<52x384xf32, #tpu.memory_space<vmem>>, %arg12: memref<52x256xf32, #tpu.memory_space<vmem>>) attributes {dimension_semantics = [], scalar_prefetch = 0 : i64, scratch_operands = 3 : i64, tpu.core_type = #tpu.core_type<tc>} {
    %c0 = arith.constant 0 : index
    %c0_0 = arith.constant 0 : index
    %0 = vector.load %arg1[%c0, %c0_0] : memref<256x192xf32, #tpu.memory_space<vmem>>, vector<256x192xf32>
    %c0_1 = arith.constant 0 : index
    %c0_2 = arith.constant 0 : index
    %1 = vector.load %arg2[%c0_1, %c0_2] : memref<1x192xf32, #tpu.memory_space<vmem>>, vector<1x192xf32>
    %c0_3 = arith.constant 0 : index
    %c0_4 = arith.constant 0 : index
    %2 = vector.load %arg4[%c0_3, %c0_4] : memref<1x384xf32, #tpu.memory_space<vmem>>, vector<1x384xf32>
    %c0_5 = arith.constant 0 : index
    %c0_6 = arith.constant 0 : index
    %3 = vector.load %arg6[%c0_5, %c0_6] : memref<1x256xf32, #tpu.memory_space<vmem>>, vector<1x256xf32>
    %c0_7 = arith.constant 0 : index
    %c0_8 = arith.constant 0 : index
    %4 = vector.load %arg8[%c0_7, %c0_8] : memref<1x256xf32, #tpu.memory_space<vmem>>, vector<1x256xf32>
    %c0_9 = arith.constant 0 : index
    %c0_10 = arith.constant 0 : index
    %c0_11 = arith.constant 0 : index
    %5 = vector.load %arg0[%c0_9, %c0_10, %c0_11] : memref<2x24x1024xf32, #tpu.memory_space<vmem>>, vector<1x24x1024xf32>
    %6 = vector.shape_cast %5 : vector<1x24x1024xf32> to vector<24x1024xf32>
    %7 = vector.extract_strided_slice %6 {offsets = [0, 0], sizes = [24, 256], strides = [1, 1]} : vector<24x1024xf32> to vector<24x256xf32>
    %cst = arith.constant dense<0.000000e+00> : vector<24x192xf32>
    %8 = tpu.matmul %7, %0, %cst {dimension_numbers = #tpu.dot_dimension_numbers<[1], [0], [0], [1], [0, 0, 1, 1], [], []>} : vector<24x256xf32>, vector<256x192xf32>, vector<24x192xf32> -> vector<24x192xf32>
    %9 = vector.extract_strided_slice %6 {offsets = [0, 256], sizes = [24, 256], strides = [1, 1]} : vector<24x1024xf32> to vector<24x256xf32>
    %cst_12 = arith.constant dense<0.000000e+00> : vector<24x192xf32>
    %10 = tpu.matmul %9, %0, %cst_12 {dimension_numbers = #tpu.dot_dimension_numbers<[1], [0], [0], [1], [0, 0, 1, 1], [], []>} : vector<24x256xf32>, vector<256x192xf32>, vector<24x192xf32> -> vector<24x192xf32>
    %11 = arith.maximumf %8, %10 : vector<24x192xf32>
    %12 = vector.extract_strided_slice %6 {offsets = [0, 512], sizes = [24, 256], strides = [1, 1]} : vector<24x1024xf32> to vector<24x256xf32>
    %cst_13 = arith.constant dense<0.000000e+00> : vector<24x192xf32>
    %13 = tpu.matmul %12, %0, %cst_13 {dimension_numbers = #tpu.dot_dimension_numbers<[1], [0], [0], [1], [0, 0, 1, 1], [], []>} : vector<24x256xf32>, vector<256x192xf32>, vector<24x192xf32> -> vector<24x192xf32>
    %14 = arith.maximumf %11, %13 : vector<24x192xf32>
    %15 = vector.extract_strided_slice %6 {offsets = [0, 768], sizes = [24, 256], strides = [1, 1]} : vector<24x1024xf32> to vector<24x256xf32>
    %cst_14 = arith.constant dense<0.000000e+00> : vector<24x192xf32>
    %16 = tpu.matmul %15, %0, %cst_14 {dimension_numbers = #tpu.dot_dimension_numbers<[1], [0], [0], [1], [0, 0, 1, 1], [], []>} : vector<24x256xf32>, vector<256x192xf32>, vector<24x192xf32> -> vector<24x192xf32>
    %17 = arith.maximumf %14, %16 : vector<24x192xf32>
    %18 = vector.broadcast %1 : vector<1x192xf32> to vector<24x192xf32>
    %19 = arith.addf %17, %18 : vector<24x192xf32>
    %cst_15 = arith.constant 0.000000e+00 : f32
    %20 = vector.broadcast %cst_15 : f32 to vector<24x192xf32>
    %21 = arith.maximumf %19, %20 : vector<24x192xf32>
    %cst_16 = arith.constant 0.000000e+00 : f32
    %22 = vector.broadcast %cst_16 : f32 to vector<1x192xf32>
    %c0_17 = arith.constant 0 : index
    %c0_18 = arith.constant 0 : index
    %23 = vector.load %arg10[%c0_17, %c0_18] : memref<52x192xf32, #tpu.memory_space<vmem>>, vector<1x192xf32>
    tpu.vector_store %arg10[%c0_17, %c0_18], %22 {strides = array<i32>} : memref<52x192xf32, #tpu.memory_space<vmem>>, vector<1x192xf32>,
    %cst_19 = arith.constant 0.000000e+00 : f32
    %24 = vector.broadcast %cst_19 : f32 to vector<1x192xf32>
    %c25 = arith.constant 25 : index
    %c0_20 = arith.constant 0 : index
    %25 = vector.load %arg10[%c25, %c0_20] : memref<52x192xf32, #tpu.memory_space<vmem>>, vector<1x192xf32>
    tpu.vector_store %arg10[%c25, %c0_20], %24 {strides = array<i32>} : memref<52x192xf32, #tpu.memory_space<vmem>>, vector<1x192xf32>,
    %c1 = arith.constant 1 : index
    %c0_21 = arith.constant 0 : index
    %26 = vector.load %arg10[%c1, %c0_21] : memref<52x192xf32, #tpu.memory_space<vmem>>, vector<24x192xf32>
    tpu.vector_store %arg10[%c1, %c0_21], %21 {strides = array<i32>} : memref<52x192xf32, #tpu.memory_space<vmem>>, vector<24x192xf32>,
    %c0_22 = arith.constant 0 : index
    %c0_23 = arith.constant 0 : index
    %27 = vector.load %arg10[%c0_22, %c0_23] : memref<52x192xf32, #tpu.memory_space<vmem>>, vector<24x192xf32>
    %c0_24 = arith.constant 0 : index
    %c0_25 = arith.constant 0 : index
    %c0_26 = arith.constant 0 : index
    %28 = vector.load %arg3[%c0_24, %c0_25, %c0_26] : memref<3x192x384xf32, #tpu.memory_space<vmem>>, vector<1x192x384xf32>
    %29 = vector.shape_cast %28 : vector<1x192x384xf32> to vector<192x384xf32>
    %cst_27 = arith.constant dense<0.000000e+00> : vector<24x384xf32>
    %30 = tpu.matmul %27, %29, %cst_27 {dimension_numbers = #tpu.dot_dimension_numbers<[1], [0], [0], [1], [0, 0, 1, 1], [], []>} : vector<24x192xf32>, vector<192x384xf32>, vector<24x384xf32> -> vector<24x384xf32>
    %c1_28 = arith.constant 1 : index
    %c0_29 = arith.constant 0 : index
    %31 = vector.load %arg10[%c1_28, %c0_29] : memref<52x192xf32, #tpu.memory_space<vmem>>, vector<24x192xf32>
    %c1_30 = arith.constant 1 : index
    %c0_31 = arith.constant 0 : index
    %c0_32 = arith.constant 0 : index
    %32 = vector.load %arg3[%c1_30, %c0_31, %c0_32] : memref<3x192x384xf32, #tpu.memory_space<vmem>>, vector<1x192x384xf32>
    %33 = vector.shape_cast %32 : vector<1x192x384xf32> to vector<192x384xf32>
    %cst_33 = arith.constant dense<0.000000e+00> : vector<24x384xf32>
    %34 = tpu.matmul %31, %33, %cst_33 {dimension_numbers = #tpu.dot_dimension_numbers<[1], [0], [0], [1], [0, 0, 1, 1], [], []>} : vector<24x192xf32>, vector<192x384xf32>, vector<24x384xf32> -> vector<24x384xf32>
    %35 = arith.addf %30, %34 : vector<24x384xf32>
    %c2 = arith.constant 2 : index
    %c0_34 = arith.constant 0 : index
    %36 = vector.load %arg10[%c2, %c0_34] : memref<52x192xf32, #tpu.memory_space<vmem>>, vector<24x192xf32>
    %c2_35 = arith.constant 2 : index
    %c0_36 = arith.constant 0 : index
    %c0_37 = arith.constant 0 : index
    %37 = vector.load %arg3[%c2_35, %c0_36, %c0_37] : memref<3x192x384xf32, #tpu.memory_space<vmem>>, vector<1x192x384xf32>
    %38 = vector.shape_cast %37 : vector<1x192x384xf32> to vector<192x384xf32>
    %cst_38 = arith.constant dense<0.000000e+00> : vector<24x384xf32>
    %39 = tpu.matmul %36, %38, %cst_38 {dimension_numbers = #tpu.dot_dimension_numbers<[1], [0], [0], [1], [0, 0, 1, 1], [], []>} : vector<24x192xf32>, vector<192x384xf32>, vector<24x384xf32> -> vector<24x384xf32>
    %40 = arith.addf %35, %39 : vector<24x384xf32>
    %41 = vector.broadcast %2 : vector<1x384xf32> to vector<24x384xf32>
    %42 = arith.addf %40, %41 : vector<24x384xf32>
    %cst_39 = arith.constant 0.000000e+00 : f32
    %43 = vector.broadcast %cst_39 : f32 to vector<24x384xf32>
    %44 = arith.maximumf %42, %43 : vector<24x384xf32>
    %cst_40 = arith.constant 0.000000e+00 : f32
    %45 = vector.broadcast %cst_40 : f32 to vector<1x384xf32>
    %c0_41 = arith.constant 0 : index
    %c0_42 = arith.constant 0 : index
    %46 = vector.load %arg11[%c0_41, %c0_42] : memref<52x384xf32, #tpu.memory_space<vmem>>, vector<1x384xf32>
    tpu.vector_store %arg11[%c0_41, %c0_42], %45 {strides = array<i32>} : memref<52x384xf32, #tpu.memory_space<vmem>>, vector<1x384xf32>,
    %cst_43 = arith.constant 0.000000e+00 : f32
    %47 = vector.broadcast %cst_43 : f32 to vector<1x384xf32>
    %c25_44 = arith.constant 25 : index
    %c0_45 = arith.constant 0 : index
    %48 = vector.load %arg11[%c25_44, %c0_45] : memref<52x384xf32, #tpu.memory_space<vmem>>, vector<1x384xf32>
    tpu.vector_store %arg11[%c25_44, %c0_45], %47 {strides = array<i32>} : memref<52x384xf32, #tpu.memory_space<vmem>>, vector<1x384xf32>,
    %c1_46 = arith.constant 1 : index
    %c0_47 = arith.constant 0 : index
    %49 = vector.load %arg11[%c1_46, %c0_47] : memref<52x384xf32, #tpu.memory_space<vmem>>, vector<24x384xf32>
    tpu.vector_store %arg11[%c1_46, %c0_47], %44 {strides = array<i32>} : memref<52x384xf32, #tpu.memory_space<vmem>>, vector<24x384xf32>,
    %c0_48 = arith.constant 0 : index
    %c0_49 = arith.constant 0 : index
    %50 = vector.load %arg11[%c0_48, %c0_49] : memref<52x384xf32, #tpu.memory_space<vmem>>, vector<24x384xf32>
    %c0_50 = arith.constant 0 : index
    %c0_51 = arith.constant 0 : index
    %c0_52 = arith.constant 0 : index
    %51 = vector.load %arg5[%c0_50, %c0_51, %c0_52] : memref<3x384x256xf32, #tpu.memory_space<vmem>>, vector<1x384x256xf32>
    %52 = vector.shape_cast %51 : vector<1x384x256xf32> to vector<384x256xf32>
    %cst_53 = arith.constant dense<0.000000e+00> : vector<24x256xf32>
    %53 = tpu.matmul %50, %52, %cst_53 {dimension_numbers = #tpu.dot_dimension_numbers<[1], [0], [0], [1], [0, 0, 1, 1], [], []>} : vector<24x384xf32>, vector<384x256xf32>, vector<24x256xf32> -> vector<24x256xf32>
    %c1_54 = arith.constant 1 : index
    %c0_55 = arith.constant 0 : index
    %54 = vector.load %arg11[%c1_54, %c0_55] : memref<52x384xf32, #tpu.memory_space<vmem>>, vector<24x384xf32>
    %c1_56 = arith.constant 1 : index
    %c0_57 = arith.constant 0 : index
    %c0_58 = arith.constant 0 : index
    %55 = vector.load %arg5[%c1_56, %c0_57, %c0_58] : memref<3x384x256xf32, #tpu.memory_space<vmem>>, vector<1x384x256xf32>
    %56 = vector.shape_cast %55 : vector<1x384x256xf32> to vector<384x256xf32>
    %cst_59 = arith.constant dense<0.000000e+00> : vector<24x256xf32>
    %57 = tpu.matmul %54, %56, %cst_59 {dimension_numbers = #tpu.dot_dimension_numbers<[1], [0], [0], [1], [0, 0, 1, 1], [], []>} : vector<24x384xf32>, vector<384x256xf32>, vector<24x256xf32> -> vector<24x256xf32>
    %58 = arith.addf %53, %57 : vector<24x256xf32>
    %c2_60 = arith.constant 2 : index
    %c0_61 = arith.constant 0 : index
    %59 = vector.load %arg11[%c2_60, %c0_61] : memref<52x384xf32, #tpu.memory_space<vmem>>, vector<24x384xf32>
    %c2_62 = arith.constant 2 : index
    %c0_63 = arith.constant 0 : index
    %c0_64 = arith.constant 0 : index
    %60 = vector.load %arg5[%c2_62, %c0_63, %c0_64] : memref<3x384x256xf32, #tpu.memory_space<vmem>>, vector<1x384x256xf32>
    %61 = vector.shape_cast %60 : vector<1x384x256xf32> to vector<384x256xf32>
    %cst_65 = arith.constant dense<0.000000e+00> : vector<24x256xf32>
    %62 = tpu.matmul %59, %61, %cst_65 {dimension_numbers = #tpu.dot_dimension_numbers<[1], [0], [0], [1], [0, 0, 1, 1], [], []>} : vector<24x384xf32>, vector<384x256xf32>, vector<24x256xf32> -> vector<24x256xf32>
    %63 = arith.addf %58, %62 : vector<24x256xf32>
    %64 = vector.broadcast %3 : vector<1x256xf32> to vector<24x256xf32>
    %65 = arith.addf %63, %64 : vector<24x256xf32>
    %cst_66 = arith.constant 0.000000e+00 : f32
    %66 = vector.broadcast %cst_66 : f32 to vector<24x256xf32>
    %67 = arith.maximumf %65, %66 : vector<24x256xf32>
    %cst_67 = arith.constant 0.000000e+00 : f32
    %68 = vector.broadcast %cst_67 : f32 to vector<1x256xf32>
    %c0_68 = arith.constant 0 : index
    %c0_69 = arith.constant 0 : index
    %69 = vector.load %arg12[%c0_68, %c0_69] : memref<52x256xf32, #tpu.memory_space<vmem>>, vector<1x256xf32>
    tpu.vector_store %arg12[%c0_68, %c0_69], %68 {strides = array<i32>} : memref<52x256xf32, #tpu.memory_space<vmem>>, vector<1x256xf32>,
    %cst_70 = arith.constant 0.000000e+00 : f32
    %70 = vector.broadcast %cst_70 : f32 to vector<1x256xf32>
    %c25_71 = arith.constant 25 : index
    %c0_72 = arith.constant 0 : index
    %71 = vector.load %arg12[%c25_71, %c0_72] : memref<52x256xf32, #tpu.memory_space<vmem>>, vector<1x256xf32>
    tpu.vector_store %arg12[%c25_71, %c0_72], %70 {strides = array<i32>} : memref<52x256xf32, #tpu.memory_space<vmem>>, vector<1x256xf32>,
    %c1_73 = arith.constant 1 : index
    %c0_74 = arith.constant 0 : index
    %72 = vector.load %arg12[%c1_73, %c0_74] : memref<52x256xf32, #tpu.memory_space<vmem>>, vector<24x256xf32>
    tpu.vector_store %arg12[%c1_73, %c0_74], %67 {strides = array<i32>} : memref<52x256xf32, #tpu.memory_space<vmem>>, vector<24x256xf32>,
    %c0_75 = arith.constant 0 : index
    %c0_76 = arith.constant 0 : index
    %73 = vector.load %arg12[%c0_75, %c0_76] : memref<52x256xf32, #tpu.memory_space<vmem>>, vector<24x256xf32>
    %c0_77 = arith.constant 0 : index
    %c0_78 = arith.constant 0 : index
    %c0_79 = arith.constant 0 : index
    %74 = vector.load %arg7[%c0_77, %c0_78, %c0_79] : memref<3x256x256xf32, #tpu.memory_space<vmem>>, vector<1x256x256xf32>
    %75 = vector.shape_cast %74 : vector<1x256x256xf32> to vector<256x256xf32>
    %cst_80 = arith.constant dense<0.000000e+00> : vector<24x256xf32>
    %76 = tpu.matmul %73, %75, %cst_80 {dimension_numbers = #tpu.dot_dimension_numbers<[1], [0], [0], [1], [0, 0, 1, 1], [], []>} : vector<24x256xf32>, vector<256x256xf32>, vector<24x256xf32> -> vector<24x256xf32>
    %c1_81 = arith.constant 1 : index
    %c0_82 = arith.constant 0 : index
    %77 = vector.load %arg12[%c1_81, %c0_82] : memref<52x256xf32, #tpu.memory_space<vmem>>, vector<24x256xf32>
    %c1_83 = arith.constant 1 : index
    %c0_84 = arith.constant 0 : index
    %c0_85 = arith.constant 0 : index
    %78 = vector.load %arg7[%c1_83, %c0_84, %c0_85] : memref<3x256x256xf32, #tpu.memory_space<vmem>>, vector<1x256x256xf32>
    %79 = vector.shape_cast %78 : vector<1x256x256xf32> to vector<256x256xf32>
    %cst_86 = arith.constant dense<0.000000e+00> : vector<24x256xf32>
    %80 = tpu.matmul %77, %79, %cst_86 {dimension_numbers = #tpu.dot_dimension_numbers<[1], [0], [0], [1], [0, 0, 1, 1], [], []>} : vector<24x256xf32>, vector<256x256xf32>, vector<24x256xf32> -> vector<24x256xf32>
    %81 = arith.addf %76, %80 : vector<24x256xf32>
    %c2_87 = arith.constant 2 : index
    %c0_88 = arith.constant 0 : index
    %82 = vector.load %arg12[%c2_87, %c0_88] : memref<52x256xf32, #tpu.memory_space<vmem>>, vector<24x256xf32>
    %c2_89 = arith.constant 2 : index
    %c0_90 = arith.constant 0 : index
    %c0_91 = arith.constant 0 : index
    %83 = vector.load %arg7[%c2_89, %c0_90, %c0_91] : memref<3x256x256xf32, #tpu.memory_space<vmem>>, vector<1x256x256xf32>
    %84 = vector.shape_cast %83 : vector<1x256x256xf32> to vector<256x256xf32>
    %cst_92 = arith.constant dense<0.000000e+00> : vector<24x256xf32>
    %85 = tpu.matmul %82, %84, %cst_92 {dimension_numbers = #tpu.dot_dimension_numbers<[1], [0], [0], [1], [0, 0, 1, 1], [], []>} : vector<24x256xf32>, vector<256x256xf32>, vector<24x256xf32> -> vector<24x256xf32>
    %86 = arith.addf %81, %85 : vector<24x256xf32>
    %87 = vector.broadcast %4 : vector<1x256xf32> to vector<24x256xf32>
    %88 = arith.addf %86, %87 : vector<24x256xf32>
    %cst_93 = arith.constant 0.000000e+00 : f32
    %89 = vector.broadcast %cst_93 : f32 to vector<24x256xf32>
    %90 = arith.maximumf %88, %89 : vector<24x256xf32>
    %c0_94 = arith.constant 0 : index
    %c0_95 = arith.constant 0 : index
    %c0_96 = arith.constant 0 : index
    %91 = vector.load %arg9[%c0_94, %c0_95, %c0_96] : memref<2x24x256xf32, #tpu.memory_space<vmem>>, vector<1x24x256xf32>
    %92 = vector.shape_cast %91 : vector<1x24x256xf32> to vector<24x256xf32>
    %93 = vector.shape_cast %90 : vector<24x256xf32> to vector<1x24x256xf32>
    tpu.vector_store %arg9[%c0_94, %c0_95, %c0_96], %93 {strides = array<i32>} : memref<2x24x256xf32, #tpu.memory_space<vmem>>, vector<1x24x256xf32>,
    %c1_97 = arith.constant 1 : index
    %c0_98 = arith.constant 0 : index
    %c0_99 = arith.constant 0 : index
    %94 = vector.load %arg0[%c1_97, %c0_98, %c0_99] : memref<2x24x1024xf32, #tpu.memory_space<vmem>>, vector<1x24x1024xf32>
    %95 = vector.shape_cast %94 : vector<1x24x1024xf32> to vector<24x1024xf32>
    %96 = vector.extract_strided_slice %95 {offsets = [0, 0], sizes = [24, 256], strides = [1, 1]} : vector<24x1024xf32> to vector<24x256xf32>
    %cst_100 = arith.constant dense<0.000000e+00> : vector<24x192xf32>
    %97 = tpu.matmul %96, %0, %cst_100 {dimension_numbers = #tpu.dot_dimension_numbers<[1], [0], [0], [1], [0, 0, 1, 1], [], []>} : vector<24x256xf32>, vector<256x192xf32>, vector<24x192xf32> -> vector<24x192xf32>
    %98 = vector.extract_strided_slice %95 {offsets = [0, 256], sizes = [24, 256], strides = [1, 1]} : vector<24x1024xf32> to vector<24x256xf32>
    %cst_101 = arith.constant dense<0.000000e+00> : vector<24x192xf32>
    %99 = tpu.matmul %98, %0, %cst_101 {dimension_numbers = #tpu.dot_dimension_numbers<[1], [0], [0], [1], [0, 0, 1, 1], [], []>} : vector<24x256xf32>, vector<256x192xf32>, vector<24x192xf32> -> vector<24x192xf32>
    %100 = arith.maximumf %97, %99 : vector<24x192xf32>
    %101 = vector.extract_strided_slice %95 {offsets = [0, 512], sizes = [24, 256], strides = [1, 1]} : vector<24x1024xf32> to vector<24x256xf32>
    %cst_102 = arith.constant dense<0.000000e+00> : vector<24x192xf32>
    %102 = tpu.matmul %101, %0, %cst_102 {dimension_numbers = #tpu.dot_dimension_numbers<[1], [0], [0], [1], [0, 0, 1, 1], [], []>} : vector<24x256xf32>, vector<256x192xf32>, vector<24x192xf32> -> vector<24x192xf32>
    %103 = arith.maximumf %100, %102 : vector<24x192xf32>
    %104 = vector.extract_strided_slice %95 {offsets = [0, 768], sizes = [24, 256], strides = [1, 1]} : vector<24x1024xf32> to vector<24x256xf32>
    %cst_103 = arith.constant dense<0.000000e+00> : vector<24x192xf32>
    %105 = tpu.matmul %104, %0, %cst_103 {dimension_numbers = #tpu.dot_dimension_numbers<[1], [0], [0], [1], [0, 0, 1, 1], [], []>} : vector<24x256xf32>, vector<256x192xf32>, vector<24x192xf32> -> vector<24x192xf32>
    %106 = arith.maximumf %103, %105 : vector<24x192xf32>
    %107 = vector.broadcast %1 : vector<1x192xf32> to vector<24x192xf32>
    %108 = arith.addf %106, %107 : vector<24x192xf32>
    %cst_104 = arith.constant 0.000000e+00 : f32
    %109 = vector.broadcast %cst_104 : f32 to vector<24x192xf32>
    %110 = arith.maximumf %108, %109 : vector<24x192xf32>
    %cst_105 = arith.constant 0.000000e+00 : f32
    %111 = vector.broadcast %cst_105 : f32 to vector<1x192xf32>
    %c26 = arith.constant 26 : index
    %c0_106 = arith.constant 0 : index
    %112 = vector.load %arg10[%c26, %c0_106] : memref<52x192xf32, #tpu.memory_space<vmem>>, vector<1x192xf32>
    tpu.vector_store %arg10[%c26, %c0_106], %111 {strides = array<i32>} : memref<52x192xf32, #tpu.memory_space<vmem>>, vector<1x192xf32>,
    %cst_107 = arith.constant 0.000000e+00 : f32
    %113 = vector.broadcast %cst_107 : f32 to vector<1x192xf32>
    %c51 = arith.constant 51 : index
    %c0_108 = arith.constant 0 : index
    %114 = vector.load %arg10[%c51, %c0_108] : memref<52x192xf32, #tpu.memory_space<vmem>>, vector<1x192xf32>
    tpu.vector_store %arg10[%c51, %c0_108], %113 {strides = array<i32>} : memref<52x192xf32, #tpu.memory_space<vmem>>, vector<1x192xf32>,
    %c27 = arith.constant 27 : index
    %c0_109 = arith.constant 0 : index
    %115 = vector.load %arg10[%c27, %c0_109] : memref<52x192xf32, #tpu.memory_space<vmem>>, vector<24x192xf32>
    tpu.vector_store %arg10[%c27, %c0_109], %110 {strides = array<i32>} : memref<52x192xf32, #tpu.memory_space<vmem>>, vector<24x192xf32>,
    %c26_110 = arith.constant 26 : index
    %c0_111 = arith.constant 0 : index
    %116 = vector.load %arg10[%c26_110, %c0_111] : memref<52x192xf32, #tpu.memory_space<vmem>>, vector<24x192xf32>
    %c0_112 = arith.constant 0 : index
    %c0_113 = arith.constant 0 : index
    %c0_114 = arith.constant 0 : index
    %117 = vector.load %arg3[%c0_112, %c0_113, %c0_114] : memref<3x192x384xf32, #tpu.memory_space<vmem>>, vector<1x192x384xf32>
    %118 = vector.shape_cast %117 : vector<1x192x384xf32> to vector<192x384xf32>
    %cst_115 = arith.constant dense<0.000000e+00> : vector<24x384xf32>
    %119 = tpu.matmul %116, %118, %cst_115 {dimension_numbers = #tpu.dot_dimension_numbers<[1], [0], [0], [1], [0, 0, 1, 1], [], []>} : vector<24x192xf32>, vector<192x384xf32>, vector<24x384xf32> -> vector<24x384xf32>
    %c27_116 = arith.constant 27 : index
    %c0_117 = arith.constant 0 : index
    %120 = vector.load %arg10[%c27_116, %c0_117] : memref<52x192xf32, #tpu.memory_space<vmem>>, vector<24x192xf32>
    %c1_118 = arith.constant 1 : index
    %c0_119 = arith.constant 0 : index
    %c0_120 = arith.constant 0 : index
    %121 = vector.load %arg3[%c1_118, %c0_119, %c0_120] : memref<3x192x384xf32, #tpu.memory_space<vmem>>, vector<1x192x384xf32>
    %122 = vector.shape_cast %121 : vector<1x192x384xf32> to vector<192x384xf32>
    %cst_121 = arith.constant dense<0.000000e+00> : vector<24x384xf32>
    %123 = tpu.matmul %120, %122, %cst_121 {dimension_numbers = #tpu.dot_dimension_numbers<[1], [0], [0], [1], [0, 0, 1, 1], [], []>} : vector<24x192xf32>, vector<192x384xf32>, vector<24x384xf32> -> vector<24x384xf32>
    %124 = arith.addf %119, %123 : vector<24x384xf32>
    %c28 = arith.constant 28 : index
    %c0_122 = arith.constant 0 : index
    %125 = vector.load %arg10[%c28, %c0_122] : memref<52x192xf32, #tpu.memory_space<vmem>>, vector<24x192xf32>
    %c2_123 = arith.constant 2 : index
    %c0_124 = arith.constant 0 : index
    %c0_125 = arith.constant 0 : index
    %126 = vector.load %arg3[%c2_123, %c0_124, %c0_125] : memref<3x192x384xf32, #tpu.memory_space<vmem>>, vector<1x192x384xf32>
    %127 = vector.shape_cast %126 : vector<1x192x384xf32> to vector<192x384xf32>
    %cst_126 = arith.constant dense<0.000000e+00> : vector<24x384xf32>
    %128 = tpu.matmul %125, %127, %cst_126 {dimension_numbers = #tpu.dot_dimension_numbers<[1], [0], [0], [1], [0, 0, 1, 1], [], []>} : vector<24x192xf32>, vector<192x384xf32>, vector<24x384xf32> -> vector<24x384xf32>
    %129 = arith.addf %124, %128 : vector<24x384xf32>
    %130 = vector.broadcast %2 : vector<1x384xf32> to vector<24x384xf32>
    %131 = arith.addf %129, %130 : vector<24x384xf32>
    %cst_127 = arith.constant 0.000000e+00 : f32
    %132 = vector.broadcast %cst_127 : f32 to vector<24x384xf32>
    %133 = arith.maximumf %131, %132 : vector<24x384xf32>
    %cst_128 = arith.constant 0.000000e+00 : f32
    %134 = vector.broadcast %cst_128 : f32 to vector<1x384xf32>
    %c26_129 = arith.constant 26 : index
    %c0_130 = arith.constant 0 : index
    %135 = vector.load %arg11[%c26_129, %c0_130] : memref<52x384xf32, #tpu.memory_space<vmem>>, vector<1x384xf32>
    tpu.vector_store %arg11[%c26_129, %c0_130], %134 {strides = array<i32>} : memref<52x384xf32, #tpu.memory_space<vmem>>, vector<1x384xf32>,
    %cst_131 = arith.constant 0.000000e+00 : f32
    %136 = vector.broadcast %cst_131 : f32 to vector<1x384xf32>
    %c51_132 = arith.constant 51 : index
    %c0_133 = arith.constant 0 : index
    %137 = vector.load %arg11[%c51_132, %c0_133] : memref<52x384xf32, #tpu.memory_space<vmem>>, vector<1x384xf32>
    tpu.vector_store %arg11[%c51_132, %c0_133], %136 {strides = array<i32>} : memref<52x384xf32, #tpu.memory_space<vmem>>, vector<1x384xf32>,
    %c27_134 = arith.constant 27 : index
    %c0_135 = arith.constant 0 : index
    %138 = vector.load %arg11[%c27_134, %c0_135] : memref<52x384xf32, #tpu.memory_space<vmem>>, vector<24x384xf32>
    tpu.vector_store %arg11[%c27_134, %c0_135], %133 {strides = array<i32>} : memref<52x384xf32, #tpu.memory_space<vmem>>, vector<24x384xf32>,
    %c26_136 = arith.constant 26 : index
    %c0_137 = arith.constant 0 : index
    %139 = vector.load %arg11[%c26_136, %c0_137] : memref<52x384xf32, #tpu.memory_space<vmem>>, vector<24x384xf32>
    %c0_138 = arith.constant 0 : index
    %c0_139 = arith.constant 0 : index
    %c0_140 = arith.constant 0 : index
    %140 = vector.load %arg5[%c0_138, %c0_139, %c0_140] : memref<3x384x256xf32, #tpu.memory_space<vmem>>, vector<1x384x256xf32>
    %141 = vector.shape_cast %140 : vector<1x384x256xf32> to vector<384x256xf32>
    %cst_141 = arith.constant dense<0.000000e+00> : vector<24x256xf32>
    %142 = tpu.matmul %139, %141, %cst_141 {dimension_numbers = #tpu.dot_dimension_numbers<[1], [0], [0], [1], [0, 0, 1, 1], [], []>} : vector<24x384xf32>, vector<384x256xf32>, vector<24x256xf32> -> vector<24x256xf32>
    %c27_142 = arith.constant 27 : index
    %c0_143 = arith.constant 0 : index
    %143 = vector.load %arg11[%c27_142, %c0_143] : memref<52x384xf32, #tpu.memory_space<vmem>>, vector<24x384xf32>
    %c1_144 = arith.constant 1 : index
    %c0_145 = arith.constant 0 : index
    %c0_146 = arith.constant 0 : index
    %144 = vector.load %arg5[%c1_144, %c0_145, %c0_146] : memref<3x384x256xf32, #tpu.memory_space<vmem>>, vector<1x384x256xf32>
    %145 = vector.shape_cast %144 : vector<1x384x256xf32> to vector<384x256xf32>
    %cst_147 = arith.constant dense<0.000000e+00> : vector<24x256xf32>
    %146 = tpu.matmul %143, %145, %cst_147 {dimension_numbers = #tpu.dot_dimension_numbers<[1], [0], [0], [1], [0, 0, 1, 1], [], []>} : vector<24x384xf32>, vector<384x256xf32>, vector<24x256xf32> -> vector<24x256xf32>
    %147 = arith.addf %142, %146 : vector<24x256xf32>
    %c28_148 = arith.constant 28 : index
    %c0_149 = arith.constant 0 : index
    %148 = vector.load %arg11[%c28_148, %c0_149] : memref<52x384xf32, #tpu.memory_space<vmem>>, vector<24x384xf32>
    %c2_150 = arith.constant 2 : index
    %c0_151 = arith.constant 0 : index
    %c0_152 = arith.constant 0 : index
    %149 = vector.load %arg5[%c2_150, %c0_151, %c0_152] : memref<3x384x256xf32, #tpu.memory_space<vmem>>, vector<1x384x256xf32>
    %150 = vector.shape_cast %149 : vector<1x384x256xf32> to vector<384x256xf32>
    %cst_153 = arith.constant dense<0.000000e+00> : vector<24x256xf32>
    %151 = tpu.matmul %148, %150, %cst_153 {dimension_numbers = #tpu.dot_dimension_numbers<[1], [0], [0], [1], [0, 0, 1, 1], [], []>} : vector<24x384xf32>, vector<384x256xf32>, vector<24x256xf32> -> vector<24x256xf32>
    %152 = arith.addf %147, %151 : vector<24x256xf32>
    %153 = vector.broadcast %3 : vector<1x256xf32> to vector<24x256xf32>
    %154 = arith.addf %152, %153 : vector<24x256xf32>
    %cst_154 = arith.constant 0.000000e+00 : f32
    %155 = vector.broadcast %cst_154 : f32 to vector<24x256xf32>
    %156 = arith.maximumf %154, %155 : vector<24x256xf32>
    %cst_155 = arith.constant 0.000000e+00 : f32
    %157 = vector.broadcast %cst_155 : f32 to vector<1x256xf32>
    %c26_156 = arith.constant 26 : index
    %c0_157 = arith.constant 0 : index
    %158 = vector.load %arg12[%c26_156, %c0_157] : memref<52x256xf32, #tpu.memory_space<vmem>>, vector<1x256xf32>
    tpu.vector_store %arg12[%c26_156, %c0_157], %157 {strides = array<i32>} : memref<52x256xf32, #tpu.memory_space<vmem>>, vector<1x256xf32>,
    %cst_158 = arith.constant 0.000000e+00 : f32
    %159 = vector.broadcast %cst_158 : f32 to vector<1x256xf32>
    %c51_159 = arith.constant 51 : index
    %c0_160 = arith.constant 0 : index
    %160 = vector.load %arg12[%c51_159, %c0_160] : memref<52x256xf32, #tpu.memory_space<vmem>>, vector<1x256xf32>
    tpu.vector_store %arg12[%c51_159, %c0_160], %159 {strides = array<i32>} : memref<52x256xf32, #tpu.memory_space<vmem>>, vector<1x256xf32>,
    %c27_161 = arith.constant 27 : index
    %c0_162 = arith.constant 0 : index
    %161 = vector.load %arg12[%c27_161, %c0_162] : memref<52x256xf32, #tpu.memory_space<vmem>>, vector<24x256xf32>
    tpu.vector_store %arg12[%c27_161, %c0_162], %156 {strides = array<i32>} : memref<52x256xf32, #tpu.memory_space<vmem>>, vector<24x256xf32>,
    %c26_163 = arith.constant 26 : index
    %c0_164 = arith.constant 0 : index
    %162 = vector.load %arg12[%c26_163, %c0_164] : memref<52x256xf32, #tpu.memory_space<vmem>>, vector<24x256xf32>
    %c0_165 = arith.constant 0 : index
    %c0_166 = arith.constant 0 : index
    %c0_167 = arith.constant 0 : index
    %163 = vector.load %arg7[%c0_165, %c0_166, %c0_167] : memref<3x256x256xf32, #tpu.memory_space<vmem>>, vector<1x256x256xf32>
    %164 = vector.shape_cast %163 : vector<1x256x256xf32> to vector<256x256xf32>
    %cst_168 = arith.constant dense<0.000000e+00> : vector<24x256xf32>
    %165 = tpu.matmul %162, %164, %cst_168 {dimension_numbers = #tpu.dot_dimension_numbers<[1], [0], [0], [1], [0, 0, 1, 1], [], []>} : vector<24x256xf32>, vector<256x256xf32>, vector<24x256xf32> -> vector<24x256xf32>
    %c27_169 = arith.constant 27 : index
    %c0_170 = arith.constant 0 : index
    %166 = vector.load %arg12[%c27_169, %c0_170] : memref<52x256xf32, #tpu.memory_space<vmem>>, vector<24x256xf32>
    %c1_171 = arith.constant 1 : index
    %c0_172 = arith.constant 0 : index
    %c0_173 = arith.constant 0 : index
    %167 = vector.load %arg7[%c1_171, %c0_172, %c0_173] : memref<3x256x256xf32, #tpu.memory_space<vmem>>, vector<1x256x256xf32>
    %168 = vector.shape_cast %167 : vector<1x256x256xf32> to vector<256x256xf32>
    %cst_174 = arith.constant dense<0.000000e+00> : vector<24x256xf32>
    %169 = tpu.matmul %166, %168, %cst_174 {dimension_numbers = #tpu.dot_dimension_numbers<[1], [0], [0], [1], [0, 0, 1, 1], [], []>} : vector<24x256xf32>, vector<256x256xf32>, vector<24x256xf32> -> vector<24x256xf32>
    %170 = arith.addf %165, %169 : vector<24x256xf32>
    %c28_175 = arith.constant 28 : index
    %c0_176 = arith.constant 0 : index
    %171 = vector.load %arg12[%c28_175, %c0_176] : memref<52x256xf32, #tpu.memory_space<vmem>>, vector<24x256xf32>
    %c2_177 = arith.constant 2 : index
    %c0_178 = arith.constant 0 : index
    %c0_179 = arith.constant 0 : index
    %172 = vector.load %arg7[%c2_177, %c0_178, %c0_179] : memref<3x256x256xf32, #tpu.memory_space<vmem>>, vector<1x256x256xf32>
    %173 = vector.shape_cast %172 : vector<1x256x256xf32> to vector<256x256xf32>
    %cst_180 = arith.constant dense<0.000000e+00> : vector<24x256xf32>
    %174 = tpu.matmul %171, %173, %cst_180 {dimension_numbers = #tpu.dot_dimension_numbers<[1], [0], [0], [1], [0, 0, 1, 1], [], []>} : vector<24x256xf32>, vector<256x256xf32>, vector<24x256xf32> -> vector<24x256xf32>
    %175 = arith.addf %170, %174 : vector<24x256xf32>
    %176 = vector.broadcast %4 : vector<1x256xf32> to vector<24x256xf32>
    %177 = arith.addf %175, %176 : vector<24x256xf32>
    %cst_181 = arith.constant 0.000000e+00 : f32
    %178 = vector.broadcast %cst_181 : f32 to vector<24x256xf32>
    %179 = arith.maximumf %177, %178 : vector<24x256xf32>
    %c1_182 = arith.constant 1 : index
    %c0_183 = arith.constant 0 : index
    %c0_184 = arith.constant 0 : index
    %180 = vector.load %arg9[%c1_182, %c0_183, %c0_184] : memref<2x24x256xf32, #tpu.memory_space<vmem>>, vector<1x24x256xf32>
    %181 = vector.shape_cast %180 : vector<1x24x256xf32> to vector<24x256xf32>
    %182 = vector.shape_cast %179 : vector<24x256xf32> to vector<1x24x256xf32>
    tpu.vector_store %arg9[%c1_182, %c0_183, %c0_184], %182 {strides = array<i32>} : memref<2x24x256xf32, #tpu.memory_space<vmem>>, vector<1x24x256xf32>,
    return
  }
}

module attributes {stable_mosaic.version = 11 : i64} {
  func.func @_head_kernel(%arg0: memref<2x6x1024xf32, #tpu.memory_space<vmem>>, %arg1: memref<6x256x512xf32, #tpu.memory_space<vmem>>, %arg2: memref<1x512xf32, #tpu.memory_space<vmem>>, %arg3: memref<512x128xf32, #tpu.memory_space<vmem>>, %arg4: memref<1x128xf32, #tpu.memory_space<vmem>>, %arg5: memref<128x128xf32, #tpu.memory_space<vmem>>, %arg6: memref<1x128xf32, #tpu.memory_space<vmem>>, %arg7: memref<2x128xf32, #tpu.memory_space<vmem>>) attributes {dimension_semantics = [], scalar_prefetch = 0 : i64, scratch_operands = 0 : i64, tpu.core_type = #tpu.core_type<tc>} {
    %c0 = arith.constant 0 : index
    %c0_0 = arith.constant 0 : index
    %c0_1 = arith.constant 0 : index
    %0 = vector.load %arg0[%c0, %c0_0, %c0_1] : memref<2x6x1024xf32, #tpu.memory_space<vmem>>, vector<2x6x1024xf32>
    %1 = vector.extract_strided_slice %0 {offsets = [0, 0, 0], sizes = [2, 6, 256], strides = [1, 1, 1]} : vector<2x6x1024xf32> to vector<2x6x256xf32>
    %2 = vector.extract_strided_slice %0 {offsets = [0, 0, 256], sizes = [2, 6, 256], strides = [1, 1, 1]} : vector<2x6x1024xf32> to vector<2x6x256xf32>
    %3 = arith.maximumf %1, %2 : vector<2x6x256xf32>
    %4 = vector.extract_strided_slice %0 {offsets = [0, 0, 512], sizes = [2, 6, 256], strides = [1, 1, 1]} : vector<2x6x1024xf32> to vector<2x6x256xf32>
    %5 = arith.maximumf %3, %4 : vector<2x6x256xf32>
    %6 = vector.extract_strided_slice %0 {offsets = [0, 0, 768], sizes = [2, 6, 256], strides = [1, 1, 1]} : vector<2x6x1024xf32> to vector<2x6x256xf32>
    %7 = arith.maximumf %5, %6 : vector<2x6x256xf32>
    %cst = arith.constant 0.000000e+00 : f32
    %8 = vector.broadcast %cst : f32 to vector<2x512xf32>
    %9 = vector.extract_strided_slice %7 {offsets = [0, 0, 0], sizes = [2, 1, 256], strides = [1, 1, 1]} : vector<2x6x256xf32> to vector<2x1x256xf32>
    %cst_2 = arith.constant dense<0.000000e+00> : vector<2x256xf32>
    %10 = vector.multi_reduction <add>, %9, %cst_2 [1] : vector<2x1x256xf32> to vector<2x256xf32>
    %cst_3 = arith.constant 1.000000e+00 : f32
    %11 = vector.broadcast %cst_3 : f32 to vector<2x256xf32>
    %12 = arith.divf %10, %11 : vector<2x256xf32>
    %c0_4 = arith.constant 0 : index
    %c0_5 = arith.constant 0 : index
    %c0_6 = arith.constant 0 : index
    %13 = vector.load %arg1[%c0_4, %c0_5, %c0_6] : memref<6x256x512xf32, #tpu.memory_space<vmem>>, vector<1x256x512xf32>
    %14 = vector.shape_cast %13 : vector<1x256x512xf32> to vector<256x512xf32>
    %cst_7 = arith.constant dense<0.000000e+00> : vector<2x512xf32>
    %15 = tpu.matmul %12, %14, %cst_7 {dimension_numbers = #tpu.dot_dimension_numbers<[1], [0], [0], [1], [0, 0, 1, 1], [], []>} : vector<2x256xf32>, vector<256x512xf32>, vector<2x512xf32> -> vector<2x512xf32>
    %16 = arith.addf %8, %15 : vector<2x512xf32>
    %17 = vector.extract_strided_slice %7 {offsets = [0, 1, 0], sizes = [2, 1, 256], strides = [1, 1, 1]} : vector<2x6x256xf32> to vector<2x1x256xf32>
    %cst_8 = arith.constant dense<0.000000e+00> : vector<2x256xf32>
    %18 = vector.multi_reduction <add>, %17, %cst_8 [1] : vector<2x1x256xf32> to vector<2x256xf32>
    %cst_9 = arith.constant 1.000000e+00 : f32
    %19 = vector.broadcast %cst_9 : f32 to vector<2x256xf32>
    %20 = arith.divf %18, %19 : vector<2x256xf32>
    %c1 = arith.constant 1 : index
    %c0_10 = arith.constant 0 : index
    %c0_11 = arith.constant 0 : index
    %21 = vector.load %arg1[%c1, %c0_10, %c0_11] : memref<6x256x512xf32, #tpu.memory_space<vmem>>, vector<1x256x512xf32>
    %22 = vector.shape_cast %21 : vector<1x256x512xf32> to vector<256x512xf32>
    %cst_12 = arith.constant dense<0.000000e+00> : vector<2x512xf32>
    %23 = tpu.matmul %20, %22, %cst_12 {dimension_numbers = #tpu.dot_dimension_numbers<[1], [0], [0], [1], [0, 0, 1, 1], [], []>} : vector<2x256xf32>, vector<256x512xf32>, vector<2x512xf32> -> vector<2x512xf32>
    %24 = arith.addf %16, %23 : vector<2x512xf32>
    %25 = vector.extract_strided_slice %7 {offsets = [0, 2, 0], sizes = [2, 1, 256], strides = [1, 1, 1]} : vector<2x6x256xf32> to vector<2x1x256xf32>
    %cst_13 = arith.constant dense<0.000000e+00> : vector<2x256xf32>
    %26 = vector.multi_reduction <add>, %25, %cst_13 [1] : vector<2x1x256xf32> to vector<2x256xf32>
    %cst_14 = arith.constant 1.000000e+00 : f32
    %27 = vector.broadcast %cst_14 : f32 to vector<2x256xf32>
    %28 = arith.divf %26, %27 : vector<2x256xf32>
    %c2 = arith.constant 2 : index
    %c0_15 = arith.constant 0 : index
    %c0_16 = arith.constant 0 : index
    %29 = vector.load %arg1[%c2, %c0_15, %c0_16] : memref<6x256x512xf32, #tpu.memory_space<vmem>>, vector<1x256x512xf32>
    %30 = vector.shape_cast %29 : vector<1x256x512xf32> to vector<256x512xf32>
    %cst_17 = arith.constant dense<0.000000e+00> : vector<2x512xf32>
    %31 = tpu.matmul %28, %30, %cst_17 {dimension_numbers = #tpu.dot_dimension_numbers<[1], [0], [0], [1], [0, 0, 1, 1], [], []>} : vector<2x256xf32>, vector<256x512xf32>, vector<2x512xf32> -> vector<2x512xf32>
    %32 = arith.addf %24, %31 : vector<2x512xf32>
    %33 = vector.extract_strided_slice %7 {offsets = [0, 3, 0], sizes = [2, 1, 256], strides = [1, 1, 1]} : vector<2x6x256xf32> to vector<2x1x256xf32>
    %cst_18 = arith.constant dense<0.000000e+00> : vector<2x256xf32>
    %34 = vector.multi_reduction <add>, %33, %cst_18 [1] : vector<2x1x256xf32> to vector<2x256xf32>
    %cst_19 = arith.constant 1.000000e+00 : f32
    %35 = vector.broadcast %cst_19 : f32 to vector<2x256xf32>
    %36 = arith.divf %34, %35 : vector<2x256xf32>
    %c3 = arith.constant 3 : index
    %c0_20 = arith.constant 0 : index
    %c0_21 = arith.constant 0 : index
    %37 = vector.load %arg1[%c3, %c0_20, %c0_21] : memref<6x256x512xf32, #tpu.memory_space<vmem>>, vector<1x256x512xf32>
    %38 = vector.shape_cast %37 : vector<1x256x512xf32> to vector<256x512xf32>
    %cst_22 = arith.constant dense<0.000000e+00> : vector<2x512xf32>
    %39 = tpu.matmul %36, %38, %cst_22 {dimension_numbers = #tpu.dot_dimension_numbers<[1], [0], [0], [1], [0, 0, 1, 1], [], []>} : vector<2x256xf32>, vector<256x512xf32>, vector<2x512xf32> -> vector<2x512xf32>
    %40 = arith.addf %32, %39 : vector<2x512xf32>
    %41 = vector.extract_strided_slice %7 {offsets = [0, 4, 0], sizes = [2, 1, 256], strides = [1, 1, 1]} : vector<2x6x256xf32> to vector<2x1x256xf32>
    %cst_23 = arith.constant dense<0.000000e+00> : vector<2x256xf32>
    %42 = vector.multi_reduction <add>, %41, %cst_23 [1] : vector<2x1x256xf32> to vector<2x256xf32>
    %cst_24 = arith.constant 1.000000e+00 : f32
    %43 = vector.broadcast %cst_24 : f32 to vector<2x256xf32>
    %44 = arith.divf %42, %43 : vector<2x256xf32>
    %c4 = arith.constant 4 : index
    %c0_25 = arith.constant 0 : index
    %c0_26 = arith.constant 0 : index
    %45 = vector.load %arg1[%c4, %c0_25, %c0_26] : memref<6x256x512xf32, #tpu.memory_space<vmem>>, vector<1x256x512xf32>
    %46 = vector.shape_cast %45 : vector<1x256x512xf32> to vector<256x512xf32>
    %cst_27 = arith.constant dense<0.000000e+00> : vector<2x512xf32>
    %47 = tpu.matmul %44, %46, %cst_27 {dimension_numbers = #tpu.dot_dimension_numbers<[1], [0], [0], [1], [0, 0, 1, 1], [], []>} : vector<2x256xf32>, vector<256x512xf32>, vector<2x512xf32> -> vector<2x512xf32>
    %48 = arith.addf %40, %47 : vector<2x512xf32>
    %49 = vector.extract_strided_slice %7 {offsets = [0, 5, 0], sizes = [2, 1, 256], strides = [1, 1, 1]} : vector<2x6x256xf32> to vector<2x1x256xf32>
    %cst_28 = arith.constant dense<0.000000e+00> : vector<2x256xf32>
    %50 = vector.multi_reduction <add>, %49, %cst_28 [1] : vector<2x1x256xf32> to vector<2x256xf32>
    %cst_29 = arith.constant 1.000000e+00 : f32
    %51 = vector.broadcast %cst_29 : f32 to vector<2x256xf32>
    %52 = arith.divf %50, %51 : vector<2x256xf32>
    %c5 = arith.constant 5 : index
    %c0_30 = arith.constant 0 : index
    %c0_31 = arith.constant 0 : index
    %53 = vector.load %arg1[%c5, %c0_30, %c0_31] : memref<6x256x512xf32, #tpu.memory_space<vmem>>, vector<1x256x512xf32>
    %54 = vector.shape_cast %53 : vector<1x256x512xf32> to vector<256x512xf32>
    %cst_32 = arith.constant dense<0.000000e+00> : vector<2x512xf32>
    %55 = tpu.matmul %52, %54, %cst_32 {dimension_numbers = #tpu.dot_dimension_numbers<[1], [0], [0], [1], [0, 0, 1, 1], [], []>} : vector<2x256xf32>, vector<256x512xf32>, vector<2x512xf32> -> vector<2x512xf32>
    %56 = arith.addf %48, %55 : vector<2x512xf32>
    %c0_33 = arith.constant 0 : index
    %c0_34 = arith.constant 0 : index
    %57 = vector.load %arg2[%c0_33, %c0_34] : memref<1x512xf32, #tpu.memory_space<vmem>>, vector<1x512xf32>
    %58 = vector.broadcast %57 : vector<1x512xf32> to vector<2x512xf32>
    %59 = arith.addf %56, %58 : vector<2x512xf32>
    %cst_35 = arith.constant 0.000000e+00 : f32
    %60 = vector.broadcast %cst_35 : f32 to vector<2x512xf32>
    %61 = arith.maximumf %59, %60 : vector<2x512xf32>
    %c0_36 = arith.constant 0 : index
    %c0_37 = arith.constant 0 : index
    %62 = vector.load %arg3[%c0_36, %c0_37] : memref<512x128xf32, #tpu.memory_space<vmem>>, vector<512x128xf32>
    %cst_38 = arith.constant dense<0.000000e+00> : vector<2x128xf32>
    %63 = tpu.matmul %61, %62, %cst_38 {dimension_numbers = #tpu.dot_dimension_numbers<[1], [0], [0], [1], [0, 0, 1, 1], [], []>} : vector<2x512xf32>, vector<512x128xf32>, vector<2x128xf32> -> vector<2x128xf32>
    %c0_39 = arith.constant 0 : index
    %c0_40 = arith.constant 0 : index
    %64 = vector.load %arg4[%c0_39, %c0_40] : memref<1x128xf32, #tpu.memory_space<vmem>>, vector<1x128xf32>
    %65 = vector.broadcast %64 : vector<1x128xf32> to vector<2x128xf32>
    %66 = arith.addf %63, %65 : vector<2x128xf32>
    %cst_41 = arith.constant 0.000000e+00 : f32
    %67 = vector.broadcast %cst_41 : f32 to vector<2x128xf32>
    %68 = arith.maximumf %66, %67 : vector<2x128xf32>
    %c0_42 = arith.constant 0 : index
    %c0_43 = arith.constant 0 : index
    %69 = vector.load %arg5[%c0_42, %c0_43] : memref<128x128xf32, #tpu.memory_space<vmem>>, vector<128x128xf32>
    %cst_44 = arith.constant dense<0.000000e+00> : vector<2x128xf32>
    %70 = tpu.matmul %68, %69, %cst_44 {dimension_numbers = #tpu.dot_dimension_numbers<[1], [0], [0], [1], [0, 0, 1, 1], [], []>} : vector<2x128xf32>, vector<128x128xf32>, vector<2x128xf32> -> vector<2x128xf32>
    %c0_45 = arith.constant 0 : index
    %c0_46 = arith.constant 0 : index
    %71 = vector.load %arg6[%c0_45, %c0_46] : memref<1x128xf32, #tpu.memory_space<vmem>>, vector<1x128xf32>
    %72 = vector.broadcast %71 : vector<1x128xf32> to vector<2x128xf32>
    %73 = arith.addf %70, %72 : vector<2x128xf32>
    %c0_47 = arith.constant 0 : index
    %c0_48 = arith.constant 0 : index
    %74 = vector.load %arg7[%c0_47, %c0_48] : memref<2x128xf32, #tpu.memory_space<vmem>>, vector<2x128xf32>
    tpu.vector_store %arg7[%c0_47, %c0_48], %73 {strides = array<i32>} : memref<2x128xf32, #tpu.memory_space<vmem>>, vector<2x128xf32>,
    return
  }
}

</mosaic_0001>

<llo_original>
// kernel: conv_classifier_forward.3
$region0: #{conv_classifier_forward.3}
  #allocation0 [shape = 'u32[]', space=smem, size = 0x4, offset = 0x4, fixed_abs, tag = 'smem constant byte address 0x4 - core index']
  #allocation1 [shape = 'u32[72,128]{1,0:T(1,128)}', space=vmem, size = 0x9000, scoped, tag = 'internal scratch']
  %s0 = inlined_call_operand.vmem [shape: f32[768,48], index: 0, kind: input, shape index: {}]
  %s1 = inlined_call_operand.vmem [shape: f32[36,64], index: 1, kind: input, shape index: {}]
  %s2 = inlined_call_operand.vmem [shape: f32[1,64], index: 2, kind: input, shape index: {}]
  %s3 = inlined_call_operand.vmem [shape: f32[768,64], index: 3, kind: output, shape index: {}]
  %s4 = sld [smem:[#allocation0]]
  $region22: #{conv_classifier_forward.3} parent=0
    _
  %s6 = ssub.s32 1, %s4
  %s7 = scalar_select 0, %s6, %s4
  // Predicated region
  $region2: #{conv_classifier_forward.3} parent=0 // pred_check
    _
  $region3: #{conv_classifier_forward.3} parent=0 // pred_check_branch
    %9 = sbr.rel (0) target = $region5
  $region4: #{conv_classifier_forward.3} parent=0 // pred_region
    _
  $region5: #{conv_classifier_forward.3} parent=0 // pred_fallthru
    _
  // Predicated region
  $region6: #{conv_classifier_forward.3} parent=0 // pred_check
    _
  $region7: #{conv_classifier_forward.3} parent=0 // pred_check_branch
    %11 = sbr.rel (0) target = $region9
  $region8: #{conv_classifier_forward.3} parent=0 // pred_region
    _
  $region9: #{conv_classifier_forward.3} parent=0 // pred_fallthru
    _
  // Predicated region
  $region10: #{conv_classifier_forward.3} parent=0 // pred_check
    _
  $region11: #{conv_classifier_forward.3} parent=0 // pred_check_branch
    %13 = sbr.rel (0) target = $region13
  $region12: #{conv_classifier_forward.3} parent=0 // pred_region
    _
  $region13: #{conv_classifier_forward.3} parent=0 // pred_fallthru
    _
  %v14 = vld [vmem:[%s1] sm:$0xff]
  %v15 = vld [vmem:[%s1 + $0x8] sm:$0xff]
  %v16 = vld [vmem:[%s1 + $0x10] sm:$0xff]
  %v17 = vld [vmem:[%s1 + $0x18] sm:$0xff]
  %v18 = vld [vmem:[%s1 + $0x20] sm:$0xf]
  %v19 = vld [vmem:[%s2] sm:$0x1]
  %v20 = vld [vmem:[%s0] sm:$0xff]
  %v21 = vld [vmem:[%s0 + $0x8] sm:$0xff]
  %v22 = vld [vmem:[%s0 + $0x10] sm:$0xff]
  %v23 = vld [vmem:[%s0 + $0x18] sm:$0xff]
  %v24 = vld [vmem:[%s0 + $0x20] sm:$0xff]
  %v25 = vld [vmem:[%s0 + $0x28] sm:$0xff]
  %v26 = vld [vmem:[%s0 + $0x30] sm:$0xff]
  %v27 = vld [vmem:[%s0 + $0x38] sm:$0xff]
  %v28 = vld [vmem:[%s0 + $0x40] sm:$0xff]
  %v29 = vld [vmem:[%s0 + $0x48] sm:$0xff]
  %v30 = vld [vmem:[%s0 + $0x50] sm:$0xff]
  %v31 = vld [vmem:[%s0 + $0x58] sm:$0xff]
  %v32 = vld [vmem:[%s0 + $0x60] sm:$0xff]
  %v33 = vld [vmem:[%s0 + $0x68] sm:$0xff]
  %v34 = vld [vmem:[%s0 + $0x70] sm:$0xff]
  %v35 = vld [vmem:[%s0 + $0x78] sm:$0xff]
  %v36 = vld [vmem:[%s0 + $0x80] sm:$0xff]
  %v37 = vld [vmem:[%s0 + $0x88] sm:$0xff]
  %v38 = vld [vmem:[%s0 + $0x90] sm:$0xff]
  %v39 = vld [vmem:[%s0 + $0x98] sm:$0xff]
  %v40 = vld [vmem:[%s0 + $0xa0] sm:$0xff]
  %v41 = vld [vmem:[%s0 + $0xa8] sm:$0xff]
  %v42 = vld [vmem:[%s0 + $0xb0] sm:$0xff]
  %v43 = vld [vmem:[%s0 + $0xb8] sm:$0xff]
  %v44 = vld [vmem:[%s0 + $0xc0] sm:$0xff]
  %v45 = vld [vmem:[%s0 + $0xc8] sm:$0xff]
  %v46 = vld [vmem:[%s0 + $0xd0] sm:$0xff]
  %v47 = vld [vmem:[%s0 + $0xd8] sm:$0xff]
  %v48 = vld [vmem:[%s0 + $0xe0] sm:$0xff]
  %v49 = vld [vmem:[%s0 + $0xe8] sm:$0xff]
  %v50 = vld [vmem:[%s0 + $0xf0] sm:$0xff]
  %v51 = vld [vmem:[%s0 + $0xf8] sm:$0xff]
  %v52 = vld [vmem:[%s0 + $0x100] sm:$0xff]
  %v53 = vld [vmem:[%s0 + $0x108] sm:$0xff]
  %v54 = vld [vmem:[%s0 + $0x110] sm:$0xff]
  %v55 = vld [vmem:[%s0 + $0x118] sm:$0xff]
  %v56 = vld [vmem:[%s0 + $0x120] sm:$0xff]
  %v57 = vld [vmem:[%s0 + $0x128] sm:$0xff]
  %v58 = vld [vmem:[%s0 + $0x130] sm:$0xff]
  %v59 = vld [vmem:[%s0 + $0x138] sm:$0xff]
  %v60 = vld [vmem:[%s0 + $0x140] sm:$0xff]
  %v61 = vld [vmem:[%s0 + $0x148] sm:$0xff]
  %v62 = vld [vmem:[%s0 + $0x150] sm:$0xff]
  %v63 = vld [vmem:[%s0 + $0x158] sm:$0xff]
  %v64 = vld [vmem:[%s0 + $0x160] sm:$0xff]
  %v65 = vld [vmem:[%s0 + $0x168] sm:$0xff]
  %v66 = vld [vmem:[%s0 + $0x170] sm:$0xff]
  %v67 = vld [vmem:[%s0 + $0x178] sm:$0xff]
  %v68 = vld [vmem:[%s0 + $0x180] sm:$0xff]
  %v69 = vld [vmem:[%s0 + $0x188] sm:$0xff]
  %v70 = vld [vmem:[%s0 + $0x190] sm:$0xff]
  %v71 = vld [vmem:[%s0 + $0x198] sm:$0xff]
  %v72 = vld [vmem:[%s0 + $0x1a0] sm:$0xff]
  %v73 = vld [vmem:[%s0 + $0x1a8] sm:$0xff]
  %v74 = vld [vmem:[%s0 + $0x1b0] sm:$0xff]
  %v75 = vld [vmem:[%s0 + $0x1b8] sm:$0xff]
  %v76 = vld [vmem:[%s0 + $0x1c0] sm:$0xff]
  %v77 = vld [vmem:[%s0 + $0x1c8] sm:$0xff]
  %v78 = vld [vmem:[%s0 + $0x1d0] sm:$0xff]
  %v79 = vld [vmem:[%s0 + $0x1d8] sm:$0xff]
  %v80 = vld [vmem:[%s0 + $0x1e0] sm:$0xff]
  %v81 = vld [vmem:[%s0 + $0x1e8] sm:$0xff]
  %v82 = vld [vmem:[%s0 + $0x1f0] sm:$0xff]
  %v83 = vld [vmem:[%s0 + $0x1f8] sm:$0xff]
  %v84 = vld [vmem:[%s0 + $0x200] sm:$0xff]
  %v85 = vld [vmem:[%s0 + $0x208] sm:$0xff]
  %v86 = vld [vmem:[%s0 + $0x210] sm:$0xff]
  %v87 = vld [vmem:[%s0 + $0x218] sm:$0xff]
  %v88 = vld [vmem:[%s0 + $0x220] sm:$0xff]
  %v89 = vld [vmem:[%s0 + $0x228] sm:$0xff]
  %v90 = vld [vmem:[%s0 + $0x230] sm:$0xff]
  %v91 = vld [vmem:[%s0 + $0x238] sm:$0xff]
  %v92 = vld [vmem:[%s0 + $0x240] sm:$0xff]
  %v93 = vld [vmem:[%s0 + $0x248] sm:$0xff]
  %v94 = vld [vmem:[%s0 + $0x250] sm:$0xff]
  %v95 = vld [vmem:[%s0 + $0x258] sm:$0xff]
  %v96 = vld [vmem:[%s0 + $0x260] sm:$0xff]
  %v97 = vld [vmem:[%s0 + $0x268] sm:$0xff]
  %v98 = vld [vmem:[%s0 + $0x270] sm:$0xff]
  %v99 = vld [vmem:[%s0 + $0x278] sm:$0xff]
  %v100 = vld [vmem:[%s0 + $0x280] sm:$0xff]
  %v101 = vld [vmem:[%s0 + $0x288] sm:$0xff]
  %v102 = vld [vmem:[%s0 + $0x290] sm:$0xff]
  %v103 = vld [vmem:[%s0 + $0x298] sm:$0xff]
  %v104 = vld [vmem:[%s0 + $0x2a0] sm:$0xff]
  %v105 = vld [vmem:[%s0 + $0x2a8] sm:$0xff]
  %v106 = vld [vmem:[%s0 + $0x2b0] sm:$0xff]
  %v107 = vld [vmem:[%s0 + $0x2b8] sm:$0xff]
  %v108 = vld [vmem:[%s0 + $0x2c0] sm:$0xff]
  %v109 = vld [vmem:[%s0 + $0x2c8] sm:$0xff]
  %v110 = vld [vmem:[%s0 + $0x2d0] sm:$0xff]
  %v111 = vld [vmem:[%s0 + $0x2d8] sm:$0xff]
  %v112 = vld [vmem:[%s0 + $0x2e0] sm:$0xff]
  %v113 = vld [vmem:[%s0 + $0x2e8] sm:$0xff]
  %v114 = vld [vmem:[%s0 + $0x2f0] sm:$0xff]
  %v115 = vld [vmem:[%s0 + $0x2f8] sm:$0xff]
  %vm116 = vcmask 293888
  %v118 = vsel %vm116, %v20, 0
  %v121 = vsel %vm116, %v21, 0
  %v124 = vsel %vm116, %v22, 0
  %v127 = vsel %vm116, %v23, 0
  %v130 = vsel %vm116, %v24, 0
  %v133 = vsel %vm116, %v25, 0
  %v136 = vsel %vm116, %v26, 0
  %v139 = vsel %vm116, %v27, 0
  %v142 = vsel %vm116, %v28, 0
  %v145 = vsel %vm116, %v29, 0
  %v148 = vsel %vm116, %v30, 0
  %v151 = vsel %vm116, %v31, 0
  %v154 = vsel %vm116, %v32, 0
  %v157 = vsel %vm116, %v33, 0
  %v160 = vsel %vm116, %v34, 0
  %v163 = vsel %vm116, %v35, 0
  %v166 = vsel %vm116, %v36, 0
  %v169 = vsel %vm116, %v37, 0
  %v172 = vsel %vm116, %v38, 0
  %v175 = vsel %vm116, %v39, 0
  %v178 = vsel %vm116, %v40, 0
  %v181 = vsel %vm116, %v41, 0
  %v184 = vsel %vm116, %v42, 0
  %v187 = vsel %vm116, %v43, 0
  %v190 = vsel %vm116, %v44, 0
  %v193 = vsel %vm116, %v45, 0
  %v196 = vsel %vm116, %v46, 0
  %v199 = vsel %vm116, %v47, 0
  %v202 = vsel %vm116, %v48, 0
  %v205 = vsel %vm116, %v49, 0
  %v208 = vsel %vm116, %v50, 0
  %v211 = vsel %vm116, %v51, 0
  %v214 = vsel %vm116, %v52, 0
  %v217 = vsel %vm116, %v53, 0
  %v220 = vsel %vm116, %v54, 0
  %v223 = vsel %vm116, %v55, 0
  %v226 = vsel %vm116, %v56, 0
  %v229 = vsel %vm116, %v57, 0
  %v232 = vsel %vm116, %v58, 0
  %v235 = vsel %vm116, %v59, 0
  %v238 = vsel %vm116, %v60, 0
  %v241 = vsel %vm116, %v61, 0
  %v244 = vsel %vm116, %v62, 0
  %v247 = vsel %vm116, %v63, 0
  %v250 = vsel %vm116, %v64, 0
  %v253 = vsel %vm116, %v65, 0
  %v256 = vsel %vm116, %v66, 0
  %v259 = vsel %vm116, %v67, 0
  %v262 = vsel %vm116, %v68, 0
  %v265 = vsel %vm116, %v69, 0
  %v268 = vsel %vm116, %v70, 0
  %v271 = vsel %vm116, %v71, 0
  %v274 = vsel %vm116, %v72, 0
  %v277 = vsel %vm116, %v73, 0
  %v280 = vsel %vm116, %v74, 0
  %v283 = vsel %vm116, %v75, 0
  %v286 = vsel %vm116, %v76, 0
  %v289 = vsel %vm116, %v77, 0
  %v292 = vsel %vm116, %v78, 0
  %v295 = vsel %vm116, %v79, 0
  %v298 = vsel %vm116, %v80, 0
  %v301 = vsel %vm116, %v81, 0
  %v304 = vsel %vm116, %v82, 0
  %v307 = vsel %vm116, %v83, 0
  %v310 = vsel %vm116, %v84, 0
  %v313 = vsel %vm116, %v85, 0
  %v316 = vsel %vm116, %v86, 0
  %v319 = vsel %vm116, %v87, 0
  %v322 = vsel %vm116, %v88, 0
  %v325 = vsel %vm116, %v89, 0
  %v328 = vsel %vm116, %v90, 0
  %v331 = vsel %vm116, %v91, 0
  %v334 = vsel %vm116, %v92, 0
  %v337 = vsel %vm116, %v93, 0
  %v340 = vsel %vm116, %v94, 0
  %v343 = vsel %vm116, %v95, 0
  %v346 = vsel %vm116, %v96, 0
  %v349 = vsel %vm116, %v97, 0
  %v352 = vsel %vm116, %v98, 0
  %v355 = vsel %vm116, %v99, 0
  %v358 = vsel %vm116, %v100, 0
  %v361 = vsel %vm116, %v101, 0
  %v364 = vsel %vm116, %v102, 0
  %v367 = vsel %vm116, %v103, 0
  %v370 = vsel %vm116, %v104, 0
  %v373 = vsel %vm116, %v105, 0
  %v376 = vsel %vm116, %v106, 0
  %v379 = vsel %vm116, %v107, 0
  %v382 = vsel %vm116, %v108, 0
  %v385 = vsel %vm116, %v109, 0
  %v388 = vsel %vm116, %v110, 0
  %v391 = vsel %vm116, %v111, 0
  %v394 = vsel %vm116, %v112, 0
  %v397 = vsel %vm116, %v113, 0
  %v400 = vsel %vm116, %v114, 0
  %v403 = vsel %vm116, %v115, 0
  %vm405 = vcmask 1043456
  %v407 = vsel %vm405, %v18, 0
  %409 = vmatpush.msra.mxu0 0.0
  %410 = vmatpush.msra.mxu0 0.0
  %411 = vmatpush.msra.mxu0 0.0
  %412 = vmatpush.msra.mxu0 0.0
  %413 = vmatpush.msra.mxu0 0.0
  %414 = vmatpush.msra.mxu0 0.0
  %415 = vmatpush.msra.mxu0 0.0
  %416 = vmatpush.msra.mxu0 0.0
  %417 = vmatpush.msra.mxu0 0.0
  %418 = vmatpush.msra.mxu0 0.0
  %419 = vmatpush.msra.mxu0 0.0
  %420 = vmatpush.msra.mxu0 %v407
  %421 = vmatpush.msra.mxu0 %v17
  %422 = vmatpush.msra.mxu0 %v16
  %423 = vmatpush.msra.mxu0 %v15
  %424 = vmatpush.msra.mxu0 %v14
  %425 = vmatmul.f32.gmra.mxu0 %v118
  %v426 = vpop.f32.mrf.mxu0
  %v427 = vadd.f32 0.0, %v426
  %428 = vmatmul.f32.gmra.mxu0 %v121
  %v429 = vpop.f32.mrf.mxu0
  %v430 = vadd.f32 0.0, %v429
  %431 = vmatmul.f32.gmra.mxu0 %v124
  %v432 = vpop.f32.mrf.mxu0
  %v433 = vadd.f32 0.0, %v432
  %434 = vmatmul.f32.gmra.mxu0 %v127
  %v435 = vpop.f32.mrf.mxu0
  %v436 = vadd.f32 0.0, %v435
  %437 = vmatmul.f32.gmra.mxu0 %v130
  %v438 = vpop.f32.mrf.mxu0
  %v439 = vadd.f32 0.0, %v438
  %440 = vmatmul.f32.gmra.mxu0 %v133
  %v441 = vpop.f32.mrf.mxu0
  %v442 = vadd.f32 0.0, %v441
  %443 = vmatmul.f32.gmra.mxu0 %v136
  %v444 = vpop.f32.mrf.mxu0
  %v445 = vadd.f32 0.0, %v444
  %446 = vmatmul.f32.gmra.mxu0 %v139
  %v447 = vpop.f32.mrf.mxu0
  %v448 = vadd.f32 0.0, %v447
  %449 = vmatmul.f32.gmra.mxu0 %v142
  %v450 = vpop.f32.mrf.mxu0
  %v451 = vadd.f32 0.0, %v450
  %452 = vmatmul.f32.gmra.mxu0 %v145
  %v453 = vpop.f32.mrf.mxu0
  %v454 = vadd.f32 0.0, %v453
  %455 = vmatmul.f32.gmra.mxu0 %v148
  %v456 = vpop.f32.mrf.mxu0
  %v457 = vadd.f32 0.0, %v456
  %458 = vmatmul.f32.gmra.mxu0 %v151
  %v459 = vpop.f32.mrf.mxu0
  %v460 = vadd.f32 0.0, %v459
  %461 = vmatmul.f32.gmra.mxu0 %v154
  %v462 = vpop.f32.mrf.mxu0
  %v463 = vadd.f32 0.0, %v462
  %464 = vmatmul.f32.gmra.mxu0 %v157
  %v465 = vpop.f32.mrf.mxu0
  %v466 = vadd.f32 0.0, %v465
  %467 = vmatmul.f32.gmra.mxu0 %v160
  %v468 = vpop.f32.mrf.mxu0
  %v469 = vadd.f32 0.0, %v468
  %470 = vmatmul.f32.gmra.mxu0 %v163
  %v471 = vpop.f32.mrf.mxu0
  %v472 = vadd.f32 0.0, %v471
  %473 = vmatmul.f32.gmra.mxu0 %v166
  %v474 = vpop.f32.mrf.mxu0
  %v475 = vadd.f32 0.0, %v474
  %476 = vmatmul.f32.gmra.mxu0 %v169
  %v477 = vpop.f32.mrf.mxu0
  %v478 = vadd.f32 0.0, %v477
  %479 = vmatmul.f32.gmra.mxu0 %v172
  %v480 = vpop.f32.mrf.mxu0
  %v481 = vadd.f32 0.0, %v480
  %482 = vmatmul.f32.gmra.mxu0 %v175
  %v483 = vpop.f32.mrf.mxu0
  %v484 = vadd.f32 0.0, %v483
  %485 = vmatmul.f32.gmra.mxu0 %v178
  %v486 = vpop.f32.mrf.mxu0
  %v487 = vadd.f32 0.0, %v486
  %488 = vmatmul.f32.gmra.mxu0 %v181
  %v489 = vpop.f32.mrf.mxu0
  %v490 = vadd.f32 0.0, %v489
  %491 = vmatmul.f32.gmra.mxu0 %v184
  %v492 = vpop.f32.mrf.mxu0
  %v493 = vadd.f32 0.0, %v492
  %494 = vmatmul.f32.gmra.mxu0 %v187
  %v495 = vpop.f32.mrf.mxu0
  %v496 = vadd.f32 0.0, %v495
  %497 = vmatmul.f32.gmra.mxu0 %v190
  %v498 = vpop.f32.mrf.mxu0
  %v499 = vadd.f32 0.0, %v498
  %500 = vmatmul.f32.gmra.mxu0 %v193
  %v501 = vpop.f32.mrf.mxu0
  %v502 = vadd.f32 0.0, %v501
  %503 = vmatmul.f32.gmra.mxu0 %v196
  %v504 = vpop.f32.mrf.mxu0
  %v505 = vadd.f32 0.0, %v504
  %506 = vmatmul.f32.gmra.mxu0 %v199
  %v507 = vpop.f32.mrf.mxu0
  %v508 = vadd.f32 0.0, %v507
  %509 = vmatmul.f32.gmra.mxu0 %v202
  %v510 = vpop.f32.mrf.mxu0
  %v511 = vadd.f32 0.0, %v510
  %512 = vmatmul.f32.gmra.mxu0 %v205
  %v513 = vpop.f32.mrf.mxu0
  %v514 = vadd.f32 0.0, %v513
  %515 = vmatmul.f32.gmra.mxu0 %v208
  %v516 = vpop.f32.mrf.mxu0
  %v517 = vadd.f32 0.0, %v516
  %518 = vmatmul.f32.gmra.mxu0 %v211
  %v519 = vpop.f32.mrf.mxu0
  %v520 = vadd.f32 0.0, %v519
  %521 = vmatmul.f32.gmra.mxu0 %v214
  %v522 = vpop.f32.mrf.mxu0
  %v523 = vadd.f32 0.0, %v522
  %524 = vmatmul.f32.gmra.mxu0 %v217
  %v525 = vpop.f32.mrf.mxu0
  %v526 = vadd.f32 0.0, %v525
  %527 = vmatmul.f32.gmra.mxu0 %v220
  %v528 = vpop.f32.mrf.mxu0
  %v529 = vadd.f32 0.0, %v528
  %530 = vmatmul.f32.gmra.mxu0 %v223
  %v531 = vpop.f32.mrf.mxu0
  %v532 = vadd.f32 0.0, %v531
  %533 = vmatmul.f32.gmra.mxu0 %v226
  %v534 = vpop.f32.mrf.mxu0
  %v535 = vadd.f32 0.0, %v534
  %536 = vmatmul.f32.gmra.mxu0 %v229
  %v537 = vpop.f32.mrf.mxu0
  %v538 = vadd.f32 0.0, %v537
  %539 = vmatmul.f32.gmra.mxu0 %v232
  %v540 = vpop.f32.mrf.mxu0
  %v541 = vadd.f32 0.0, %v540
  %542 = vmatmul.f32.gmra.mxu0 %v235
  %v543 = vpop.f32.mrf.mxu0
  %v544 = vadd.f32 0.0, %v543
  %545 = vmatmul.f32.gmra.mxu0 %v238
  %v546 = vpop.f32.mrf.mxu0
  %v547 = vadd.f32 0.0, %v546
  %548 = vmatmul.f32.gmra.mxu0 %v241
  %v549 = vpop.f32.mrf.mxu0
  %v550 = vadd.f32 0.0, %v549
  %551 = vmatmul.f32.gmra.mxu0 %v244
  %v552 = vpop.f32.mrf.mxu0
  %v553 = vadd.f32 0.0, %v552
  %554 = vmatmul.f32.gmra.mxu0 %v247
  %v555 = vpop.f32.mrf.mxu0
  %v556 = vadd.f32 0.0, %v555
  %557 = vmatmul.f32.gmra.mxu0 %v250
  %v558 = vpop.f32.mrf.mxu0
  %v559 = vadd.f32 0.0, %v558
  %560 = vmatmul.f32.gmra.mxu0 %v253
  %v561 = vpop.f32.mrf.mxu0
  %v562 = vadd.f32 0.0, %v561
  %563 = vmatmul.f32.gmra.mxu0 %v256
  %v564 = vpop.f32.mrf.mxu0
  %v565 = vadd.f32 0.0, %v564
  %566 = vmatmul.f32.gmra.mxu0 %v259
  %v567 = vpop.f32.mrf.mxu0
  %v568 = vadd.f32 0.0, %v567
  %569 = vmatmul.f32.gmra.mxu0 %v262
  %v570 = vpop.f32.mrf.mxu0
  %v571 = vadd.f32 0.0, %v570
  %572 = vmatmul.f32.gmra.mxu0 %v265
  %v573 = vpop.f32.mrf.mxu0
  %v574 = vadd.f32 0.0, %v573
  %575 = vmatmul.f32.gmra.mxu0 %v268
  %v576 = vpop.f32.mrf.mxu0
  %v577 = vadd.f32 0.0, %v576
  %578 = vmatmul.f32.gmra.mxu0 %v271
  %v579 = vpop.f32.mrf.mxu0
  %v580 = vadd.f32 0.0, %v579
  %581 = vmatmul.f32.gmra.mxu0 %v274
  %v582 = vpop.f32.mrf.mxu0
  %v583 = vadd.f32 0.0, %v582
  %584 = vmatmul.f32.gmra.mxu0 %v277
  %v585 = vpop.f32.mrf.mxu0
  %v586 = vadd.f32 0.0, %v585
  %587 = vmatmul.f32.gmra.mxu0 %v280
  %v588 = vpop.f32.mrf.mxu0
  %v589 = vadd.f32 0.0, %v588
  %590 = vmatmul.f32.gmra.mxu0 %v283
  %v591 = vpop.f32.mrf.mxu0
  %v592 = vadd.f32 0.0, %v591
  %593 = vmatmul.f32.gmra.mxu0 %v286
  %v594 = vpop.f32.mrf.mxu0
  %v595 = vadd.f32 0.0, %v594
  %596 = vmatmul.f32.gmra.mxu0 %v289
  %v597 = vpop.f32.mrf.mxu0
  %v598 = vadd.f32 0.0, %v597
  %599 = vmatmul.f32.gmra.mxu0 %v292
  %v600 = vpop.f32.mrf.mxu0
  %v601 = vadd.f32 0.0, %v600
  %602 = vmatmul.f32.gmra.mxu0 %v295
  %v603 = vpop.f32.mrf.mxu0
  %v604 = vadd.f32 0.0, %v603
  %605 = vmatmul.f32.gmra.mxu0 %v298
  %v606 = vpop.f32.mrf.mxu0
  %v607 = vadd.f32 0.0, %v606
  %608 = vmatmul.f32.gmra.mxu0 %v301
  %v609 = vpop.f32.mrf.mxu0
  %v610 = vadd.f32 0.0, %v609
  %611 = vmatmul.f32.gmra.mxu0 %v304
  %v612 = vpop.f32.mrf.mxu0
  %v613 = vadd.f32 0.0, %v612
  %614 = vmatmul.f32.gmra.mxu0 %v307
  %v615 = vpop.f32.mrf.mxu0
  %v616 = vadd.f32 0.0, %v615
  %617 = vmatmul.f32.gmra.mxu0 %v310
  %v618 = vpop.f32.mrf.mxu0
  %v619 = vadd.f32 0.0, %v618
  %620 = vmatmul.f32.gmra.mxu0 %v313
  %v621 = vpop.f32.mrf.mxu0
  %v622 = vadd.f32 0.0, %v621
  %623 = vmatmul.f32.gmra.mxu0 %v316
  %v624 = vpop.f32.mrf.mxu0
  %v625 = vadd.f32 0.0, %v624
  %626 = vmatmul.f32.gmra.mxu0 %v319
  %v627 = vpop.f32.mrf.mxu0
  %v628 = vadd.f32 0.0, %v627
  %629 = vmatmul.f32.gmra.mxu0 %v322
  %v630 = vpop.f32.mrf.mxu0
  %v631 = vadd.f32 0.0, %v630
  %632 = vmatmul.f32.gmra.mxu0 %v325
  %v633 = vpop.f32.mrf.mxu0
  %v634 = vadd.f32 0.0, %v633
  %635 = vmatmul.f32.gmra.mxu0 %v328
  %v636 = vpop.f32.mrf.mxu0
  %v637 = vadd.f32 0.0, %v636
  %638 = vmatmul.f32.gmra.mxu0 %v331
  %v639 = vpop.f32.mrf.mxu0
  %v640 = vadd.f32 0.0, %v639
  %641 = vmatmul.f32.gmra.mxu0 %v334
  %v642 = vpop.f32.mrf.mxu0
  %v643 = vadd.f32 0.0, %v642
  %644 = vmatmul.f32.gmra.mxu0 %v337
  %v645 = vpop.f32.mrf.mxu0
  %v646 = vadd.f32 0.0, %v645
  %647 = vmatmul.f32.gmra.mxu0 %v340
  %v648 = vpop.f32.mrf.mxu0
  %v649 = vadd.f32 0.0, %v648
  %650 = vmatmul.f32.gmra.mxu0 %v343
  %v651 = vpop.f32.mrf.mxu0
  %v652 = vadd.f32 0.0, %v651
  %653 = vmatmul.f32.gmra.mxu0 %v346
  %v654 = vpop.f32.mrf.mxu0
  %v655 = vadd.f32 0.0, %v654
  %656 = vmatmul.f32.gmra.mxu0 %v349
  %v657 = vpop.f32.mrf.mxu0
  %v658 = vadd.f32 0.0, %v657
  %659 = vmatmul.f32.gmra.mxu0 %v352
  %v660 = vpop.f32.mrf.mxu0
  %v661 = vadd.f32 0.0, %v660
  %662 = vmatmul.f32.gmra.mxu0 %v355
  %v663 = vpop.f32.mrf.mxu0
  %v664 = vadd.f32 0.0, %v663
  %665 = vmatmul.f32.gmra.mxu0 %v358
  %v666 = vpop.f32.mrf.mxu0
  %v667 = vadd.f32 0.0, %v666
  %668 = vmatmul.f32.gmra.mxu0 %v361
  %v669 = vpop.f32.mrf.mxu0
  %v670 = vadd.f32 0.0, %v669
  %671 = vmatmul.f32.gmra.mxu0 %v364
  %v672 = vpop.f32.mrf.mxu0
  %v673 = vadd.f32 0.0, %v672
  %674 = vmatmul.f32.gmra.mxu0 %v367
  %v675 = vpop.f32.mrf.mxu0
  %v676 = vadd.f32 0.0, %v675
  %677 = vmatmul.f32.gmra.mxu0 %v370
  %v678 = vpop.f32.mrf.mxu0
  %v679 = vadd.f32 0.0, %v678
  %680 = vmatmul.f32.gmra.mxu0 %v373
  %v681 = vpop.f32.mrf.mxu0
  %v682 = vadd.f32 0.0, %v681
  %683 = vmatmul.f32.gmra.mxu0 %v376
  %v684 = vpop.f32.mrf.mxu0
  %v685 = vadd.f32 0.0, %v684
  %686 = vmatmul.f32.gmra.mxu0 %v379
  %v687 = vpop.f32.mrf.mxu0
  %v688 = vadd.f32 0.0, %v687
  %689 = vmatmul.f32.gmra.mxu0 %v382
  %v690 = vpop.f32.mrf.mxu0
  %v691 = vadd.f32 0.0, %v690
  %692 = vmatmul.f32.gmra.mxu0 %v385
  %v693 = vpop.f32.mrf.mxu0
  %v694 = vadd.f32 0.0, %v693
  %695 = vmatmul.f32.gmra.mxu0 %v388
  %v696 = vpop.f32.mrf.mxu0
  %v697 = vadd.f32 0.0, %v696
  %698 = vmatmul.f32.gmra.mxu0 %v391
  %v699 = vpop.f32.mrf.mxu0
  %v700 = vadd.f32 0.0, %v699
  %701 = vmatmul.f32.gmra.mxu0 %v394
  %v702 = vpop.f32.mrf.mxu0
  %v703 = vadd.f32 0.0, %v702
  %704 = vmatmul.f32.gmra.mxu0 %v397
  %v705 = vpop.f32.mrf.mxu0
  %v706 = vadd.f32 0.0, %v705
  %707 = vmatmul.f32.gmra.mxu0 %v400
  %v708 = vpop.f32.mrf.mxu0
  %v709 = vadd.f32 0.0, %v708
  %710 = vmatmul.f32.gmra.mxu0 %v403
  %v711 = vpop.f32.mrf.mxu0
  %v712 = vadd.f32 0.0, %v711
  %713 = vdwg.mxu0
  %714 = vrot.lane.b32.xlu0 %v20, 116
  %v715 = vpop.permute.xlu0 %714
  %716 = vrot.lane.b32.xlu0 %v21, 116
  %v717 = vpop.permute.xlu0 %716
  %718 = vrot.lane.b32.xlu0 %v22, 116
  %v719 = vpop.permute.xlu0 %718
  %720 = vrot.lane.b32.xlu0 %v23, 116
  %v721 = vpop.permute.xlu0 %720
  %722 = vrot.lane.b32.xlu0 %v24, 116
  %v723 = vpop.permute.xlu0 %722
  %724 = vrot.lane.b32.xlu0 %v25, 116
  %v725 = vpop.permute.xlu0 %724
  %726 = vrot.lane.b32.xlu0 %v26, 116
  %v727 = vpop.permute.xlu0 %726
  %728 = vrot.lane.b32.xlu0 %v27, 116
  %v729 = vpop.permute.xlu0 %728
  %730 = vrot.lane.b32.xlu0 %v28, 116
  %v731 = vpop.permute.xlu0 %730
  %732 = vrot.lane.b32.xlu0 %v29, 116
  %v733 = vpop.permute.xlu0 %732
  %734 = vrot.lane.b32.xlu0 %v30, 116
  %v735 = vpop.permute.xlu0 %734
  %736 = vrot.lane.b32.xlu0 %v31, 116
  %v737 = vpop.permute.xlu0 %736
  %738 = vrot.lane.b32.xlu0 %v32, 116
  %v739 = vpop.permute.xlu0 %738
  %740 = vrot.lane.b32.xlu0 %v33, 116
  %v741 = vpop.permute.xlu0 %740
  %742 = vrot.lane.b32.xlu0 %v34, 116
  %v743 = vpop.permute.xlu0 %742
  %744 = vrot.lane.b32.xlu0 %v35, 116
  %v745 = vpop.permute.xlu0 %744
  %746 = vrot.lane.b32.xlu0 %v36, 116
  %v747 = vpop.permute.xlu0 %746
  %748 = vrot.lane.b32.xlu0 %v37, 116
  %v749 = vpop.permute.xlu0 %748
  %750 = vrot.lane.b32.xlu0 %v38, 116
  %v751 = vpop.permute.xlu0 %750
  %752 = vrot.lane.b32.xlu0 %v39, 116
  %v753 = vpop.permute.xlu0 %752
  %754 = vrot.lane.b32.xlu0 %v40, 116
  %v755 = vpop.permute.xlu0 %754
  %756 = vrot.lane.b32.xlu0 %v41, 116
  %v757 = vpop.permute.xlu0 %756
  %758 = vrot.lane.b32.xlu0 %v42, 116
  %v759 = vpop.permute.xlu0 %758
  %760 = vrot.lane.b32.xlu0 %v43, 116
  %v761 = vpop.permute.xlu0 %760
  %762 = vrot.lane.b32.xlu0 %v44, 116
  %v763 = vpop.permute.xlu0 %762
  %764 = vrot.lane.b32.xlu0 %v45, 116
  %v765 = vpop.permute.xlu0 %764
  %766 = vrot.lane.b32.xlu0 %v46, 116
  %v767 = vpop.permute.xlu0 %766
  %768 = vrot.lane.b32.xlu0 %v47, 116
  %v769 = vpop.permute.xlu0 %768
  %770 = vrot.lane.b32.xlu0 %v48, 116
  %v771 = vpop.permute.xlu0 %770
  %772 = vrot.lane.b32.xlu0 %v49, 116
  %v773 = vpop.permute.xlu0 %772
  %774 = vrot.lane.b32.xlu0 %v50, 116
  %v775 = vpop.permute.xlu0 %774
  %776 = vrot.lane.b32.xlu0 %v51, 116
  %v777 = vpop.permute.xlu0 %776
  %778 = vrot.lane.b32.xlu0 %v52, 116
  %v779 = vpop.permute.xlu0 %778
  %780 = vrot.lane.b32.xlu0 %v53, 116
  %v781 = vpop.permute.xlu0 %780
  %782 = vrot.lane.b32.xlu0 %v54, 116
  %v783 = vpop.permute.xlu0 %782
  %784 = vrot.lane.b32.xlu0 %v55, 116
  %v785 = vpop.permute.xlu0 %784
  %786 = vrot.lane.b32.xlu0 %v56, 116
  %v787 = vpop.permute.xlu0 %786
  %788 = vrot.lane.b32.xlu0 %v57, 116
  %v789 = vpop.permute.xlu0 %788
  %790 = vrot.lane.b32.xlu0 %v58, 116
  %v791 = vpop.permute.xlu0 %790
  %792 = vrot.lane.b32.xlu0 %v59, 116
  %v793 = vpop.permute.xlu0 %792
  %794 = vrot.lane.b32.xlu0 %v60, 116
  %v795 = vpop.permute.xlu0 %794
  %796 = vrot.lane.b32.xlu0 %v61, 116
  %v797 = vpop.permute.xlu0 %796
  %798 = vrot.lane.b32.xlu0 %v62, 116
  %v799 = vpop.permute.xlu0 %798
  %800 = vrot.lane.b32.xlu0 %v63, 116
  %v801 = vpop.permute.xlu0 %800
  %802 = vrot.lane.b32.xlu0 %v64, 116
  %v803 = vpop.permute.xlu0 %802
  %804 = vrot.lane.b32.xlu0 %v65, 116
  %v805 = vpop.permute.xlu0 %804
  %806 = vrot.lane.b32.xlu0 %v66, 116
  %v807 = vpop.permute.xlu0 %806
  %808 = vrot.lane.b32.xlu0 %v67, 116
  %v809 = vpop.permute.xlu0 %808
  %810 = vrot.lane.b32.xlu0 %v68, 116
  %v811 = vpop.permute.xlu0 %810
  %812 = vrot.lane.b32.xlu0 %v69, 116
  %v813 = vpop.permute.xlu0 %812
  %814 = vrot.lane.b32.xlu0 %v70, 116
  %v815 = vpop.permute.xlu0 %814
  %816 = vrot.lane.b32.xlu0 %v71, 116
  %v817 = vpop.permute.xlu0 %816
  %818 = vrot.lane.b32.xlu0 %v72, 116
  %v819 = vpop.permute.xlu0 %818
  %820 = vrot.lane.b32.xlu0 %v73, 116
  %v821 = vpop.permute.xlu0 %820
  %822 = vrot.lane.b32.xlu0 %v74, 116
  %v823 = vpop.permute.xlu0 %822
  %824 = vrot.lane.b32.xlu0 %v75, 116
  %v825 = vpop.permute.xlu0 %824
  %826 = vrot.lane.b32.xlu0 %v76, 116
  %v827 = vpop.permute.xlu0 %826
  %828 = vrot.lane.b32.xlu0 %v77, 116
  %v829 = vpop.permute.xlu0 %828
  %830 = vrot.lane.b32.xlu0 %v78, 116
  %v831 = vpop.permute.xlu0 %830
  %832 = vrot.lane.b32.xlu0 %v79, 116
  %v833 = vpop.permute.xlu0 %832
  %834 = vrot.lane.b32.xlu0 %v80, 116
  %v835 = vpop.permute.xlu0 %834
  %836 = vrot.lane.b32.xlu0 %v81, 116
  %v837 = vpop.permute.xlu0 %836
  %838 = vrot.lane.b32.xlu0 %v82, 116
  %v839 = vpop.permute.xlu0 %838
  %840 = vrot.lane.b32.xlu0 %v83, 116
  %v841 = vpop.permute.xlu0 %840
  %842 = vrot.lane.b32.xlu0 %v84, 116
  %v843 = vpop.permute.xlu0 %842
  %844 = vrot.lane.b32.xlu0 %v85, 116
  %v845 = vpop.permute.xlu0 %844
  %846 = vrot.lane.b32.xlu0 %v86, 116
  %v847 = vpop.permute.xlu0 %846
  %848 = vrot.lane.b32.xlu0 %v87, 116
  %v849 = vpop.permute.xlu0 %848
  %850 = vrot.lane.b32.xlu0 %v88, 116
  %v851 = vpop.permute.xlu0 %850
  %852 = vrot.lane.b32.xlu0 %v89, 116
  %v853 = vpop.permute.xlu0 %852
  %854 = vrot.lane.b32.xlu0 %v90, 116
  %v855 = vpop.permute.xlu0 %854
  %856 = vrot.lane.b32.xlu0 %v91, 116
  %v857 = vpop.permute.xlu0 %856
  %858 = vrot.lane.b32.xlu0 %v92, 116
  %v859 = vpop.permute.xlu0 %858
  %860 = vrot.lane.b32.xlu0 %v93, 116
  %v861 = vpop.permute.xlu0 %860
  %862 = vrot.lane.b32.xlu0 %v94, 116
  %v863 = vpop.permute.xlu0 %862
  %864 = vrot.lane.b32.xlu0 %v95, 116
  %v865 = vpop.permute.xlu0 %864
  %866 = vrot.lane.b32.xlu0 %v96, 116
  %v867 = vpop.permute.xlu0 %866
  %868 = vrot.lane.b32.xlu0 %v97, 116
  %v869 = vpop.permute.xlu0 %868
  %870 = vrot.lane.b32.xlu0 %v98, 116
  %v871 = vpop.permute.xlu0 %870
  %872 = vrot.lane.b32.xlu0 %v99, 116
  %v873 = vpop.permute.xlu0 %872
  %874 = vrot.lane.b32.xlu0 %v100, 116
  %v875 = vpop.permute.xlu0 %874
  %876 = vrot.lane.b32.xlu0 %v101, 116
  %v877 = vpop.permute.xlu0 %876
  %878 = vrot.lane.b32.xlu0 %v102, 116
  %v879 = vpop.permute.xlu0 %878
  %880 = vrot.lane.b32.xlu0 %v103, 116
  %v881 = vpop.permute.xlu0 %880
  %882 = vrot.lane.b32.xlu0 %v104, 116
  %v883 = vpop.permute.xlu0 %882
  %884 = vrot.lane.b32.xlu0 %v105, 116
  %v885 = vpop.permute.xlu0 %884
  %886 = vrot.lane.b32.xlu0 %v106, 116
  %v887 = vpop.permute.xlu0 %886
  %888 = vrot.lane.b32.xlu0 %v107, 116
  %v889 = vpop.permute.xlu0 %888
  %890 = vrot.lane.b32.xlu0 %v108, 116
  %v891 = vpop.permute.xlu0 %890
  %892 = vrot.lane.b32.xlu0 %v109, 116
  %v893 = vpop.permute.xlu0 %892
  %894 = vrot.lane.b32.xlu0 %v110, 116
  %v895 = vpop.permute.xlu0 %894
  %896 = vrot.lane.b32.xlu0 %v111, 116
  %v897 = vpop.permute.xlu0 %896
  %898 = vrot.lane.b32.xlu0 %v112, 116
  %v899 = vpop.permute.xlu0 %898
  %900 = vrot.lane.b32.xlu0 %v113, 116
  %v901 = vpop.permute.xlu0 %900
  %902 = vrot.lane.b32.xlu0 %v114, 116
  %v903 = vpop.permute.xlu0 %902
  %904 = vrot.lane.b32.xlu0 %v115, 116
  %v905 = vpop.permute.xlu0 %904
  %v906 = vsel %vm116, %v715, 0
  %v908 = vsel %vm116, %v717, 0
  %v910 = vsel %vm116, %v719, 0
  %v912 = vsel %vm116, %v721, 0
  %v914 = vsel %vm116, %v723, 0
  %v916 = vsel %vm116, %v725, 0
  %v918 = vsel %vm116, %v727, 0
  %v920 = vsel %vm116, %v729, 0
  %v922 = vsel %vm116, %v731, 0
  %v924 = vsel %vm116, %v733, 0
  %v926 = vsel %vm116, %v735, 0
  %v928 = vsel %vm116, %v737, 0
  %v930 = vsel %vm116, %v739, 0
  %v932 = vsel %vm116, %v741, 0
  %v934 = vsel %vm116, %v743, 0
  %v936 = vsel %vm116, %v745, 0
  %v938 = vsel %vm116, %v747, 0
  %v940 = vsel %vm116, %v749, 0
  %v942 = vsel %vm116, %v751, 0
  %v944 = vsel %vm116, %v753, 0
  %v946 = vsel %vm116, %v755, 0
  %v948 = vsel %vm116, %v757, 0
  %v950 = vsel %vm116, %v759, 0
  %v952 = vsel %vm116, %v761, 0
  %v954 = vsel %vm116, %v763, 0
  %v956 = vsel %vm116, %v765, 0
  %v958 = vsel %vm116, %v767, 0
  %v960 = vsel %vm116, %v769, 0
  %v962 = vsel %vm116, %v771, 0
  %v964 = vsel %vm116, %v773, 0
  %v966 = vsel %vm116, %v775, 0
  %v968 = vsel %vm116, %v777, 0
  %v970 = vsel %vm116, %v779, 0
  %v972 = vsel %vm116, %v781, 0
  %v974 = vsel %vm116, %v783, 0
  %v976 = vsel %vm116, %v785, 0
  %v978 = vsel %vm116, %v787, 0
  %v980 = vsel %vm116, %v789, 0
  %v982 = vsel %vm116, %v791, 0
  %v984 = vsel %vm116, %v793, 0
  %v986 = vsel %vm116, %v795, 0
  %v988 = vsel %vm116, %v797, 0
  %v990 = vsel %vm116, %v799, 0
  %v992 = vsel %vm116, %v801, 0
  %v994 = vsel %vm116, %v803, 0
  %v996 = vsel %vm116, %v805, 0
  %v998 = vsel %vm116, %v807, 0
  %v1000 = vsel %vm116, %v809, 0
  %v1002 = vsel %vm116, %v811, 0
  %v1004 = vsel %vm116, %v813, 0
  %v1006 = vsel %vm116, %v815, 0
  %v1008 = vsel %vm116, %v817, 0
  %v1010 = vsel %vm116, %v819, 0
  %v1012 = vsel %vm116, %v821, 0
  %v1014 = vsel %vm116, %v823, 0
  %v1016 = vsel %vm116, %v825, 0
  %v1018 = vsel %vm116, %v827, 0
  %v1020 = vsel %vm116, %v829, 0
  %v1022 = vsel %vm116, %v831, 0
  %v1024 = vsel %vm116, %v833, 0
  %v1026 = vsel %vm116, %v835, 0
  %v1028 = vsel %vm116, %v837, 0
  %v1030 = vsel %vm116, %v839, 0
  %v1032 = vsel %vm116, %v841, 0
  %v1034 = vsel %vm116, %v843, 0
  %v1036 = vsel %vm116, %v845, 0
  %v1038 = vsel %vm116, %v847, 0
  %v1040 = vsel %vm116, %v849, 0
  %v1042 = vsel %vm116, %v851, 0
  %v1044 = vsel %vm116, %v853, 0
  %v1046 = vsel %vm116, %v855, 0
  %v1048 = vsel %vm116, %v857, 0
  %v1050 = vsel %vm116, %v859, 0
  %v1052 = vsel %vm116, %v861, 0
  %v1054 = vsel %vm116, %v863, 0
  %v1056 = vsel %vm116, %v865, 0
  %v1058 = vsel %vm116, %v867, 0
  %v1060 = vsel %vm116, %v869, 0
  %v1062 = vsel %vm116, %v871, 0
  %v1064 = vsel %vm116, %v873, 0
  %v1066 = vsel %vm116, %v875, 0
  %v1068 = vsel %vm116, %v877, 0
  %v1070 = vsel %vm116, %v879, 0
  %v1072 = vsel %vm116, %v881, 0
  %v1074 = vsel %vm116, %v883, 0
  %v1076 = vsel %vm116, %v885, 0
  %v1078 = vsel %vm116, %v887, 0
  %v1080 = vsel %vm116, %v889, 0
  %v1082 = vsel %vm116, %v891, 0
  %v1084 = vsel %vm116, %v893, 0
  %v1086 = vsel %vm116, %v895, 0
  %v1088 = vsel %vm116, %v897, 0
  %v1090 = vsel %vm116, %v899, 0
  %v1092 = vsel %vm116, %v901, 0
  %v1094 = vsel %vm116, %v903, 0
  %v1096 = vsel %vm116, %v905, 0
  %1098 = vmatpush.msra.mxu0 0.0
  %1099 = vmatpush.msra.mxu0 0.0
  %1100 = vmatpush.msra.mxu0 0.0
  %1101 = vmatpush.msra.mxu0 0.0
  %1102 = vmatpush.msra.mxu0 0.0
  %1103 = vmatpush.msra.mxu0 0.0
  %1104 = vmatpush.msra.mxu0 0.0
  %1105 = vmatpush.msra.mxu0 0.0
  %1106 = vmatpush.msra.mxu0 0.0
  %1107 = vmatpush.msra.mxu0 0.0
  %1108 = vmatpush.msra.mxu0 0.0
  %1109 = vmatpush.msra.mxu0 %v407
  %1110 = vmatpush.msra.mxu0 %v17
  %1111 = vmatpush.msra.mxu0 %v16
  %1112 = vmatpush.msra.mxu0 %v15
  %1113 = vmatpush.msra.mxu0 %v14
  %1114 = vmatmul.f32.gmra.mxu0 %v906
  %v1115 = vpop.f32.mrf.mxu0
  %v1116 = vadd.f32 0.0, %v1115
  %1117 = vmatmul.f32.gmra.mxu0 %v908
  %v1118 = vpop.f32.mrf.mxu0
  %v1119 = vadd.f32 0.0, %v1118
  %1120 = vmatmul.f32.gmra.mxu0 %v910
  %v1121 = vpop.f32.mrf.mxu0
  %v1122 = vadd.f32 0.0, %v1121
  %1123 = vmatmul.f32.gmra.mxu0 %v912
  %v1124 = vpop.f32.mrf.mxu0
  %v1125 = vadd.f32 0.0, %v1124
  %1126 = vmatmul.f32.gmra.mxu0 %v914
  %v1127 = vpop.f32.mrf.mxu0
  %v1128 = vadd.f32 0.0, %v1127
  %1129 = vmatmul.f32.gmra.mxu0 %v916
  %v1130 = vpop.f32.mrf.mxu0
  %v1131 = vadd.f32 0.0, %v1130
  %1132 = vmatmul.f32.gmra.mxu0 %v918
  %v1133 = vpop.f32.mrf.mxu0
  %v1134 = vadd.f32 0.0, %v1133
  %1135 = vmatmul.f32.gmra.mxu0 %v920
  %v1136 = vpop.f32.mrf.mxu0
  %v1137 = vadd.f32 0.0, %v1136
  %1138 = vmatmul.f32.gmra.mxu0 %v922
  %v1139 = vpop.f32.mrf.mxu0
  %v1140 = vadd.f32 0.0, %v1139
  %1141 = vmatmul.f32.gmra.mxu0 %v924
  %v1142 = vpop.f32.mrf.mxu0
  %v1143 = vadd.f32 0.0, %v1142
  %1144 = vmatmul.f32.gmra.mxu0 %v926
  %v1145 = vpop.f32.mrf.mxu0
  %v1146 = vadd.f32 0.0, %v1145
  %1147 = vmatmul.f32.gmra.mxu0 %v928
  %v1148 = vpop.f32.mrf.mxu0
  %v1149 = vadd.f32 0.0, %v1148
  %1150 = vmatmul.f32.gmra.mxu0 %v930
  %v1151 = vpop.f32.mrf.mxu0
  %v1152 = vadd.f32 0.0, %v1151
  %1153 = vmatmul.f32.gmra.mxu0 %v932
  %v1154 = vpop.f32.mrf.mxu0
  %v1155 = vadd.f32 0.0, %v1154
  %1156 = vmatmul.f32.gmra.mxu0 %v934
  %v1157 = vpop.f32.mrf.mxu0
  %v1158 = vadd.f32 0.0, %v1157
  %1159 = vmatmul.f32.gmra.mxu0 %v936
  %v1160 = vpop.f32.mrf.mxu0
  %v1161 = vadd.f32 0.0, %v1160
  %1162 = vmatmul.f32.gmra.mxu0 %v938
  %v1163 = vpop.f32.mrf.mxu0
  %v1164 = vadd.f32 0.0, %v1163
  %1165 = vmatmul.f32.gmra.mxu0 %v940
  %v1166 = vpop.f32.mrf.mxu0
  %v1167 = vadd.f32 0.0, %v1166
  %1168 = vmatmul.f32.gmra.mxu0 %v942
  %v1169 = vpop.f32.mrf.mxu0
  %v1170 = vadd.f32 0.0, %v1169
  %1171 = vmatmul.f32.gmra.mxu0 %v944
  %v1172 = vpop.f32.mrf.mxu0
  %v1173 = vadd.f32 0.0, %v1172
  %1174 = vmatmul.f32.gmra.mxu0 %v946
  %v1175 = vpop.f32.mrf.mxu0
  %v1176 = vadd.f32 0.0, %v1175
  %1177 = vmatmul.f32.gmra.mxu0 %v948
  %v1178 = vpop.f32.mrf.mxu0
  %v1179 = vadd.f32 0.0, %v1178
  %1180 = vmatmul.f32.gmra.mxu0 %v950
  %v1181 = vpop.f32.mrf.mxu0
  %v1182 = vadd.f32 0.0, %v1181
  %1183 = vmatmul.f32.gmra.mxu0 %v952
  %v1184 = vpop.f32.mrf.mxu0
  %v1185 = vadd.f32 0.0, %v1184
  %1186 = vmatmul.f32.gmra.mxu0 %v954
  %v1187 = vpop.f32.mrf.mxu0
  %v1188 = vadd.f32 0.0, %v1187
  %1189 = vmatmul.f32.gmra.mxu0 %v956
  %v1190 = vpop.f32.mrf.mxu0
  %v1191 = vadd.f32 0.0, %v1190
  %1192 = vmatmul.f32.gmra.mxu0 %v958
  %v1193 = vpop.f32.mrf.mxu0
  %v1194 = vadd.f32 0.0, %v1193
  %1195 = vmatmul.f32.gmra.mxu0 %v960
  %v1196 = vpop.f32.mrf.mxu0
  %v1197 = vadd.f32 0.0, %v1196
  %1198 = vmatmul.f32.gmra.mxu0 %v962
  %v1199 = vpop.f32.mrf.mxu0
  %v1200 = vadd.f32 0.0, %v1199
  %1201 = vmatmul.f32.gmra.mxu0 %v964
  %v1202 = vpop.f32.mrf.mxu0
  %v1203 = vadd.f32 0.0, %v1202
  %1204 = vmatmul.f32.gmra.mxu0 %v966
  %v1205 = vpop.f32.mrf.mxu0
  %v1206 = vadd.f32 0.0, %v1205
  %1207 = vmatmul.f32.gmra.mxu0 %v968
  %v1208 = vpop.f32.mrf.mxu0
  %v1209 = vadd.f32 0.0, %v1208
  %1210 = vmatmul.f32.gmra.mxu0 %v970
  %v1211 = vpop.f32.mrf.mxu0
  %v1212 = vadd.f32 0.0, %v1211
  %1213 = vmatmul.f32.gmra.mxu0 %v972
  %v1214 = vpop.f32.mrf.mxu0
  %v1215 = vadd.f32 0.0, %v1214
  %1216 = vmatmul.f32.gmra.mxu0 %v974
  %v1217 = vpop.f32.mrf.mxu0
  %v1218 = vadd.f32 0.0, %v1217
  %1219 = vmatmul.f32.gmra.mxu0 %v976
  %v1220 = vpop.f32.mrf.mxu0
  %v1221 = vadd.f32 0.0, %v1220
  %1222 = vmatmul.f32.gmra.mxu0 %v978
  %v1223 = vpop.f32.mrf.mxu0
  %v1224 = vadd.f32 0.0, %v1223
  %1225 = vmatmul.f32.gmra.mxu0 %v980
  %v1226 = vpop.f32.mrf.mxu0
  %v1227 = vadd.f32 0.0, %v1226
  %1228 = vmatmul.f32.gmra.mxu0 %v982
  %v1229 = vpop.f32.mrf.mxu0
  %v1230 = vadd.f32 0.0, %v1229
  %1231 = vmatmul.f32.gmra.mxu0 %v984
  %v1232 = vpop.f32.mrf.mxu0
  %v1233 = vadd.f32 0.0, %v1232
  %1234 = vmatmul.f32.gmra.mxu0 %v986
  %v1235 = vpop.f32.mrf.mxu0
  %v1236 = vadd.f32 0.0, %v1235
  %1237 = vmatmul.f32.gmra.mxu0 %v988
  %v1238 = vpop.f32.mrf.mxu0
  %v1239 = vadd.f32 0.0, %v1238
  %1240 = vmatmul.f32.gmra.mxu0 %v990
  %v1241 = vpop.f32.mrf.mxu0
  %v1242 = vadd.f32 0.0, %v1241
  %1243 = vmatmul.f32.gmra.mxu0 %v992
  %v1244 = vpop.f32.mrf.mxu0
  %v1245 = vadd.f32 0.0, %v1244
  %1246 = vmatmul.f32.gmra.mxu0 %v994
  %v1247 = vpop.f32.mrf.mxu0
  %v1248 = vadd.f32 0.0, %v1247
  %1249 = vmatmul.f32.gmra.mxu0 %v996
  %v1250 = vpop.f32.mrf.mxu0
  %v1251 = vadd.f32 0.0, %v1250
  %1252 = vmatmul.f32.gmra.mxu0 %v998
  %v1253 = vpop.f32.mrf.mxu0
  %v1254 = vadd.f32 0.0, %v1253
  %1255 = vmatmul.f32.gmra.mxu0 %v1000
  %v1256 = vpop.f32.mrf.mxu0
  %v1257 = vadd.f32 0.0, %v1256
  %1258 = vmatmul.f32.gmra.mxu0 %v1002
  %v1259 = vpop.f32.mrf.mxu0
  %v1260 = vadd.f32 0.0, %v1259
  %1261 = vmatmul.f32.gmra.mxu0 %v1004
  %v1262 = vpop.f32.mrf.mxu0
  %v1263 = vadd.f32 0.0, %v1262
  %1264 = vmatmul.f32.gmra.mxu0 %v1006
  %v1265 = vpop.f32.mrf.mxu0
  %v1266 = vadd.f32 0.0, %v1265
  %1267 = vmatmul.f32.gmra.mxu0 %v1008
  %v1268 = vpop.f32.mrf.mxu0
  %v1269 = vadd.f32 0.0, %v1268
  %1270 = vmatmul.f32.gmra.mxu0 %v1010
  %v1271 = vpop.f32.mrf.mxu0
  %v1272 = vadd.f32 0.0, %v1271
  %1273 = vmatmul.f32.gmra.mxu0 %v1012
  %v1274 = vpop.f32.mrf.mxu0
  %v1275 = vadd.f32 0.0, %v1274
  %1276 = vmatmul.f32.gmra.mxu0 %v1014
  %v1277 = vpop.f32.mrf.mxu0
  %v1278 = vadd.f32 0.0, %v1277
  %1279 = vmatmul.f32.gmra.mxu0 %v1016
  %v1280 = vpop.f32.mrf.mxu0
  %v1281 = vadd.f32 0.0, %v1280
  %1282 = vmatmul.f32.gmra.mxu0 %v1018
  %v1283 = vpop.f32.mrf.mxu0
  %v1284 = vadd.f32 0.0, %v1283
  %1285 = vmatmul.f32.gmra.mxu0 %v1020
  %v1286 = vpop.f32.mrf.mxu0
  %v1287 = vadd.f32 0.0, %v1286
  %1288 = vmatmul.f32.gmra.mxu0 %v1022
  %v1289 = vpop.f32.mrf.mxu0
  %v1290 = vadd.f32 0.0, %v1289
  %1291 = vmatmul.f32.gmra.mxu0 %v1024
  %v1292 = vpop.f32.mrf.mxu0
  %v1293 = vadd.f32 0.0, %v1292
  %1294 = vmatmul.f32.gmra.mxu0 %v1026
  %v1295 = vpop.f32.mrf.mxu0
  %v1296 = vadd.f32 0.0, %v1295
  %1297 = vmatmul.f32.gmra.mxu0 %v1028
  %v1298 = vpop.f32.mrf.mxu0
  %v1299 = vadd.f32 0.0, %v1298
  %1300 = vmatmul.f32.gmra.mxu0 %v1030
  %v1301 = vpop.f32.mrf.mxu0
  %v1302 = vadd.f32 0.0, %v1301
  %1303 = vmatmul.f32.gmra.mxu0 %v1032
  %v1304 = vpop.f32.mrf.mxu0
  %v1305 = vadd.f32 0.0, %v1304
  %1306 = vmatmul.f32.gmra.mxu0 %v1034
  %v1307 = vpop.f32.mrf.mxu0
  %v1308 = vadd.f32 0.0, %v1307
  %1309 = vmatmul.f32.gmra.mxu0 %v1036
  %v1310 = vpop.f32.mrf.mxu0
  %v1311 = vadd.f32 0.0, %v1310
  %1312 = vmatmul.f32.gmra.mxu0 %v1038
  %v1313 = vpop.f32.mrf.mxu0
  %v1314 = vadd.f32 0.0, %v1313
  %1315 = vmatmul.f32.gmra.mxu0 %v1040
  %v1316 = vpop.f32.mrf.mxu0
  %v1317 = vadd.f32 0.0, %v1316
  %1318 = vmatmul.f32.gmra.mxu0 %v1042
  %v1319 = vpop.f32.mrf.mxu0
  %v1320 = vadd.f32 0.0, %v1319
  %1321 = vmatmul.f32.gmra.mxu0 %v1044
  %v1322 = vpop.f32.mrf.mxu0
  %v1323 = vadd.f32 0.0, %v1322
  %1324 = vmatmul.f32.gmra.mxu0 %v1046
  %v1325 = vpop.f32.mrf.mxu0
  %v1326 = vadd.f32 0.0, %v1325
  %1327 = vmatmul.f32.gmra.mxu0 %v1048
  %v1328 = vpop.f32.mrf.mxu0
  %v1329 = vadd.f32 0.0, %v1328
  %1330 = vmatmul.f32.gmra.mxu0 %v1050
  %v1331 = vpop.f32.mrf.mxu0
  %v1332 = vadd.f32 0.0, %v1331
  %1333 = vmatmul.f32.gmra.mxu0 %v1052
  %v1334 = vpop.f32.mrf.mxu0
  %v1335 = vadd.f32 0.0, %v1334
  %1336 = vmatmul.f32.gmra.mxu0 %v1054
  %v1337 = vpop.f32.mrf.mxu0
  %v1338 = vadd.f32 0.0, %v1337
  %1339 = vmatmul.f32.gmra.mxu0 %v1056
  %v1340 = vpop.f32.mrf.mxu0
  %v1341 = vadd.f32 0.0, %v1340
  %1342 = vmatmul.f32.gmra.mxu0 %v1058
  %v1343 = vpop.f32.mrf.mxu0
  %v1344 = vadd.f32 0.0, %v1343
  %1345 = vmatmul.f32.gmra.mxu0 %v1060
  %v1346 = vpop.f32.mrf.mxu0
  %v1347 = vadd.f32 0.0, %v1346
  %1348 = vmatmul.f32.gmra.mxu0 %v1062
  %v1349 = vpop.f32.mrf.mxu0
  %v1350 = vadd.f32 0.0, %v1349
  %1351 = vmatmul.f32.gmra.mxu0 %v1064
  %v1352 = vpop.f32.mrf.mxu0
  %v1353 = vadd.f32 0.0, %v1352
  %1354 = vmatmul.f32.gmra.mxu0 %v1066
  %v1355 = vpop.f32.mrf.mxu0
  %v1356 = vadd.f32 0.0, %v1355
  %1357 = vmatmul.f32.gmra.mxu0 %v1068
  %v1358 = vpop.f32.mrf.mxu0
  %v1359 = vadd.f32 0.0, %v1358
  %1360 = vmatmul.f32.gmra.mxu0 %v1070
  %v1361 = vpop.f32.mrf.mxu0
  %v1362 = vadd.f32 0.0, %v1361
  %1363 = vmatmul.f32.gmra.mxu0 %v1072
  %v1364 = vpop.f32.mrf.mxu0
  %v1365 = vadd.f32 0.0, %v1364
  %1366 = vmatmul.f32.gmra.mxu0 %v1074
  %v1367 = vpop.f32.mrf.mxu0
  %v1368 = vadd.f32 0.0, %v1367
  %1369 = vmatmul.f32.gmra.mxu0 %v1076
  %v1370 = vpop.f32.mrf.mxu0
  %v1371 = vadd.f32 0.0, %v1370
  %1372 = vmatmul.f32.gmra.mxu0 %v1078
  %v1373 = vpop.f32.mrf.mxu0
  %v1374 = vadd.f32 0.0, %v1373
  %1375 = vmatmul.f32.gmra.mxu0 %v1080
  %v1376 = vpop.f32.mrf.mxu0
  %v1377 = vadd.f32 0.0, %v1376
  %1378 = vmatmul.f32.gmra.mxu0 %v1082
  %v1379 = vpop.f32.mrf.mxu0
  %v1380 = vadd.f32 0.0, %v1379
  %1381 = vmatmul.f32.gmra.mxu0 %v1084
  %v1382 = vpop.f32.mrf.mxu0
  %v1383 = vadd.f32 0.0, %v1382
  %1384 = vmatmul.f32.gmra.mxu0 %v1086
  %v1385 = vpop.f32.mrf.mxu0
  %v1386 = vadd.f32 0.0, %v1385
  %1387 = vmatmul.f32.gmra.mxu0 %v1088
  %v1388 = vpop.f32.mrf.mxu0
  %v1389 = vadd.f32 0.0, %v1388
  %1390 = vmatmul.f32.gmra.mxu0 %v1090
  %v1391 = vpop.f32.mrf.mxu0
  %v1392 = vadd.f32 0.0, %v1391
  %1393 = vmatmul.f32.gmra.mxu0 %v1092
  %v1394 = vpop.f32.mrf.mxu0
  %v1395 = vadd.f32 0.0, %v1394
  %1396 = vmatmul.f32.gmra.mxu0 %v1094
  %v1397 = vpop.f32.mrf.mxu0
  %v1398 = vadd.f32 0.0, %v1397
  %1399 = vmatmul.f32.gmra.mxu0 %v1096
  %v1400 = vpop.f32.mrf.mxu0
  %v1401 = vadd.f32 0.0, %v1400
  %1402 = vdwg.mxu0
  %v1403 = vmax.f32 %v427, %v1116
  %v1404 = vmax.f32 %v430, %v1119
  %v1405 = vmax.f32 %v433, %v1122
  %v1406 = vmax.f32 %v436, %v1125
  %v1407 = vmax.f32 %v439, %v1128
  %v1408 = vmax.f32 %v442, %v1131
  %v1409 = vmax.f32 %v445, %v1134
  %v1410 = vmax.f32 %v448, %v1137
  %v1411 = vmax.f32 %v451, %v1140
  %v1412 = vmax.f32 %v454, %v1143
  %v1413 = vmax.f32 %v457, %v1146
  %v1414 = vmax.f32 %v460, %v1149
  %v1415 = vmax.f32 %v463, %v1152
  %v1416 = vmax.f32 %v466, %v1155
  %v1417 = vmax.f32 %v469, %v1158
  %v1418 = vmax.f32 %v472, %v1161
  %v1419 = vmax.f32 %v475, %v1164
  %v1420 = vmax.f32 %v478, %v1167
  %v1421 = vmax.f32 %v481, %v1170
  %v1422 = vmax.f32 %v484, %v1173
  %v1423 = vmax.f32 %v487, %v1176
  %v1424 = vmax.f32 %v490, %v1179
  %v1425 = vmax.f32 %v493, %v1182
  %v1426 = vmax.f32 %v496, %v1185
  %v1427 = vmax.f32 %v499, %v1188
  %v1428 = vmax.f32 %v502, %v1191
  %v1429 = vmax.f32 %v505, %v1194
  %v1430 = vmax.f32 %v508, %v1197
  %v1431 = vmax.f32 %v511, %v1200
  %v1432 = vmax.f32 %v514, %v1203
  %v1433 = vmax.f32 %v517, %v1206
  %v1434 = vmax.f32 %v520, %v1209
  %v1435 = vmax.f32 %v523, %v1212
  %v1436 = vmax.f32 %v526, %v1215
  %v1437 = vmax.f32 %v529, %v1218
  %v1438 = vmax.f32 %v532, %v1221
  %v1439 = vmax.f32 %v535, %v1224
  %v1440 = vmax.f32 %v538, %v1227
  %v1441 = vmax.f32 %v541, %v1230
  %v1442 = vmax.f32 %v544, %v1233
  %v1443 = vmax.f32 %v547, %v1236
  %v1444 = vmax.f32 %v550, %v1239
  %v1445 = vmax.f32 %v553, %v1242
  %v1446 = vmax.f32 %v556, %v1245
  %v1447 = vmax.f32 %v559, %v1248
  %v1448 = vmax.f32 %v562, %v1251
  %v1449 = vmax.f32 %v565, %v1254
  %v1450 = vmax.f32 %v568, %v1257
  %v1451 = vmax.f32 %v571, %v1260
  %v1452 = vmax.f32 %v574, %v1263
  %v1453 = vmax.f32 %v577, %v1266
  %v1454 = vmax.f32 %v580, %v1269
  %v1455 = vmax.f32 %v583, %v1272
  %v1456 = vmax.f32 %v586, %v1275
  %v1457 = vmax.f32 %v589, %v1278
  %v1458 = vmax.f32 %v592, %v1281
  %v1459 = vmax.f32 %v595, %v1284
  %v1460 = vmax.f32 %v598, %v1287
  %v1461 = vmax.f32 %v601, %v1290
  %v1462 = vmax.f32 %v604, %v1293
  %v1463 = vmax.f32 %v607, %v1296
  %v1464 = vmax.f32 %v610, %v1299
  %v1465 = vmax.f32 %v613, %v1302
  %v1466 = vmax.f32 %v616, %v1305
  %v1467 = vmax.f32 %v619, %v1308
  %v1468 = vmax.f32 %v622, %v1311
  %v1469 = vmax.f32 %v625, %v1314
  %v1470 = vmax.f32 %v628, %v1317
  %v1471 = vmax.f32 %v631, %v1320
  %v1472 = vmax.f32 %v634, %v1323
  %v1473 = vmax.f32 %v637, %v1326
  %v1474 = vmax.f32 %v640, %v1329
  %v1475 = vmax.f32 %v643, %v1332
  %v1476 = vmax.f32 %v646, %v1335
  %v1477 = vmax.f32 %v649, %v1338
  %v1478 = vmax.f32 %v652, %v1341
  %v1479 = vmax.f32 %v655, %v1344
  %v1480 = vmax.f32 %v658, %v1347
  %v1481 = vmax.f32 %v661, %v1350
  %v1482 = vmax.f32 %v664, %v1353
  %v1483 = vmax.f32 %v667, %v1356
  %v1484 = vmax.f32 %v670, %v1359
  %v1485 = vmax.f32 %v673, %v1362
  %v1486 = vmax.f32 %v676, %v1365
  %v1487 = vmax.f32 %v679, %v1368
  %v1488 = vmax.f32 %v682, %v1371
  %v1489 = vmax.f32 %v685, %v1374
  %v1490 = vmax.f32 %v688, %v1377
  %v1491 = vmax.f32 %v691, %v1380
  %v1492 = vmax.f32 %v694, %v1383
  %v1493 = vmax.f32 %v697, %v1386
  %v1494 = vmax.f32 %v700, %v1389
  %v1495 = vmax.f32 %v703, %v1392
  %v1496 = vmax.f32 %v706, %v1395
  %v1497 = vmax.f32 %v709, %v1398
  %v1498 = vmax.f32 %v712, %v1401
  %v1500 = vperm.slane %v19, 0
  %v1502 = vadd.f32 %v1403, %v1500
  %v1503 = vadd.f32 %v1404, %v1500
  %v1504 = vadd.f32 %v1405, %v1500
  %v1505 = vadd.f32 %v1406, %v1500
  %v1506 = vadd.f32 %v1407, %v1500
  %v1507 = vadd.f32 %v1408, %v1500
  %v1508 = vadd.f32 %v1409, %v1500
  %v1509 = vadd.f32 %v1410, %v1500
  %v1510 = vadd.f32 %v1411, %v1500
  %v1511 = vadd.f32 %v1412, %v1500
  %v1512 = vadd.f32 %v1413, %v1500
  %v1513 = vadd.f32 %v1414, %v1500
  %v1514 = vadd.f32 %v1415, %v1500
  %v1515 = vadd.f32 %v1416, %v1500
  %v1516 = vadd.f32 %v1417, %v1500
  %v1517 = vadd.f32 %v1418, %v1500
  %v1518 = vadd.f32 %v1419, %v1500
  %v1519 = vadd.f32 %v1420, %v1500
  %v1520 = vadd.f32 %v1421, %v1500
  %v1521 = vadd.f32 %v1422, %v1500
  %v1522 = vadd.f32 %v1423, %v1500
  %v1523 = vadd.f32 %v1424, %v1500
  %v1524 = vadd.f32 %v1425, %v1500
  %v1525 = vadd.f32 %v1426, %v1500
  %v1526 = vadd.f32 %v1427, %v1500
  %v1527 = vadd.f32 %v1428, %v1500
  %v1528 = vadd.f32 %v1429, %v1500
  %v1529 = vadd.f32 %v1430, %v1500
  %v1530 = vadd.f32 %v1431, %v1500
  %v1531 = vadd.f32 %v1432, %v1500
  %v1532 = vadd.f32 %v1433, %v1500
  %v1533 = vadd.f32 %v1434, %v1500
  %v1534 = vadd.f32 %v1435, %v1500
  %v1535 = vadd.f32 %v1436, %v1500
  %v1536 = vadd.f32 %v1437, %v1500
  %v1537 = vadd.f32 %v1438, %v1500
  %v1538 = vadd.f32 %v1439, %v1500
  %v1539 = vadd.f32 %v1440, %v1500
  %v1540 = vadd.f32 %v1441, %v1500
  %v1541 = vadd.f32 %v1442, %v1500
  %v1542 = vadd.f32 %v1443, %v1500
  %v1543 = vadd.f32 %v1444, %v1500
  %v1544 = vadd.f32 %v1445, %v1500
  %v1545 = vadd.f32 %v1446, %v1500
  %v1546 = vadd.f32 %v1447, %v1500
  %v1547 = vadd.f32 %v1448, %v1500
  %v1548 = vadd.f32 %v1449, %v1500
  %v1549 = vadd.f32 %v1450, %v1500
  %v1550 = vadd.f32 %v1451, %v1500
  %v1551 = vadd.f32 %v1452, %v1500
  %v1552 = vadd.f32 %v1453, %v1500
  %v1553 = vadd.f32 %v1454, %v1500
  %v1554 = vadd.f32 %v1455, %v1500
  %v1555 = vadd.f32 %v1456, %v1500
  %v1556 = vadd.f32 %v1457, %v1500
  %v1557 = vadd.f32 %v1458, %v1500
  %v1558 = vadd.f32 %v1459, %v1500
  %v1559 = vadd.f32 %v1460, %v1500
  %v1560 = vadd.f32 %v1461, %v1500
  %v1561 = vadd.f32 %v1462, %v1500
  %v1562 = vadd.f32 %v1463, %v1500
  %v1563 = vadd.f32 %v1464, %v1500
  %v1564 = vadd.f32 %v1465, %v1500
  %v1565 = vadd.f32 %v1466, %v1500
  %v1566 = vadd.f32 %v1467, %v1500
  %v1567 = vadd.f32 %v1468, %v1500
  %v1568 = vadd.f32 %v1469, %v1500
  %v1569 = vadd.f32 %v1470, %v1500
  %v1570 = vadd.f32 %v1471, %v1500
  %v1571 = vadd.f32 %v1472, %v1500
  %v1572 = vadd.f32 %v1473, %v1500
  %v1573 = vadd.f32 %v1474, %v1500
  %v1574 = vadd.f32 %v1475, %v1500
  %v1575 = vadd.f32 %v1476, %v1500
  %v1576 = vadd.f32 %v1477, %v1500
  %v1577 = vadd.f32 %v1478, %v1500
  %v1578 = vadd.f32 %v1479, %v1500
  %v1579 = vadd.f32 %v1480, %v1500
  %v1580 = vadd.f32 %v1481, %v1500
  %v1581 = vadd.f32 %v1482, %v1500
  %v1582 = vadd.f32 %v1483, %v1500
  %v1583 = vadd.f32 %v1484, %v1500
  %v1584 = vadd.f32 %v1485, %v1500
  %v1585 = vadd.f32 %v1486, %v1500
  %v1586 = vadd.f32 %v1487, %v1500
  %v1587 = vadd.f32 %v1488, %v1500
  %v1588 = vadd.f32 %v1489, %v1500
  %v1589 = vadd.f32 %v1490, %v1500
  %v1590 = vadd.f32 %v1491, %v1500
  %v1591 = vadd.f32 %v1492, %v1500
  %v1592 = vadd.f32 %v1493, %v1500
  %v1593 = vadd.f32 %v1494, %v1500
  %v1594 = vadd.f32 %v1495, %v1500
  %v1595 = vadd.f32 %v1496, %v1500
  %v1596 = vadd.f32 %v1497, %v1500
  %v1597 = vadd.f32 %v1498, %v1500
  %v1598 = vmax.f32 %v1502, 0.0
  %v1599 = vmax.f32 %v1503, 0.0
  %v1600 = vmax.f32 %v1504, 0.0
  %v1601 = vmax.f32 %v1505, 0.0
  %v1602 = vmax.f32 %v1506, 0.0
  %v1603 = vmax.f32 %v1507, 0.0
  %v1604 = vmax.f32 %v1508, 0.0
  %v1605 = vmax.f32 %v1509, 0.0
  %v1606 = vmax.f32 %v1510, 0.0
  %v1607 = vmax.f32 %v1511, 0.0
  %v1608 = vmax.f32 %v1512, 0.0
  %v1609 = vmax.f32 %v1513, 0.0
  %v1610 = vmax.f32 %v1514, 0.0
  %v1611 = vmax.f32 %v1515, 0.0
  %v1612 = vmax.f32 %v1516, 0.0
  %v1613 = vmax.f32 %v1517, 0.0
  %v1614 = vmax.f32 %v1518, 0.0
  %v1615 = vmax.f32 %v1519, 0.0
  %v1616 = vmax.f32 %v1520, 0.0
  %v1617 = vmax.f32 %v1521, 0.0
  %v1618 = vmax.f32 %v1522, 0.0
  %v1619 = vmax.f32 %v1523, 0.0
  %v1620 = vmax.f32 %v1524, 0.0
  %v1621 = vmax.f32 %v1525, 0.0
  %v1622 = vmax.f32 %v1526, 0.0
  %v1623 = vmax.f32 %v1527, 0.0
  %v1624 = vmax.f32 %v1528, 0.0
  %v1625 = vmax.f32 %v1529, 0.0
  %v1626 = vmax.f32 %v1530, 0.0
  %v1627 = vmax.f32 %v1531, 0.0
  %v1628 = vmax.f32 %v1532, 0.0
  %v1629 = vmax.f32 %v1533, 0.0
  %v1630 = vmax.f32 %v1534, 0.0
  %v1631 = vmax.f32 %v1535, 0.0
  %v1632 = vmax.f32 %v1536, 0.0
  %v1633 = vmax.f32 %v1537, 0.0
  %v1634 = vmax.f32 %v1538, 0.0
  %v1635 = vmax.f32 %v1539, 0.0
  %v1636 = vmax.f32 %v1540, 0.0
  %v1637 = vmax.f32 %v1541, 0.0
  %v1638 = vmax.f32 %v1542, 0.0
  %v1639 = vmax.f32 %v1543, 0.0
  %v1640 = vmax.f32 %v1544, 0.0
  %v1641 = vmax.f32 %v1545, 0.0
  %v1642 = vmax.f32 %v1546, 0.0
  %v1643 = vmax.f32 %v1547, 0.0
  %v1644 = vmax.f32 %v1548, 0.0
  %v1645 = vmax.f32 %v1549, 0.0
  %v1646 = vmax.f32 %v1550, 0.0
  %v1647 = vmax.f32 %v1551, 0.0
  %v1648 = vmax.f32 %v1552, 0.0
  %v1649 = vmax.f32 %v1553, 0.0
  %v1650 = vmax.f32 %v1554, 0.0
  %v1651 = vmax.f32 %v1555, 0.0
  %v1652 = vmax.f32 %v1556, 0.0
  %v1653 = vmax.f32 %v1557, 0.0
  %v1654 = vmax.f32 %v1558, 0.0
  %v1655 = vmax.f32 %v1559, 0.0
  %v1656 = vmax.f32 %v1560, 0.0
  %v1657 = vmax.f32 %v1561, 0.0
  %v1658 = vmax.f32 %v1562, 0.0
  %v1659 = vmax.f32 %v1563, 0.0
  %v1660 = vmax.f32 %v1564, 0.0
  %v1661 = vmax.f32 %v1565, 0.0
  %v1662 = vmax.f32 %v1566, 0.0
  %v1663 = vmax.f32 %v1567, 0.0
  %v1664 = vmax.f32 %v1568, 0.0
  %v1665 = vmax.f32 %v1569, 0.0
  %v1666 = vmax.f32 %v1570, 0.0
  %v1667 = vmax.f32 %v1571, 0.0
  %v1668 = vmax.f32 %v1572, 0.0
  %v1669 = vmax.f32 %v1573, 0.0
  %v1670 = vmax.f32 %v1574, 0.0
  %v1671 = vmax.f32 %v1575, 0.0
  %v1672 = vmax.f32 %v1576, 0.0
  %v1673 = vmax.f32 %v1577, 0.0
  %v1674 = vmax.f32 %v1578, 0.0
  %v1675 = vmax.f32 %v1579, 0.0
  %v1676 = vmax.f32 %v1580, 0.0
  %v1677 = vmax.f32 %v1581, 0.0
  %v1678 = vmax.f32 %v1582, 0.0
  %v1679 = vmax.f32 %v1583, 0.0
  %v1680 = vmax.f32 %v1584, 0.0
  %v1681 = vmax.f32 %v1585, 0.0
  %v1682 = vmax.f32 %v1586, 0.0
  %v1683 = vmax.f32 %v1587, 0.0
  %v1684 = vmax.f32 %v1588, 0.0
  %v1685 = vmax.f32 %v1589, 0.0
  %v1686 = vmax.f32 %v1590, 0.0
  %v1687 = vmax.f32 %v1591, 0.0
  %v1688 = vmax.f32 %v1592, 0.0
  %v1689 = vmax.f32 %v1593, 0.0
  %v1690 = vmax.f32 %v1594, 0.0
  %v1691 = vmax.f32 %v1595, 0.0
  %v1692 = vmax.f32 %v1596, 0.0
  %v1693 = vmax.f32 %v1597, 0.0
  %vm1694 = vcmask 523264
  %1695 = vst.msk [vmem:[%s3] sm:$0xff] %vm1694, %v1598
  %1696 = vst.msk [vmem:[%s3 + $0x8] sm:$0xff] %vm1694, %v1599
  %1697 = vst.msk [vmem:[%s3 + $0x10] sm:$0xff] %vm1694, %v1600
  %1698 = vst.msk [vmem:[%s3 + $0x18] sm:$0xff] %vm1694, %v1601
  %1699 = vst.msk [vmem:[%s3 + $0x20] sm:$0xff] %vm1694, %v1602
  %1700 = vst.msk [vmem:[%s3 + $0x28] sm:$0xff] %vm1694, %v1603
  %1701 = vst.msk [vmem:[%s3 + $0x30] sm:$0xff] %vm1694, %v1604
  %1702 = vst.msk [vmem:[%s3 + $0x38] sm:$0xff] %vm1694, %v1605
  %1703 = vst.msk [vmem:[%s3 + $0x40] sm:$0xff] %vm1694, %v1606
  %1704 = vst.msk [vmem:[%s3 + $0x48] sm:$0xff] %vm1694, %v1607
  %1705 = vst.msk [vmem:[%s3 + $0x50] sm:$0xff] %vm1694, %v1608
  %1706 = vst.msk [vmem:[%s3 + $0x58] sm:$0xff] %vm1694, %v1609
  %1707 = vst.msk [vmem:[%s3 + $0x60] sm:$0xff] %vm1694, %v1610
  %1708 = vst.msk [vmem:[%s3 + $0x68] sm:$0xff] %vm1694, %v1611
  %1709 = vst.msk [vmem:[%s3 + $0x70] sm:$0xff] %vm1694, %v1612
  %1710 = vst.msk [vmem:[%s3 + $0x78] sm:$0xff] %vm1694, %v1613
  %1711 = vst.msk [vmem:[%s3 + $0x80] sm:$0xff] %vm1694, %v1614
  %1712 = vst.msk [vmem:[%s3 + $0x88] sm:$0xff] %vm1694, %v1615
  %1713 = vst.msk [vmem:[%s3 + $0x90] sm:$0xff] %vm1694, %v1616
  %1714 = vst.msk [vmem:[%s3 + $0x98] sm:$0xff] %vm1694, %v1617
  %1715 = vst.msk [vmem:[%s3 + $0xa0] sm:$0xff] %vm1694, %v1618
  %1716 = vst.msk [vmem:[%s3 + $0xa8] sm:$0xff] %vm1694, %v1619
  %1717 = vst.msk [vmem:[%s3 + $0xb0] sm:$0xff] %vm1694, %v1620
  %1718 = vst.msk [vmem:[%s3 + $0xb8] sm:$0xff] %vm1694, %v1621
  %1719 = vst.msk [vmem:[%s3 + $0xc0] sm:$0xff] %vm1694, %v1622
  %1720 = vst.msk [vmem:[%s3 + $0xc8] sm:$0xff] %vm1694, %v1623
  %1721 = vst.msk [vmem:[%s3 + $0xd0] sm:$0xff] %vm1694, %v1624
  %1722 = vst.msk [vmem:[%s3 + $0xd8] sm:$0xff] %vm1694, %v1625
  %1723 = vst.msk [vmem:[%s3 + $0xe0] sm:$0xff] %vm1694, %v1626
  %1724 = vst.msk [vmem:[%s3 + $0xe8] sm:$0xff] %vm1694, %v1627
  %1725 = vst.msk [vmem:[%s3 + $0xf0] sm:$0xff] %vm1694, %v1628
  %1726 = vst.msk [vmem:[%s3 + $0xf8] sm:$0xff] %vm1694, %v1629
  %1727 = vst.msk [vmem:[%s3 + $0x100] sm:$0xff] %vm1694, %v1630
  %1728 = vst.msk [vmem:[%s3 + $0x108] sm:$0xff] %vm1694, %v1631
  %1729 = vst.msk [vmem:[%s3 + $0x110] sm:$0xff] %vm1694, %v1632
  %1730 = vst.msk [vmem:[%s3 + $0x118] sm:$0xff] %vm1694, %v1633
  %1731 = vst.msk [vmem:[%s3 + $0x120] sm:$0xff] %vm1694, %v1634
  %1732 = vst.msk [vmem:[%s3 + $0x128] sm:$0xff] %vm1694, %v1635
  %1733 = vst.msk [vmem:[%s3 + $0x130] sm:$0xff] %vm1694, %v1636
  %1734 = vst.msk [vmem:[%s3 + $0x138] sm:$0xff] %vm1694, %v1637
  %1735 = vst.msk [vmem:[%s3 + $0x140] sm:$0xff] %vm1694, %v1638
  %1736 = vst.msk [vmem:[%s3 + $0x148] sm:$0xff] %vm1694, %v1639
  %1737 = vst.msk [vmem:[%s3 + $0x150] sm:$0xff] %vm1694, %v1640
  %1738 = vst.msk [vmem:[%s3 + $0x158] sm:$0xff] %vm1694, %v1641
  %1739 = vst.msk [vmem:[%s3 + $0x160] sm:$0xff] %vm1694, %v1642
  %1740 = vst.msk [vmem:[%s3 + $0x168] sm:$0xff] %vm1694, %v1643
  %1741 = vst.msk [vmem:[%s3 + $0x170] sm:$0xff] %vm1694, %v1644
  %1742 = vst.msk [vmem:[%s3 + $0x178] sm:$0xff] %vm1694, %v1645
  %1743 = vst.msk [vmem:[%s3 + $0x180] sm:$0xff] %vm1694, %v1646
  %1744 = vst.msk [vmem:[%s3 + $0x188] sm:$0xff] %vm1694, %v1647
  %1745 = vst.msk [vmem:[%s3 + $0x190] sm:$0xff] %vm1694, %v1648
  %1746 = vst.msk [vmem:[%s3 + $0x198] sm:$0xff] %vm1694, %v1649
  %1747 = vst.msk [vmem:[%s3 + $0x1a0] sm:$0xff] %vm1694, %v1650
  %1748 = vst.msk [vmem:[%s3 + $0x1a8] sm:$0xff] %vm1694, %v1651
  %1749 = vst.msk [vmem:[%s3 + $0x1b0] sm:$0xff] %vm1694, %v1652
  %1750 = vst.msk [vmem:[%s3 + $0x1b8] sm:$0xff] %vm1694, %v1653
  %1751 = vst.msk [vmem:[%s3 + $0x1c0] sm:$0xff] %vm1694, %v1654
  %1752 = vst.msk [vmem:[%s3 + $0x1c8] sm:$0xff] %vm1694, %v1655
  %1753 = vst.msk [vmem:[%s3 + $0x1d0] sm:$0xff] %vm1694, %v1656
  %1754 = vst.msk [vmem:[%s3 + $0x1d8] sm:$0xff] %vm1694, %v1657
  %1755 = vst.msk [vmem:[%s3 + $0x1e0] sm:$0xff] %vm1694, %v1658
  %1756 = vst.msk [vmem:[%s3 + $0x1e8] sm:$0xff] %vm1694, %v1659
  %1757 = vst.msk [vmem:[%s3 + $0x1f0] sm:$0xff] %vm1694, %v1660
  %1758 = vst.msk [vmem:[%s3 + $0x1f8] sm:$0xff] %vm1694, %v1661
  %1759 = vst.msk [vmem:[%s3 + $0x200] sm:$0xff] %vm1694, %v1662
  %1760 = vst.msk [vmem:[%s3 + $0x208] sm:$0xff] %vm1694, %v1663
  %1761 = vst.msk [vmem:[%s3 + $0x210] sm:$0xff] %vm1694, %v1664
  %1762 = vst.msk [vmem:[%s3 + $0x218] sm:$0xff] %vm1694, %v1665
  %1763 = vst.msk [vmem:[%s3 + $0x220] sm:$0xff] %vm1694, %v1666
  %1764 = vst.msk [vmem:[%s3 + $0x228] sm:$0xff] %vm1694, %v1667
  %1765 = vst.msk [vmem:[%s3 + $0x230] sm:$0xff] %vm1694, %v1668
  %1766 = vst.msk [vmem:[%s3 + $0x238] sm:$0xff] %vm1694, %v1669
  %1767 = vst.msk [vmem:[%s3 + $0x240] sm:$0xff] %vm1694, %v1670
  %1768 = vst.msk [vmem:[%s3 + $0x248] sm:$0xff] %vm1694, %v1671
  %1769 = vst.msk [vmem:[%s3 + $0x250] sm:$0xff] %vm1694, %v1672
  %1770 = vst.msk [vmem:[%s3 + $0x258] sm:$0xff] %vm1694, %v1673
  %1771 = vst.msk [vmem:[%s3 + $0x260] sm:$0xff] %vm1694, %v1674
  %1772 = vst.msk [vmem:[%s3 + $0x268] sm:$0xff] %vm1694, %v1675
  %1773 = vst.msk [vmem:[%s3 + $0x270] sm:$0xff] %vm1694, %v1676
  %1774 = vst.msk [vmem:[%s3 + $0x278] sm:$0xff] %vm1694, %v1677
  %1775 = vst.msk [vmem:[%s3 + $0x280] sm:$0xff] %vm1694, %v1678
  %1776 = vst.msk [vmem:[%s3 + $0x288] sm:$0xff] %vm1694, %v1679
  %1777 = vst.msk [vmem:[%s3 + $0x290] sm:$0xff] %vm1694, %v1680
  %1778 = vst.msk [vmem:[%s3 + $0x298] sm:$0xff] %vm1694, %v1681
  %1779 = vst.msk [vmem:[%s3 + $0x2a0] sm:$0xff] %vm1694, %v1682
  %1780 = vst.msk [vmem:[%s3 + $0x2a8] sm:$0xff] %vm1694, %v1683
  %1781 = vst.msk [vmem:[%s3 + $0x2b0] sm:$0xff] %vm1694, %v1684
  %1782 = vst.msk [vmem:[%s3 + $0x2b8] sm:$0xff] %vm1694, %v1685
  %1783 = vst.msk [vmem:[%s3 + $0x2c0] sm:$0xff] %vm1694, %v1686
  %1784 = vst.msk [vmem:[%s3 + $0x2c8] sm:$0xff] %vm1694, %v1687
  %1785 = vst.msk [vmem:[%s3 + $0x2d0] sm:$0xff] %vm1694, %v1688
  %1786 = vst.msk [vmem:[%s3 + $0x2d8] sm:$0xff] %vm1694, %v1689
  %1787 = vst.msk [vmem:[%s3 + $0x2e0] sm:$0xff] %vm1694, %v1690
  %1788 = vst.msk [vmem:[%s3 + $0x2e8] sm:$0xff] %vm1694, %v1691
  %1789 = vst.msk [vmem:[%s3 + $0x2f0] sm:$0xff] %vm1694, %v1692
  %1790 = vst.msk [vmem:[%s3 + $0x2f8] sm:$0xff] %vm1694, %v1693
  // Predicated region
  $region14: #{conv_classifier_forward.3} parent=0 // pred_check
    _
  $region15: #{conv_classifier_forward.3} parent=0 // pred_check_branch
    %1792 = sbr.rel (0) target = $region17
  $region16: #{conv_classifier_forward.3} parent=0 // pred_region
    _
  $region17: #{conv_classifier_forward.3} parent=0 // pred_fallthru
    _
  // Predicated region
  $region18: #{conv_classifier_forward.3} parent=0 // pred_check
    _
  $region19: #{conv_classifier_forward.3} parent=0 // pred_check_branch
    %1794 = sbr.rel (0) target = $region21
  $region20: #{conv_classifier_forward.3} parent=0 // pred_region
    _
  $region21: #{conv_classifier_forward.3} parent=0 // pred_fallthru
    _

// kernel: conv_classifier_forward.5
$region0: #{conv_classifier_forward.5}
  #allocation0 [shape = 'u32[]', space=smem, size = 0x4, offset = 0x4, fixed_abs, tag = 'smem constant byte address 0x4 - core index']
  #allocation1 [shape = 'u32[72,128]{1,0:T(1,128)}', space=vmem, size = 0x9000, scoped, tag = 'internal scratch']
  %s0 = inlined_call_operand.vmem [shape: f32[2,6,1024], index: 0, kind: input, shape index: {}]
  %s1 = inlined_call_operand.vmem [shape: f32[6,256,512], index: 1, kind: input, shape index: {}]
  %s2 = inlined_call_operand.vmem [shape: f32[1,512], index: 2, kind: input, shape index: {}]
  %s3 = inlined_call_operand.vmem [shape: f32[512,128], index: 3, kind: input, shape index: {}]
  %s4 = inlined_call_operand.vmem [shape: f32[1,128], index: 4, kind: input, shape index: {}]
  %s5 = inlined_call_operand.vmem [shape: f32[128,128], index: 5, kind: input, shape index: {}]
  %s6 = inlined_call_operand.vmem [shape: f32[1,128], index: 6, kind: input, shape index: {}]
  %s7 = inlined_call_operand.hbm [shape: f32[2,128], index: 7, kind: output, shape index: {}]
  %s8 = sld [smem:[#allocation0]]
  $region38: #{conv_classifier_forward.5} parent=0
    _
  %s10 = ssub.s32 1, %s8
  %s11 = scalar_select 0, %s10, %s8
  $region1: #{conv_classifier_forward.5} parent=0
    #allocation2 [shape = 'u8[1024]{0}', space=vmem, size = 0x400, scoped, tag = 'output window, operand 0, single buffered']
    #allocation3 [shape = 's32[1]{0}', space=sflag, size = 0x4, scoped, tag = 'scoped memory for conv_classifier_forward.5']
    %12 = vsyncpa [#allocation3], 0
    // Predicated region
    $region2: #{conv_classifier_forward.5} parent=1 // pred_check
      _
    $region3: #{conv_classifier_forward.5} parent=1 // pred_check_branch
      %14 = sbr.rel (0) target = $region5
    $region4: #{conv_classifier_forward.5} parent=1 // pred_region
      _
    $region5: #{conv_classifier_forward.5} parent=1 // pred_fallthru
      _
    // Predicated region
    $region6: #{conv_classifier_forward.5} parent=1 // pred_check
      _
    $region7: #{conv_classifier_forward.5} parent=1 // pred_check_branch
      %16 = sbr.rel (0) target = $region9
    $region8: #{conv_classifier_forward.5} parent=1 // pred_region
      _
    $region9: #{conv_classifier_forward.5} parent=1 // pred_fallthru
      _
    // Predicated region
    $region10: #{conv_classifier_forward.5} parent=1 // pred_check
      _
    $region11: #{conv_classifier_forward.5} parent=1 // pred_check_branch
      %18 = sbr.rel (0) target = $region13
    $region12: #{conv_classifier_forward.5} parent=1 // pred_region
      _
    $region13: #{conv_classifier_forward.5} parent=1 // pred_fallthru
      _
    // Predicated region
    $region14: #{conv_classifier_forward.5} parent=1 // pred_check
      _
    $region15: #{conv_classifier_forward.5} parent=1 // pred_check_branch
      %20 = sbr.rel (0) target = $region17
    $region16: #{conv_classifier_forward.5} parent=1 // pred_region
      _
    $region17: #{conv_classifier_forward.5} parent=1 // pred_fallthru
      _
    // Predicated region
    $region18: #{conv_classifier_forward.5} parent=1 // pred_check
      _
    $region19: #{conv_classifier_forward.5} parent=1 // pred_check_branch
      %22 = sbr.rel (0) target = $region21
    $region20: #{conv_classifier_forward.5} parent=1 // pred_region
      _
    $region21: #{conv_classifier_forward.5} parent=1 // pred_fallthru
      _
    // Predicated region
    $region22: #{conv_classifier_forward.5} parent=1 // pred_check
      _
    $region23: #{conv_classifier_forward.5} parent=1 // pred_check_branch
      %24 = sbr.rel (0) target = $region25
    $region24: #{conv_classifier_forward.5} parent=1 // pred_region
      _
    $region25: #{conv_classifier_forward.5} parent=1 // pred_fallthru
      _
    // Predicated region
    $region26: #{conv_classifier_forward.5} parent=1 // pred_check
      _
    $region27: #{conv_classifier_forward.5} parent=1 // pred_check_branch
      %26 = sbr.rel (0) target = $region29
    $region28: #{conv_classifier_forward.5} parent=1 // pred_region
      _
    $region29: #{conv_classifier_forward.5} parent=1 // pred_fallthru
      _
    %v27 = vld [vmem:[%s0] sm:$0x3f]
    %v28 = vld [vmem:[%s0 + $0x8] sm:$0x3f]
    %v29 = vld [vmem:[%s0 + $0x10] sm:$0x3f]
    %v30 = vld [vmem:[%s0 + $0x18] sm:$0x3f]
    %v31 = vld [vmem:[%s0 + $0x20] sm:$0x3f]
    %v32 = vld [vmem:[%s0 + $0x28] sm:$0x3f]
    %v33 = vld [vmem:[%s0 + $0x30] sm:$0x3f]
    %v34 = vld [vmem:[%s0 + $0x38] sm:$0x3f]
    %v35 = vld [vmem:[%s0 + $0x40] sm:$0x3f]
    %v36 = vld [vmem:[%s0 + $0x48] sm:$0x3f]
    %v37 = vld [vmem:[%s0 + $0x50] sm:$0x3f]
    %v38 = vld [vmem:[%s0 + $0x58] sm:$0x3f]
    %v39 = vld [vmem:[%s0 + $0x60] sm:$0x3f]
    %v40 = vld [vmem:[%s0 + $0x68] sm:$0x3f]
    %v41 = vld [vmem:[%s0 + $0x70] sm:$0x3f]
    %v42 = vld [vmem:[%s0 + $0x78] sm:$0x3f]
    %v43 = vmax.f32 %v27, %v29
    %v44 = vmax.f32 %v28, %v30
    %v45 = vmax.f32 %v35, %v37
    %v46 = vmax.f32 %v36, %v38
    %v47 = vmax.f32 %v43, %v31
    %v48 = vmax.f32 %v44, %v32
    %v49 = vmax.f32 %v45, %v39
    %v50 = vmax.f32 %v46, %v40
    %v51 = vmax.f32 %v47, %v33
    %v52 = vmax.f32 %v48, %v34
    %v53 = vmax.f32 %v49, %v41
    %v54 = vmax.f32 %v50, %v42
    %v55 = vadd.f32 %v51, 0.0
    %v56 = vadd.f32 %v52, 0.0
    %v57 = vadd.f32 %v53, 0.0
    %v58 = vadd.f32 %v54, 0.0
    %v59 = vld [vmem:[%s1] sm:$0xff]
    %v60 = vld [vmem:[%s1 + $0x8] sm:$0xff]
    %v61 = vld [vmem:[%s1 + $0x10] sm:$0xff]
    %v62 = vld [vmem:[%s1 + $0x18] sm:$0xff]
    %v63 = vld [vmem:[%s1 + $0x20] sm:$0xff]
    %v64 = vld [vmem:[%s1 + $0x28] sm:$0xff]
    %v65 = vld [vmem:[%s1 + $0x30] sm:$0xff]
    %v66 = vld [vmem:[%s1 + $0x38] sm:$0xff]
    %v67 = vld [vmem:[%s1 + $0x40] sm:$0xff]
    %v68 = vld [vmem:[%s1 + $0x48] sm:$0xff]
    %v69 = vld [vmem:[%s1 + $0x50] sm:$0xff]
    %v70 = vld [vmem:[%s1 + $0x58] sm:$0xff]
    %v71 = vld [vmem:[%s1 + $0x60] sm:$0xff]
    %v72 = vld [vmem:[%s1 + $0x68] sm:$0xff]
    %v73 = vld [vmem:[%s1 + $0x70] sm:$0xff]
    %v74 = vld [vmem:[%s1 + $0x78] sm:$0xff]
    %v75 = vld [vmem:[%s1 + $0x80] sm:$0xff]
    %v76 = vld [vmem:[%s1 + $0x88] sm:$0xff]
    %v77 = vld [vmem:[%s1 + $0x90] sm:$0xff]
    %v78 = vld [vmem:[%s1 + $0x98] sm:$0xff]
    %v79 = vld [vmem:[%s1 + $0xa0] sm:$0xff]
    %v80 = vld [vmem:[%s1 + $0xa8] sm:$0xff]
    %v81 = vld [vmem:[%s1 + $0xb0] sm:$0xff]
    %v82 = vld [vmem:[%s1 + $0xb8] sm:$0xff]
    %v83 = vld [vmem:[%s1 + $0xc0] sm:$0xff]
    %v84 = vld [vmem:[%s1 + $0xc8] sm:$0xff]
    %v85 = vld [vmem:[%s1 + $0xd0] sm:$0xff]
    %v86 = vld [vmem:[%s1 + $0xd8] sm:$0xff]
    %v87 = vld [vmem:[%s1 + $0xe0] sm:$0xff]
    %v88 = vld [vmem:[%s1 + $0xe8] sm:$0xff]
    %v89 = vld [vmem:[%s1 + $0xf0] sm:$0xff]
    %v90 = vld [vmem:[%s1 + $0xf8] sm:$0xff]
    %v91 = vld [vmem:[%s1 + $0x100] sm:$0xff]
    %v92 = vld [vmem:[%s1 + $0x108] sm:$0xff]
    %v93 = vld [vmem:[%s1 + $0x110] sm:$0xff]
    %v94 = vld [vmem:[%s1 + $0x118] sm:$0xff]
    %v95 = vld [vmem:[%s1 + $0x120] sm:$0xff]
    %v96 = vld [vmem:[%s1 + $0x128] sm:$0xff]
    %v97 = vld [vmem:[%s1 + $0x130] sm:$0xff]
    %v98 = vld [vmem:[%s1 + $0x138] sm:$0xff]
    %v99 = vld [vmem:[%s1 + $0x140] sm:$0xff]
    %v100 = vld [vmem:[%s1 + $0x148] sm:$0xff]
    %v101 = vld [vmem:[%s1 + $0x150] sm:$0xff]
    %v102 = vld [vmem:[%s1 + $0x158] sm:$0xff]
    %v103 = vld [vmem:[%s1 + $0x160] sm:$0xff]
    %v104 = vld [vmem:[%s1 + $0x168] sm:$0xff]
    %v105 = vld [vmem:[%s1 + $0x170] sm:$0xff]
    %v106 = vld [vmem:[%s1 + $0x178] sm:$0xff]
    %v107 = vld [vmem:[%s1 + $0x180] sm:$0xff]
    %v108 = vld [vmem:[%s1 + $0x188] sm:$0xff]
    %v109 = vld [vmem:[%s1 + $0x190] sm:$0xff]
    %v110 = vld [vmem:[%s1 + $0x198] sm:$0xff]
    %v111 = vld [vmem:[%s1 + $0x1a0] sm:$0xff]
    %v112 = vld [vmem:[%s1 + $0x1a8] sm:$0xff]
    %v113 = vld [vmem:[%s1 + $0x1b0] sm:$0xff]
    %v114 = vld [vmem:[%s1 + $0x1b8] sm:$0xff]
    %v115 = vld [vmem:[%s1 + $0x1c0] sm:$0xff]
    %v116 = vld [vmem:[%s1 + $0x1c8] sm:$0xff]
    %v117 = vld [vmem:[%s1 + $0x1d0] sm:$0xff]
    %v118 = vld [vmem:[%s1 + $0x1d8] sm:$0xff]
    %v119 = vld [vmem:[%s1 + $0x1e0] sm:$0xff]
    %v120 = vld [vmem:[%s1 + $0x1e8] sm:$0xff]
    %v121 = vld [vmem:[%s1 + $0x1f0] sm:$0xff]
    %v122 = vld [vmem:[%s1 + $0x1f8] sm:$0xff]
    %v123 = vld [vmem:[%s1 + $0x200] sm:$0xff]
    %v124 = vld [vmem:[%s1 + $0x208] sm:$0xff]
    %v125 = vld [vmem:[%s1 + $0x210] sm:$0xff]
    %v126 = vld [vmem:[%s1 + $0x218] sm:$0xff]
    %v127 = vld [vmem:[%s1 + $0x220] sm:$0xff]
    %v128 = vld [vmem:[%s1 + $0x228] sm:$0xff]
    %v129 = vld [vmem:[%s1 + $0x230] sm:$0xff]
    %v130 = vld [vmem:[%s1 + $0x238] sm:$0xff]
    %v131 = vld [vmem:[%s1 + $0x240] sm:$0xff]
    %v132 = vld [vmem:[%s1 + $0x248] sm:$0xff]
    %v133 = vld [vmem:[%s1 + $0x250] sm:$0xff]
    %v134 = vld [vmem:[%s1 + $0x258] sm:$0xff]
    %v135 = vld [vmem:[%s1 + $0x260] sm:$0xff]
    %v136 = vld [vmem:[%s1 + $0x268] sm:$0xff]
    %v137 = vld [vmem:[%s1 + $0x270] sm:$0xff]
    %v138 = vld [vmem:[%s1 + $0x278] sm:$0xff]
    %v139 = vld [vmem:[%s1 + $0x280] sm:$0xff]
    %v140 = vld [vmem:[%s1 + $0x288] sm:$0xff]
    %v141 = vld [vmem:[%s1 + $0x290] sm:$0xff]
    %v142 = vld [vmem:[%s1 + $0x298] sm:$0xff]
    %v143 = vld [vmem:[%s1 + $0x2a0] sm:$0xff]
    %v144 = vld [vmem:[%s1 + $0x2a8] sm:$0xff]
    %v145 = vld [vmem:[%s1 + $0x2b0] sm:$0xff]
    %v146 = vld [vmem:[%s1 + $0x2b8] sm:$0xff]
    %v147 = vld [vmem:[%s1 + $0x2c0] sm:$0xff]
    %v148 = vld [vmem:[%s1 + $0x2c8] sm:$0xff]
    %v149 = vld [vmem:[%s1 + $0x2d0] sm:$0xff]
    %v150 = vld [vmem:[%s1 + $0x2d8] sm:$0xff]
    %v151 = vld [vmem:[%s1 + $0x2e0] sm:$0xff]
    %v152 = vld [vmem:[%s1 + $0x2e8] sm:$0xff]
    %v153 = vld [vmem:[%s1 + $0x2f0] sm:$0xff]
    %v154 = vld [vmem:[%s1 + $0x2f8] sm:$0xff]
    %v155 = vld [vmem:[%s1 + $0x300] sm:$0xff]
    %v156 = vld [vmem:[%s1 + $0x308] sm:$0xff]
    %v157 = vld [vmem:[%s1 + $0x310] sm:$0xff]
    %v158 = vld [vmem:[%s1 + $0x318] sm:$0xff]
    %v159 = vld [vmem:[%s1 + $0x320] sm:$0xff]
    %v160 = vld [vmem:[%s1 + $0x328] sm:$0xff]
    %v161 = vld [vmem:[%s1 + $0x330] sm:$0xff]
    %v162 = vld [vmem:[%s1 + $0x338] sm:$0xff]
    %v163 = vld [vmem:[%s1 + $0x340] sm:$0xff]
    %v164 = vld [vmem:[%s1 + $0x348] sm:$0xff]
    %v165 = vld [vmem:[%s1 + $0x350] sm:$0xff]
    %v166 = vld [vmem:[%s1 + $0x358] sm:$0xff]
    %v167 = vld [vmem:[%s1 + $0x360] sm:$0xff]
    %v168 = vld [vmem:[%s1 + $0x368] sm:$0xff]
    %v169 = vld [vmem:[%s1 + $0x370] sm:$0xff]
    %v170 = vld [vmem:[%s1 + $0x378] sm:$0xff]
    %v171 = vld [vmem:[%s1 + $0x380] sm:$0xff]
    %v172 = vld [vmem:[%s1 + $0x388] sm:$0xff]
    %v173 = vld [vmem:[%s1 + $0x390] sm:$0xff]
    %v174 = vld [vmem:[%s1 + $0x398] sm:$0xff]
    %v175 = vld [vmem:[%s1 + $0x3a0] sm:$0xff]
    %v176 = vld [vmem:[%s1 + $0x3a8] sm:$0xff]
    %v177 = vld [vmem:[%s1 + $0x3b0] sm:$0xff]
    %v178 = vld [vmem:[%s1 + $0x3b8] sm:$0xff]
    %v179 = vld [vmem:[%s1 + $0x3c0] sm:$0xff]
    %v180 = vld [vmem:[%s1 + $0x3c8] sm:$0xff]
    %v181 = vld [vmem:[%s1 + $0x3d0] sm:$0xff]
    %v182 = vld [vmem:[%s1 + $0x3d8] sm:$0xff]
    %v183 = vld [vmem:[%s1 + $0x3e0] sm:$0xff]
    %v184 = vld [vmem:[%s1 + $0x3e8] sm:$0xff]
    %v185 = vld [vmem:[%s1 + $0x3f0] sm:$0xff]
    %v186 = vld [vmem:[%s1 + $0x3f8] sm:$0xff]
    %s187 = scalar_lea.vmem %s1, 1024
    %v188 = vld [vmem:[%s187] sm:$0xff]
    %v189 = vld [vmem:[%s187 + $0x8] sm:$0xff]
    %v190 = vld [vmem:[%s187 + $0x10] sm:$0xff]
    %v191 = vld [vmem:[%s187 + $0x18] sm:$0xff]
    %v192 = vld [vmem:[%s187 + $0x20] sm:$0xff]
    %v193 = vld [vmem:[%s187 + $0x28] sm:$0xff]
    %v194 = vld [vmem:[%s187 + $0x30] sm:$0xff]
    %v195 = vld [vmem:[%s187 + $0x38] sm:$0xff]
    %v196 = vld [vmem:[%s187 + $0x40] sm:$0xff]
    %v197 = vld [vmem:[%s187 + $0x48] sm:$0xff]
    %v198 = vld [vmem:[%s187 + $0x50] sm:$0xff]
    %v199 = vld [vmem:[%s187 + $0x58] sm:$0xff]
    %v200 = vld [vmem:[%s187 + $0x60] sm:$0xff]
    %v201 = vld [vmem:[%s187 + $0x68] sm:$0xff]
    %v202 = vld [vmem:[%s187 + $0x70] sm:$0xff]
    %v203 = vld [vmem:[%s187 + $0x78] sm:$0xff]
    %v204 = vld [vmem:[%s187 + $0x80] sm:$0xff]
    %v205 = vld [vmem:[%s187 + $0x88] sm:$0xff]
    %v206 = vld [vmem:[%s187 + $0x90] sm:$0xff]
    %v207 = vld [vmem:[%s187 + $0x98] sm:$0xff]
    %v208 = vld [vmem:[%s187 + $0xa0] sm:$0xff]
    %v209 = vld [vmem:[%s187 + $0xa8] sm:$0xff]
    %v210 = vld [vmem:[%s187 + $0xb0] sm:$0xff]
    %v211 = vld [vmem:[%s187 + $0xb8] sm:$0xff]
    %v212 = vld [vmem:[%s187 + $0xc0] sm:$0xff]
    %v213 = vld [vmem:[%s187 + $0xc8] sm:$0xff]
    %v214 = vld [vmem:[%s187 + $0xd0] sm:$0xff]
    %v215 = vld [vmem:[%s187 + $0xd8] sm:$0xff]
    %v216 = vld [vmem:[%s187 + $0xe0] sm:$0xff]
    %v217 = vld [vmem:[%s187 + $0xe8] sm:$0xff]
    %v218 = vld [vmem:[%s187 + $0xf0] sm:$0xff]
    %v219 = vld [vmem:[%s187 + $0xf8] sm:$0xff]
    %v220 = vld [vmem:[%s187 + $0x100] sm:$0xff]
    %v221 = vld [vmem:[%s187 + $0x108] sm:$0xff]
    %v222 = vld [vmem:[%s187 + $0x110] sm:$0xff]
    %v223 = vld [vmem:[%s187 + $0x118] sm:$0xff]
    %v224 = vld [vmem:[%s187 + $0x120] sm:$0xff]
    %v225 = vld [vmem:[%s187 + $0x128] sm:$0xff]
    %v226 = vld [vmem:[%s187 + $0x130] sm:$0xff]
    %v227 = vld [vmem:[%s187 + $0x138] sm:$0xff]
    %v228 = vld [vmem:[%s187 + $0x140] sm:$0xff]
    %v229 = vld [vmem:[%s187 + $0x148] sm:$0xff]
    %v230 = vld [vmem:[%s187 + $0x150] sm:$0xff]
    %v231 = vld [vmem:[%s187 + $0x158] sm:$0xff]
    %v232 = vld [vmem:[%s187 + $0x160] sm:$0xff]
    %v233 = vld [vmem:[%s187 + $0x168] sm:$0xff]
    %v234 = vld [vmem:[%s187 + $0x170] sm:$0xff]
    %v235 = vld [vmem:[%s187 + $0x178] sm:$0xff]
    %v236 = vld [vmem:[%s187 + $0x180] sm:$0xff]
    %v237 = vld [vmem:[%s187 + $0x188] sm:$0xff]
    %v238 = vld [vmem:[%s187 + $0x190] sm:$0xff]
    %v239 = vld [vmem:[%s187 + $0x198] sm:$0xff]
    %v240 = vld [vmem:[%s187 + $0x1a0] sm:$0xff]
    %v241 = vld [vmem:[%s187 + $0x1a8] sm:$0xff]
    %v242 = vld [vmem:[%s187 + $0x1b0] sm:$0xff]
    %v243 = vld [vmem:[%s187 + $0x1b8] sm:$0xff]
    %v244 = vld [vmem:[%s187 + $0x1c0] sm:$0xff]
    %v245 = vld [vmem:[%s187 + $0x1c8] sm:$0xff]
    %v246 = vld [vmem:[%s187 + $0x1d0] sm:$0xff]
    %v247 = vld [vmem:[%s187 + $0x1d8] sm:$0xff]
    %v248 = vld [vmem:[%s187 + $0x1e0] sm:$0xff]
    %v249 = vld [vmem:[%s187 + $0x1e8] sm:$0xff]
    %v250 = vld [vmem:[%s187 + $0x1f0] sm:$0xff]
    %v251 = vld [vmem:[%s187 + $0x1f8] sm:$0xff]
    %v252 = vld [vmem:[%s187 + $0x200] sm:$0xff]
    %v253 = vld [vmem:[%s187 + $0x208] sm:$0xff]
    %v254 = vld [vmem:[%s187 + $0x210] sm:$0xff]
    %v255 = vld [vmem:[%s187 + $0x218] sm:$0xff]
    %v256 = vld [vmem:[%s187 + $0x220] sm:$0xff]
    %v257 = vld [vmem:[%s187 + $0x228] sm:$0xff]
    %v258 = vld [vmem:[%s187 + $0x230] sm:$0xff]
    %v259 = vld [vmem:[%s187 + $0x238] sm:$0xff]
    %v260 = vld [vmem:[%s187 + $0x240] sm:$0xff]
    %v261 = vld [vmem:[%s187 + $0x248] sm:$0xff]
    %v262 = vld [vmem:[%s187 + $0x250] sm:$0xff]
    %v263 = vld [vmem:[%s187 + $0x258] sm:$0xff]
    %v264 = vld [vmem:[%s187 + $0x260] sm:$0xff]
    %v265 = vld [vmem:[%s187 + $0x268] sm:$0xff]
    %v266 = vld [vmem:[%s187 + $0x270] sm:$0xff]
    %v267 = vld [vmem:[%s187 + $0x278] sm:$0xff]
    %v268 = vld [vmem:[%s187 + $0x280] sm:$0xff]
    %v269 = vld [vmem:[%s187 + $0x288] sm:$0xff]
    %v270 = vld [vmem:[%s187 + $0x290] sm:$0xff]
    %v271 = vld [vmem:[%s187 + $0x298] sm:$0xff]
    %v272 = vld [vmem:[%s187 + $0x2a0] sm:$0xff]
    %v273 = vld [vmem:[%s187 + $0x2a8] sm:$0xff]
    %v274 = vld [vmem:[%s187 + $0x2b0] sm:$0xff]
    %v275 = vld [vmem:[%s187 + $0x2b8] sm:$0xff]
    %v276 = vld [vmem:[%s187 + $0x2c0] sm:$0xff]
    %v277 = vld [vmem:[%s187 + $0x2c8] sm:$0xff]
    %v278 = vld [vmem:[%s187 + $0x2d0] sm:$0xff]
    %v279 = vld [vmem:[%s187 + $0x2d8] sm:$0xff]
    %v280 = vld [vmem:[%s187 + $0x2e0] sm:$0xff]
    %v281 = vld [vmem:[%s187 + $0x2e8] sm:$0xff]
    %v282 = vld [vmem:[%s187 + $0x2f0] sm:$0xff]
    %v283 = vld [vmem:[%s187 + $0x2f8] sm:$0xff]
    %v284 = vld [vmem:[%s187 + $0x300] sm:$0xff]
    %v285 = vld [vmem:[%s187 + $0x308] sm:$0xff]
    %v286 = vld [vmem:[%s187 + $0x310] sm:$0xff]
    %v287 = vld [vmem:[%s187 + $0x318] sm:$0xff]
    %v288 = vld [vmem:[%s187 + $0x320] sm:$0xff]
    %v289 = vld [vmem:[%s187 + $0x328] sm:$0xff]
    %v290 = vld [vmem:[%s187 + $0x330] sm:$0xff]
    %v291 = vld [vmem:[%s187 + $0x338] sm:$0xff]
    %v292 = vld [vmem:[%s187 + $0x340] sm:$0xff]
    %v293 = vld [vmem:[%s187 + $0x348] sm:$0xff]
    %v294 = vld [vmem:[%s187 + $0x350] sm:$0xff]
    %v295 = vld [vmem:[%s187 + $0x358] sm:$0xff]
    %v296 = vld [vmem:[%s187 + $0x360] sm:$0xff]
    %v297 = vld [vmem:[%s187 + $0x368] sm:$0xff]
    %v298 = vld [vmem:[%s187 + $0x370] sm:$0xff]
    %v299 = vld [vmem:[%s187 + $0x378] sm:$0xff]
    %v300 = vld [vmem:[%s187 + $0x380] sm:$0xff]
    %v301 = vld [vmem:[%s187 + $0x388] sm:$0xff]
    %v302 = vld [vmem:[%s187 + $0x390] sm:$0xff]
    %v303 = vld [vmem:[%s187 + $0x398] sm:$0xff]
    %v304 = vld [vmem:[%s187 + $0x3a0] sm:$0xff]
    %v305 = vld [vmem:[%s187 + $0x3a8] sm:$0xff]
    %v306 = vld [vmem:[%s187 + $0x3b0] sm:$0xff]
    %v307 = vld [vmem:[%s187 + $0x3b8] sm:$0xff]
    %v308 = vld [vmem:[%s187 + $0x3c0] sm:$0xff]
    %v309 = vld [vmem:[%s187 + $0x3c8] sm:$0xff]
    %v310 = vld [vmem:[%s187 + $0x3d0] sm:$0xff]
    %v311 = vld [vmem:[%s187 + $0x3d8] sm:$0xff]
    %v312 = vld [vmem:[%s187 + $0x3e0] sm:$0xff]
    %v313 = vld [vmem:[%s187 + $0x3e8] sm:$0xff]
    %v314 = vld [vmem:[%s187 + $0x3f0] sm:$0xff]
    %v315 = vld [vmem:[%s187 + $0x3f8] sm:$0xff]
    %v320 = vrot.slane %v55, 1
    %vm321 = vcmask 1041409
    %v322 = vsel %vm321, %v57, %v320
    %v323 = vrot.slane %v56, 1
    %v324 = vsel %vm321, %v58, %v323
    %327 = vmatpush.msra.mxu0 %v248
    %328 = vmatpush.msra.mxu0 %v244
    %329 = vmatpush.msra.mxu0 %v240
    %330 = vmatpush.msra.mxu0 %v236
    %331 = vmatpush.msra.mxu0 %v232
    %332 = vmatpush.msra.mxu0 %v228
    %333 = vmatpush.msra.mxu0 %v224
    %334 = vmatpush.msra.mxu0 %v220
    %335 = vmatpush.msra.mxu0 %v216
    %336 = vmatpush.msra.mxu0 %v212
    %337 = vmatpush.msra.mxu0 %v208
    %338 = vmatpush.msra.mxu0 %v204
    %339 = vmatpush.msra.mxu0 %v200
    %340 = vmatpush.msra.mxu0 %v196
    %341 = vmatpush.msra.mxu0 %v192
    %342 = vmatpush.msra.mxu0 %v188
    %343 = vmatmul.f32.gmra.mxu0 %v322
    %v344 = vpop.f32.mrf.mxu0
    %v345 = vadd.f32 0.0, %v344
    %346 = vdwg.mxu0
    %347 = vmatpush.msra.mxu0 %v312
    %348 = vmatpush.msra.mxu0 %v308
    %349 = vmatpush.msra.mxu0 %v304
    %350 = vmatpush.msra.mxu0 %v300
    %351 = vmatpush.msra.mxu0 %v296
    %352 = vmatpush.msra.mxu0 %v292
    %353 = vmatpush.msra.mxu0 %v288
    %354 = vmatpush.msra.mxu0 %v284
    %355 = vmatpush.msra.mxu0 %v280
    %356 = vmatpush.msra.mxu0 %v276
    %357 = vmatpush.msra.mxu0 %v272
    %358 = vmatpush.msra.mxu0 %v268
    %359 = vmatpush.msra.mxu0 %v264
    %360 = vmatpush.msra.mxu0 %v260
    %361 = vmatpush.msra.mxu0 %v256
    %362 = vmatpush.msra.mxu0 %v252
    %363 = vmatmul.f32.gmra.mxu0 %v324
    %v364 = vpop.f32.mrf.mxu0
    %v365 = vadd.f32 %v345, %v364
    %366 = vdwg.mxu0
    %367 = vmatpush.msra.mxu0 %v249
    %368 = vmatpush.msra.mxu0 %v245
    %369 = vmatpush.msra.mxu0 %v241
    %370 = vmatpush.msra.mxu0 %v237
    %371 = vmatpush.msra.mxu0 %v233
    %372 = vmatpush.msra.mxu0 %v229
    %373 = vmatpush.msra.mxu0 %v225
    %374 = vmatpush.msra.mxu0 %v221
    %375 = vmatpush.msra.mxu0 %v217
    %376 = vmatpush.msra.mxu0 %v213
    %377 = vmatpush.msra.mxu0 %v209
    %378 = vmatpush.msra.mxu0 %v205
    %379 = vmatpush.msra.mxu0 %v201
    %380 = vmatpush.msra.mxu0 %v197
    %381 = vmatpush.msra.mxu0 %v193
    %382 = vmatpush.msra.mxu0 %v189
    %383 = vmatmul.f32.gmra.mxu0 %v322
    %v384 = vpop.f32.mrf.mxu0
    %v385 = vadd.f32 0.0, %v384
    %386 = vdwg.mxu0
    %387 = vmatpush.msra.mxu0 %v313
    %388 = vmatpush.msra.mxu0 %v309
    %389 = vmatpush.msra.mxu0 %v305
    %390 = vmatpush.msra.mxu0 %v301
    %391 = vmatpush.msra.mxu0 %v297
    %392 = vmatpush.msra.mxu0 %v293
    %393 = vmatpush.msra.mxu0 %v289
    %394 = vmatpush.msra.mxu0 %v285
    %395 = vmatpush.msra.mxu0 %v281
    %396 = vmatpush.msra.mxu0 %v277
    %397 = vmatpush.msra.mxu0 %v273
    %398 = vmatpush.msra.mxu0 %v269
    %399 = vmatpush.msra.mxu0 %v265
    %400 = vmatpush.msra.mxu0 %v261
    %401 = vmatpush.msra.mxu0 %v257
    %402 = vmatpush.msra.mxu0 %v253
    %403 = vmatmul.f32.gmra.mxu0 %v324
    %v404 = vpop.f32.mrf.mxu0
    %v405 = vadd.f32 %v385, %v404
    %406 = vdwg.mxu0
    %407 = vmatpush.msra.mxu0 %v250
    %408 = vmatpush.msra.mxu0 %v246
    %409 = vmatpush.msra.mxu0 %v242
    %410 = vmatpush.msra.mxu0 %v238
    %411 = vmatpush.msra.mxu0 %v234
    %412 = vmatpush.msra.mxu0 %v230
    %413 = vmatpush.msra.mxu0 %v226
    %414 = vmatpush.msra.mxu0 %v222
    %415 = vmatpush.msra.mxu0 %v218
    %416 = vmatpush.msra.mxu0 %v214
    %417 = vmatpush.msra.mxu0 %v210
    %418 = vmatpush.msra.mxu0 %v206
    %419 = vmatpush.msra.mxu0 %v202
    %420 = vmatpush.msra.mxu0 %v198
    %421 = vmatpush.msra.mxu0 %v194
    %422 = vmatpush.msra.mxu0 %v190
    %423 = vmatmul.f32.gmra.mxu0 %v322
    %v424 = vpop.f32.mrf.mxu0
    %v425 = vadd.f32 0.0, %v424
    %426 = vdwg.mxu0
    %427 = vmatpush.msra.mxu0 %v314
    %428 = vmatpush.msra.mxu0 %v310
    %429 = vmatpush.msra.mxu0 %v306
    %430 = vmatpush.msra.mxu0 %v302
    %431 = vmatpush.msra.mxu0 %v298
    %432 = vmatpush.msra.mxu0 %v294
    %433 = vmatpush.msra.mxu0 %v290
    %434 = vmatpush.msra.mxu0 %v286
    %435 = vmatpush.msra.mxu0 %v282
    %436 = vmatpush.msra.mxu0 %v278
    %437 = vmatpush.msra.mxu0 %v274
    %438 = vmatpush.msra.mxu0 %v270
    %439 = vmatpush.msra.mxu0 %v266
    %440 = vmatpush.msra.mxu0 %v262
    %441 = vmatpush.msra.mxu0 %v258
    %442 = vmatpush.msra.mxu0 %v254
    %443 = vmatmul.f32.gmra.mxu0 %v324
    %v444 = vpop.f32.mrf.mxu0
    %v445 = vadd.f32 %v425, %v444
    %446 = vdwg.mxu0
    %447 = vmatpush.msra.mxu0 %v251
    %448 = vmatpush.msra.mxu0 %v247
    %449 = vmatpush.msra.mxu0 %v243
    %450 = vmatpush.msra.mxu0 %v239
    %451 = vmatpush.msra.mxu0 %v235
    %452 = vmatpush.msra.mxu0 %v231
    %453 = vmatpush.msra.mxu0 %v227
    %454 = vmatpush.msra.mxu0 %v223
    %455 = vmatpush.msra.mxu0 %v219
    %456 = vmatpush.msra.mxu0 %v215
    %457 = vmatpush.msra.mxu0 %v211
    %458 = vmatpush.msra.mxu0 %v207
    %459 = vmatpush.msra.mxu0 %v203
    %460 = vmatpush.msra.mxu0 %v199
    %461 = vmatpush.msra.mxu0 %v195
    %462 = vmatpush.msra.mxu0 %v191
    %463 = vmatmul.f32.gmra.mxu0 %v322
    %v464 = vpop.f32.mrf.mxu0
    %v465 = vadd.f32 0.0, %v464
    %466 = vdwg.mxu0
    %467 = vmatpush.msra.mxu0 %v315
    %468 = vmatpush.msra.mxu0 %v311
    %469 = vmatpush.msra.mxu0 %v307
    %470 = vmatpush.msra.mxu0 %v303
    %471 = vmatpush.msra.mxu0 %v299
    %472 = vmatpush.msra.mxu0 %v295
    %473 = vmatpush.msra.mxu0 %v291
    %474 = vmatpush.msra.mxu0 %v287
    %475 = vmatpush.msra.mxu0 %v283
    %476 = vmatpush.msra.mxu0 %v279
    %477 = vmatpush.msra.mxu0 %v275
    %478 = vmatpush.msra.mxu0 %v271
    %479 = vmatpush.msra.mxu0 %v267
    %480 = vmatpush.msra.mxu0 %v263
    %481 = vmatpush.msra.mxu0 %v259
    %482 = vmatpush.msra.mxu0 %v255
    %483 = vmatmul.f32.gmra.mxu0 %v324
    %v484 = vpop.f32.mrf.mxu0
    %v485 = vadd.f32 %v465, %v484
    %486 = vdwg.mxu0
    %v487 = vrot.slane %v57, 7
    %v488 = vsel %vm321, %v487, %v55
    %v489 = vrot.slane %v58, 7
    %v490 = vsel %vm321, %v489, %v56
    %493 = vmatpush.msra.mxu0 %v119
    %494 = vmatpush.msra.mxu0 %v115
    %495 = vmatpush.msra.mxu0 %v111
    %496 = vmatpush.msra.mxu0 %v107
    %497 = vmatpush.msra.mxu0 %v103
    %498 = vmatpush.msra.mxu0 %v99
    %499 = vmatpush.msra.mxu0 %v95
    %500 = vmatpush.msra.mxu0 %v91
    %501 = vmatpush.msra.mxu0 %v87
    %502 = vmatpush.msra.mxu0 %v83
    %503 = vmatpush.msra.mxu0 %v79
    %504 = vmatpush.msra.mxu0 %v75
    %505 = vmatpush.msra.mxu0 %v71
    %506 = vmatpush.msra.mxu0 %v67
    %507 = vmatpush.msra.mxu0 %v63
    %508 = vmatpush.msra.mxu0 %v59
    %509 = vmatmul.f32.gmra.mxu0 %v488
    %v510 = vpop.f32.mrf.mxu0
    %v511 = vadd.f32 %v365, %v510
    %512 = vdwg.mxu0
    %513 = vmatpush.msra.mxu0 %v183
    %514 = vmatpush.msra.mxu0 %v179
    %515 = vmatpush.msra.mxu0 %v175
    %516 = vmatpush.msra.mxu0 %v171
    %517 = vmatpush.msra.mxu0 %v167
    %518 = vmatpush.msra.mxu0 %v163
    %519 = vmatpush.msra.mxu0 %v159
    %520 = vmatpush.msra.mxu0 %v155
    %521 = vmatpush.msra.mxu0 %v151
    %522 = vmatpush.msra.mxu0 %v147
    %523 = vmatpush.msra.mxu0 %v143
    %524 = vmatpush.msra.mxu0 %v139
    %525 = vmatpush.msra.mxu0 %v135
    %526 = vmatpush.msra.mxu0 %v131
    %527 = vmatpush.msra.mxu0 %v127
    %528 = vmatpush.msra.mxu0 %v123
    %529 = vmatmul.f32.gmra.mxu0 %v490
    %v530 = vpop.f32.mrf.mxu0
    %v531 = vadd.f32 %v511, %v530
    %532 = vdwg.mxu0
    %533 = vmatpush.msra.mxu0 %v120
    %534 = vmatpush.msra.mxu0 %v116
    %535 = vmatpush.msra.mxu0 %v112
    %536 = vmatpush.msra.mxu0 %v108
    %537 = vmatpush.msra.mxu0 %v104
    %538 = vmatpush.msra.mxu0 %v100
    %539 = vmatpush.msra.mxu0 %v96
    %540 = vmatpush.msra.mxu0 %v92
    %541 = vmatpush.msra.mxu0 %v88
    %542 = vmatpush.msra.mxu0 %v84
    %543 = vmatpush.msra.mxu0 %v80
    %544 = vmatpush.msra.mxu0 %v76
    %545 = vmatpush.msra.mxu0 %v72
    %546 = vmatpush.msra.mxu0 %v68
    %547 = vmatpush.msra.mxu0 %v64
    %548 = vmatpush.msra.mxu0 %v60
    %549 = vmatmul.f32.gmra.mxu0 %v488
    %v550 = vpop.f32.mrf.mxu0
    %v551 = vadd.f32 %v405, %v550
    %552 = vdwg.mxu0
    %553 = vmatpush.msra.mxu0 %v184
    %554 = vmatpush.msra.mxu0 %v180
    %555 = vmatpush.msra.mxu0 %v176
    %556 = vmatpush.msra.mxu0 %v172
    %557 = vmatpush.msra.mxu0 %v168
    %558 = vmatpush.msra.mxu0 %v164
    %559 = vmatpush.msra.mxu0 %v160
    %560 = vmatpush.msra.mxu0 %v156
    %561 = vmatpush.msra.mxu0 %v152
    %562 = vmatpush.msra.mxu0 %v148
    %563 = vmatpush.msra.mxu0 %v144
    %564 = vmatpush.msra.mxu0 %v140
    %565 = vmatpush.msra.mxu0 %v136
    %566 = vmatpush.msra.mxu0 %v132
    %567 = vmatpush.msra.mxu0 %v128
    %568 = vmatpush.msra.mxu0 %v124
    %569 = vmatmul.f32.gmra.mxu0 %v490
    %v570 = vpop.f32.mrf.mxu0
    %v571 = vadd.f32 %v551, %v570
    %572 = vdwg.mxu0
    %573 = vmatpush.msra.mxu0 %v121
    %574 = vmatpush.msra.mxu0 %v117
    %575 = vmatpush.msra.mxu0 %v113
    %576 = vmatpush.msra.mxu0 %v109
    %577 = vmatpush.msra.mxu0 %v105
    %578 = vmatpush.msra.mxu0 %v101
    %579 = vmatpush.msra.mxu0 %v97
    %580 = vmatpush.msra.mxu0 %v93
    %581 = vmatpush.msra.mxu0 %v89
    %582 = vmatpush.msra.mxu0 %v85
    %583 = vmatpush.msra.mxu0 %v81
    %584 = vmatpush.msra.mxu0 %v77
    %585 = vmatpush.msra.mxu0 %v73
    %586 = vmatpush.msra.mxu0 %v69
    %587 = vmatpush.msra.mxu0 %v65
    %588 = vmatpush.msra.mxu0 %v61
    %589 = vmatmul.f32.gmra.mxu0 %v488
    %v590 = vpop.f32.mrf.mxu0
    %v591 = vadd.f32 %v445, %v590
    %592 = vdwg.mxu0
    %593 = vmatpush.msra.mxu0 %v185
    %594 = vmatpush.msra.mxu0 %v181
    %595 = vmatpush.msra.mxu0 %v177
    %596 = vmatpush.msra.mxu0 %v173
    %597 = vmatpush.msra.mxu0 %v169
    %598 = vmatpush.msra.mxu0 %v165
    %599 = vmatpush.msra.mxu0 %v161
    %600 = vmatpush.msra.mxu0 %v157
    %601 = vmatpush.msra.mxu0 %v153
    %602 = vmatpush.msra.mxu0 %v149
    %603 = vmatpush.msra.mxu0 %v145
    %604 = vmatpush.msra.mxu0 %v141
    %605 = vmatpush.msra.mxu0 %v137
    %606 = vmatpush.msra.mxu0 %v133
    %607 = vmatpush.msra.mxu0 %v129
    %608 = vmatpush.msra.mxu0 %v125
    %609 = vmatmul.f32.gmra.mxu0 %v490
    %v610 = vpop.f32.mrf.mxu0
    %v611 = vadd.f32 %v591, %v610
    %612 = vdwg.mxu0
    %613 = vmatpush.msra.mxu0 %v122
    %614 = vmatpush.msra.mxu0 %v118
    %615 = vmatpush.msra.mxu0 %v114
    %616 = vmatpush.msra.mxu0 %v110
    %617 = vmatpush.msra.mxu0 %v106
    %618 = vmatpush.msra.mxu0 %v102
    %619 = vmatpush.msra.mxu0 %v98
    %620 = vmatpush.msra.mxu0 %v94
    %621 = vmatpush.msra.mxu0 %v90
    %622 = vmatpush.msra.mxu0 %v86
    %623 = vmatpush.msra.mxu0 %v82
    %624 = vmatpush.msra.mxu0 %v78
    %625 = vmatpush.msra.mxu0 %v74
    %626 = vmatpush.msra.mxu0 %v70
    %627 = vmatpush.msra.mxu0 %v66
    %628 = vmatpush.msra.mxu0 %v62
    %629 = vmatmul.f32.gmra.mxu0 %v488
    %v630 = vpop.f32.mrf.mxu0
    %v631 = vadd.f32 %v485, %v630
    %632 = vdwg.mxu0
    %633 = vmatpush.msra.mxu0 %v186
    %634 = vmatpush.msra.mxu0 %v182
    %635 = vmatpush.msra.mxu0 %v178
    %636 = vmatpush.msra.mxu0 %v174
    %637 = vmatpush.msra.mxu0 %v170
    %638 = vmatpush.msra.mxu0 %v166
    %639 = vmatpush.msra.mxu0 %v162
    %640 = vmatpush.msra.mxu0 %v158
    %641 = vmatpush.msra.mxu0 %v154
    %642 = vmatpush.msra.mxu0 %v150
    %643 = vmatpush.msra.mxu0 %v146
    %644 = vmatpush.msra.mxu0 %v142
    %645 = vmatpush.msra.mxu0 %v138
    %646 = vmatpush.msra.mxu0 %v134
    %647 = vmatpush.msra.mxu0 %v130
    %648 = vmatpush.msra.mxu0 %v126
    %649 = vmatmul.f32.gmra.mxu0 %v490
    %v650 = vpop.f32.mrf.mxu0
    %v651 = vadd.f32 %v631, %v650
    %652 = vdwg.mxu0
    %s653 = scalar_lea.vmem %s1, 2048
    %v654 = vld [vmem:[%s653] sm:$0xff]
    %v655 = vld [vmem:[%s653 + $0x8] sm:$0xff]
    %v656 = vld [vmem:[%s653 + $0x10] sm:$0xff]
    %v657 = vld [vmem:[%s653 + $0x18] sm:$0xff]
    %v658 = vld [vmem:[%s653 + $0x20] sm:$0xff]
    %v659 = vld [vmem:[%s653 + $0x28] sm:$0xff]
    %v660 = vld [vmem:[%s653 + $0x30] sm:$0xff]
    %v661 = vld [vmem:[%s653 + $0x38] sm:$0xff]
    %v662 = vld [vmem:[%s653 + $0x40] sm:$0xff]
    %v663 = vld [vmem:[%s653 + $0x48] sm:$0xff]
    %v664 = vld [vmem:[%s653 + $0x50] sm:$0xff]
    %v665 = vld [vmem:[%s653 + $0x58] sm:$0xff]
    %v666 = vld [vmem:[%s653 + $0x60] sm:$0xff]
    %v667 = vld [vmem:[%s653 + $0x68] sm:$0xff]
    %v668 = vld [vmem:[%s653 + $0x70] sm:$0xff]
    %v669 = vld [vmem:[%s653 + $0x78] sm:$0xff]
    %v670 = vld [vmem:[%s653 + $0x80] sm:$0xff]
    %v671 = vld [vmem:[%s653 + $0x88] sm:$0xff]
    %v672 = vld [vmem:[%s653 + $0x90] sm:$0xff]
    %v673 = vld [vmem:[%s653 + $0x98] sm:$0xff]
    %v674 = vld [vmem:[%s653 + $0xa0] sm:$0xff]
    %v675 = vld [vmem:[%s653 + $0xa8] sm:$0xff]
    %v676 = vld [vmem:[%s653 + $0xb0] sm:$0xff]
    %v677 = vld [vmem:[%s653 + $0xb8] sm:$0xff]
    %v678 = vld [vmem:[%s653 + $0xc0] sm:$0xff]
    %v679 = vld [vmem:[%s653 + $0xc8] sm:$0xff]
    %v680 = vld [vmem:[%s653 + $0xd0] sm:$0xff]
    %v681 = vld [vmem:[%s653 + $0xd8] sm:$0xff]
    %v682 = vld [vmem:[%s653 + $0xe0] sm:$0xff]
    %v683 = vld [vmem:[%s653 + $0xe8] sm:$0xff]
    %v684 = vld [vmem:[%s653 + $0xf0] sm:$0xff]
    %v685 = vld [vmem:[%s653 + $0xf8] sm:$0xff]
    %v686 = vld [vmem:[%s653 + $0x100] sm:$0xff]
    %v687 = vld [vmem:[%s653 + $0x108] sm:$0xff]
    %v688 = vld [vmem:[%s653 + $0x110] sm:$0xff]
    %v689 = vld [vmem:[%s653 + $0x118] sm:$0xff]
    %v690 = vld [vmem:[%s653 + $0x120] sm:$0xff]
    %v691 = vld [vmem:[%s653 + $0x128] sm:$0xff]
    %v692 = vld [vmem:[%s653 + $0x130] sm:$0xff]
    %v693 = vld [vmem:[%s653 + $0x138] sm:$0xff]
    %v694 = vld [vmem:[%s653 + $0x140] sm:$0xff]
    %v695 = vld [vmem:[%s653 + $0x148] sm:$0xff]
    %v696 = vld [vmem:[%s653 + $0x150] sm:$0xff]
    %v697 = vld [vmem:[%s653 + $0x158] sm:$0xff]
    %v698 = vld [vmem:[%s653 + $0x160] sm:$0xff]
    %v699 = vld [vmem:[%s653 + $0x168] sm:$0xff]
    %v700 = vld [vmem:[%s653 + $0x170] sm:$0xff]
    %v701 = vld [vmem:[%s653 + $0x178] sm:$0xff]
    %v702 = vld [vmem:[%s653 + $0x180] sm:$0xff]
    %v703 = vld [vmem:[%s653 + $0x188] sm:$0xff]
    %v704 = vld [vmem:[%s653 + $0x190] sm:$0xff]
    %v705 = vld [vmem:[%s653 + $0x198] sm:$0xff]
    %v706 = vld [vmem:[%s653 + $0x1a0] sm:$0xff]
    %v707 = vld [vmem:[%s653 + $0x1a8] sm:$0xff]
    %v708 = vld [vmem:[%s653 + $0x1b0] sm:$0xff]
    %v709 = vld [vmem:[%s653 + $0x1b8] sm:$0xff]
    %v710 = vld [vmem:[%s653 + $0x1c0] sm:$0xff]
    %v711 = vld [vmem:[%s653 + $0x1c8] sm:$0xff]
    %v712 = vld [vmem:[%s653 + $0x1d0] sm:$0xff]
    %v713 = vld [vmem:[%s653 + $0x1d8] sm:$0xff]
    %v714 = vld [vmem:[%s653 + $0x1e0] sm:$0xff]
    %v715 = vld [vmem:[%s653 + $0x1e8] sm:$0xff]
    %v716 = vld [vmem:[%s653 + $0x1f0] sm:$0xff]
    %v717 = vld [vmem:[%s653 + $0x1f8] sm:$0xff]
    %v718 = vld [vmem:[%s653 + $0x200] sm:$0xff]
    %v719 = vld [vmem:[%s653 + $0x208] sm:$0xff]
    %v720 = vld [vmem:[%s653 + $0x210] sm:$0xff]
    %v721 = vld [vmem:[%s653 + $0x218] sm:$0xff]
    %v722 = vld [vmem:[%s653 + $0x220] sm:$0xff]
    %v723 = vld [vmem:[%s653 + $0x228] sm:$0xff]
    %v724 = vld [vmem:[%s653 + $0x230] sm:$0xff]
    %v725 = vld [vmem:[%s653 + $0x238] sm:$0xff]
    %v726 = vld [vmem:[%s653 + $0x240] sm:$0xff]
    %v727 = vld [vmem:[%s653 + $0x248] sm:$0xff]
    %v728 = vld [vmem:[%s653 + $0x250] sm:$0xff]
    %v729 = vld [vmem:[%s653 + $0x258] sm:$0xff]
    %v730 = vld [vmem:[%s653 + $0x260] sm:$0xff]
    %v731 = vld [vmem:[%s653 + $0x268] sm:$0xff]
    %v732 = vld [vmem:[%s653 + $0x270] sm:$0xff]
    %v733 = vld [vmem:[%s653 + $0x278] sm:$0xff]
    %v734 = vld [vmem:[%s653 + $0x280] sm:$0xff]
    %v735 = vld [vmem:[%s653 + $0x288] sm:$0xff]
    %v736 = vld [vmem:[%s653 + $0x290] sm:$0xff]
    %v737 = vld [vmem:[%s653 + $0x298] sm:$0xff]
    %v738 = vld [vmem:[%s653 + $0x2a0] sm:$0xff]
    %v739 = vld [vmem:[%s653 + $0x2a8] sm:$0xff]
    %v740 = vld [vmem:[%s653 + $0x2b0] sm:$0xff]
    %v741 = vld [vmem:[%s653 + $0x2b8] sm:$0xff]
    %v742 = vld [vmem:[%s653 + $0x2c0] sm:$0xff]
    %v743 = vld [vmem:[%s653 + $0x2c8] sm:$0xff]
    %v744 = vld [vmem:[%s653 + $0x2d0] sm:$0xff]
    %v745 = vld [vmem:[%s653 + $0x2d8] sm:$0xff]
    %v746 = vld [vmem:[%s653 + $0x2e0] sm:$0xff]
    %v747 = vld [vmem:[%s653 + $0x2e8] sm:$0xff]
    %v748 = vld [vmem:[%s653 + $0x2f0] sm:$0xff]
    %v749 = vld [vmem:[%s653 + $0x2f8] sm:$0xff]
    %v750 = vld [vmem:[%s653 + $0x300] sm:$0xff]
    %v751 = vld [vmem:[%s653 + $0x308] sm:$0xff]
    %v752 = vld [vmem:[%s653 + $0x310] sm:$0xff]
    %v753 = vld [vmem:[%s653 + $0x318] sm:$0xff]
    %v754 = vld [vmem:[%s653 + $0x320] sm:$0xff]
    %v755 = vld [vmem:[%s653 + $0x328] sm:$0xff]
    %v756 = vld [vmem:[%s653 + $0x330] sm:$0xff]
    %v757 = vld [vmem:[%s653 + $0x338] sm:$0xff]
    %v758 = vld [vmem:[%s653 + $0x340] sm:$0xff]
    %v759 = vld [vmem:[%s653 + $0x348] sm:$0xff]
    %v760 = vld [vmem:[%s653 + $0x350] sm:$0xff]
    %v761 = vld [vmem:[%s653 + $0x358] sm:$0xff]
    %v762 = vld [vmem:[%s653 + $0x360] sm:$0xff]
    %v763 = vld [vmem:[%s653 + $0x368] sm:$0xff]
    %v764 = vld [vmem:[%s653 + $0x370] sm:$0xff]
    %v765 = vld [vmem:[%s653 + $0x378] sm:$0xff]
    %v766 = vld [vmem:[%s653 + $0x380] sm:$0xff]
    %v767 = vld [vmem:[%s653 + $0x388] sm:$0xff]
    %v768 = vld [vmem:[%s653 + $0x390] sm:$0xff]
    %v769 = vld [vmem:[%s653 + $0x398] sm:$0xff]
    %v770 = vld [vmem:[%s653 + $0x3a0] sm:$0xff]
    %v771 = vld [vmem:[%s653 + $0x3a8] sm:$0xff]
    %v772 = vld [vmem:[%s653 + $0x3b0] sm:$0xff]
    %v773 = vld [vmem:[%s653 + $0x3b8] sm:$0xff]
    %v774 = vld [vmem:[%s653 + $0x3c0] sm:$0xff]
    %v775 = vld [vmem:[%s653 + $0x3c8] sm:$0xff]
    %v776 = vld [vmem:[%s653 + $0x3d0] sm:$0xff]
    %v777 = vld [vmem:[%s653 + $0x3d8] sm:$0xff]
    %v778 = vld [vmem:[%s653 + $0x3e0] sm:$0xff]
    %v779 = vld [vmem:[%s653 + $0x3e8] sm:$0xff]
    %v780 = vld [vmem:[%s653 + $0x3f0] sm:$0xff]
    %v781 = vld [vmem:[%s653 + $0x3f8] sm:$0xff]
    %v782 = vrot.slane %v55, 2
    %v783 = vrot.slane %v57, 1
    %v784 = vsel %vm321, %v783, %v782
    %v785 = vrot.slane %v56, 2
    %v786 = vrot.slane %v58, 1
    %v787 = vsel %vm321, %v786, %v785
    %790 = vmatpush.msra.mxu0 %v714
    %791 = vmatpush.msra.mxu0 %v710
    %792 = vmatpush.msra.mxu0 %v706
    %793 = vmatpush.msra.mxu0 %v702
    %794 = vmatpush.msra.mxu0 %v698
    %795 = vmatpush.msra.mxu0 %v694
    %796 = vmatpush.msra.mxu0 %v690
    %797 = vmatpush.msra.mxu0 %v686
    %798 = vmatpush.msra.mxu0 %v682
    %799 = vmatpush.msra.mxu0 %v678
    %800 = vmatpush.msra.mxu0 %v674
    %801 = vmatpush.msra.mxu0 %v670
    %802 = vmatpush.msra.mxu0 %v666
    %803 = vmatpush.msra.mxu0 %v662
    %804 = vmatpush.msra.mxu0 %v658
    %805 = vmatpush.msra.mxu0 %v654
    %806 = vmatmul.f32.gmra.mxu0 %v784
    %v807 = vpop.f32.mrf.mxu0
    %v808 = vadd.f32 0.0, %v807
    %809 = vdwg.mxu0
    %810 = vmatpush.msra.mxu0 %v778
    %811 = vmatpush.msra.mxu0 %v774
    %812 = vmatpush.msra.mxu0 %v770
    %813 = vmatpush.msra.mxu0 %v766
    %814 = vmatpush.msra.mxu0 %v762
    %815 = vmatpush.msra.mxu0 %v758
    %816 = vmatpush.msra.mxu0 %v754
    %817 = vmatpush.msra.mxu0 %v750
    %818 = vmatpush.msra.mxu0 %v746
    %819 = vmatpush.msra.mxu0 %v742
    %820 = vmatpush.msra.mxu0 %v738
    %821 = vmatpush.msra.mxu0 %v734
    %822 = vmatpush.msra.mxu0 %v730
    %823 = vmatpush.msra.mxu0 %v726
    %824 = vmatpush.msra.mxu0 %v722
    %825 = vmatpush.msra.mxu0 %v718
    %826 = vmatmul.f32.gmra.mxu0 %v787
    %v827 = vpop.f32.mrf.mxu0
    %v828 = vadd.f32 %v808, %v827
    %829 = vdwg.mxu0
    %830 = vmatpush.msra.mxu0 %v715
    %831 = vmatpush.msra.mxu0 %v711
    %832 = vmatpush.msra.mxu0 %v707
    %833 = vmatpush.msra.mxu0 %v703
    %834 = vmatpush.msra.mxu0 %v699
    %835 = vmatpush.msra.mxu0 %v695
    %836 = vmatpush.msra.mxu0 %v691
    %837 = vmatpush.msra.mxu0 %v687
    %838 = vmatpush.msra.mxu0 %v683
    %839 = vmatpush.msra.mxu0 %v679
    %840 = vmatpush.msra.mxu0 %v675
    %841 = vmatpush.msra.mxu0 %v671
    %842 = vmatpush.msra.mxu0 %v667
    %843 = vmatpush.msra.mxu0 %v663
    %844 = vmatpush.msra.mxu0 %v659
    %845 = vmatpush.msra.mxu0 %v655
    %846 = vmatmul.f32.gmra.mxu0 %v784
    %v847 = vpop.f32.mrf.mxu0
    %v848 = vadd.f32 0.0, %v847
    %849 = vdwg.mxu0
    %850 = vmatpush.msra.mxu0 %v779
    %851 = vmatpush.msra.mxu0 %v775
    %852 = vmatpush.msra.mxu0 %v771
    %853 = vmatpush.msra.mxu0 %v767
    %854 = vmatpush.msra.mxu0 %v763
    %855 = vmatpush.msra.mxu0 %v759
    %856 = vmatpush.msra.mxu0 %v755
    %857 = vmatpush.msra.mxu0 %v751
    %858 = vmatpush.msra.mxu0 %v747
    %859 = vmatpush.msra.mxu0 %v743
    %860 = vmatpush.msra.mxu0 %v739
    %861 = vmatpush.msra.mxu0 %v735
    %862 = vmatpush.msra.mxu0 %v731
    %863 = vmatpush.msra.mxu0 %v727
    %864 = vmatpush.msra.mxu0 %v723
    %865 = vmatpush.msra.mxu0 %v719
    %866 = vmatmul.f32.gmra.mxu0 %v787
    %v867 = vpop.f32.mrf.mxu0
    %v868 = vadd.f32 %v848, %v867
    %869 = vdwg.mxu0
    %870 = vmatpush.msra.mxu0 %v716
    %871 = vmatpush.msra.mxu0 %v712
    %872 = vmatpush.msra.mxu0 %v708
    %873 = vmatpush.msra.mxu0 %v704
    %874 = vmatpush.msra.mxu0 %v700
    %875 = vmatpush.msra.mxu0 %v696
    %876 = vmatpush.msra.mxu0 %v692
    %877 = vmatpush.msra.mxu0 %v688
    %878 = vmatpush.msra.mxu0 %v684
    %879 = vmatpush.msra.mxu0 %v680
    %880 = vmatpush.msra.mxu0 %v676
    %881 = vmatpush.msra.mxu0 %v672
    %882 = vmatpush.msra.mxu0 %v668
    %883 = vmatpush.msra.mxu0 %v664
    %884 = vmatpush.msra.mxu0 %v660
    %885 = vmatpush.msra.mxu0 %v656
    %886 = vmatmul.f32.gmra.mxu0 %v784
    %v887 = vpop.f32.mrf.mxu0
    %v888 = vadd.f32 0.0, %v887
    %889 = vdwg.mxu0
    %890 = vmatpush.msra.mxu0 %v780
    %891 = vmatpush.msra.mxu0 %v776
    %892 = vmatpush.msra.mxu0 %v772
    %893 = vmatpush.msra.mxu0 %v768
    %894 = vmatpush.msra.mxu0 %v764
    %895 = vmatpush.msra.mxu0 %v760
    %896 = vmatpush.msra.mxu0 %v756
    %897 = vmatpush.msra.mxu0 %v752
    %898 = vmatpush.msra.mxu0 %v748
    %899 = vmatpush.msra.mxu0 %v744
    %900 = vmatpush.msra.mxu0 %v740
    %901 = vmatpush.msra.mxu0 %v736
    %902 = vmatpush.msra.mxu0 %v732
    %903 = vmatpush.msra.mxu0 %v728
    %904 = vmatpush.msra.mxu0 %v724
    %905 = vmatpush.msra.mxu0 %v720
    %906 = vmatmul.f32.gmra.mxu0 %v787
    %v907 = vpop.f32.mrf.mxu0
    %v908 = vadd.f32 %v888, %v907
    %909 = vdwg.mxu0
    %910 = vmatpush.msra.mxu0 %v717
    %911 = vmatpush.msra.mxu0 %v713
    %912 = vmatpush.msra.mxu0 %v709
    %913 = vmatpush.msra.mxu0 %v705
    %914 = vmatpush.msra.mxu0 %v701
    %915 = vmatpush.msra.mxu0 %v697
    %916 = vmatpush.msra.mxu0 %v693
    %917 = vmatpush.msra.mxu0 %v689
    %918 = vmatpush.msra.mxu0 %v685
    %919 = vmatpush.msra.mxu0 %v681
    %920 = vmatpush.msra.mxu0 %v677
    %921 = vmatpush.msra.mxu0 %v673
    %922 = vmatpush.msra.mxu0 %v669
    %923 = vmatpush.msra.mxu0 %v665
    %924 = vmatpush.msra.mxu0 %v661
    %925 = vmatpush.msra.mxu0 %v657
    %926 = vmatmul.f32.gmra.mxu0 %v784
    %v927 = vpop.f32.mrf.mxu0
    %v928 = vadd.f32 0.0, %v927
    %929 = vdwg.mxu0
    %930 = vmatpush.msra.mxu0 %v781
    %931 = vmatpush.msra.mxu0 %v777
    %932 = vmatpush.msra.mxu0 %v773
    %933 = vmatpush.msra.mxu0 %v769
    %934 = vmatpush.msra.mxu0 %v765
    %935 = vmatpush.msra.mxu0 %v761
    %936 = vmatpush.msra.mxu0 %v757
    %937 = vmatpush.msra.mxu0 %v753
    %938 = vmatpush.msra.mxu0 %v749
    %939 = vmatpush.msra.mxu0 %v745
    %940 = vmatpush.msra.mxu0 %v741
    %941 = vmatpush.msra.mxu0 %v737
    %942 = vmatpush.msra.mxu0 %v733
    %943 = vmatpush.msra.mxu0 %v729
    %944 = vmatpush.msra.mxu0 %v725
    %945 = vmatpush.msra.mxu0 %v721
    %946 = vmatmul.f32.gmra.mxu0 %v787
    %v947 = vpop.f32.mrf.mxu0
    %v948 = vadd.f32 %v928, %v947
    %949 = vdwg.mxu0
    %v950 = vadd.f32 %v531, %v828
    %v951 = vadd.f32 %v571, %v868
    %v952 = vadd.f32 %v611, %v908
    %v953 = vadd.f32 %v651, %v948
    %s954 = scalar_lea.vmem %s1, 3072
    %v955 = vld [vmem:[%s954] sm:$0xff]
    %v956 = vld [vmem:[%s954 + $0x8] sm:$0xff]
    %v957 = vld [vmem:[%s954 + $0x10] sm:$0xff]
    %v958 = vld [vmem:[%s954 + $0x18] sm:$0xff]
    %v959 = vld [vmem:[%s954 + $0x20] sm:$0xff]
    %v960 = vld [vmem:[%s954 + $0x28] sm:$0xff]
    %v961 = vld [vmem:[%s954 + $0x30] sm:$0xff]
    %v962 = vld [vmem:[%s954 + $0x38] sm:$0xff]
    %v963 = vld [vmem:[%s954 + $0x40] sm:$0xff]
    %v964 = vld [vmem:[%s954 + $0x48] sm:$0xff]
    %v965 = vld [vmem:[%s954 + $0x50] sm:$0xff]
    %v966 = vld [vmem:[%s954 + $0x58] sm:$0xff]
    %v967 = vld [vmem:[%s954 + $0x60] sm:$0xff]
    %v968 = vld [vmem:[%s954 + $0x68] sm:$0xff]
    %v969 = vld [vmem:[%s954 + $0x70] sm:$0xff]
    %v970 = vld [vmem:[%s954 + $0x78] sm:$0xff]
    %v971 = vld [vmem:[%s954 + $0x80] sm:$0xff]
    %v972 = vld [vmem:[%s954 + $0x88] sm:$0xff]
    %v973 = vld [vmem:[%s954 + $0x90] sm:$0xff]
    %v974 = vld [vmem:[%s954 + $0x98] sm:$0xff]
    %v975 = vld [vmem:[%s954 + $0xa0] sm:$0xff]
    %v976 = vld [vmem:[%s954 + $0xa8] sm:$0xff]
    %v977 = vld [vmem:[%s954 + $0xb0] sm:$0xff]
    %v978 = vld [vmem:[%s954 + $0xb8] sm:$0xff]
    %v979 = vld [vmem:[%s954 + $0xc0] sm:$0xff]
    %v980 = vld [vmem:[%s954 + $0xc8] sm:$0xff]
    %v981 = vld [vmem:[%s954 + $0xd0] sm:$0xff]
    %v982 = vld [vmem:[%s954 + $0xd8] sm:$0xff]
    %v983 = vld [vmem:[%s954 + $0xe0] sm:$0xff]
    %v984 = vld [vmem:[%s954 + $0xe8] sm:$0xff]
    %v985 = vld [vmem:[%s954 + $0xf0] sm:$0xff]
    %v986 = vld [vmem:[%s954 + $0xf8] sm:$0xff]
    %v987 = vld [vmem:[%s954 + $0x100] sm:$0xff]
    %v988 = vld [vmem:[%s954 + $0x108] sm:$0xff]
    %v989 = vld [vmem:[%s954 + $0x110] sm:$0xff]
    %v990 = vld [vmem:[%s954 + $0x118] sm:$0xff]
    %v991 = vld [vmem:[%s954 + $0x120] sm:$0xff]
    %v992 = vld [vmem:[%s954 + $0x128] sm:$0xff]
    %v993 = vld [vmem:[%s954 + $0x130] sm:$0xff]
    %v994 = vld [vmem:[%s954 + $0x138] sm:$0xff]
    %v995 = vld [vmem:[%s954 + $0x140] sm:$0xff]
    %v996 = vld [vmem:[%s954 + $0x148] sm:$0xff]
    %v997 = vld [vmem:[%s954 + $0x150] sm:$0xff]
    %v998 = vld [vmem:[%s954 + $0x158] sm:$0xff]
    %v999 = vld [vmem:[%s954 + $0x160] sm:$0xff]
    %v1000 = vld [vmem:[%s954 + $0x168] sm:$0xff]
    %v1001 = vld [vmem:[%s954 + $0x170] sm:$0xff]
    %v1002 = vld [vmem:[%s954 + $0x178] sm:$0xff]
    %v1003 = vld [vmem:[%s954 + $0x180] sm:$0xff]
    %v1004 = vld [vmem:[%s954 + $0x188] sm:$0xff]
    %v1005 = vld [vmem:[%s954 + $0x190] sm:$0xff]
    %v1006 = vld [vmem:[%s954 + $0x198] sm:$0xff]
    %v1007 = vld [vmem:[%s954 + $0x1a0] sm:$0xff]
    %v1008 = vld [vmem:[%s954 + $0x1a8] sm:$0xff]
    %v1009 = vld [vmem:[%s954 + $0x1b0] sm:$0xff]
    %v1010 = vld [vmem:[%s954 + $0x1b8] sm:$0xff]
    %v1011 = vld [vmem:[%s954 + $0x1c0] sm:$0xff]
    %v1012 = vld [vmem:[%s954 + $0x1c8] sm:$0xff]
    %v1013 = vld [vmem:[%s954 + $0x1d0] sm:$0xff]
    %v1014 = vld [vmem:[%s954 + $0x1d8] sm:$0xff]
    %v1015 = vld [vmem:[%s954 + $0x1e0] sm:$0xff]
    %v1016 = vld [vmem:[%s954 + $0x1e8] sm:$0xff]
    %v1017 = vld [vmem:[%s954 + $0x1f0] sm:$0xff]
    %v1018 = vld [vmem:[%s954 + $0x1f8] sm:$0xff]
    %v1019 = vld [vmem:[%s954 + $0x200] sm:$0xff]
    %v1020 = vld [vmem:[%s954 + $0x208] sm:$0xff]
    %v1021 = vld [vmem:[%s954 + $0x210] sm:$0xff]
    %v1022 = vld [vmem:[%s954 + $0x218] sm:$0xff]
    %v1023 = vld [vmem:[%s954 + $0x220] sm:$0xff]
    %v1024 = vld [vmem:[%s954 + $0x228] sm:$0xff]
    %v1025 = vld [vmem:[%s954 + $0x230] sm:$0xff]
    %v1026 = vld [vmem:[%s954 + $0x238] sm:$0xff]
    %v1027 = vld [vmem:[%s954 + $0x240] sm:$0xff]
    %v1028 = vld [vmem:[%s954 + $0x248] sm:$0xff]
    %v1029 = vld [vmem:[%s954 + $0x250] sm:$0xff]
    %v1030 = vld [vmem:[%s954 + $0x258] sm:$0xff]
    %v1031 = vld [vmem:[%s954 + $0x260] sm:$0xff]
    %v1032 = vld [vmem:[%s954 + $0x268] sm:$0xff]
    %v1033 = vld [vmem:[%s954 + $0x270] sm:$0xff]
    %v1034 = vld [vmem:[%s954 + $0x278] sm:$0xff]
    %v1035 = vld [vmem:[%s954 + $0x280] sm:$0xff]
    %v1036 = vld [vmem:[%s954 + $0x288] sm:$0xff]
    %v1037 = vld [vmem:[%s954 + $0x290] sm:$0xff]
    %v1038 = vld [vmem:[%s954 + $0x298] sm:$0xff]
    %v1039 = vld [vmem:[%s954 + $0x2a0] sm:$0xff]
    %v1040 = vld [vmem:[%s954 + $0x2a8] sm:$0xff]
    %v1041 = vld [vmem:[%s954 + $0x2b0] sm:$0xff]
    %v1042 = vld [vmem:[%s954 + $0x2b8] sm:$0xff]
    %v1043 = vld [vmem:[%s954 + $0x2c0] sm:$0xff]
    %v1044 = vld [vmem:[%s954 + $0x2c8] sm:$0xff]
    %v1045 = vld [vmem:[%s954 + $0x2d0] sm:$0xff]
    %v1046 = vld [vmem:[%s954 + $0x2d8] sm:$0xff]
    %v1047 = vld [vmem:[%s954 + $0x2e0] sm:$0xff]
    %v1048 = vld [vmem:[%s954 + $0x2e8] sm:$0xff]
    %v1049 = vld [vmem:[%s954 + $0x2f0] sm:$0xff]
    %v1050 = vld [vmem:[%s954 + $0x2f8] sm:$0xff]
    %v1051 = vld [vmem:[%s954 + $0x300] sm:$0xff]
    %v1052 = vld [vmem:[%s954 + $0x308] sm:$0xff]
    %v1053 = vld [vmem:[%s954 + $0x310] sm:$0xff]
    %v1054 = vld [vmem:[%s954 + $0x318] sm:$0xff]
    %v1055 = vld [vmem:[%s954 + $0x320] sm:$0xff]
    %v1056 = vld [vmem:[%s954 + $0x328] sm:$0xff]
    %v1057 = vld [vmem:[%s954 + $0x330] sm:$0xff]
    %v1058 = vld [vmem:[%s954 + $0x338] sm:$0xff]
    %v1059 = vld [vmem:[%s954 + $0x340] sm:$0xff]
    %v1060 = vld [vmem:[%s954 + $0x348] sm:$0xff]
    %v1061 = vld [vmem:[%s954 + $0x350] sm:$0xff]
    %v1062 = vld [vmem:[%s954 + $0x358] sm:$0xff]
    %v1063 = vld [vmem:[%s954 + $0x360] sm:$0xff]
    %v1064 = vld [vmem:[%s954 + $0x368] sm:$0xff]
    %v1065 = vld [vmem:[%s954 + $0x370] sm:$0xff]
    %v1066 = vld [vmem:[%s954 + $0x378] sm:$0xff]
    %v1067 = vld [vmem:[%s954 + $0x380] sm:$0xff]
    %v1068 = vld [vmem:[%s954 + $0x388] sm:$0xff]
    %v1069 = vld [vmem:[%s954 + $0x390] sm:$0xff]
    %v1070 = vld [vmem:[%s954 + $0x398] sm:$0xff]
    %v1071 = vld [vmem:[%s954 + $0x3a0] sm:$0xff]
    %v1072 = vld [vmem:[%s954 + $0x3a8] sm:$0xff]
    %v1073 = vld [vmem:[%s954 + $0x3b0] sm:$0xff]
    %v1074 = vld [vmem:[%s954 + $0x3b8] sm:$0xff]
    %v1075 = vld [vmem:[%s954 + $0x3c0] sm:$0xff]
    %v1076 = vld [vmem:[%s954 + $0x3c8] sm:$0xff]
    %v1077 = vld [vmem:[%s954 + $0x3d0] sm:$0xff]
    %v1078 = vld [vmem:[%s954 + $0x3d8] sm:$0xff]
    %v1079 = vld [vmem:[%s954 + $0x3e0] sm:$0xff]
    %v1080 = vld [vmem:[%s954 + $0x3e8] sm:$0xff]
    %v1081 = vld [vmem:[%s954 + $0x3f0] sm:$0xff]
    %v1082 = vld [vmem:[%s954 + $0x3f8] sm:$0xff]
    %v1083 = vrot.slane %v55, 3
    %v1084 = vrot.slane %v57, 2
    %v1085 = vsel %vm321, %v1084, %v1083
    %v1086 = vrot.slane %v56, 3
    %v1087 = vrot.slane %v58, 2
    %v1088 = vsel %vm321, %v1087, %v1086
    %1091 = vmatpush.msra.mxu0 %v1015
    %1092 = vmatpush.msra.mxu0 %v1011
    %1093 = vmatpush.msra.mxu0 %v1007
    %1094 = vmatpush.msra.mxu0 %v1003
    %1095 = vmatpush.msra.mxu0 %v999
    %1096 = vmatpush.msra.mxu0 %v995
    %1097 = vmatpush.msra.mxu0 %v991
    %1098 = vmatpush.msra.mxu0 %v987
    %1099 = vmatpush.msra.mxu0 %v983
    %1100 = vmatpush.msra.mxu0 %v979
    %1101 = vmatpush.msra.mxu0 %v975
    %1102 = vmatpush.msra.mxu0 %v971
    %1103 = vmatpush.msra.mxu0 %v967
    %1104 = vmatpush.msra.mxu0 %v963
    %1105 = vmatpush.msra.mxu0 %v959
    %1106 = vmatpush.msra.mxu0 %v955
    %1107 = vmatmul.f32.gmra.mxu0 %v1085
    %v1108 = vpop.f32.mrf.mxu0
    %v1109 = vadd.f32 0.0, %v1108
    %1110 = vdwg.mxu0
    %1111 = vmatpush.msra.mxu0 %v1079
    %1112 = vmatpush.msra.mxu0 %v1075
    %1113 = vmatpush.msra.mxu0 %v1071
    %1114 = vmatpush.msra.mxu0 %v1067
    %1115 = vmatpush.msra.mxu0 %v1063
    %1116 = vmatpush.msra.mxu0 %v1059
    %1117 = vmatpush.msra.mxu0 %v1055
    %1118 = vmatpush.msra.mxu0 %v1051
    %1119 = vmatpush.msra.mxu0 %v1047
    %1120 = vmatpush.msra.mxu0 %v1043
    %1121 = vmatpush.msra.mxu0 %v1039
    %1122 = vmatpush.msra.mxu0 %v1035
    %1123 = vmatpush.msra.mxu0 %v1031
    %1124 = vmatpush.msra.mxu0 %v1027
    %1125 = vmatpush.msra.mxu0 %v1023
    %1126 = vmatpush.msra.mxu0 %v1019
    %1127 = vmatmul.f32.gmra.mxu0 %v1088
    %v1128 = vpop.f32.mrf.mxu0
    %v1129 = vadd.f32 %v1109, %v1128
    %1130 = vdwg.mxu0
    %1131 = vmatpush.msra.mxu0 %v1016
    %1132 = vmatpush.msra.mxu0 %v1012
    %1133 = vmatpush.msra.mxu0 %v1008
    %1134 = vmatpush.msra.mxu0 %v1004
    %1135 = vmatpush.msra.mxu0 %v1000
    %1136 = vmatpush.msra.mxu0 %v996
    %1137 = vmatpush.msra.mxu0 %v992
    %1138 = vmatpush.msra.mxu0 %v988
    %1139 = vmatpush.msra.mxu0 %v984
    %1140 = vmatpush.msra.mxu0 %v980
    %1141 = vmatpush.msra.mxu0 %v976
    %1142 = vmatpush.msra.mxu0 %v972
    %1143 = vmatpush.msra.mxu0 %v968
    %1144 = vmatpush.msra.mxu0 %v964
    %1145 = vmatpush.msra.mxu0 %v960
    %1146 = vmatpush.msra.mxu0 %v956
    %1147 = vmatmul.f32.gmra.mxu0 %v1085
    %v1148 = vpop.f32.mrf.mxu0
    %v1149 = vadd.f32 0.0, %v1148
    %1150 = vdwg.mxu0
    %1151 = vmatpush.msra.mxu0 %v1080
    %1152 = vmatpush.msra.mxu0 %v1076
    %1153 = vmatpush.msra.mxu0 %v1072
    %1154 = vmatpush.msra.mxu0 %v1068
    %1155 = vmatpush.msra.mxu0 %v1064
    %1156 = vmatpush.msra.mxu0 %v1060
    %1157 = vmatpush.msra.mxu0 %v1056
    %1158 = vmatpush.msra.mxu0 %v1052
    %1159 = vmatpush.msra.mxu0 %v1048
    %1160 = vmatpush.msra.mxu0 %v1044
    %1161 = vmatpush.msra.mxu0 %v1040
    %1162 = vmatpush.msra.mxu0 %v1036
    %1163 = vmatpush.msra.mxu0 %v1032
    %1164 = vmatpush.msra.mxu0 %v1028
    %1165 = vmatpush.msra.mxu0 %v1024
    %1166 = vmatpush.msra.mxu0 %v1020
    %1167 = vmatmul.f32.gmra.mxu0 %v1088
    %v1168 = vpop.f32.mrf.mxu0
    %v1169 = vadd.f32 %v1149, %v1168
    %1170 = vdwg.mxu0
    %1171 = vmatpush.msra.mxu0 %v1017
    %1172 = vmatpush.msra.mxu0 %v1013
    %1173 = vmatpush.msra.mxu0 %v1009
    %1174 = vmatpush.msra.mxu0 %v1005
    %1175 = vmatpush.msra.mxu0 %v1001
    %1176 = vmatpush.msra.mxu0 %v997
    %1177 = vmatpush.msra.mxu0 %v993
    %1178 = vmatpush.msra.mxu0 %v989
    %1179 = vmatpush.msra.mxu0 %v985
    %1180 = vmatpush.msra.mxu0 %v981
    %1181 = vmatpush.msra.mxu0 %v977
    %1182 = vmatpush.msra.mxu0 %v973
    %1183 = vmatpush.msra.mxu0 %v969
    %1184 = vmatpush.msra.mxu0 %v965
    %1185 = vmatpush.msra.mxu0 %v961
    %1186 = vmatpush.msra.mxu0 %v957
    %1187 = vmatmul.f32.gmra.mxu0 %v1085
    %v1188 = vpop.f32.mrf.mxu0
    %v1189 = vadd.f32 0.0, %v1188
    %1190 = vdwg.mxu0
    %1191 = vmatpush.msra.mxu0 %v1081
    %1192 = vmatpush.msra.mxu0 %v1077
    %1193 = vmatpush.msra.mxu0 %v1073
    %1194 = vmatpush.msra.mxu0 %v1069
    %1195 = vmatpush.msra.mxu0 %v1065
    %1196 = vmatpush.msra.mxu0 %v1061
    %1197 = vmatpush.msra.mxu0 %v1057
    %1198 = vmatpush.msra.mxu0 %v1053
    %1199 = vmatpush.msra.mxu0 %v1049
    %1200 = vmatpush.msra.mxu0 %v1045
    %1201 = vmatpush.msra.mxu0 %v1041
    %1202 = vmatpush.msra.mxu0 %v1037
    %1203 = vmatpush.msra.mxu0 %v1033
    %1204 = vmatpush.msra.mxu0 %v1029
    %1205 = vmatpush.msra.mxu0 %v1025
    %1206 = vmatpush.msra.mxu0 %v1021
    %1207 = vmatmul.f32.gmra.mxu0 %v1088
    %v1208 = vpop.f32.mrf.mxu0
    %v1209 = vadd.f32 %v1189, %v1208
    %1210 = vdwg.mxu0
    %1211 = vmatpush.msra.mxu0 %v1018
    %1212 = vmatpush.msra.mxu0 %v1014
    %1213 = vmatpush.msra.mxu0 %v1010
    %1214 = vmatpush.msra.mxu0 %v1006
    %1215 = vmatpush.msra.mxu0 %v1002
    %1216 = vmatpush.msra.mxu0 %v998
    %1217 = vmatpush.msra.mxu0 %v994
    %1218 = vmatpush.msra.mxu0 %v990
    %1219 = vmatpush.msra.mxu0 %v986
    %1220 = vmatpush.msra.mxu0 %v982
    %1221 = vmatpush.msra.mxu0 %v978
    %1222 = vmatpush.msra.mxu0 %v974
    %1223 = vmatpush.msra.mxu0 %v970
    %1224 = vmatpush.msra.mxu0 %v966
    %1225 = vmatpush.msra.mxu0 %v962
    %1226 = vmatpush.msra.mxu0 %v958
    %1227 = vmatmul.f32.gmra.mxu0 %v1085
    %v1228 = vpop.f32.mrf.mxu0
    %v1229 = vadd.f32 0.0, %v1228
    %1230 = vdwg.mxu0
    %1231 = vmatpush.msra.mxu0 %v1082
    %1232 = vmatpush.msra.mxu0 %v1078
    %1233 = vmatpush.msra.mxu0 %v1074
    %1234 = vmatpush.msra.mxu0 %v1070
    %1235 = vmatpush.msra.mxu0 %v1066
    %1236 = vmatpush.msra.mxu0 %v1062
    %1237 = vmatpush.msra.mxu0 %v1058
    %1238 = vmatpush.msra.mxu0 %v1054
    %1239 = vmatpush.msra.mxu0 %v1050
    %1240 = vmatpush.msra.mxu0 %v1046
    %1241 = vmatpush.msra.mxu0 %v1042
    %1242 = vmatpush.msra.mxu0 %v1038
    %1243 = vmatpush.msra.mxu0 %v1034
    %1244 = vmatpush.msra.mxu0 %v1030
    %1245 = vmatpush.msra.mxu0 %v1026
    %1246 = vmatpush.msra.mxu0 %v1022
    %1247 = vmatmul.f32.gmra.mxu0 %v1088
    %v1248 = vpop.f32.mrf.mxu0
    %v1249 = vadd.f32 %v1229, %v1248
    %1250 = vdwg.mxu0
    %v1251 = vadd.f32 %v950, %v1129
    %v1252 = vadd.f32 %v951, %v1169
    %v1253 = vadd.f32 %v952, %v1209
    %v1254 = vadd.f32 %v953, %v1249
    %s1255 = scalar_lea.vmem %s1, 4096
    %v1256 = vld [vmem:[%s1255] sm:$0xff]
    %v1257 = vld [vmem:[%s1255 + $0x8] sm:$0xff]
    %v1258 = vld [vmem:[%s1255 + $0x10] sm:$0xff]
    %v1259 = vld [vmem:[%s1255 + $0x18] sm:$0xff]
    %v1260 = vld [vmem:[%s1255 + $0x20] sm:$0xff]
    %v1261 = vld [vmem:[%s1255 + $0x28] sm:$0xff]
    %v1262 = vld [vmem:[%s1255 + $0x30] sm:$0xff]
    %v1263 = vld [vmem:[%s1255 + $0x38] sm:$0xff]
    %v1264 = vld [vmem:[%s1255 + $0x40] sm:$0xff]
    %v1265 = vld [vmem:[%s1255 + $0x48] sm:$0xff]
    %v1266 = vld [vmem:[%s1255 + $0x50] sm:$0xff]
    %v1267 = vld [vmem:[%s1255 + $0x58] sm:$0xff]
    %v1268 = vld [vmem:[%s1255 + $0x60] sm:$0xff]
    %v1269 = vld [vmem:[%s1255 + $0x68] sm:$0xff]
    %v1270 = vld [vmem:[%s1255 + $0x70] sm:$0xff]
    %v1271 = vld [vmem:[%s1255 + $0x78] sm:$0xff]
    %v1272 = vld [vmem:[%s1255 + $0x80] sm:$0xff]
    %v1273 = vld [vmem:[%s1255 + $0x88] sm:$0xff]
    %v1274 = vld [vmem:[%s1255 + $0x90] sm:$0xff]
    %v1275 = vld [vmem:[%s1255 + $0x98] sm:$0xff]
    %v1276 = vld [vmem:[%s1255 + $0xa0] sm:$0xff]
    %v1277 = vld [vmem:[%s1255 + $0xa8] sm:$0xff]
    %v1278 = vld [vmem:[%s1255 + $0xb0] sm:$0xff]
    %v1279 = vld [vmem:[%s1255 + $0xb8] sm:$0xff]
    %v1280 = vld [vmem:[%s1255 + $0xc0] sm:$0xff]
    %v1281 = vld [vmem:[%s1255 + $0xc8] sm:$0xff]
    %v1282 = vld [vmem:[%s1255 + $0xd0] sm:$0xff]
    %v1283 = vld [vmem:[%s1255 + $0xd8] sm:$0xff]
    %v1284 = vld [vmem:[%s1255 + $0xe0] sm:$0xff]
    %v1285 = vld [vmem:[%s1255 + $0xe8] sm:$0xff]
    %v1286 = vld [vmem:[%s1255 + $0xf0] sm:$0xff]
    %v1287 = vld [vmem:[%s1255 + $0xf8] sm:$0xff]
    %v1288 = vld [vmem:[%s1255 + $0x100] sm:$0xff]
    %v1289 = vld [vmem:[%s1255 + $0x108] sm:$0xff]
    %v1290 = vld [vmem:[%s1255 + $0x110] sm:$0xff]
    %v1291 = vld [vmem:[%s1255 + $0x118] sm:$0xff]
    %v1292 = vld [vmem:[%s1255 + $0x120] sm:$0xff]
    %v1293 = vld [vmem:[%s1255 + $0x128] sm:$0xff]
    %v1294 = vld [vmem:[%s1255 + $0x130] sm:$0xff]
    %v1295 = vld [vmem:[%s1255 + $0x138] sm:$0xff]
    %v1296 = vld [vmem:[%s1255 + $0x140] sm:$0xff]
    %v1297 = vld [vmem:[%s1255 + $0x148] sm:$0xff]
    %v1298 = vld [vmem:[%s1255 + $0x150] sm:$0xff]
    %v1299 = vld [vmem:[%s1255 + $0x158] sm:$0xff]
    %v1300 = vld [vmem:[%s1255 + $0x160] sm:$0xff]
    %v1301 = vld [vmem:[%s1255 + $0x168] sm:$0xff]
    %v1302 = vld [vmem:[%s1255 + $0x170] sm:$0xff]
    %v1303 = vld [vmem:[%s1255 + $0x178] sm:$0xff]
    %v1304 = vld [vmem:[%s1255 + $0x180] sm:$0xff]
    %v1305 = vld [vmem:[%s1255 + $0x188] sm:$0xff]
    %v1306 = vld [vmem:[%s1255 + $0x190] sm:$0xff]
    %v1307 = vld [vmem:[%s1255 + $0x198] sm:$0xff]
    %v1308 = vld [vmem:[%s1255 + $0x1a0] sm:$0xff]
    %v1309 = vld [vmem:[%s1255 + $0x1a8] sm:$0xff]
    %v1310 = vld [vmem:[%s1255 + $0x1b0] sm:$0xff]
    %v1311 = vld [vmem:[%s1255 + $0x1b8] sm:$0xff]
    %v1312 = vld [vmem:[%s1255 + $0x1c0] sm:$0xff]
    %v1313 = vld [vmem:[%s1255 + $0x1c8] sm:$0xff]
    %v1314 = vld [vmem:[%s1255 + $0x1d0] sm:$0xff]
    %v1315 = vld [vmem:[%s1255 + $0x1d8] sm:$0xff]
    %v1316 = vld [vmem:[%s1255 + $0x1e0] sm:$0xff]
    %v1317 = vld [vmem:[%s1255 + $0x1e8] sm:$0xff]
    %v1318 = vld [vmem:[%s1255 + $0x1f0] sm:$0xff]
    %v1319 = vld [vmem:[%s1255 + $0x1f8] sm:$0xff]
    %v1320 = vld [vmem:[%s1255 + $0x200] sm:$0xff]
    %v1321 = vld [vmem:[%s1255 + $0x208] sm:$0xff]
    %v1322 = vld [vmem:[%s1255 + $0x210] sm:$0xff]
    %v1323 = vld [vmem:[%s1255 + $0x218] sm:$0xff]
    %v1324 = vld [vmem:[%s1255 + $0x220] sm:$0xff]
    %v1325 = vld [vmem:[%s1255 + $0x228] sm:$0xff]
    %v1326 = vld [vmem:[%s1255 + $0x230] sm:$0xff]
    %v1327 = vld [vmem:[%s1255 + $0x238] sm:$0xff]
    %v1328 = vld [vmem:[%s1255 + $0x240] sm:$0xff]
    %v1329 = vld [vmem:[%s1255 + $0x248] sm:$0xff]
    %v1330 = vld [vmem:[%s1255 + $0x250] sm:$0xff]
    %v1331 = vld [vmem:[%s1255 + $0x258] sm:$0xff]
    %v1332 = vld [vmem:[%s1255 + $0x260] sm:$0xff]
    %v1333 = vld [vmem:[%s1255 + $0x268] sm:$0xff]
    %v1334 = vld [vmem:[%s1255 + $0x270] sm:$0xff]
    %v1335 = vld [vmem:[%s1255 + $0x278] sm:$0xff]
    %v1336 = vld [vmem:[%s1255 + $0x280] sm:$0xff]
    %v1337 = vld [vmem:[%s1255 + $0x288] sm:$0xff]
    %v1338 = vld [vmem:[%s1255 + $0x290] sm:$0xff]
    %v1339 = vld [vmem:[%s1255 + $0x298] sm:$0xff]
    %v1340 = vld [vmem:[%s1255 + $0x2a0] sm:$0xff]
    %v1341 = vld [vmem:[%s1255 + $0x2a8] sm:$0xff]
    %v1342 = vld [vmem:[%s1255 + $0x2b0] sm:$0xff]
    %v1343 = vld [vmem:[%s1255 + $0x2b8] sm:$0xff]
    %v1344 = vld [vmem:[%s1255 + $0x2c0] sm:$0xff]
    %v1345 = vld [vmem:[%s1255 + $0x2c8] sm:$0xff]
    %v1346 = vld [vmem:[%s1255 + $0x2d0] sm:$0xff]
    %v1347 = vld [vmem:[%s1255 + $0x2d8] sm:$0xff]
    %v1348 = vld [vmem:[%s1255 + $0x2e0] sm:$0xff]
    %v1349 = vld [vmem:[%s1255 + $0x2e8] sm:$0xff]
    %v1350 = vld [vmem:[%s1255 + $0x2f0] sm:$0xff]
    %v1351 = vld [vmem:[%s1255 + $0x2f8] sm:$0xff]
    %v1352 = vld [vmem:[%s1255 + $0x300] sm:$0xff]
    %v1353 = vld [vmem:[%s1255 + $0x308] sm:$0xff]
    %v1354 = vld [vmem:[%s1255 + $0x310] sm:$0xff]
    %v1355 = vld [vmem:[%s1255 + $0x318] sm:$0xff]
    %v1356 = vld [vmem:[%s1255 + $0x320] sm:$0xff]
    %v1357 = vld [vmem:[%s1255 + $0x328] sm:$0xff]
    %v1358 = vld [vmem:[%s1255 + $0x330] sm:$0xff]
    %v1359 = vld [vmem:[%s1255 + $0x338] sm:$0xff]
    %v1360 = vld [vmem:[%s1255 + $0x340] sm:$0xff]
    %v1361 = vld [vmem:[%s1255 + $0x348] sm:$0xff]
    %v1362 = vld [vmem:[%s1255 + $0x350] sm:$0xff]
    %v1363 = vld [vmem:[%s1255 + $0x358] sm:$0xff]
    %v1364 = vld [vmem:[%s1255 + $0x360] sm:$0xff]
    %v1365 = vld [vmem:[%s1255 + $0x368] sm:$0xff]
    %v1366 = vld [vmem:[%s1255 + $0x370] sm:$0xff]
    %v1367 = vld [vmem:[%s1255 + $0x378] sm:$0xff]
    %v1368 = vld [vmem:[%s1255 + $0x380] sm:$0xff]
    %v1369 = vld [vmem:[%s1255 + $0x388] sm:$0xff]
    %v1370 = vld [vmem:[%s1255 + $0x390] sm:$0xff]
    %v1371 = vld [vmem:[%s1255 + $0x398] sm:$0xff]
    %v1372 = vld [vmem:[%s1255 + $0x3a0] sm:$0xff]
    %v1373 = vld [vmem:[%s1255 + $0x3a8] sm:$0xff]
    %v1374 = vld [vmem:[%s1255 + $0x3b0] sm:$0xff]
    %v1375 = vld [vmem:[%s1255 + $0x3b8] sm:$0xff]
    %v1376 = vld [vmem:[%s1255 + $0x3c0] sm:$0xff]
    %v1377 = vld [vmem:[%s1255 + $0x3c8] sm:$0xff]
    %v1378 = vld [vmem:[%s1255 + $0x3d0] sm:$0xff]
    %v1379 = vld [vmem:[%s1255 + $0x3d8] sm:$0xff]
    %v1380 = vld [vmem:[%s1255 + $0x3e0] sm:$0xff]
    %v1381 = vld [vmem:[%s1255 + $0x3e8] sm:$0xff]
    %v1382 = vld [vmem:[%s1255 + $0x3f0] sm:$0xff]
    %v1383 = vld [vmem:[%s1255 + $0x3f8] sm:$0xff]
    %v1384 = vrot.slane %v55, 4
    %v1385 = vrot.slane %v57, 3
    %v1386 = vsel %vm321, %v1385, %v1384
    %v1387 = vrot.slane %v56, 4
    %v1388 = vrot.slane %v58, 3
    %v1389 = vsel %vm321, %v1388, %v1387
    %1392 = vmatpush.msra.mxu0 %v1316
    %1393 = vmatpush.msra.mxu0 %v1312
    %1394 = vmatpush.msra.mxu0 %v1308
    %1395 = vmatpush.msra.mxu0 %v1304
    %1396 = vmatpush.msra.mxu0 %v1300
    %1397 = vmatpush.msra.mxu0 %v1296
    %1398 = vmatpush.msra.mxu0 %v1292
    %1399 = vmatpush.msra.mxu0 %v1288
    %1400 = vmatpush.msra.mxu0 %v1284
    %1401 = vmatpush.msra.mxu0 %v1280
    %1402 = vmatpush.msra.mxu0 %v1276
    %1403 = vmatpush.msra.mxu0 %v1272
    %1404 = vmatpush.msra.mxu0 %v1268
    %1405 = vmatpush.msra.mxu0 %v1264
    %1406 = vmatpush.msra.mxu0 %v1260
    %1407 = vmatpush.msra.mxu0 %v1256
    %1408 = vmatmul.f32.gmra.mxu0 %v1386
    %v1409 = vpop.f32.mrf.mxu0
    %v1410 = vadd.f32 0.0, %v1409
    %1411 = vdwg.mxu0
    %1412 = vmatpush.msra.mxu0 %v1380
    %1413 = vmatpush.msra.mxu0 %v1376
    %1414 = vmatpush.msra.mxu0 %v1372
    %1415 = vmatpush.msra.mxu0 %v1368
    %1416 = vmatpush.msra.mxu0 %v1364
    %1417 = vmatpush.msra.mxu0 %v1360
    %1418 = vmatpush.msra.mxu0 %v1356
    %1419 = vmatpush.msra.mxu0 %v1352
    %1420 = vmatpush.msra.mxu0 %v1348
    %1421 = vmatpush.msra.mxu0 %v1344
    %1422 = vmatpush.msra.mxu0 %v1340
    %1423 = vmatpush.msra.mxu0 %v1336
    %1424 = vmatpush.msra.mxu0 %v1332
    %1425 = vmatpush.msra.mxu0 %v1328
    %1426 = vmatpush.msra.mxu0 %v1324
    %1427 = vmatpush.msra.mxu0 %v1320
    %1428 = vmatmul.f32.gmra.mxu0 %v1389
    %v1429 = vpop.f32.mrf.mxu0
    %v1430 = vadd.f32 %v1410, %v1429
    %1431 = vdwg.mxu0
    %1432 = vmatpush.msra.mxu0 %v1317
    %1433 = vmatpush.msra.mxu0 %v1313
    %1434 = vmatpush.msra.mxu0 %v1309
    %1435 = vmatpush.msra.mxu0 %v1305
    %1436 = vmatpush.msra.mxu0 %v1301
    %1437 = vmatpush.msra.mxu0 %v1297
    %1438 = vmatpush.msra.mxu0 %v1293
    %1439 = vmatpush.msra.mxu0 %v1289
    %1440 = vmatpush.msra.mxu0 %v1285
    %1441 = vmatpush.msra.mxu0 %v1281
    %1442 = vmatpush.msra.mxu0 %v1277
    %1443 = vmatpush.msra.mxu0 %v1273
    %1444 = vmatpush.msra.mxu0 %v1269
    %1445 = vmatpush.msra.mxu0 %v1265
    %1446 = vmatpush.msra.mxu0 %v1261
    %1447 = vmatpush.msra.mxu0 %v1257
    %1448 = vmatmul.f32.gmra.mxu0 %v1386
    %v1449 = vpop.f32.mrf.mxu0
    %v1450 = vadd.f32 0.0, %v1449
    %1451 = vdwg.mxu0
    %1452 = vmatpush.msra.mxu0 %v1381
    %1453 = vmatpush.msra.mxu0 %v1377
    %1454 = vmatpush.msra.mxu0 %v1373
    %1455 = vmatpush.msra.mxu0 %v1369
    %1456 = vmatpush.msra.mxu0 %v1365
    %1457 = vmatpush.msra.mxu0 %v1361
    %1458 = vmatpush.msra.mxu0 %v1357
    %1459 = vmatpush.msra.mxu0 %v1353
    %1460 = vmatpush.msra.mxu0 %v1349
    %1461 = vmatpush.msra.mxu0 %v1345
    %1462 = vmatpush.msra.mxu0 %v1341
    %1463 = vmatpush.msra.mxu0 %v1337
    %1464 = vmatpush.msra.mxu0 %v1333
    %1465 = vmatpush.msra.mxu0 %v1329
    %1466 = vmatpush.msra.mxu0 %v1325
    %1467 = vmatpush.msra.mxu0 %v1321
    %1468 = vmatmul.f32.gmra.mxu0 %v1389
    %v1469 = vpop.f32.mrf.mxu0
    %v1470 = vadd.f32 %v1450, %v1469
    %1471 = vdwg.mxu0
    %1472 = vmatpush.msra.mxu0 %v1318
    %1473 = vmatpush.msra.mxu0 %v1314
    %1474 = vmatpush.msra.mxu0 %v1310
    %1475 = vmatpush.msra.mxu0 %v1306
    %1476 = vmatpush.msra.mxu0 %v1302
    %1477 = vmatpush.msra.mxu0 %v1298
    %1478 = vmatpush.msra.mxu0 %v1294
    %1479 = vmatpush.msra.mxu0 %v1290
    %1480 = vmatpush.msra.mxu0 %v1286
    %1481 = vmatpush.msra.mxu0 %v1282
    %1482 = vmatpush.msra.mxu0 %v1278
    %1483 = vmatpush.msra.mxu0 %v1274
    %1484 = vmatpush.msra.mxu0 %v1270
    %1485 = vmatpush.msra.mxu0 %v1266
    %1486 = vmatpush.msra.mxu0 %v1262
    %1487 = vmatpush.msra.mxu0 %v1258
    %1488 = vmatmul.f32.gmra.mxu0 %v1386
    %v1489 = vpop.f32.mrf.mxu0
    %v1490 = vadd.f32 0.0, %v1489
    %1491 = vdwg.mxu0
    %1492 = vmatpush.msra.mxu0 %v1382
    %1493 = vmatpush.msra.mxu0 %v1378
    %1494 = vmatpush.msra.mxu0 %v1374
    %1495 = vmatpush.msra.mxu0 %v1370
    %1496 = vmatpush.msra.mxu0 %v1366
    %1497 = vmatpush.msra.mxu0 %v1362
    %1498 = vmatpush.msra.mxu0 %v1358
    %1499 = vmatpush.msra.mxu0 %v1354
    %1500 = vmatpush.msra.mxu0 %v1350
    %1501 = vmatpush.msra.mxu0 %v1346
    %1502 = vmatpush.msra.mxu0 %v1342
    %1503 = vmatpush.msra.mxu0 %v1338
    %1504 = vmatpush.msra.mxu0 %v1334
    %1505 = vmatpush.msra.mxu0 %v1330
    %1506 = vmatpush.msra.mxu0 %v1326
    %1507 = vmatpush.msra.mxu0 %v1322
    %1508 = vmatmul.f32.gmra.mxu0 %v1389
    %v1509 = vpop.f32.mrf.mxu0
    %v1510 = vadd.f32 %v1490, %v1509
    %1511 = vdwg.mxu0
    %1512 = vmatpush.msra.mxu0 %v1319
    %1513 = vmatpush.msra.mxu0 %v1315
    %1514 = vmatpush.msra.mxu0 %v1311
    %1515 = vmatpush.msra.mxu0 %v1307
    %1516 = vmatpush.msra.mxu0 %v1303
    %1517 = vmatpush.msra.mxu0 %v1299
    %1518 = vmatpush.msra.mxu0 %v1295
    %1519 = vmatpush.msra.mxu0 %v1291
    %1520 = vmatpush.msra.mxu0 %v1287
    %1521 = vmatpush.msra.mxu0 %v1283
    %1522 = vmatpush.msra.mxu0 %v1279
    %1523 = vmatpush.msra.mxu0 %v1275
    %1524 = vmatpush.msra.mxu0 %v1271
    %1525 = vmatpush.msra.mxu0 %v1267
    %1526 = vmatpush.msra.mxu0 %v1263
    %1527 = vmatpush.msra.mxu0 %v1259
    %1528 = vmatmul.f32.gmra.mxu0 %v1386
    %v1529 = vpop.f32.mrf.mxu0
    %v1530 = vadd.f32 0.0, %v1529
    %1531 = vdwg.mxu0
    %1532 = vmatpush.msra.mxu0 %v1383
    %1533 = vmatpush.msra.mxu0 %v1379
    %1534 = vmatpush.msra.mxu0 %v1375
    %1535 = vmatpush.msra.mxu0 %v1371
    %1536 = vmatpush.msra.mxu0 %v1367
    %1537 = vmatpush.msra.mxu0 %v1363
    %1538 = vmatpush.msra.mxu0 %v1359
    %1539 = vmatpush.msra.mxu0 %v1355
    %1540 = vmatpush.msra.mxu0 %v1351
    %1541 = vmatpush.msra.mxu0 %v1347
    %1542 = vmatpush.msra.mxu0 %v1343
    %1543 = vmatpush.msra.mxu0 %v1339
    %1544 = vmatpush.msra.mxu0 %v1335
    %1545 = vmatpush.msra.mxu0 %v1331
    %1546 = vmatpush.msra.mxu0 %v1327
    %1547 = vmatpush.msra.mxu0 %v1323
    %1548 = vmatmul.f32.gmra.mxu0 %v1389
    %v1549 = vpop.f32.mrf.mxu0
    %v1550 = vadd.f32 %v1530, %v1549
    %1551 = vdwg.mxu0
    %v1552 = vadd.f32 %v1251, %v1430
    %v1553 = vadd.f32 %v1252, %v1470
    %v1554 = vadd.f32 %v1253, %v1510
    %v1555 = vadd.f32 %v1254, %v1550
    %s1556 = scalar_lea.vmem %s1, 5120
    %v1557 = vld [vmem:[%s1556] sm:$0xff]
    %v1558 = vld [vmem:[%s1556 + $0x8] sm:$0xff]
    %v1559 = vld [vmem:[%s1556 + $0x10] sm:$0xff]
    %v1560 = vld [vmem:[%s1556 + $0x18] sm:$0xff]
    %v1561 = vld [vmem:[%s1556 + $0x20] sm:$0xff]
    %v1562 = vld [vmem:[%s1556 + $0x28] sm:$0xff]
    %v1563 = vld [vmem:[%s1556 + $0x30] sm:$0xff]
    %v1564 = vld [vmem:[%s1556 + $0x38] sm:$0xff]
    %v1565 = vld [vmem:[%s1556 + $0x40] sm:$0xff]
    %v1566 = vld [vmem:[%s1556 + $0x48] sm:$0xff]
    %v1567 = vld [vmem:[%s1556 + $0x50] sm:$0xff]
    %v1568 = vld [vmem:[%s1556 + $0x58] sm:$0xff]
    %v1569 = vld [vmem:[%s1556 + $0x60] sm:$0xff]
    %v1570 = vld [vmem:[%s1556 + $0x68] sm:$0xff]
    %v1571 = vld [vmem:[%s1556 + $0x70] sm:$0xff]
    %v1572 = vld [vmem:[%s1556 + $0x78] sm:$0xff]
    %v1573 = vld [vmem:[%s1556 + $0x80] sm:$0xff]
    %v1574 = vld [vmem:[%s1556 + $0x88] sm:$0xff]
    %v1575 = vld [vmem:[%s1556 + $0x90] sm:$0xff]
    %v1576 = vld [vmem:[%s1556 + $0x98] sm:$0xff]
    %v1577 = vld [vmem:[%s1556 + $0xa0] sm:$0xff]
    %v1578 = vld [vmem:[%s1556 + $0xa8] sm:$0xff]
    %v1579 = vld [vmem:[%s1556 + $0xb0] sm:$0xff]
    %v1580 = vld [vmem:[%s1556 + $0xb8] sm:$0xff]
    %v1581 = vld [vmem:[%s1556 + $0xc0] sm:$0xff]
    %v1582 = vld [vmem:[%s1556 + $0xc8] sm:$0xff]
    %v1583 = vld [vmem:[%s1556 + $0xd0] sm:$0xff]
    %v1584 = vld [vmem:[%s1556 + $0xd8] sm:$0xff]
    %v1585 = vld [vmem:[%s1556 + $0xe0] sm:$0xff]
    %v1586 = vld [vmem:[%s1556 + $0xe8] sm:$0xff]
    %v1587 = vld [vmem:[%s1556 + $0xf0] sm:$0xff]
    %v1588 = vld [vmem:[%s1556 + $0xf8] sm:$0xff]
    %v1589 = vld [vmem:[%s1556 + $0x100] sm:$0xff]
    %v1590 = vld [vmem:[%s1556 + $0x108] sm:$0xff]
    %v1591 = vld [vmem:[%s1556 + $0x110] sm:$0xff]
    %v1592 = vld [vmem:[%s1556 + $0x118] sm:$0xff]
    %v1593 = vld [vmem:[%s1556 + $0x120] sm:$0xff]
    %v1594 = vld [vmem:[%s1556 + $0x128] sm:$0xff]
    %v1595 = vld [vmem:[%s1556 + $0x130] sm:$0xff]
    %v1596 = vld [vmem:[%s1556 + $0x138] sm:$0xff]
    %v1597 = vld [vmem:[%s1556 + $0x140] sm:$0xff]
    %v1598 = vld [vmem:[%s1556 + $0x148] sm:$0xff]
    %v1599 = vld [vmem:[%s1556 + $0x150] sm:$0xff]
    %v1600 = vld [vmem:[%s1556 + $0x158] sm:$0xff]
    %v1601 = vld [vmem:[%s1556 + $0x160] sm:$0xff]
    %v1602 = vld [vmem:[%s1556 + $0x168] sm:$0xff]
    %v1603 = vld [vmem:[%s1556 + $0x170] sm:$0xff]
    %v1604 = vld [vmem:[%s1556 + $0x178] sm:$0xff]
    %v1605 = vld [vmem:[%s1556 + $0x180] sm:$0xff]
    %v1606 = vld [vmem:[%s1556 + $0x188] sm:$0xff]
    %v1607 = vld [vmem:[%s1556 + $0x190] sm:$0xff]
    %v1608 = vld [vmem:[%s1556 + $0x198] sm:$0xff]
    %v1609 = vld [vmem:[%s1556 + $0x1a0] sm:$0xff]
    %v1610 = vld [vmem:[%s1556 + $0x1a8] sm:$0xff]
    %v1611 = vld [vmem:[%s1556 + $0x1b0] sm:$0xff]
    %v1612 = vld [vmem:[%s1556 + $0x1b8] sm:$0xff]
    %v1613 = vld [vmem:[%s1556 + $0x1c0] sm:$0xff]
    %v1614 = vld [vmem:[%s1556 + $0x1c8] sm:$0xff]
    %v1615 = vld [vmem:[%s1556 + $0x1d0] sm:$0xff]
    %v1616 = vld [vmem:[%s1556 + $0x1d8] sm:$0xff]
    %v1617 = vld [vmem:[%s1556 + $0x1e0] sm:$0xff]
    %v1618 = vld [vmem:[%s1556 + $0x1e8] sm:$0xff]
    %v1619 = vld [vmem:[%s1556 + $0x1f0] sm:$0xff]
    %v1620 = vld [vmem:[%s1556 + $0x1f8] sm:$0xff]
    %v1621 = vld [vmem:[%s1556 + $0x200] sm:$0xff]
    %v1622 = vld [vmem:[%s1556 + $0x208] sm:$0xff]
    %v1623 = vld [vmem:[%s1556 + $0x210] sm:$0xff]
    %v1624 = vld [vmem:[%s1556 + $0x218] sm:$0xff]
    %v1625 = vld [vmem:[%s1556 + $0x220] sm:$0xff]
    %v1626 = vld [vmem:[%s1556 + $0x228] sm:$0xff]
    %v1627 = vld [vmem:[%s1556 + $0x230] sm:$0xff]
    %v1628 = vld [vmem:[%s1556 + $0x238] sm:$0xff]
    %v1629 = vld [vmem:[%s1556 + $0x240] sm:$0xff]
    %v1630 = vld [vmem:[%s1556 + $0x248] sm:$0xff]
    %v1631 = vld [vmem:[%s1556 + $0x250] sm:$0xff]
    %v1632 = vld [vmem:[%s1556 + $0x258] sm:$0xff]
    %v1633 = vld [vmem:[%s1556 + $0x260] sm:$0xff]
    %v1634 = vld [vmem:[%s1556 + $0x268] sm:$0xff]
    %v1635 = vld [vmem:[%s1556 + $0x270] sm:$0xff]
    %v1636 = vld [vmem:[%s1556 + $0x278] sm:$0xff]
    %v1637 = vld [vmem:[%s1556 + $0x280] sm:$0xff]
    %v1638 = vld [vmem:[%s1556 + $0x288] sm:$0xff]
    %v1639 = vld [vmem:[%s1556 + $0x290] sm:$0xff]
    %v1640 = vld [vmem:[%s1556 + $0x298] sm:$0xff]
    %v1641 = vld [vmem:[%s1556 + $0x2a0] sm:$0xff]
    %v1642 = vld [vmem:[%s1556 + $0x2a8] sm:$0xff]
    %v1643 = vld [vmem:[%s1556 + $0x2b0] sm:$0xff]
    %v1644 = vld [vmem:[%s1556 + $0x2b8] sm:$0xff]
    %v1645 = vld [vmem:[%s1556 + $0x2c0] sm:$0xff]
    %v1646 = vld [vmem:[%s1556 + $0x2c8] sm:$0xff]
    %v1647 = vld [vmem:[%s1556 + $0x2d0] sm:$0xff]
    %v1648 = vld [vmem:[%s1556 + $0x2d8] sm:$0xff]
    %v1649 = vld [vmem:[%s1556 + $0x2e0] sm:$0xff]
    %v1650 = vld [vmem:[%s1556 + $0x2e8] sm:$0xff]
    %v1651 = vld [vmem:[%s1556 + $0x2f0] sm:$0xff]
    %v1652 = vld [vmem:[%s1556 + $0x2f8] sm:$0xff]
    %v1653 = vld [vmem:[%s1556 + $0x300] sm:$0xff]
    %v1654 = vld [vmem:[%s1556 + $0x308] sm:$0xff]
    %v1655 = vld [vmem:[%s1556 + $0x310] sm:$0xff]
    %v1656 = vld [vmem:[%s1556 + $0x318] sm:$0xff]
    %v1657 = vld [vmem:[%s1556 + $0x320] sm:$0xff]
    %v1658 = vld [vmem:[%s1556 + $0x328] sm:$0xff]
    %v1659 = vld [vmem:[%s1556 + $0x330] sm:$0xff]
    %v1660 = vld [vmem:[%s1556 + $0x338] sm:$0xff]
    %v1661 = vld [vmem:[%s1556 + $0x340] sm:$0xff]
    %v1662 = vld [vmem:[%s1556 + $0x348] sm:$0xff]
    %v1663 = vld [vmem:[%s1556 + $0x350] sm:$0xff]
    %v1664 = vld [vmem:[%s1556 + $0x358] sm:$0xff]
    %v1665 = vld [vmem:[%s1556 + $0x360] sm:$0xff]
    %v1666 = vld [vmem:[%s1556 + $0x368] sm:$0xff]
    %v1667 = vld [vmem:[%s1556 + $0x370] sm:$0xff]
    %v1668 = vld [vmem:[%s1556 + $0x378] sm:$0xff]
    %v1669 = vld [vmem:[%s1556 + $0x380] sm:$0xff]
    %v1670 = vld [vmem:[%s1556 + $0x388] sm:$0xff]
    %v1671 = vld [vmem:[%s1556 + $0x390] sm:$0xff]
    %v1672 = vld [vmem:[%s1556 + $0x398] sm:$0xff]
    %v1673 = vld [vmem:[%s1556 + $0x3a0] sm:$0xff]
    %v1674 = vld [vmem:[%s1556 + $0x3a8] sm:$0xff]
    %v1675 = vld [vmem:[%s1556 + $0x3b0] sm:$0xff]
    %v1676 = vld [vmem:[%s1556 + $0x3b8] sm:$0xff]
    %v1677 = vld [vmem:[%s1556 + $0x3c0] sm:$0xff]
    %v1678 = vld [vmem:[%s1556 + $0x3c8] sm:$0xff]
    %v1679 = vld [vmem:[%s1556 + $0x3d0] sm:$0xff]
    %v1680 = vld [vmem:[%s1556 + $0x3d8] sm:$0xff]
    %v1681 = vld [vmem:[%s1556 + $0x3e0] sm:$0xff]
    %v1682 = vld [vmem:[%s1556 + $0x3e8] sm:$0xff]
    %v1683 = vld [vmem:[%s1556 + $0x3f0] sm:$0xff]
    %v1684 = vld [vmem:[%s1556 + $0x3f8] sm:$0xff]
    %v1685 = vrot.slane %v55, 5
    %v1686 = vrot.slane %v57, 4
    %v1687 = vsel %vm321, %v1686, %v1685
    %v1688 = vrot.slane %v56, 5
    %v1689 = vrot.slane %v58, 4
    %v1690 = vsel %vm321, %v1689, %v1688
    %1693 = vmatpush.msra.mxu0 %v1617
    %1694 = vmatpush.msra.mxu0 %v1613
    %1695 = vmatpush.msra.mxu0 %v1609
    %1696 = vmatpush.msra.mxu0 %v1605
    %1697 = vmatpush.msra.mxu0 %v1601
    %1698 = vmatpush.msra.mxu0 %v1597
    %1699 = vmatpush.msra.mxu0 %v1593
    %1700 = vmatpush.msra.mxu0 %v1589
    %1701 = vmatpush.msra.mxu0 %v1585
    %1702 = vmatpush.msra.mxu0 %v1581
    %1703 = vmatpush.msra.mxu0 %v1577
    %1704 = vmatpush.msra.mxu0 %v1573
    %1705 = vmatpush.msra.mxu0 %v1569
    %1706 = vmatpush.msra.mxu0 %v1565
    %1707 = vmatpush.msra.mxu0 %v1561
    %1708 = vmatpush.msra.mxu0 %v1557
    %1709 = vmatmul.f32.gmra.mxu0 %v1687
    %v1710 = vpop.f32.mrf.mxu0
    %v1711 = vadd.f32 0.0, %v1710
    %1712 = vdwg.mxu0
    %1713 = vmatpush.msra.mxu0 %v1681
    %1714 = vmatpush.msra.mxu0 %v1677
    %1715 = vmatpush.msra.mxu0 %v1673
    %1716 = vmatpush.msra.mxu0 %v1669
    %1717 = vmatpush.msra.mxu0 %v1665
    %1718 = vmatpush.msra.mxu0 %v1661
    %1719 = vmatpush.msra.mxu0 %v1657
    %1720 = vmatpush.msra.mxu0 %v1653
    %1721 = vmatpush.msra.mxu0 %v1649
    %1722 = vmatpush.msra.mxu0 %v1645
    %1723 = vmatpush.msra.mxu0 %v1641
    %1724 = vmatpush.msra.mxu0 %v1637
    %1725 = vmatpush.msra.mxu0 %v1633
    %1726 = vmatpush.msra.mxu0 %v1629
    %1727 = vmatpush.msra.mxu0 %v1625
    %1728 = vmatpush.msra.mxu0 %v1621
    %1729 = vmatmul.f32.gmra.mxu0 %v1690
    %v1730 = vpop.f32.mrf.mxu0
    %v1731 = vadd.f32 %v1711, %v1730
    %1732 = vdwg.mxu0
    %1733 = vmatpush.msra.mxu0 %v1618
    %1734 = vmatpush.msra.mxu0 %v1614
    %1735 = vmatpush.msra.mxu0 %v1610
    %1736 = vmatpush.msra.mxu0 %v1606
    %1737 = vmatpush.msra.mxu0 %v1602
    %1738 = vmatpush.msra.mxu0 %v1598
    %1739 = vmatpush.msra.mxu0 %v1594
    %1740 = vmatpush.msra.mxu0 %v1590
    %1741 = vmatpush.msra.mxu0 %v1586
    %1742 = vmatpush.msra.mxu0 %v1582
    %1743 = vmatpush.msra.mxu0 %v1578
    %1744 = vmatpush.msra.mxu0 %v1574
    %1745 = vmatpush.msra.mxu0 %v1570
    %1746 = vmatpush.msra.mxu0 %v1566
    %1747 = vmatpush.msra.mxu0 %v1562
    %1748 = vmatpush.msra.mxu0 %v1558
    %1749 = vmatmul.f32.gmra.mxu0 %v1687
    %v1750 = vpop.f32.mrf.mxu0
    %v1751 = vadd.f32 0.0, %v1750
    %1752 = vdwg.mxu0
    %1753 = vmatpush.msra.mxu0 %v1682
    %1754 = vmatpush.msra.mxu0 %v1678
    %1755 = vmatpush.msra.mxu0 %v1674
    %1756 = vmatpush.msra.mxu0 %v1670
    %1757 = vmatpush.msra.mxu0 %v1666
    %1758 = vmatpush.msra.mxu0 %v1662
    %1759 = vmatpush.msra.mxu0 %v1658
    %1760 = vmatpush.msra.mxu0 %v1654
    %1761 = vmatpush.msra.mxu0 %v1650
    %1762 = vmatpush.msra.mxu0 %v1646
    %1763 = vmatpush.msra.mxu0 %v1642
    %1764 = vmatpush.msra.mxu0 %v1638
    %1765 = vmatpush.msra.mxu0 %v1634
    %1766 = vmatpush.msra.mxu0 %v1630
    %1767 = vmatpush.msra.mxu0 %v1626
    %1768 = vmatpush.msra.mxu0 %v1622
    %1769 = vmatmul.f32.gmra.mxu0 %v1690
    %v1770 = vpop.f32.mrf.mxu0
    %v1771 = vadd.f32 %v1751, %v1770
    %1772 = vdwg.mxu0
    %1773 = vmatpush.msra.mxu0 %v1619
    %1774 = vmatpush.msra.mxu0 %v1615
    %1775 = vmatpush.msra.mxu0 %v1611
    %1776 = vmatpush.msra.mxu0 %v1607
    %1777 = vmatpush.msra.mxu0 %v1603
    %1778 = vmatpush.msra.mxu0 %v1599
    %1779 = vmatpush.msra.mxu0 %v1595
    %1780 = vmatpush.msra.mxu0 %v1591
    %1781 = vmatpush.msra.mxu0 %v1587
    %1782 = vmatpush.msra.mxu0 %v1583
    %1783 = vmatpush.msra.mxu0 %v1579
    %1784 = vmatpush.msra.mxu0 %v1575
    %1785 = vmatpush.msra.mxu0 %v1571
    %1786 = vmatpush.msra.mxu0 %v1567
    %1787 = vmatpush.msra.mxu0 %v1563
    %1788 = vmatpush.msra.mxu0 %v1559
    %1789 = vmatmul.f32.gmra.mxu0 %v1687
    %v1790 = vpop.f32.mrf.mxu0
    %v1791 = vadd.f32 0.0, %v1790
    %1792 = vdwg.mxu0
    %1793 = vmatpush.msra.mxu0 %v1683
    %1794 = vmatpush.msra.mxu0 %v1679
    %1795 = vmatpush.msra.mxu0 %v1675
    %1796 = vmatpush.msra.mxu0 %v1671
    %1797 = vmatpush.msra.mxu0 %v1667
    %1798 = vmatpush.msra.mxu0 %v1663
    %1799 = vmatpush.msra.mxu0 %v1659
    %1800 = vmatpush.msra.mxu0 %v1655
    %1801 = vmatpush.msra.mxu0 %v1651
    %1802 = vmatpush.msra.mxu0 %v1647
    %1803 = vmatpush.msra.mxu0 %v1643
    %1804 = vmatpush.msra.mxu0 %v1639
    %1805 = vmatpush.msra.mxu0 %v1635
    %1806 = vmatpush.msra.mxu0 %v1631
    %1807 = vmatpush.msra.mxu0 %v1627
    %1808 = vmatpush.msra.mxu0 %v1623
    %1809 = vmatmul.f32.gmra.mxu0 %v1690
    %v1810 = vpop.f32.mrf.mxu0
    %v1811 = vadd.f32 %v1791, %v1810
    %1812 = vdwg.mxu0
    %1813 = vmatpush.msra.mxu0 %v1620
    %1814 = vmatpush.msra.mxu0 %v1616
    %1815 = vmatpush.msra.mxu0 %v1612
    %1816 = vmatpush.msra.mxu0 %v1608
    %1817 = vmatpush.msra.mxu0 %v1604
    %1818 = vmatpush.msra.mxu0 %v1600
    %1819 = vmatpush.msra.mxu0 %v1596
    %1820 = vmatpush.msra.mxu0 %v1592
    %1821 = vmatpush.msra.mxu0 %v1588
    %1822 = vmatpush.msra.mxu0 %v1584
    %1823 = vmatpush.msra.mxu0 %v1580
    %1824 = vmatpush.msra.mxu0 %v1576
    %1825 = vmatpush.msra.mxu0 %v1572
    %1826 = vmatpush.msra.mxu0 %v1568
    %1827 = vmatpush.msra.mxu0 %v1564
    %1828 = vmatpush.msra.mxu0 %v1560
    %1829 = vmatmul.f32.gmra.mxu0 %v1687
    %v1830 = vpop.f32.mrf.mxu0
    %v1831 = vadd.f32 0.0, %v1830
    %1832 = vdwg.mxu0
    %1833 = vmatpush.msra.mxu0 %v1684
    %1834 = vmatpush.msra.mxu0 %v1680
    %1835 = vmatpush.msra.mxu0 %v1676
    %1836 = vmatpush.msra.mxu0 %v1672
    %1837 = vmatpush.msra.mxu0 %v1668
    %1838 = vmatpush.msra.mxu0 %v1664
    %1839 = vmatpush.msra.mxu0 %v1660
    %1840 = vmatpush.msra.mxu0 %v1656
    %1841 = vmatpush.msra.mxu0 %v1652
    %1842 = vmatpush.msra.mxu0 %v1648
    %1843 = vmatpush.msra.mxu0 %v1644
    %1844 = vmatpush.msra.mxu0 %v1640
    %1845 = vmatpush.msra.mxu0 %v1636
    %1846 = vmatpush.msra.mxu0 %v1632
    %1847 = vmatpush.msra.mxu0 %v1628
    %1848 = vmatpush.msra.mxu0 %v1624
    %1849 = vmatmul.f32.gmra.mxu0 %v1690
    %v1850 = vpop.f32.mrf.mxu0
    %v1851 = vadd.f32 %v1831, %v1850
    %1852 = vdwg.mxu0
    %v1853 = vadd.f32 %v1552, %v1731
    %v1854 = vadd.f32 %v1553, %v1771
    %v1855 = vadd.f32 %v1554, %v1811
    %v1856 = vadd.f32 %v1555, %v1851
    %v1857 = vld [vmem:[%s2] sm:$0xf]
    %v1859 = vperm.slane %v1857, 0
    %v1860 = vperm.slane %v1857, 1
    %v1861 = vperm.slane %v1857, 2
    %v1862 = vperm.slane %v1857, 3
    %v1867 = vadd.f32 %v1853, %v1859
    %v1868 = vadd.f32 %v1854, %v1860
    %v1869 = vadd.f32 %v1855, %v1861
    %v1870 = vadd.f32 %v1856, %v1862
    %v1871 = vmax.f32 %v1867, 0.0
    %v1872 = vmax.f32 %v1868, 0.0
    %v1873 = vmax.f32 %v1869, 0.0
    %v1874 = vmax.f32 %v1870, 0.0
    %v1875 = vld [vmem:[%s3] sm:$0xff]
    %v1876 = vld [vmem:[%s3 + $0x8] sm:$0xff]
    %v1877 = vld [vmem:[%s3 + $0x10] sm:$0xff]
    %v1878 = vld [vmem:[%s3 + $0x18] sm:$0xff]
    %v1879 = vld [vmem:[%s3 + $0x20] sm:$0xff]
    %v1880 = vld [vmem:[%s3 + $0x28] sm:$0xff]
    %v1881 = vld [vmem:[%s3 + $0x30] sm:$0xff]
    %v1882 = vld [vmem:[%s3 + $0x38] sm:$0xff]
    %v1883 = vld [vmem:[%s3 + $0x40] sm:$0xff]
    %v1884 = vld [vmem:[%s3 + $0x48] sm:$0xff]
    %v1885 = vld [vmem:[%s3 + $0x50] sm:$0xff]
    %v1886 = vld [vmem:[%s3 + $0x58] sm:$0xff]
    %v1887 = vld [vmem:[%s3 + $0x60] sm:$0xff]
    %v1888 = vld [vmem:[%s3 + $0x68] sm:$0xff]
    %v1889 = vld [vmem:[%s3 + $0x70] sm:$0xff]
    %v1890 = vld [vmem:[%s3 + $0x78] sm:$0xff]
    %v1891 = vld [vmem:[%s3 + $0x80] sm:$0xff]
    %v1892 = vld [vmem:[%s3 + $0x88] sm:$0xff]
    %v1893 = vld [vmem:[%s3 + $0x90] sm:$0xff]
    %v1894 = vld [vmem:[%s3 + $0x98] sm:$0xff]
    %v1895 = vld [vmem:[%s3 + $0xa0] sm:$0xff]
    %v1896 = vld [vmem:[%s3 + $0xa8] sm:$0xff]
    %v1897 = vld [vmem:[%s3 + $0xb0] sm:$0xff]
    %v1898 = vld [vmem:[%s3 + $0xb8] sm:$0xff]
    %v1899 = vld [vmem:[%s3 + $0xc0] sm:$0xff]
    %v1900 = vld [vmem:[%s3 + $0xc8] sm:$0xff]
    %v1901 = vld [vmem:[%s3 + $0xd0] sm:$0xff]
    %v1902 = vld [vmem:[%s3 + $0xd8] sm:$0xff]
    %v1903 = vld [vmem:[%s3 + $0xe0] sm:$0xff]
    %v1904 = vld [vmem:[%s3 + $0xe8] sm:$0xff]
    %v1905 = vld [vmem:[%s3 + $0xf0] sm:$0xff]
    %v1906 = vld [vmem:[%s3 + $0xf8] sm:$0xff]
    %v1907 = vld [vmem:[%s3 + $0x100] sm:$0xff]
    %v1908 = vld [vmem:[%s3 + $0x108] sm:$0xff]
    %v1909 = vld [vmem:[%s3 + $0x110] sm:$0xff]
    %v1910 = vld [vmem:[%s3 + $0x118] sm:$0xff]
    %v1911 = vld [vmem:[%s3 + $0x120] sm:$0xff]
    %v1912 = vld [vmem:[%s3 + $0x128] sm:$0xff]
    %v1913 = vld [vmem:[%s3 + $0x130] sm:$0xff]
    %v1914 = vld [vmem:[%s3 + $0x138] sm:$0xff]
    %v1915 = vld [vmem:[%s3 + $0x140] sm:$0xff]
    %v1916 = vld [vmem:[%s3 + $0x148] sm:$0xff]
    %v1917 = vld [vmem:[%s3 + $0x150] sm:$0xff]
    %v1918 = vld [vmem:[%s3 + $0x158] sm:$0xff]
    %v1919 = vld [vmem:[%s3 + $0x160] sm:$0xff]
    %v1920 = vld [vmem:[%s3 + $0x168] sm:$0xff]
    %v1921 = vld [vmem:[%s3 + $0x170] sm:$0xff]
    %v1922 = vld [vmem:[%s3 + $0x178] sm:$0xff]
    %v1923 = vld [vmem:[%s3 + $0x180] sm:$0xff]
    %v1924 = vld [vmem:[%s3 + $0x188] sm:$0xff]
    %v1925 = vld [vmem:[%s3 + $0x190] sm:$0xff]
    %v1926 = vld [vmem:[%s3 + $0x198] sm:$0xff]
    %v1927 = vld [vmem:[%s3 + $0x1a0] sm:$0xff]
    %v1928 = vld [vmem:[%s3 + $0x1a8] sm:$0xff]
    %v1929 = vld [vmem:[%s3 + $0x1b0] sm:$0xff]
    %v1930 = vld [vmem:[%s3 + $0x1b8] sm:$0xff]
    %v1931 = vld [vmem:[%s3 + $0x1c0] sm:$0xff]
    %v1932 = vld [vmem:[%s3 + $0x1c8] sm:$0xff]
    %v1933 = vld [vmem:[%s3 + $0x1d0] sm:$0xff]
    %v1934 = vld [vmem:[%s3 + $0x1d8] sm:$0xff]
    %v1935 = vld [vmem:[%s3 + $0x1e0] sm:$0xff]
    %v1936 = vld [vmem:[%s3 + $0x1e8] sm:$0xff]
    %v1937 = vld [vmem:[%s3 + $0x1f0] sm:$0xff]
    %v1938 = vld [vmem:[%s3 + $0x1f8] sm:$0xff]
    %v1939 = vld [vmem:[%s4] sm:$0x1]
    %v1941 = vperm.slane %v1939, 0
    %1943 = vmatpush.msra.mxu0 %v1890
    %1944 = vmatpush.msra.mxu0 %v1889
    %1945 = vmatpush.msra.mxu0 %v1888
    %1946 = vmatpush.msra.mxu0 %v1887
    %1947 = vmatpush.msra.mxu0 %v1886
    %1948 = vmatpush.msra.mxu0 %v1885
    %1949 = vmatpush.msra.mxu0 %v1884
    %1950 = vmatpush.msra.mxu0 %v1883
    %1951 = vmatpush.msra.mxu0 %v1882
    %1952 = vmatpush.msra.mxu0 %v1881
    %1953 = vmatpush.msra.mxu0 %v1880
    %1954 = vmatpush.msra.mxu0 %v1879
    %1955 = vmatpush.msra.mxu0 %v1878
    %1956 = vmatpush.msra.mxu0 %v1877
    %1957 = vmatpush.msra.mxu0 %v1876
    %1958 = vmatpush.msra.mxu0 %v1875
    %1959 = vmatmul.f32.gmra.mxu0 %v1871
    %v1960 = vpop.f32.mrf.mxu0
    %v1961 = vadd.f32 %v1941, %v1960
    %1962 = vdwg.mxu0
    %1963 = vmatpush.msra.mxu0 %v1906
    %1964 = vmatpush.msra.mxu0 %v1905
    %1965 = vmatpush.msra.mxu0 %v1904
    %1966 = vmatpush.msra.mxu0 %v1903
    %1967 = vmatpush.msra.mxu0 %v1902
    %1968 = vmatpush.msra.mxu0 %v1901
    %1969 = vmatpush.msra.mxu0 %v1900
    %1970 = vmatpush.msra.mxu0 %v1899
    %1971 = vmatpush.msra.mxu0 %v1898
    %1972 = vmatpush.msra.mxu0 %v1897
    %1973 = vmatpush.msra.mxu0 %v1896
    %1974 = vmatpush.msra.mxu0 %v1895
    %1975 = vmatpush.msra.mxu0 %v1894
    %1976 = vmatpush.msra.mxu0 %v1893
    %1977 = vmatpush.msra.mxu0 %v1892
    %1978 = vmatpush.msra.mxu0 %v1891
    %1979 = vmatmul.f32.gmra.mxu0 %v1872
    %v1980 = vpop.f32.mrf.mxu0
    %v1981 = vadd.f32 %v1961, %v1980
    %1982 = vdwg.mxu0
    %1983 = vmatpush.msra.mxu0 %v1922
    %1984 = vmatpush.msra.mxu0 %v1921
    %1985 = vmatpush.msra.mxu0 %v1920
    %1986 = vmatpush.msra.mxu0 %v1919
    %1987 = vmatpush.msra.mxu0 %v1918
    %1988 = vmatpush.msra.mxu0 %v1917
    %1989 = vmatpush.msra.mxu0 %v1916
    %1990 = vmatpush.msra.mxu0 %v1915
    %1991 = vmatpush.msra.mxu0 %v1914
    %1992 = vmatpush.msra.mxu0 %v1913
    %1993 = vmatpush.msra.mxu0 %v1912
    %1994 = vmatpush.msra.mxu0 %v1911
    %1995 = vmatpush.msra.mxu0 %v1910
    %1996 = vmatpush.msra.mxu0 %v1909
    %1997 = vmatpush.msra.mxu0 %v1908
    %1998 = vmatpush.msra.mxu0 %v1907
    %1999 = vmatmul.f32.gmra.mxu0 %v1873
    %v2000 = vpop.f32.mrf.mxu0
    %v2001 = vadd.f32 %v1981, %v2000
    %2002 = vdwg.mxu0
    %2003 = vmatpush.msra.mxu0 %v1938
    %2004 = vmatpush.msra.mxu0 %v1937
    %2005 = vmatpush.msra.mxu0 %v1936
    %2006 = vmatpush.msra.mxu0 %v1935
    %2007 = vmatpush.msra.mxu0 %v1934
    %2008 = vmatpush.msra.mxu0 %v1933
    %2009 = vmatpush.msra.mxu0 %v1932
    %2010 = vmatpush.msra.mxu0 %v1931
    %2011 = vmatpush.msra.mxu0 %v1930
    %2012 = vmatpush.msra.mxu0 %v1929
    %2013 = vmatpush.msra.mxu0 %v1928
    %2014 = vmatpush.msra.mxu0 %v1927
    %2015 = vmatpush.msra.mxu0 %v1926
    %2016 = vmatpush.msra.mxu0 %v1925
    %2017 = vmatpush.msra.mxu0 %v1924
    %2018 = vmatpush.msra.mxu0 %v1923
    %2019 = vmatmul.f32.gmra.mxu0 %v1874
    %v2020 = vpop.f32.mrf.mxu0
    %v2021 = vadd.f32 %v2001, %v2020
    %2022 = vdwg.mxu0
    %v2023 = vmax.f32 %v2021, 0.0
    %v2024 = vld [vmem:[%s5] sm:$0xff]
    %v2025 = vld [vmem:[%s5 + $0x8] sm:$0xff]
    %v2026 = vld [vmem:[%s5 + $0x10] sm:$0xff]
    %v2027 = vld [vmem:[%s5 + $0x18] sm:$0xff]
    %v2028 = vld [vmem:[%s5 + $0x20] sm:$0xff]
    %v2029 = vld [vmem:[%s5 + $0x28] sm:$0xff]
    %v2030 = vld [vmem:[%s5 + $0x30] sm:$0xff]
    %v2031 = vld [vmem:[%s5 + $0x38] sm:$0xff]
    %v2032 = vld [vmem:[%s5 + $0x40] sm:$0xff]
    %v2033 = vld [vmem:[%s5 + $0x48] sm:$0xff]
    %v2034 = vld [vmem:[%s5 + $0x50] sm:$0xff]
    %v2035 = vld [vmem:[%s5 + $0x58] sm:$0xff]
    %v2036 = vld [vmem:[%s5 + $0x60] sm:$0xff]
    %v2037 = vld [vmem:[%s5 + $0x68] sm:$0xff]
    %v2038 = vld [vmem:[%s5 + $0x70] sm:$0xff]
    %v2039 = vld [vmem:[%s5 + $0x78] sm:$0xff]
    %v2040 = vld [vmem:[%s6] sm:$0x1]
    %v2042 = vperm.slane %v2040, 0
    %2044 = vmatpush.msra.mxu0 %v2039
    %2045 = vmatpush.msra.mxu0 %v2038
    %2046 = vmatpush.msra.mxu0 %v2037
    %2047 = vmatpush.msra.mxu0 %v2036
    %2048 = vmatpush.msra.mxu0 %v2035
    %2049 = vmatpush.msra.mxu0 %v2034
    %2050 = vmatpush.msra.mxu0 %v2033
    %2051 = vmatpush.msra.mxu0 %v2032
    %2052 = vmatpush.msra.mxu0 %v2031
    %2053 = vmatpush.msra.mxu0 %v2030
    %2054 = vmatpush.msra.mxu0 %v2029
    %2055 = vmatpush.msra.mxu0 %v2028
    %2056 = vmatpush.msra.mxu0 %v2027
    %2057 = vmatpush.msra.mxu0 %v2026
    %2058 = vmatpush.msra.mxu0 %v2025
    %2059 = vmatpush.msra.mxu0 %v2024
    %2060 = vmatmul.f32.gmra.mxu0 %v2023
    %v2061 = vpop.f32.mrf.mxu0
    %v2062 = vadd.f32 %v2042, %v2061
    %2063 = vdwg.mxu0
    %2064 = vst [vmem:[#allocation2] sm:$0x3] %v2062
    // Predicated region
    $region30: #{conv_classifier_forward.5} parent=1 // pred_check
      _
    $region31: #{conv_classifier_forward.5} parent=1 // pred_check_branch
      %2066 = sbr.rel (0) target = $region33
    $region32: #{conv_classifier_forward.5} parent=1 // pred_region
      %2068 = vsyncadd [#allocation3], 0
      %s2070 = sshll.u32 [#allocation2], 4
      %s2071 = int_to_ptr.vmem [resolvable:$true] %s2070
      %s2072 = sshll.u32 %s7, 4
      %s2073 = int_to_ptr.hbm [resolvable:$true] %s2072
      %2075 = dma.vmem_to_hbm [thread:$0]  %s2071, 32, %s2073, [#allocation3]
    $region33: #{conv_classifier_forward.5} parent=1 // pred_fallthru
      _
    // Predicated region
    $region34: #{conv_classifier_forward.5} parent=1 // pred_check
      _
    $region35: #{conv_classifier_forward.5} parent=1 // pred_check_branch
      %2077 = sbr.rel (0) target = $region37
    $region36: #{conv_classifier_forward.5} parent=1 // pred_region
      %2079 = dma.done [#allocation3], 32
    $region37: #{conv_classifier_forward.5} parent=1 // pred_fallthru
      _
    %2080 = vsyncpa [#allocation3], 1

// kernel: conv_classifier_forward.4
$region0: #{conv_classifier_forward.4}
  #allocation0 [shape = 'u32[]', space=smem, size = 0x4, offset = 0x4, fixed_abs, tag = 'smem constant byte address 0x4 - core index']
  #allocation1 [shape = 'u32[72,128]{1,0:T(1,128)}', space=vmem, size = 0x9000, scoped, tag = 'internal scratch']
  #allocation2 [shape = 'f32[52,192]{1,0:T(8,128)}', space=vmem, size = 0xe000, scoped, tag = 'scratch operand']
  #allocation3 [shape = 'f32[52,384]{1,0:T(8,128)}', space=vmem, size = 0x15000, scoped, tag = 'scratch operand']
  #allocation4 [shape = 'f32[52,256]{1,0:T(8,128)}', space=vmem, size = 0xe000, scoped, tag = 'scratch operand']
  %s0 = inlined_call_operand.vmem [shape: f32[2,24,1024], index: 0, kind: input, shape index: {}]
  %s1 = inlined_call_operand.vmem [shape: f32[256,192], index: 1, kind: input, shape index: {}]
  %s2 = inlined_call_operand.vmem [shape: f32[1,192], index: 2, kind: input, shape index: {}]
  %s3 = inlined_call_operand.vmem [shape: f32[3,192,384], index: 3, kind: input, shape index: {}]
  %s4 = inlined_call_operand.vmem [shape: f32[1,384], index: 4, kind: input, shape index: {}]
  %s5 = inlined_call_operand.vmem [shape: f32[3,384,256], index: 5, kind: input, shape index: {}]
  %s6 = inlined_call_operand.vmem [shape: f32[1,256], index: 6, kind: input, shape index: {}]
  %s7 = inlined_call_operand.vmem [shape: f32[3,256,256], index: 7, kind: input, shape index: {}]
  %s8 = inlined_call_operand.vmem [shape: f32[1,256], index: 8, kind: input, shape index: {}]
  %s9 = inlined_call_operand.vmem [shape: f32[2,24,256], index: 9, kind: output, shape index: {}]
  %s10 = sld [smem:[#allocation0]]
  $region46: #{conv_classifier_forward.4} parent=0
    _
  %s12 = ssub.s32 1, %s10
  %s13 = scalar_select 0, %s12, %s10
  // Predicated region
  $region2: #{conv_classifier_forward.4} parent=0 // pred_check
    _
  $region3: #{conv_classifier_forward.4} parent=0 // pred_check_branch
    %15 = sbr.rel (0) target = $region5
  $region4: #{conv_classifier_forward.4} parent=0 // pred_region
    _
  $region5: #{conv_classifier_forward.4} parent=0 // pred_fallthru
    _
  // Predicated region
  $region6: #{conv_classifier_forward.4} parent=0 // pred_check
    _
  $region7: #{conv_classifier_forward.4} parent=0 // pred_check_branch
    %17 = sbr.rel (0) target = $region9
  $region8: #{conv_classifier_forward.4} parent=0 // pred_region
    _
  $region9: #{conv_classifier_forward.4} parent=0 // pred_fallthru
    _
  // Predicated region
  $region10: #{conv_classifier_forward.4} parent=0 // pred_check
    _
  $region11: #{conv_classifier_forward.4} parent=0 // pred_check_branch
    %19 = sbr.rel (0) target = $region13
  $region12: #{conv_classifier_forward.4} parent=0 // pred_region
    _
  $region13: #{conv_classifier_forward.4} parent=0 // pred_fallthru
    _
  // Predicated region
  $region14: #{conv_classifier_forward.4} parent=0 // pred_check
    _
  $region15: #{conv_classifier_forward.4} parent=0 // pred_check_branch
    %21 = sbr.rel (0) target = $region17
  $region16: #{conv_classifier_forward.4} parent=0 // pred_region
    _
  $region17: #{conv_classifier_forward.4} parent=0 // pred_fallthru
    _
  // Predicated region
  $region18: #{conv_classifier_forward.4} parent=0 // pred_check
    _
  $region19: #{conv_classifier_forward.4} parent=0 // pred_check_branch
    %23 = sbr.rel (0) target = $region21
  $region20: #{conv_classifier_forward.4} parent=0 // pred_region
    _
  $region21: #{conv_classifier_forward.4} parent=0 // pred_fallthru
    _
  // Predicated region
  $region22: #{conv_classifier_forward.4} parent=0 // pred_check
    _
  $region23: #{conv_classifier_forward.4} parent=0 // pred_check_branch
    %25 = sbr.rel (0) target = $region25
  $region24: #{conv_classifier_forward.4} parent=0 // pred_region
    _
  $region25: #{conv_classifier_forward.4} parent=0 // pred_fallthru
    _
  // Predicated region
  $region26: #{conv_classifier_forward.4} parent=0 // pred_check
    _
  $region27: #{conv_classifier_forward.4} parent=0 // pred_check_branch
    %27 = sbr.rel (0) target = $region29
  $region28: #{conv_classifier_forward.4} parent=0 // pred_region
    _
  $region29: #{conv_classifier_forward.4} parent=0 // pred_fallthru
    _
  // Predicated region
  $region30: #{conv_classifier_forward.4} parent=0 // pred_check
    _
  $region31: #{conv_classifier_forward.4} parent=0 // pred_check_branch
    %29 = sbr.rel (0) target = $region33
  $region32: #{conv_classifier_forward.4} parent=0 // pred_region
    _
  $region33: #{conv_classifier_forward.4} parent=0 // pred_fallthru
    _
  // Predicated region
  $region34: #{conv_classifier_forward.4} parent=0 // pred_check
    _
  $region35: #{conv_classifier_forward.4} parent=0 // pred_check_branch
    %31 = sbr.rel (0) target = $region37
  $region36: #{conv_classifier_forward.4} parent=0 // pred_region
    _
  $region37: #{conv_classifier_forward.4} parent=0 // pred_fallthru
    _
  %v32 = vld [vmem:[%s1] sm:$0xff]
  %v33 = vld [vmem:[%s1 + $0x8] sm:$0xff]
  %v34 = vld [vmem:[%s1 + $0x10] sm:$0xff]
  %v35 = vld [vmem:[%s1 + $0x18] sm:$0xff]
  %v36 = vld [vmem:[%s1 + $0x20] sm:$0xff]
  %v37 = vld [vmem:[%s1 + $0x28] sm:$0xff]
  %v38 = vld [vmem:[%s1 + $0x30] sm:$0xff]
  %v39 = vld [vmem:[%s1 + $0x38] sm:$0xff]
  %v40 = vld [vmem:[%s1 + $0x40] sm:$0xff]
  %v41 = vld [vmem:[%s1 + $0x48] sm:$0xff]
  %v42 = vld [vmem:[%s1 + $0x50] sm:$0xff]
  %v43 = vld [vmem:[%s1 + $0x58] sm:$0xff]
  %v44 = vld [vmem:[%s1 + $0x60] sm:$0xff]
  %v45 = vld [vmem:[%s1 + $0x68] sm:$0xff]
  %v46 = vld [vmem:[%s1 + $0x70] sm:$0xff]
  %v47 = vld [vmem:[%s1 + $0x78] sm:$0xff]
  %v48 = vld [vmem:[%s1 + $0x80] sm:$0xff]
  %v49 = vld [vmem:[%s1 + $0x88] sm:$0xff]
  %v50 = vld [vmem:[%s1 + $0x90] sm:$0xff]
  %v51 = vld [vmem:[%s1 + $0x98] sm:$0xff]
  %v52 = vld [vmem:[%s1 + $0xa0] sm:$0xff]
  %v53 = vld [vmem:[%s1 + $0xa8] sm:$0xff]
  %v54 = vld [vmem:[%s1 + $0xb0] sm:$0xff]
  %v55 = vld [vmem:[%s1 + $0xb8] sm:$0xff]
  %v56 = vld [vmem:[%s1 + $0xc0] sm:$0xff]
  %v57 = vld [vmem:[%s1 + $0xc8] sm:$0xff]
  %v58 = vld [vmem:[%s1 + $0xd0] sm:$0xff]
  %v59 = vld [vmem:[%s1 + $0xd8] sm:$0xff]
  %v60 = vld [vmem:[%s1 + $0xe0] sm:$0xff]
  %v61 = vld [vmem:[%s1 + $0xe8] sm:$0xff]
  %v62 = vld [vmem:[%s1 + $0xf0] sm:$0xff]
  %v63 = vld [vmem:[%s1 + $0xf8] sm:$0xff]
  %v64 = vld [vmem:[%s1 + $0x100] sm:$0xff]
  %v65 = vld [vmem:[%s1 + $0x108] sm:$0xff]
  %v66 = vld [vmem:[%s1 + $0x110] sm:$0xff]
  %v67 = vld [vmem:[%s1 + $0x118] sm:$0xff]
  %v68 = vld [vmem:[%s1 + $0x120] sm:$0xff]
  %v69 = vld [vmem:[%s1 + $0x128] sm:$0xff]
  %v70 = vld [vmem:[%s1 + $0x130] sm:$0xff]
  %v71 = vld [vmem:[%s1 + $0x138] sm:$0xff]
  %v72 = vld [vmem:[%s1 + $0x140] sm:$0xff]
  %v73 = vld [vmem:[%s1 + $0x148] sm:$0xff]
  %v74 = vld [vmem:[%s1 + $0x150] sm:$0xff]
  %v75 = vld [vmem:[%s1 + $0x158] sm:$0xff]
  %v76 = vld [vmem:[%s1 + $0x160] sm:$0xff]
  %v77 = vld [vmem:[%s1 + $0x168] sm:$0xff]
  %v78 = vld [vmem:[%s1 + $0x170] sm:$0xff]
  %v79 = vld [vmem:[%s1 + $0x178] sm:$0xff]
  %v80 = vld [vmem:[%s1 + $0x180] sm:$0xff]
  %v81 = vld [vmem:[%s1 + $0x188] sm:$0xff]
  %v82 = vld [vmem:[%s1 + $0x190] sm:$0xff]
  %v83 = vld [vmem:[%s1 + $0x198] sm:$0xff]
  %v84 = vld [vmem:[%s1 + $0x1a0] sm:$0xff]
  %v85 = vld [vmem:[%s1 + $0x1a8] sm:$0xff]
  %v86 = vld [vmem:[%s1 + $0x1b0] sm:$0xff]
  %v87 = vld [vmem:[%s1 + $0x1b8] sm:$0xff]
  %v88 = vld [vmem:[%s1 + $0x1c0] sm:$0xff]
  %v89 = vld [vmem:[%s1 + $0x1c8] sm:$0xff]
  %v90 = vld [vmem:[%s1 + $0x1d0] sm:$0xff]
  %v91 = vld [vmem:[%s1 + $0x1d8] sm:$0xff]
  %v92 = vld [vmem:[%s1 + $0x1e0] sm:$0xff]
  %v93 = vld [vmem:[%s1 + $0x1e8] sm:$0xff]
  %v94 = vld [vmem:[%s1 + $0x1f0] sm:$0xff]
  %v95 = vld [vmem:[%s1 + $0x1f8] sm:$0xff]
  %v96 = vld [vmem:[%s2] sm:$0x3]
  %v97 = vld [vmem:[%s4] sm:$0x7]
  %v98 = vld [vmem:[%s6] sm:$0x3]
  %v99 = vld [vmem:[%s8] sm:$0x3]
  %v100 = vld [vmem:[%s0] sm:$0xff]
  %v101 = vld [vmem:[%s0 + $0x8] sm:$0xff]
  %v102 = vld [vmem:[%s0 + $0x10] sm:$0xff]
  %v103 = vld [vmem:[%s0 + $0x18] sm:$0xff]
  %v104 = vld [vmem:[%s0 + $0x20] sm:$0xff]
  %v105 = vld [vmem:[%s0 + $0x28] sm:$0xff]
  %v106 = vld [vmem:[%s0 + $0x30] sm:$0xff]
  %v107 = vld [vmem:[%s0 + $0x38] sm:$0xff]
  %v108 = vld [vmem:[%s0 + $0x40] sm:$0xff]
  %v109 = vld [vmem:[%s0 + $0x48] sm:$0xff]
  %v110 = vld [vmem:[%s0 + $0x50] sm:$0xff]
  %v111 = vld [vmem:[%s0 + $0x58] sm:$0xff]
  %v112 = vld [vmem:[%s0 + $0x60] sm:$0xff]
  %v113 = vld [vmem:[%s0 + $0x68] sm:$0xff]
  %v114 = vld [vmem:[%s0 + $0x70] sm:$0xff]
  %v115 = vld [vmem:[%s0 + $0x78] sm:$0xff]
  %v116 = vld [vmem:[%s0 + $0x80] sm:$0xff]
  %v117 = vld [vmem:[%s0 + $0x88] sm:$0xff]
  %v118 = vld [vmem:[%s0 + $0x90] sm:$0xff]
  %v119 = vld [vmem:[%s0 + $0x98] sm:$0xff]
  %v120 = vld [vmem:[%s0 + $0xa0] sm:$0xff]
  %v121 = vld [vmem:[%s0 + $0xa8] sm:$0xff]
  %v122 = vld [vmem:[%s0 + $0xb0] sm:$0xff]
  %v123 = vld [vmem:[%s0 + $0xb8] sm:$0xff]
  %124 = vmatpush.msra.mxu0 %v62
  %125 = vmatpush.msra.mxu0 %v60
  %126 = vmatpush.msra.mxu0 %v58
  %127 = vmatpush.msra.mxu0 %v56
  %128 = vmatpush.msra.mxu0 %v54
  %129 = vmatpush.msra.mxu0 %v52
  %130 = vmatpush.msra.mxu0 %v50
  %131 = vmatpush.msra.mxu0 %v48
  %132 = vmatpush.msra.mxu0 %v46
  %133 = vmatpush.msra.mxu0 %v44
  %134 = vmatpush.msra.mxu0 %v42
  %135 = vmatpush.msra.mxu0 %v40
  %136 = vmatpush.msra.mxu0 %v38
  %137 = vmatpush.msra.mxu0 %v36
  %138 = vmatpush.msra.mxu0 %v34
  %139 = vmatpush.msra.mxu0 %v32
  %140 = vmatmul.f32.gmra.mxu0 %v100
  %v141 = vpop.f32.mrf.mxu0
  %v142 = vadd.f32 0.0, %v141
  %143 = vmatmul.f32.gmra.mxu0 %v108
  %v144 = vpop.f32.mrf.mxu0
  %v145 = vadd.f32 0.0, %v144
  %146 = vmatmul.f32.gmra.mxu0 %v116
  %v147 = vpop.f32.mrf.mxu0
  %v148 = vadd.f32 0.0, %v147
  %149 = vdwg.mxu0
  %150 = vmatpush.msra.mxu0 %v94
  %151 = vmatpush.msra.mxu0 %v92
  %152 = vmatpush.msra.mxu0 %v90
  %153 = vmatpush.msra.mxu0 %v88
  %154 = vmatpush.msra.mxu0 %v86
  %155 = vmatpush.msra.mxu0 %v84
  %156 = vmatpush.msra.mxu0 %v82
  %157 = vmatpush.msra.mxu0 %v80
  %158 = vmatpush.msra.mxu0 %v78
  %159 = vmatpush.msra.mxu0 %v76
  %160 = vmatpush.msra.mxu0 %v74
  %161 = vmatpush.msra.mxu0 %v72
  %162 = vmatpush.msra.mxu0 %v70
  %163 = vmatpush.msra.mxu0 %v68
  %164 = vmatpush.msra.mxu0 %v66
  %165 = vmatpush.msra.mxu0 %v64
  %166 = vmatmul.f32.gmra.mxu0 %v101
  %v167 = vpop.f32.mrf.mxu0
  %v168 = vadd.f32 %v142, %v167
  %169 = vmatmul.f32.gmra.mxu0 %v109
  %v170 = vpop.f32.mrf.mxu0
  %v171 = vadd.f32 %v145, %v170
  %172 = vmatmul.f32.gmra.mxu0 %v117
  %v173 = vpop.f32.mrf.mxu0
  %v174 = vadd.f32 %v148, %v173
  %175 = vdwg.mxu0
  %176 = vmatpush.msra.mxu0 %v63
  %177 = vmatpush.msra.mxu0 %v61
  %178 = vmatpush.msra.mxu0 %v59
  %179 = vmatpush.msra.mxu0 %v57
  %180 = vmatpush.msra.mxu0 %v55
  %181 = vmatpush.msra.mxu0 %v53
  %182 = vmatpush.msra.mxu0 %v51
  %183 = vmatpush.msra.mxu0 %v49
  %184 = vmatpush.msra.mxu0 %v47
  %185 = vmatpush.msra.mxu0 %v45
  %186 = vmatpush.msra.mxu0 %v43
  %187 = vmatpush.msra.mxu0 %v41
  %188 = vmatpush.msra.mxu0 %v39
  %189 = vmatpush.msra.mxu0 %v37
  %190 = vmatpush.msra.mxu0 %v35
  %191 = vmatpush.msra.mxu0 %v33
  %192 = vmatmul.f32.gmra.mxu0 %v100
  %v193 = vpop.f32.mrf.mxu0
  %v194 = vadd.f32 0.0, %v193
  %195 = vmatmul.f32.gmra.mxu0 %v108
  %v196 = vpop.f32.mrf.mxu0
  %v197 = vadd.f32 0.0, %v196
  %198 = vmatmul.f32.gmra.mxu0 %v116
  %v199 = vpop.f32.mrf.mxu0
  %v200 = vadd.f32 0.0, %v199
  %201 = vdwg.mxu0
  %202 = vmatpush.msra.mxu0 %v95
  %203 = vmatpush.msra.mxu0 %v93
  %204 = vmatpush.msra.mxu0 %v91
  %205 = vmatpush.msra.mxu0 %v89
  %206 = vmatpush.msra.mxu0 %v87
  %207 = vmatpush.msra.mxu0 %v85
  %208 = vmatpush.msra.mxu0 %v83
  %209 = vmatpush.msra.mxu0 %v81
  %210 = vmatpush.msra.mxu0 %v79
  %211 = vmatpush.msra.mxu0 %v77
  %212 = vmatpush.msra.mxu0 %v75
  %213 = vmatpush.msra.mxu0 %v73
  %214 = vmatpush.msra.mxu0 %v71
  %215 = vmatpush.msra.mxu0 %v69
  %216 = vmatpush.msra.mxu0 %v67
  %217 = vmatpush.msra.mxu0 %v65
  %218 = vmatmul.f32.gmra.mxu0 %v101
  %v219 = vpop.f32.mrf.mxu0
  %v220 = vadd.f32 %v194, %v219
  %221 = vmatmul.f32.gmra.mxu0 %v109
  %v222 = vpop.f32.mrf.mxu0
  %v223 = vadd.f32 %v197, %v222
  %224 = vmatmul.f32.gmra.mxu0 %v117
  %v225 = vpop.f32.mrf.mxu0
  %v226 = vadd.f32 %v200, %v225
  %227 = vdwg.mxu0
  %228 = vmatpush.msra.mxu0 %v62
  %229 = vmatpush.msra.mxu0 %v60
  %230 = vmatpush.msra.mxu0 %v58
  %231 = vmatpush.msra.mxu0 %v56
  %232 = vmatpush.msra.mxu0 %v54
  %233 = vmatpush.msra.mxu0 %v52
  %234 = vmatpush.msra.mxu0 %v50
  %235 = vmatpush.msra.mxu0 %v48
  %236 = vmatpush.msra.mxu0 %v46
  %237 = vmatpush.msra.mxu0 %v44
  %238 = vmatpush.msra.mxu0 %v42
  %239 = vmatpush.msra.mxu0 %v40
  %240 = vmatpush.msra.mxu0 %v38
  %241 = vmatpush.msra.mxu0 %v36
  %242 = vmatpush.msra.mxu0 %v34
  %243 = vmatpush.msra.mxu0 %v32
  %244 = vmatmul.f32.gmra.mxu0 %v102
  %v245 = vpop.f32.mrf.mxu0
  %v246 = vadd.f32 0.0, %v245
  %247 = vmatmul.f32.gmra.mxu0 %v110
  %v248 = vpop.f32.mrf.mxu0
  %v249 = vadd.f32 0.0, %v248
  %250 = vmatmul.f32.gmra.mxu0 %v118
  %v251 = vpop.f32.mrf.mxu0
  %v252 = vadd.f32 0.0, %v251
  %253 = vdwg.mxu0
  %254 = vmatpush.msra.mxu0 %v94
  %255 = vmatpush.msra.mxu0 %v92
  %256 = vmatpush.msra.mxu0 %v90
  %257 = vmatpush.msra.mxu0 %v88
  %258 = vmatpush.msra.mxu0 %v86
  %259 = vmatpush.msra.mxu0 %v84
  %260 = vmatpush.msra.mxu0 %v82
  %261 = vmatpush.msra.mxu0 %v80
  %262 = vmatpush.msra.mxu0 %v78
  %263 = vmatpush.msra.mxu0 %v76
  %264 = vmatpush.msra.mxu0 %v74
  %265 = vmatpush.msra.mxu0 %v72
  %266 = vmatpush.msra.mxu0 %v70
  %267 = vmatpush.msra.mxu0 %v68
  %268 = vmatpush.msra.mxu0 %v66
  %269 = vmatpush.msra.mxu0 %v64
  %270 = vmatmul.f32.gmra.mxu0 %v103
  %v271 = vpop.f32.mrf.mxu0
  %v272 = vadd.f32 %v246, %v271
  %273 = vmatmul.f32.gmra.mxu0 %v111
  %v274 = vpop.f32.mrf.mxu0
  %v275 = vadd.f32 %v249, %v274
  %276 = vmatmul.f32.gmra.mxu0 %v119
  %v277 = vpop.f32.mrf.mxu0
  %v278 = vadd.f32 %v252, %v277
  %279 = vdwg.mxu0
  %280 = vmatpush.msra.mxu0 %v63
  %281 = vmatpush.msra.mxu0 %v61
  %282 = vmatpush.msra.mxu0 %v59
  %283 = vmatpush.msra.mxu0 %v57
  %284 = vmatpush.msra.mxu0 %v55
  %285 = vmatpush.msra.mxu0 %v53
  %286 = vmatpush.msra.mxu0 %v51
  %287 = vmatpush.msra.mxu0 %v49
  %288 = vmatpush.msra.mxu0 %v47
  %289 = vmatpush.msra.mxu0 %v45
  %290 = vmatpush.msra.mxu0 %v43
  %291 = vmatpush.msra.mxu0 %v41
  %292 = vmatpush.msra.mxu0 %v39
  %293 = vmatpush.msra.mxu0 %v37
  %294 = vmatpush.msra.mxu0 %v35
  %295 = vmatpush.msra.mxu0 %v33
  %296 = vmatmul.f32.gmra.mxu0 %v102
  %v297 = vpop.f32.mrf.mxu0
  %v298 = vadd.f32 0.0, %v297
  %299 = vmatmul.f32.gmra.mxu0 %v110
  %v300 = vpop.f32.mrf.mxu0
  %v301 = vadd.f32 0.0, %v300
  %302 = vmatmul.f32.gmra.mxu0 %v118
  %v303 = vpop.f32.mrf.mxu0
  %v304 = vadd.f32 0.0, %v303
  %305 = vdwg.mxu0
  %306 = vmatpush.msra.mxu0 %v95
  %307 = vmatpush.msra.mxu0 %v93
  %308 = vmatpush.msra.mxu0 %v91
  %309 = vmatpush.msra.mxu0 %v89
  %310 = vmatpush.msra.mxu0 %v87
  %311 = vmatpush.msra.mxu0 %v85
  %312 = vmatpush.msra.mxu0 %v83
  %313 = vmatpush.msra.mxu0 %v81
  %314 = vmatpush.msra.mxu0 %v79
  %315 = vmatpush.msra.mxu0 %v77
  %316 = vmatpush.msra.mxu0 %v75
  %317 = vmatpush.msra.mxu0 %v73
  %318 = vmatpush.msra.mxu0 %v71
  %319 = vmatpush.msra.mxu0 %v69
  %320 = vmatpush.msra.mxu0 %v67
  %321 = vmatpush.msra.mxu0 %v65
  %322 = vmatmul.f32.gmra.mxu0 %v103
  %v323 = vpop.f32.mrf.mxu0
  %v324 = vadd.f32 %v298, %v323
  %325 = vmatmul.f32.gmra.mxu0 %v111
  %v326 = vpop.f32.mrf.mxu0
  %v327 = vadd.f32 %v301, %v326
  %328 = vmatmul.f32.gmra.mxu0 %v119
  %v329 = vpop.f32.mrf.mxu0
  %v330 = vadd.f32 %v304, %v329
  %331 = vdwg.mxu0
  %v332 = vmax.f32 %v168, %v272
  %v333 = vmax.f32 %v220, %v324
  %v334 = vmax.f32 %v171, %v275
  %v335 = vmax.f32 %v223, %v327
  %v336 = vmax.f32 %v174, %v278
  %v337 = vmax.f32 %v226, %v330
  %338 = vmatpush.msra.mxu0 %v62
  %339 = vmatpush.msra.mxu0 %v60
  %340 = vmatpush.msra.mxu0 %v58
  %341 = vmatpush.msra.mxu0 %v56
  %342 = vmatpush.msra.mxu0 %v54
  %343 = vmatpush.msra.mxu0 %v52
  %344 = vmatpush.msra.mxu0 %v50
  %345 = vmatpush.msra.mxu0 %v48
  %346 = vmatpush.msra.mxu0 %v46
  %347 = vmatpush.msra.mxu0 %v44
  %348 = vmatpush.msra.mxu0 %v42
  %349 = vmatpush.msra.mxu0 %v40
  %350 = vmatpush.msra.mxu0 %v38
  %351 = vmatpush.msra.mxu0 %v36
  %352 = vmatpush.msra.mxu0 %v34
  %353 = vmatpush.msra.mxu0 %v32
  %354 = vmatmul.f32.gmra.mxu0 %v104
  %v355 = vpop.f32.mrf.mxu0
  %v356 = vadd.f32 0.0, %v355
  %357 = vmatmul.f32.gmra.mxu0 %v112
  %v358 = vpop.f32.mrf.mxu0
  %v359 = vadd.f32 0.0, %v358
  %360 = vmatmul.f32.gmra.mxu0 %v120
  %v361 = vpop.f32.mrf.mxu0
  %v362 = vadd.f32 0.0, %v361
  %363 = vdwg.mxu0
  %364 = vmatpush.msra.mxu0 %v94
  %365 = vmatpush.msra.mxu0 %v92
  %366 = vmatpush.msra.mxu0 %v90
  %367 = vmatpush.msra.mxu0 %v88
  %368 = vmatpush.msra.mxu0 %v86
  %369 = vmatpush.msra.mxu0 %v84
  %370 = vmatpush.msra.mxu0 %v82
  %371 = vmatpush.msra.mxu0 %v80
  %372 = vmatpush.msra.mxu0 %v78
  %373 = vmatpush.msra.mxu0 %v76
  %374 = vmatpush.msra.mxu0 %v74
  %375 = vmatpush.msra.mxu0 %v72
  %376 = vmatpush.msra.mxu0 %v70
  %377 = vmatpush.msra.mxu0 %v68
  %378 = vmatpush.msra.mxu0 %v66
  %379 = vmatpush.msra.mxu0 %v64
  %380 = vmatmul.f32.gmra.mxu0 %v105
  %v381 = vpop.f32.mrf.mxu0
  %v382 = vadd.f32 %v356, %v381
  %383 = vmatmul.f32.gmra.mxu0 %v113
  %v384 = vpop.f32.mrf.mxu0
  %v385 = vadd.f32 %v359, %v384
  %386 = vmatmul.f32.gmra.mxu0 %v121
  %v387 = vpop.f32.mrf.mxu0
  %v388 = vadd.f32 %v362, %v387
  %389 = vdwg.mxu0
  %390 = vmatpush.msra.mxu0 %v63
  %391 = vmatpush.msra.mxu0 %v61
  %392 = vmatpush.msra.mxu0 %v59
  %393 = vmatpush.msra.mxu0 %v57
  %394 = vmatpush.msra.mxu0 %v55
  %395 = vmatpush.msra.mxu0 %v53
  %396 = vmatpush.msra.mxu0 %v51
  %397 = vmatpush.msra.mxu0 %v49
  %398 = vmatpush.msra.mxu0 %v47
  %399 = vmatpush.msra.mxu0 %v45
  %400 = vmatpush.msra.mxu0 %v43
  %401 = vmatpush.msra.mxu0 %v41
  %402 = vmatpush.msra.mxu0 %v39
  %403 = vmatpush.msra.mxu0 %v37
  %404 = vmatpush.msra.mxu0 %v35
  %405 = vmatpush.msra.mxu0 %v33
  %406 = vmatmul.f32.gmra.mxu0 %v104
  %v407 = vpop.f32.mrf.mxu0
  %v408 = vadd.f32 0.0, %v407
  %409 = vmatmul.f32.gmra.mxu0 %v112
  %v410 = vpop.f32.mrf.mxu0
  %v411 = vadd.f32 0.0, %v410
  %412 = vmatmul.f32.gmra.mxu0 %v120
  %v413 = vpop.f32.mrf.mxu0
  %v414 = vadd.f32 0.0, %v413
  %415 = vdwg.mxu0
  %416 = vmatpush.msra.mxu0 %v95
  %417 = vmatpush.msra.mxu0 %v93
  %418 = vmatpush.msra.mxu0 %v91
  %419 = vmatpush.msra.mxu0 %v89
  %420 = vmatpush.msra.mxu0 %v87
  %421 = vmatpush.msra.mxu0 %v85
  %422 = vmatpush.msra.mxu0 %v83
  %423 = vmatpush.msra.mxu0 %v81
  %424 = vmatpush.msra.mxu0 %v79
  %425 = vmatpush.msra.mxu0 %v77
  %426 = vmatpush.msra.mxu0 %v75
  %427 = vmatpush.msra.mxu0 %v73
  %428 = vmatpush.msra.mxu0 %v71
  %429 = vmatpush.msra.mxu0 %v69
  %430 = vmatpush.msra.mxu0 %v67
  %431 = vmatpush.msra.mxu0 %v65
  %432 = vmatmul.f32.gmra.mxu0 %v105
  %v433 = vpop.f32.mrf.mxu0
  %v434 = vadd.f32 %v408, %v433
  %435 = vmatmul.f32.gmra.mxu0 %v113
  %v436 = vpop.f32.mrf.mxu0
  %v437 = vadd.f32 %v411, %v436
  %438 = vmatmul.f32.gmra.mxu0 %v121
  %v439 = vpop.f32.mrf.mxu0
  %v440 = vadd.f32 %v414, %v439
  %441 = vdwg.mxu0
  %v442 = vmax.f32 %v332, %v382
  %v443 = vmax.f32 %v333, %v434
  %v444 = vmax.f32 %v334, %v385
  %v445 = vmax.f32 %v335, %v437
  %v446 = vmax.f32 %v336, %v388
  %v447 = vmax.f32 %v337, %v440
  %448 = vmatpush.msra.mxu0 %v62
  %449 = vmatpush.msra.mxu0 %v60
  %450 = vmatpush.msra.mxu0 %v58
  %451 = vmatpush.msra.mxu0 %v56
  %452 = vmatpush.msra.mxu0 %v54
  %453 = vmatpush.msra.mxu0 %v52
  %454 = vmatpush.msra.mxu0 %v50
  %455 = vmatpush.msra.mxu0 %v48
  %456 = vmatpush.msra.mxu0 %v46
  %457 = vmatpush.msra.mxu0 %v44
  %458 = vmatpush.msra.mxu0 %v42
  %459 = vmatpush.msra.mxu0 %v40
  %460 = vmatpush.msra.mxu0 %v38
  %461 = vmatpush.msra.mxu0 %v36
  %462 = vmatpush.msra.mxu0 %v34
  %463 = vmatpush.msra.mxu0 %v32
  %464 = vmatmul.f32.gmra.mxu0 %v106
  %v465 = vpop.f32.mrf.mxu0
  %v466 = vadd.f32 0.0, %v465
  %467 = vmatmul.f32.gmra.mxu0 %v114
  %v468 = vpop.f32.mrf.mxu0
  %v469 = vadd.f32 0.0, %v468
  %470 = vmatmul.f32.gmra.mxu0 %v122
  %v471 = vpop.f32.mrf.mxu0
  %v472 = vadd.f32 0.0, %v471
  %473 = vdwg.mxu0
  %474 = vmatpush.msra.mxu0 %v94
  %475 = vmatpush.msra.mxu0 %v92
  %476 = vmatpush.msra.mxu0 %v90
  %477 = vmatpush.msra.mxu0 %v88
  %478 = vmatpush.msra.mxu0 %v86
  %479 = vmatpush.msra.mxu0 %v84
  %480 = vmatpush.msra.mxu0 %v82
  %481 = vmatpush.msra.mxu0 %v80
  %482 = vmatpush.msra.mxu0 %v78
  %483 = vmatpush.msra.mxu0 %v76
  %484 = vmatpush.msra.mxu0 %v74
  %485 = vmatpush.msra.mxu0 %v72
  %486 = vmatpush.msra.mxu0 %v70
  %487 = vmatpush.msra.mxu0 %v68
  %488 = vmatpush.msra.mxu0 %v66
  %489 = vmatpush.msra.mxu0 %v64
  %490 = vmatmul.f32.gmra.mxu0 %v107
  %v491 = vpop.f32.mrf.mxu0
  %v492 = vadd.f32 %v466, %v491
  %493 = vmatmul.f32.gmra.mxu0 %v115
  %v494 = vpop.f32.mrf.mxu0
  %v495 = vadd.f32 %v469, %v494
  %496 = vmatmul.f32.gmra.mxu0 %v123
  %v497 = vpop.f32.mrf.mxu0
  %v498 = vadd.f32 %v472, %v497
  %499 = vdwg.mxu0
  %500 = vmatpush.msra.mxu0 %v63
  %501 = vmatpush.msra.mxu0 %v61
  %502 = vmatpush.msra.mxu0 %v59
  %503 = vmatpush.msra.mxu0 %v57
  %504 = vmatpush.msra.mxu0 %v55
  %505 = vmatpush.msra.mxu0 %v53
  %506 = vmatpush.msra.mxu0 %v51
  %507 = vmatpush.msra.mxu0 %v49
  %508 = vmatpush.msra.mxu0 %v47
  %509 = vmatpush.msra.mxu0 %v45
  %510 = vmatpush.msra.mxu0 %v43
  %511 = vmatpush.msra.mxu0 %v41
  %512 = vmatpush.msra.mxu0 %v39
  %513 = vmatpush.msra.mxu0 %v37
  %514 = vmatpush.msra.mxu0 %v35
  %515 = vmatpush.msra.mxu0 %v33
  %516 = vmatmul.f32.gmra.mxu0 %v106
  %v517 = vpop.f32.mrf.mxu0
  %v518 = vadd.f32 0.0, %v517
  %519 = vmatmul.f32.gmra.mxu0 %v114
  %v520 = vpop.f32.mrf.mxu0
  %v521 = vadd.f32 0.0, %v520
  %522 = vmatmul.f32.gmra.mxu0 %v122
  %v523 = vpop.f32.mrf.mxu0
  %v524 = vadd.f32 0.0, %v523
  %525 = vdwg.mxu0
  %526 = vmatpush.msra.mxu0 %v95
  %527 = vmatpush.msra.mxu0 %v93
  %528 = vmatpush.msra.mxu0 %v91
  %529 = vmatpush.msra.mxu0 %v89
  %530 = vmatpush.msra.mxu0 %v87
  %531 = vmatpush.msra.mxu0 %v85
  %532 = vmatpush.msra.mxu0 %v83
  %533 = vmatpush.msra.mxu0 %v81
  %534 = vmatpush.msra.mxu0 %v79
  %535 = vmatpush.msra.mxu0 %v77
  %536 = vmatpush.msra.mxu0 %v75
  %537 = vmatpush.msra.mxu0 %v73
  %538 = vmatpush.msra.mxu0 %v71
  %539 = vmatpush.msra.mxu0 %v69
  %540 = vmatpush.msra.mxu0 %v67
  %541 = vmatpush.msra.mxu0 %v65
  %542 = vmatmul.f32.gmra.mxu0 %v107
  %v543 = vpop.f32.mrf.mxu0
  %v544 = vadd.f32 %v518, %v543
  %545 = vmatmul.f32.gmra.mxu0 %v115
  %v546 = vpop.f32.mrf.mxu0
  %v547 = vadd.f32 %v521, %v546
  %548 = vmatmul.f32.gmra.mxu0 %v123
  %v549 = vpop.f32.mrf.mxu0
  %v550 = vadd.f32 %v524, %v549
  %551 = vdwg.mxu0
  %v552 = vmax.f32 %v442, %v492
  %v553 = vmax.f32 %v443, %v544
  %v554 = vmax.f32 %v444, %v495
  %v555 = vmax.f32 %v445, %v547
  %v556 = vmax.f32 %v446, %v498
  %v557 = vmax.f32 %v447, %v550
  %v559 = vperm.slane %v96, 0
  %v560 = vperm.slane %v96, 1
  %v563 = vadd.f32 %v552, %v559
  %v564 = vadd.f32 %v553, %v560
  %v565 = vadd.f32 %v554, %v559
  %v566 = vadd.f32 %v555, %v560
  %v567 = vadd.f32 %v556, %v559
  %v568 = vadd.f32 %v557, %v560
  %v569 = vmax.f32 %v563, 0.0
  %v570 = vmax.f32 %v564, 0.0
  %v571 = vmax.f32 %v565, 0.0
  %v572 = vmax.f32 %v566, 0.0
  %v573 = vmax.f32 %v567, 0.0
  %v574 = vmax.f32 %v568, 0.0
  %v575 = vlaneseq
  %vm576 = vcmp.ge.s32.totalorder %v575, 0
  %vm577 = vcmp.lt.s32.totalorder %v575, 192
  %vm578 = vmand %vm576, %vm577
  %579 = vst.msk [vmem:[#allocation2] ss:$8 sm:$0x3] %vm578, 0.0
  %580 = vst.msk [vmem:[#allocation2] ss:$8 sm:$0x0] %vm578, 0.0
  %s581 = scalar_lea.vmem [#allocation2], 49
  %582 = vst.msk [vmem:[%s581] ss:$8 sm:$0x3] %vm578, 0.0
  %583 = vst.msk [vmem:[%s581] ss:$8 sm:$0x0] %vm578, 0.0
  %vm590 = vcmask 1040384
  %v591 = vrot.slane %v569, 7
  %v592 = vrot.slane %v570, 7
  %v593 = vrot.slane %v571, 7
  %v594 = vsel %vm590, %v591, %v593
  %v595 = vrot.slane %v572, 7
  %v596 = vsel %vm590, %v592, %v595
  %v597 = vrot.slane %v573, 7
  %v598 = vsel %vm590, %v593, %v597
  %v599 = vrot.slane %v574, 7
  %v600 = vsel %vm590, %v595, %v599
  %609 = vst [vmem:[#allocation2] sm:$0xfe] %v591
  %vm610 = vcmask 523265
  %611 = vst.msk [vmem:[#allocation2 + $0x8] sm:$0xfe] %vm610, %v592
  %612 = vst [vmem:[#allocation2 + $0x10] sm:$0xff] %v594
  %vm613 = vcmask 523264
  %614 = vst.msk [vmem:[#allocation2 + $0x18] sm:$0xff] %vm613, %v596
  %615 = vst [vmem:[#allocation2 + $0x20] sm:$0xff] %v598
  %616 = vst.msk [vmem:[#allocation2 + $0x28] sm:$0xff] %vm613, %v600
  %617 = vst [vmem:[#allocation2 + $0x30] sm:$0x1] %v597
  %vm618 = vcmask 516096
  %619 = vst.msk [vmem:[#allocation2 + $0x38] sm:$0x1] %vm618, %v599
  %v620 = vld [vmem:[#allocation2] sm:$0xff]
  %v621 = vld [vmem:[#allocation2 + $0x8] sm:$0xff]
  %v622 = vld [vmem:[#allocation2 + $0x10] sm:$0xff]
  %v623 = vld [vmem:[#allocation2 + $0x18] sm:$0xff]
  %v624 = vld [vmem:[#allocation2 + $0x20] sm:$0xff]
  %v625 = vld [vmem:[#allocation2 + $0x28] sm:$0xff]
  %v626 = vld [vmem:[%s3] sm:$0xff]
  %v627 = vld [vmem:[%s3 + $0x8] sm:$0xff]
  %v628 = vld [vmem:[%s3 + $0x10] sm:$0xff]
  %v629 = vld [vmem:[%s3 + $0x18] sm:$0xff]
  %v630 = vld [vmem:[%s3 + $0x20] sm:$0xff]
  %v631 = vld [vmem:[%s3 + $0x28] sm:$0xff]
  %v632 = vld [vmem:[%s3 + $0x30] sm:$0xff]
  %v633 = vld [vmem:[%s3 + $0x38] sm:$0xff]
  %v634 = vld [vmem:[%s3 + $0x40] sm:$0xff]
  %v635 = vld [vmem:[%s3 + $0x48] sm:$0xff]
  %v636 = vld [vmem:[%s3 + $0x50] sm:$0xff]
  %v637 = vld [vmem:[%s3 + $0x58] sm:$0xff]
  %v638 = vld [vmem:[%s3 + $0x60] sm:$0xff]
  %v639 = vld [vmem:[%s3 + $0x68] sm:$0xff]
  %v640 = vld [vmem:[%s3 + $0x70] sm:$0xff]
  %v641 = vld [vmem:[%s3 + $0x78] sm:$0xff]
  %v642 = vld [vmem:[%s3 + $0x80] sm:$0xff]
  %v643 = vld [vmem:[%s3 + $0x88] sm:$0xff]
  %v644 = vld [vmem:[%s3 + $0x90] sm:$0xff]
  %v645 = vld [vmem:[%s3 + $0x98] sm:$0xff]
  %v646 = vld [vmem:[%s3 + $0xa0] sm:$0xff]
  %v647 = vld [vmem:[%s3 + $0xa8] sm:$0xff]
  %v648 = vld [vmem:[%s3 + $0xb0] sm:$0xff]
  %v649 = vld [vmem:[%s3 + $0xb8] sm:$0xff]
  %v650 = vld [vmem:[%s3 + $0xc0] sm:$0xff]
  %v651 = vld [vmem:[%s3 + $0xc8] sm:$0xff]
  %v652 = vld [vmem:[%s3 + $0xd0] sm:$0xff]
  %v653 = vld [vmem:[%s3 + $0xd8] sm:$0xff]
  %v654 = vld [vmem:[%s3 + $0xe0] sm:$0xff]
  %v655 = vld [vmem:[%s3 + $0xe8] sm:$0xff]
  %v656 = vld [vmem:[%s3 + $0xf0] sm:$0xff]
  %v657 = vld [vmem:[%s3 + $0xf8] sm:$0xff]
  %v658 = vld [vmem:[%s3 + $0x100] sm:$0xff]
  %v659 = vld [vmem:[%s3 + $0x108] sm:$0xff]
  %v660 = vld [vmem:[%s3 + $0x110] sm:$0xff]
  %v661 = vld [vmem:[%s3 + $0x118] sm:$0xff]
  %v662 = vld [vmem:[%s3 + $0x120] sm:$0xff]
  %v663 = vld [vmem:[%s3 + $0x128] sm:$0xff]
  %v664 = vld [vmem:[%s3 + $0x130] sm:$0xff]
  %v665 = vld [vmem:[%s3 + $0x138] sm:$0xff]
  %v666 = vld [vmem:[%s3 + $0x140] sm:$0xff]
  %v667 = vld [vmem:[%s3 + $0x148] sm:$0xff]
  %v668 = vld [vmem:[%s3 + $0x150] sm:$0xff]
  %v669 = vld [vmem:[%s3 + $0x158] sm:$0xff]
  %v670 = vld [vmem:[%s3 + $0x160] sm:$0xff]
  %v671 = vld [vmem:[%s3 + $0x168] sm:$0xff]
  %v672 = vld [vmem:[%s3 + $0x170] sm:$0xff]
  %v673 = vld [vmem:[%s3 + $0x178] sm:$0xff]
  %v674 = vld [vmem:[%s3 + $0x180] sm:$0xff]
  %v675 = vld [vmem:[%s3 + $0x188] sm:$0xff]
  %v676 = vld [vmem:[%s3 + $0x190] sm:$0xff]
  %v677 = vld [vmem:[%s3 + $0x198] sm:$0xff]
  %v678 = vld [vmem:[%s3 + $0x1a0] sm:$0xff]
  %v679 = vld [vmem:[%s3 + $0x1a8] sm:$0xff]
  %v680 = vld [vmem:[%s3 + $0x1b0] sm:$0xff]
  %v681 = vld [vmem:[%s3 + $0x1b8] sm:$0xff]
  %v682 = vld [vmem:[%s3 + $0x1c0] sm:$0xff]
  %v683 = vld [vmem:[%s3 + $0x1c8] sm:$0xff]
  %v684 = vld [vmem:[%s3 + $0x1d0] sm:$0xff]
  %v685 = vld [vmem:[%s3 + $0x1d8] sm:$0xff]
  %v686 = vld [vmem:[%s3 + $0x1e0] sm:$0xff]
  %v687 = vld [vmem:[%s3 + $0x1e8] sm:$0xff]
  %v688 = vld [vmem:[%s3 + $0x1f0] sm:$0xff]
  %v689 = vld [vmem:[%s3 + $0x1f8] sm:$0xff]
  %v690 = vld [vmem:[%s3 + $0x200] sm:$0xff]
  %v691 = vld [vmem:[%s3 + $0x208] sm:$0xff]
  %v692 = vld [vmem:[%s3 + $0x210] sm:$0xff]
  %v693 = vld [vmem:[%s3 + $0x218] sm:$0xff]
  %v694 = vld [vmem:[%s3 + $0x220] sm:$0xff]
  %v695 = vld [vmem:[%s3 + $0x228] sm:$0xff]
  %v696 = vld [vmem:[%s3 + $0x230] sm:$0xff]
  %v697 = vld [vmem:[%s3 + $0x238] sm:$0xff]
  %v698 = vld [vmem:[#allocation2] sm:$0xfe]
  %v699 = vld [vmem:[#allocation2 + $0x8] sm:$0xfe]
  %v700 = vld [vmem:[#allocation2 + $0x30] sm:$0x1]
  %v701 = vld [vmem:[#allocation2 + $0x38] sm:$0x1]
  %s702 = scalar_lea.vmem %s3, 576
  %v703 = vld [vmem:[%s702] sm:$0xff]
  %v704 = vld [vmem:[%s702 + $0x8] sm:$0xff]
  %v705 = vld [vmem:[%s702 + $0x10] sm:$0xff]
  %v706 = vld [vmem:[%s702 + $0x18] sm:$0xff]
  %v707 = vld [vmem:[%s702 + $0x20] sm:$0xff]
  %v708 = vld [vmem:[%s702 + $0x28] sm:$0xff]
  %v709 = vld [vmem:[%s702 + $0x30] sm:$0xff]
  %v710 = vld [vmem:[%s702 + $0x38] sm:$0xff]
  %v711 = vld [vmem:[%s702 + $0x40] sm:$0xff]
  %v712 = vld [vmem:[%s702 + $0x48] sm:$0xff]
  %v713 = vld [vmem:[%s702 + $0x50] sm:$0xff]
  %v714 = vld [vmem:[%s702 + $0x58] sm:$0xff]
  %v715 = vld [vmem:[%s702 + $0x60] sm:$0xff]
  %v716 = vld [vmem:[%s702 + $0x68] sm:$0xff]
  %v717 = vld [vmem:[%s702 + $0x70] sm:$0xff]
  %v718 = vld [vmem:[%s702 + $0x78] sm:$0xff]
  %v719 = vld [vmem:[%s702 + $0x80] sm:$0xff]
  %v720 = vld [vmem:[%s702 + $0x88] sm:$0xff]
  %v721 = vld [vmem:[%s702 + $0x90] sm:$0xff]
  %v722 = vld [vmem:[%s702 + $0x98] sm:$0xff]
  %v723 = vld [vmem:[%s702 + $0xa0] sm:$0xff]
  %v724 = vld [vmem:[%s702 + $0xa8] sm:$0xff]
  %v725 = vld [vmem:[%s702 + $0xb0] sm:$0xff]
  %v726 = vld [vmem:[%s702 + $0xb8] sm:$0xff]
  %v727 = vld [vmem:[%s702 + $0xc0] sm:$0xff]
  %v728 = vld [vmem:[%s702 + $0xc8] sm:$0xff]
  %v729 = vld [vmem:[%s702 + $0xd0] sm:$0xff]
  %v730 = vld [vmem:[%s702 + $0xd8] sm:$0xff]
  %v731 = vld [vmem:[%s702 + $0xe0] sm:$0xff]
  %v732 = vld [vmem:[%s702 + $0xe8] sm:$0xff]
  %v733 = vld [vmem:[%s702 + $0xf0] sm:$0xff]
  %v734 = vld [vmem:[%s702 + $0xf8] sm:$0xff]
  %v735 = vld [vmem:[%s702 + $0x100] sm:$0xff]
  %v736 = vld [vmem:[%s702 + $0x108] sm:$0xff]
  %v737 = vld [vmem:[%s702 + $0x110] sm:$0xff]
  %v738 = vld [vmem:[%s702 + $0x118] sm:$0xff]
  %v739 = vld [vmem:[%s702 + $0x120] sm:$0xff]
  %v740 = vld [vmem:[%s702 + $0x128] sm:$0xff]
  %v741 = vld [vmem:[%s702 + $0x130] sm:$0xff]
  %v742 = vld [vmem:[%s702 + $0x138] sm:$0xff]
  %v743 = vld [vmem:[%s702 + $0x140] sm:$0xff]
  %v744 = vld [vmem:[%s702 + $0x148] sm:$0xff]
  %v745 = vld [vmem:[%s702 + $0x150] sm:$0xff]
  %v746 = vld [vmem:[%s702 + $0x158] sm:$0xff]
  %v747 = vld [vmem:[%s702 + $0x160] sm:$0xff]
  %v748 = vld [vmem:[%s702 + $0x168] sm:$0xff]
  %v749 = vld [vmem:[%s702 + $0x170] sm:$0xff]
  %v750 = vld [vmem:[%s702 + $0x178] sm:$0xff]
  %v751 = vld [vmem:[%s702 + $0x180] sm:$0xff]
  %v752 = vld [vmem:[%s702 + $0x188] sm:$0xff]
  %v753 = vld [vmem:[%s702 + $0x190] sm:$0xff]
  %v754 = vld [vmem:[%s702 + $0x198] sm:$0xff]
  %v755 = vld [vmem:[%s702 + $0x1a0] sm:$0xff]
  %v756 = vld [vmem:[%s702 + $0x1a8] sm:$0xff]
  %v757 = vld [vmem:[%s702 + $0x1b0] sm:$0xff]
  %v758 = vld [vmem:[%s702 + $0x1b8] sm:$0xff]
  %v759 = vld [vmem:[%s702 + $0x1c0] sm:$0xff]
  %v760 = vld [vmem:[%s702 + $0x1c8] sm:$0xff]
  %v761 = vld [vmem:[%s702 + $0x1d0] sm:$0xff]
  %v762 = vld [vmem:[%s702 + $0x1d8] sm:$0xff]
  %v763 = vld [vmem:[%s702 + $0x1e0] sm:$0xff]
  %v764 = vld [vmem:[%s702 + $0x1e8] sm:$0xff]
  %v765 = vld [vmem:[%s702 + $0x1f0] sm:$0xff]
  %v766 = vld [vmem:[%s702 + $0x1f8] sm:$0xff]
  %v767 = vld [vmem:[%s702 + $0x200] sm:$0xff]
  %v768 = vld [vmem:[%s702 + $0x208] sm:$0xff]
  %v769 = vld [vmem:[%s702 + $0x210] sm:$0xff]
  %v770 = vld [vmem:[%s702 + $0x218] sm:$0xff]
  %v771 = vld [vmem:[%s702 + $0x220] sm:$0xff]
  %v772 = vld [vmem:[%s702 + $0x228] sm:$0xff]
  %v773 = vld [vmem:[%s702 + $0x230] sm:$0xff]
  %v774 = vld [vmem:[%s702 + $0x238] sm:$0xff]
  %vm783 = vcmask 1046528
  %v784 = vrot.slane %v698, 1
  %v785 = vrot.slane %v622, 1
  %v786 = vsel %vm783, %v784, %v785
  %v787 = vrot.slane %v699, 1
  %v788 = vrot.slane %v623, 1
  %v789 = vsel %vm783, %v787, %v788
  %v790 = vrot.slane %v624, 1
  %v791 = vsel %vm783, %v785, %v790
  %v792 = vrot.slane %v625, 1
  %v793 = vsel %vm783, %v788, %v792
  %v794 = vrot.slane %v700, 1
  %v795 = vsel %vm783, %v790, %v794
  %v796 = vrot.slane %v701, 1
  %v797 = vsel %vm783, %v792, %v796
  %v801 = vsel %vm613, %v789, 0
  %v803 = vsel %vm613, %v793, 0
  %v805 = vsel %vm613, %v797, 0
  %807 = vmatpush.msra.mxu0 %v748
  %808 = vmatpush.msra.mxu0 %v745
  %809 = vmatpush.msra.mxu0 %v742
  %810 = vmatpush.msra.mxu0 %v739
  %811 = vmatpush.msra.mxu0 %v736
  %812 = vmatpush.msra.mxu0 %v733
  %813 = vmatpush.msra.mxu0 %v730
  %814 = vmatpush.msra.mxu0 %v727
  %815 = vmatpush.msra.mxu0 %v724
  %816 = vmatpush.msra.mxu0 %v721
  %817 = vmatpush.msra.mxu0 %v718
  %818 = vmatpush.msra.mxu0 %v715
  %819 = vmatpush.msra.mxu0 %v712
  %820 = vmatpush.msra.mxu0 %v709
  %821 = vmatpush.msra.mxu0 %v706
  %822 = vmatpush.msra.mxu0 %v703
  %823 = vmatmul.f32.gmra.mxu0 %v786
  %v824 = vpop.f32.mrf.mxu0
  %v825 = vadd.f32 0.0, %v824
  %826 = vmatmul.f32.gmra.mxu0 %v791
  %v827 = vpop.f32.mrf.mxu0
  %v828 = vadd.f32 0.0, %v827
  %829 = vmatmul.f32.gmra.mxu0 %v795
  %v830 = vpop.f32.mrf.mxu0
  %v831 = vadd.f32 0.0, %v830
  %832 = vdwg.mxu0
  %833 = vmatpush.msra.mxu0 0.0
  %834 = vmatpush.msra.mxu0 0.0
  %835 = vmatpush.msra.mxu0 0.0
  %836 = vmatpush.msra.mxu0 0.0
  %837 = vmatpush.msra.mxu0 0.0
  %838 = vmatpush.msra.mxu0 0.0
  %839 = vmatpush.msra.mxu0 0.0
  %840 = vmatpush.msra.mxu0 0.0
  %841 = vmatpush.msra.mxu0 %v772
  %842 = vmatpush.msra.mxu0 %v769
  %843 = vmatpush.msra.mxu0 %v766
  %844 = vmatpush.msra.mxu0 %v763
  %845 = vmatpush.msra.mxu0 %v760
  %846 = vmatpush.msra.mxu0 %v757
  %847 = vmatpush.msra.mxu0 %v754
  %848 = vmatpush.msra.mxu0 %v751
  %849 = vmatmul.f32.gmra.mxu0 %v801
  %v850 = vpop.f32.mrf.mxu0
  %v851 = vadd.f32 %v825, %v850
  %852 = vmatmul.f32.gmra.mxu0 %v803
  %v853 = vpop.f32.mrf.mxu0
  %v854 = vadd.f32 %v828, %v853
  %855 = vmatmul.f32.gmra.mxu0 %v805
  %v856 = vpop.f32.mrf.mxu0
  %v857 = vadd.f32 %v831, %v856
  %858 = vdwg.mxu0
  %859 = vmatpush.msra.mxu0 %v749
  %860 = vmatpush.msra.mxu0 %v746
  %861 = vmatpush.msra.mxu0 %v743
  %862 = vmatpush.msra.mxu0 %v740
  %863 = vmatpush.msra.mxu0 %v737
  %864 = vmatpush.msra.mxu0 %v734
  %865 = vmatpush.msra.mxu0 %v731
  %866 = vmatpush.msra.mxu0 %v728
  %867 = vmatpush.msra.mxu0 %v725
  %868 = vmatpush.msra.mxu0 %v722
  %869 = vmatpush.msra.mxu0 %v719
  %870 = vmatpush.msra.mxu0 %v716
  %871 = vmatpush.msra.mxu0 %v713
  %872 = vmatpush.msra.mxu0 %v710
  %873 = vmatpush.msra.mxu0 %v707
  %874 = vmatpush.msra.mxu0 %v704
  %875 = vmatmul.f32.gmra.mxu0 %v786
  %v876 = vpop.f32.mrf.mxu0
  %v877 = vadd.f32 0.0, %v876
  %878 = vmatmul.f32.gmra.mxu0 %v791
  %v879 = vpop.f32.mrf.mxu0
  %v880 = vadd.f32 0.0, %v879
  %881 = vmatmul.f32.gmra.mxu0 %v795
  %v882 = vpop.f32.mrf.mxu0
  %v883 = vadd.f32 0.0, %v882
  %884 = vdwg.mxu0
  %885 = vmatpush.msra.mxu0 0.0
  %886 = vmatpush.msra.mxu0 0.0
  %887 = vmatpush.msra.mxu0 0.0
  %888 = vmatpush.msra.mxu0 0.0
  %889 = vmatpush.msra.mxu0 0.0
  %890 = vmatpush.msra.mxu0 0.0
  %891 = vmatpush.msra.mxu0 0.0
  %892 = vmatpush.msra.mxu0 0.0
  %893 = vmatpush.msra.mxu0 %v773
  %894 = vmatpush.msra.mxu0 %v770
  %895 = vmatpush.msra.mxu0 %v767
  %896 = vmatpush.msra.mxu0 %v764
  %897 = vmatpush.msra.mxu0 %v761
  %898 = vmatpush.msra.mxu0 %v758
  %899 = vmatpush.msra.mxu0 %v755
  %900 = vmatpush.msra.mxu0 %v752
  %901 = vmatmul.f32.gmra.mxu0 %v801
  %v902 = vpop.f32.mrf.mxu0
  %v903 = vadd.f32 %v877, %v902
  %904 = vmatmul.f32.gmra.mxu0 %v803
  %v905 = vpop.f32.mrf.mxu0
  %v906 = vadd.f32 %v880, %v905
  %907 = vmatmul.f32.gmra.mxu0 %v805
  %v908 = vpop.f32.mrf.mxu0
  %v909 = vadd.f32 %v883, %v908
  %910 = vdwg.mxu0
  %911 = vmatpush.msra.mxu0 %v750
  %912 = vmatpush.msra.mxu0 %v747
  %913 = vmatpush.msra.mxu0 %v744
  %914 = vmatpush.msra.mxu0 %v741
  %915 = vmatpush.msra.mxu0 %v738
  %916 = vmatpush.msra.mxu0 %v735
  %917 = vmatpush.msra.mxu0 %v732
  %918 = vmatpush.msra.mxu0 %v729
  %919 = vmatpush.msra.mxu0 %v726
  %920 = vmatpush.msra.mxu0 %v723
  %921 = vmatpush.msra.mxu0 %v720
  %922 = vmatpush.msra.mxu0 %v717
  %923 = vmatpush.msra.mxu0 %v714
  %924 = vmatpush.msra.mxu0 %v711
  %925 = vmatpush.msra.mxu0 %v708
  %926 = vmatpush.msra.mxu0 %v705
  %927 = vmatmul.f32.gmra.mxu0 %v786
  %v928 = vpop.f32.mrf.mxu0
  %v929 = vadd.f32 0.0, %v928
  %930 = vmatmul.f32.gmra.mxu0 %v791
  %v931 = vpop.f32.mrf.mxu0
  %v932 = vadd.f32 0.0, %v931
  %933 = vmatmul.f32.gmra.mxu0 %v795
  %v934 = vpop.f32.mrf.mxu0
  %v935 = vadd.f32 0.0, %v934
  %936 = vdwg.mxu0
  %937 = vmatpush.msra.mxu0 0.0
  %938 = vmatpush.msra.mxu0 0.0
  %939 = vmatpush.msra.mxu0 0.0
  %940 = vmatpush.msra.mxu0 0.0
  %941 = vmatpush.msra.mxu0 0.0
  %942 = vmatpush.msra.mxu0 0.0
  %943 = vmatpush.msra.mxu0 0.0
  %944 = vmatpush.msra.mxu0 0.0
  %945 = vmatpush.msra.mxu0 %v774
  %946 = vmatpush.msra.mxu0 %v771
  %947 = vmatpush.msra.mxu0 %v768
  %948 = vmatpush.msra.mxu0 %v765
  %949 = vmatpush.msra.mxu0 %v762
  %950 = vmatpush.msra.mxu0 %v759
  %951 = vmatpush.msra.mxu0 %v756
  %952 = vmatpush.msra.mxu0 %v753
  %953 = vmatmul.f32.gmra.mxu0 %v801
  %v954 = vpop.f32.mrf.mxu0
  %v955 = vadd.f32 %v929, %v954
  %956 = vmatmul.f32.gmra.mxu0 %v803
  %v957 = vpop.f32.mrf.mxu0
  %v958 = vadd.f32 %v932, %v957
  %959 = vmatmul.f32.gmra.mxu0 %v805
  %v960 = vpop.f32.mrf.mxu0
  %v961 = vadd.f32 %v935, %v960
  %962 = vdwg.mxu0
  %v964 = vsel %vm613, %v621, 0
  %v966 = vsel %vm613, %v623, 0
  %v968 = vsel %vm613, %v625, 0
  %970 = vmatpush.msra.mxu0 %v671
  %971 = vmatpush.msra.mxu0 %v668
  %972 = vmatpush.msra.mxu0 %v665
  %973 = vmatpush.msra.mxu0 %v662
  %974 = vmatpush.msra.mxu0 %v659
  %975 = vmatpush.msra.mxu0 %v656
  %976 = vmatpush.msra.mxu0 %v653
  %977 = vmatpush.msra.mxu0 %v650
  %978 = vmatpush.msra.mxu0 %v647
  %979 = vmatpush.msra.mxu0 %v644
  %980 = vmatpush.msra.mxu0 %v641
  %981 = vmatpush.msra.mxu0 %v638
  %982 = vmatpush.msra.mxu0 %v635
  %983 = vmatpush.msra.mxu0 %v632
  %984 = vmatpush.msra.mxu0 %v629
  %985 = vmatpush.msra.mxu0 %v626
  %986 = vmatmul.f32.gmra.mxu0 %v620
  %v987 = vpop.f32.mrf.mxu0
  %v988 = vadd.f32 %v851, %v987
  %989 = vmatmul.f32.gmra.mxu0 %v622
  %v990 = vpop.f32.mrf.mxu0
  %v991 = vadd.f32 %v854, %v990
  %992 = vmatmul.f32.gmra.mxu0 %v624
  %v993 = vpop.f32.mrf.mxu0
  %v994 = vadd.f32 %v857, %v993
  %995 = vdwg.mxu0
  %996 = vmatpush.msra.mxu0 0.0
  %997 = vmatpush.msra.mxu0 0.0
  %998 = vmatpush.msra.mxu0 0.0
  %999 = vmatpush.msra.mxu0 0.0
  %1000 = vmatpush.msra.mxu0 0.0
  %1001 = vmatpush.msra.mxu0 0.0
  %1002 = vmatpush.msra.mxu0 0.0
  %1003 = vmatpush.msra.mxu0 0.0
  %1004 = vmatpush.msra.mxu0 %v695
  %1005 = vmatpush.msra.mxu0 %v692
  %1006 = vmatpush.msra.mxu0 %v689
  %1007 = vmatpush.msra.mxu0 %v686
  %1008 = vmatpush.msra.mxu0 %v683
  %1009 = vmatpush.msra.mxu0 %v680
  %1010 = vmatpush.msra.mxu0 %v677
  %1011 = vmatpush.msra.mxu0 %v674
  %1012 = vmatmul.f32.gmra.mxu0 %v964
  %v1013 = vpop.f32.mrf.mxu0
  %v1014 = vadd.f32 %v988, %v1013
  %1015 = vmatmul.f32.gmra.mxu0 %v966
  %v1016 = vpop.f32.mrf.mxu0
  %v1017 = vadd.f32 %v991, %v1016
  %1018 = vmatmul.f32.gmra.mxu0 %v968
  %v1019 = vpop.f32.mrf.mxu0
  %v1020 = vadd.f32 %v994, %v1019
  %1021 = vdwg.mxu0
  %1022 = vmatpush.msra.mxu0 %v672
  %1023 = vmatpush.msra.mxu0 %v669
  %1024 = vmatpush.msra.mxu0 %v666
  %1025 = vmatpush.msra.mxu0 %v663
  %1026 = vmatpush.msra.mxu0 %v660
  %1027 = vmatpush.msra.mxu0 %v657
  %1028 = vmatpush.msra.mxu0 %v654
  %1029 = vmatpush.msra.mxu0 %v651
  %1030 = vmatpush.msra.mxu0 %v648
  %1031 = vmatpush.msra.mxu0 %v645
  %1032 = vmatpush.msra.mxu0 %v642
  %1033 = vmatpush.msra.mxu0 %v639
  %1034 = vmatpush.msra.mxu0 %v636
  %1035 = vmatpush.msra.mxu0 %v633
  %1036 = vmatpush.msra.mxu0 %v630
  %1037 = vmatpush.msra.mxu0 %v627
  %1038 = vmatmul.f32.gmra.mxu0 %v620
  %v1039 = vpop.f32.mrf.mxu0
  %v1040 = vadd.f32 %v903, %v1039
  %1041 = vmatmul.f32.gmra.mxu0 %v622
  %v1042 = vpop.f32.mrf.mxu0
  %v1043 = vadd.f32 %v906, %v1042
  %1044 = vmatmul.f32.gmra.mxu0 %v624
  %v1045 = vpop.f32.mrf.mxu0
  %v1046 = vadd.f32 %v909, %v1045
  %1047 = vdwg.mxu0
  %1048 = vmatpush.msra.mxu0 0.0
  %1049 = vmatpush.msra.mxu0 0.0
  %1050 = vmatpush.msra.mxu0 0.0
  %1051 = vmatpush.msra.mxu0 0.0
  %1052 = vmatpush.msra.mxu0 0.0
  %1053 = vmatpush.msra.mxu0 0.0
  %1054 = vmatpush.msra.mxu0 0.0
  %1055 = vmatpush.msra.mxu0 0.0
  %1056 = vmatpush.msra.mxu0 %v696
  %1057 = vmatpush.msra.mxu0 %v693
  %1058 = vmatpush.msra.mxu0 %v690
  %1059 = vmatpush.msra.mxu0 %v687
  %1060 = vmatpush.msra.mxu0 %v684
  %1061 = vmatpush.msra.mxu0 %v681
  %1062 = vmatpush.msra.mxu0 %v678
  %1063 = vmatpush.msra.mxu0 %v675
  %1064 = vmatmul.f32.gmra.mxu0 %v964
  %v1065 = vpop.f32.mrf.mxu0
  %v1066 = vadd.f32 %v1040, %v1065
  %1067 = vmatmul.f32.gmra.mxu0 %v966
  %v1068 = vpop.f32.mrf.mxu0
  %v1069 = vadd.f32 %v1043, %v1068
  %1070 = vmatmul.f32.gmra.mxu0 %v968
  %v1071 = vpop.f32.mrf.mxu0
  %v1072 = vadd.f32 %v1046, %v1071
  %1073 = vdwg.mxu0
  %1074 = vmatpush.msra.mxu0 %v673
  %1075 = vmatpush.msra.mxu0 %v670
  %1076 = vmatpush.msra.mxu0 %v667
  %1077 = vmatpush.msra.mxu0 %v664
  %1078 = vmatpush.msra.mxu0 %v661
  %1079 = vmatpush.msra.mxu0 %v658
  %1080 = vmatpush.msra.mxu0 %v655
  %1081 = vmatpush.msra.mxu0 %v652
  %1082 = vmatpush.msra.mxu0 %v649
  %1083 = vmatpush.msra.mxu0 %v646
  %1084 = vmatpush.msra.mxu0 %v643
  %1085 = vmatpush.msra.mxu0 %v640
  %1086 = vmatpush.msra.mxu0 %v637
  %1087 = vmatpush.msra.mxu0 %v634
  %1088 = vmatpush.msra.mxu0 %v631
  %1089 = vmatpush.msra.mxu0 %v628
  %1090 = vmatmul.f32.gmra.mxu0 %v620
  %v1091 = vpop.f32.mrf.mxu0
  %v1092 = vadd.f32 %v955, %v1091
  %1093 = vmatmul.f32.gmra.mxu0 %v622
  %v1094 = vpop.f32.mrf.mxu0
  %v1095 = vadd.f32 %v958, %v1094
  %1096 = vmatmul.f32.gmra.mxu0 %v624
  %v1097 = vpop.f32.mrf.mxu0
  %v1098 = vadd.f32 %v961, %v1097
  %1099 = vdwg.mxu0
  %1100 = vmatpush.msra.mxu0 0.0
  %1101 = vmatpush.msra.mxu0 0.0
  %1102 = vmatpush.msra.mxu0 0.0
  %1103 = vmatpush.msra.mxu0 0.0
  %1104 = vmatpush.msra.mxu0 0.0
  %1105 = vmatpush.msra.mxu0 0.0
  %1106 = vmatpush.msra.mxu0 0.0
  %1107 = vmatpush.msra.mxu0 0.0
  %1108 = vmatpush.msra.mxu0 %v697
  %1109 = vmatpush.msra.mxu0 %v694
  %1110 = vmatpush.msra.mxu0 %v691
  %1111 = vmatpush.msra.mxu0 %v688
  %1112 = vmatpush.msra.mxu0 %v685
  %1113 = vmatpush.msra.mxu0 %v682
  %1114 = vmatpush.msra.mxu0 %v679
  %1115 = vmatpush.msra.mxu0 %v676
  %1116 = vmatmul.f32.gmra.mxu0 %v964
  %v1117 = vpop.f32.mrf.mxu0
  %v1118 = vadd.f32 %v1092, %v1117
  %1119 = vmatmul.f32.gmra.mxu0 %v966
  %v1120 = vpop.f32.mrf.mxu0
  %v1121 = vadd.f32 %v1095, %v1120
  %1122 = vmatmul.f32.gmra.mxu0 %v968
  %v1123 = vpop.f32.mrf.mxu0
  %v1124 = vadd.f32 %v1098, %v1123
  %1125 = vdwg.mxu0
  %v1126 = vld [vmem:[#allocation2] sm:$0xfc]
  %v1127 = vld [vmem:[#allocation2 + $0x8] sm:$0xfc]
  %v1128 = vld [vmem:[#allocation2 + $0x30] sm:$0x3]
  %v1129 = vld [vmem:[#allocation2 + $0x38] sm:$0x3]
  %s1130 = scalar_lea.vmem %s3, 1152
  %v1131 = vld [vmem:[%s1130] sm:$0xff]
  %v1132 = vld [vmem:[%s1130 + $0x8] sm:$0xff]
  %v1133 = vld [vmem:[%s1130 + $0x10] sm:$0xff]
  %v1134 = vld [vmem:[%s1130 + $0x18] sm:$0xff]
  %v1135 = vld [vmem:[%s1130 + $0x20] sm:$0xff]
  %v1136 = vld [vmem:[%s1130 + $0x28] sm:$0xff]
  %v1137 = vld [vmem:[%s1130 + $0x30] sm:$0xff]
  %v1138 = vld [vmem:[%s1130 + $0x38] sm:$0xff]
  %v1139 = vld [vmem:[%s1130 + $0x40] sm:$0xff]
  %v1140 = vld [vmem:[%s1130 + $0x48] sm:$0xff]
  %v1141 = vld [vmem:[%s1130 + $0x50] sm:$0xff]
  %v1142 = vld [vmem:[%s1130 + $0x58] sm:$0xff]
  %v1143 = vld [vmem:[%s1130 + $0x60] sm:$0xff]
  %v1144 = vld [vmem:[%s1130 + $0x68] sm:$0xff]
  %v1145 = vld [vmem:[%s1130 + $0x70] sm:$0xff]
  %v1146 = vld [vmem:[%s1130 + $0x78] sm:$0xff]
  %v1147 = vld [vmem:[%s1130 + $0x80] sm:$0xff]
  %v1148 = vld [vmem:[%s1130 + $0x88] sm:$0xff]
  %v1149 = vld [vmem:[%s1130 + $0x90] sm:$0xff]
  %v1150 = vld [vmem:[%s1130 + $0x98] sm:$0xff]
  %v1151 = vld [vmem:[%s1130 + $0xa0] sm:$0xff]
  %v1152 = vld [vmem:[%s1130 + $0xa8] sm:$0xff]
  %v1153 = vld [vmem:[%s1130 + $0xb0] sm:$0xff]
  %v1154 = vld [vmem:[%s1130 + $0xb8] sm:$0xff]
  %v1155 = vld [vmem:[%s1130 + $0xc0] sm:$0xff]
  %v1156 = vld [vmem:[%s1130 + $0xc8] sm:$0xff]
  %v1157 = vld [vmem:[%s1130 + $0xd0] sm:$0xff]
  %v1158 = vld [vmem:[%s1130 + $0xd8] sm:$0xff]
  %v1159 = vld [vmem:[%s1130 + $0xe0] sm:$0xff]
  %v1160 = vld [vmem:[%s1130 + $0xe8] sm:$0xff]
  %v1161 = vld [vmem:[%s1130 + $0xf0] sm:$0xff]
  %v1162 = vld [vmem:[%s1130 + $0xf8] sm:$0xff]
  %v1163 = vld [vmem:[%s1130 + $0x100] sm:$0xff]
  %v1164 = vld [vmem:[%s1130 + $0x108] sm:$0xff]
  %v1165 = vld [vmem:[%s1130 + $0x110] sm:$0xff]
  %v1166 = vld [vmem:[%s1130 + $0x118] sm:$0xff]
  %v1167 = vld [vmem:[%s1130 + $0x120] sm:$0xff]
  %v1168 = vld [vmem:[%s1130 + $0x128] sm:$0xff]
  %v1169 = vld [vmem:[%s1130 + $0x130] sm:$0xff]
  %v1170 = vld [vmem:[%s1130 + $0x138] sm:$0xff]
  %v1171 = vld [vmem:[%s1130 + $0x140] sm:$0xff]
  %v1172 = vld [vmem:[%s1130 + $0x148] sm:$0xff]
  %v1173 = vld [vmem:[%s1130 + $0x150] sm:$0xff]
  %v1174 = vld [vmem:[%s1130 + $0x158] sm:$0xff]
  %v1175 = vld [vmem:[%s1130 + $0x160] sm:$0xff]
  %v1176 = vld [vmem:[%s1130 + $0x168] sm:$0xff]
  %v1177 = vld [vmem:[%s1130 + $0x170] sm:$0xff]
  %v1178 = vld [vmem:[%s1130 + $0x178] sm:$0xff]
  %v1179 = vld [vmem:[%s1130 + $0x180] sm:$0xff]
  %v1180 = vld [vmem:[%s1130 + $0x188] sm:$0xff]
  %v1181 = vld [vmem:[%s1130 + $0x190] sm:$0xff]
  %v1182 = vld [vmem:[%s1130 + $0x198] sm:$0xff]
  %v1183 = vld [vmem:[%s1130 + $0x1a0] sm:$0xff]
  %v1184 = vld [vmem:[%s1130 + $0x1a8] sm:$0xff]
  %v1185 = vld [vmem:[%s1130 + $0x1b0] sm:$0xff]
  %v1186 = vld [vmem:[%s1130 + $0x1b8] sm:$0xff]
  %v1187 = vld [vmem:[%s1130 + $0x1c0] sm:$0xff]
  %v1188 = vld [vmem:[%s1130 + $0x1c8] sm:$0xff]
  %v1189 = vld [vmem:[%s1130 + $0x1d0] sm:$0xff]
  %v1190 = vld [vmem:[%s1130 + $0x1d8] sm:$0xff]
  %v1191 = vld [vmem:[%s1130 + $0x1e0] sm:$0xff]
  %v1192 = vld [vmem:[%s1130 + $0x1e8] sm:$0xff]
  %v1193 = vld [vmem:[%s1130 + $0x1f0] sm:$0xff]
  %v1194 = vld [vmem:[%s1130 + $0x1f8] sm:$0xff]
  %v1195 = vld [vmem:[%s1130 + $0x200] sm:$0xff]
  %v1196 = vld [vmem:[%s1130 + $0x208] sm:$0xff]
  %v1197 = vld [vmem:[%s1130 + $0x210] sm:$0xff]
  %v1198 = vld [vmem:[%s1130 + $0x218] sm:$0xff]
  %v1199 = vld [vmem:[%s1130 + $0x220] sm:$0xff]
  %v1200 = vld [vmem:[%s1130 + $0x228] sm:$0xff]
  %v1201 = vld [vmem:[%s1130 + $0x230] sm:$0xff]
  %v1202 = vld [vmem:[%s1130 + $0x238] sm:$0xff]
  %vm1207 = vcmask 1045504
  %v1208 = vrot.slane %v1126, 2
  %v1209 = vrot.slane %v622, 2
  %v1210 = vsel %vm1207, %v1208, %v1209
  %v1211 = vrot.slane %v1127, 2
  %v1212 = vrot.slane %v623, 2
  %v1213 = vsel %vm1207, %v1211, %v1212
  %v1214 = vrot.slane %v624, 2
  %v1215 = vsel %vm1207, %v1209, %v1214
  %v1216 = vrot.slane %v625, 2
  %v1217 = vsel %vm1207, %v1212, %v1216
  %v1218 = vrot.slane %v1128, 2
  %v1219 = vsel %vm1207, %v1214, %v1218
  %v1220 = vrot.slane %v1129, 2
  %v1221 = vsel %vm1207, %v1216, %v1220
  %v1225 = vsel %vm613, %v1213, 0
  %v1227 = vsel %vm613, %v1217, 0
  %v1229 = vsel %vm613, %v1221, 0
  %1231 = vmatpush.msra.mxu0 %v1176
  %1232 = vmatpush.msra.mxu0 %v1173
  %1233 = vmatpush.msra.mxu0 %v1170
  %1234 = vmatpush.msra.mxu0 %v1167
  %1235 = vmatpush.msra.mxu0 %v1164
  %1236 = vmatpush.msra.mxu0 %v1161
  %1237 = vmatpush.msra.mxu0 %v1158
  %1238 = vmatpush.msra.mxu0 %v1155
  %1239 = vmatpush.msra.mxu0 %v1152
  %1240 = vmatpush.msra.mxu0 %v1149
  %1241 = vmatpush.msra.mxu0 %v1146
  %1242 = vmatpush.msra.mxu0 %v1143
  %1243 = vmatpush.msra.mxu0 %v1140
  %1244 = vmatpush.msra.mxu0 %v1137
  %1245 = vmatpush.msra.mxu0 %v1134
  %1246 = vmatpush.msra.mxu0 %v1131
  %1247 = vmatmul.f32.gmra.mxu0 %v1210
  %v1248 = vpop.f32.mrf.mxu0
  %v1249 = vadd.f32 0.0, %v1248
  %1250 = vmatmul.f32.gmra.mxu0 %v1215
  %v1251 = vpop.f32.mrf.mxu0
  %v1252 = vadd.f32 0.0, %v1251
  %1253 = vmatmul.f32.gmra.mxu0 %v1219
  %v1254 = vpop.f32.mrf.mxu0
  %v1255 = vadd.f32 0.0, %v1254
  %1256 = vdwg.mxu0
  %1257 = vmatpush.msra.mxu0 0.0
  %1258 = vmatpush.msra.mxu0 0.0
  %1259 = vmatpush.msra.mxu0 0.0
  %1260 = vmatpush.msra.mxu0 0.0
  %1261 = vmatpush.msra.mxu0 0.0
  %1262 = vmatpush.msra.mxu0 0.0
  %1263 = vmatpush.msra.mxu0 0.0
  %1264 = vmatpush.msra.mxu0 0.0
  %1265 = vmatpush.msra.mxu0 %v1200
  %1266 = vmatpush.msra.mxu0 %v1197
  %1267 = vmatpush.msra.mxu0 %v1194
  %1268 = vmatpush.msra.mxu0 %v1191
  %1269 = vmatpush.msra.mxu0 %v1188
  %1270 = vmatpush.msra.mxu0 %v1185
  %1271 = vmatpush.msra.mxu0 %v1182
  %1272 = vmatpush.msra.mxu0 %v1179
  %1273 = vmatmul.f32.gmra.mxu0 %v1225
  %v1274 = vpop.f32.mrf.mxu0
  %v1275 = vadd.f32 %v1249, %v1274
  %1276 = vmatmul.f32.gmra.mxu0 %v1227
  %v1277 = vpop.f32.mrf.mxu0
  %v1278 = vadd.f32 %v1252, %v1277
  %1279 = vmatmul.f32.gmra.mxu0 %v1229
  %v1280 = vpop.f32.mrf.mxu0
  %v1281 = vadd.f32 %v1255, %v1280
  %1282 = vdwg.mxu0
  %1283 = vmatpush.msra.mxu0 %v1177
  %1284 = vmatpush.msra.mxu0 %v1174
  %1285 = vmatpush.msra.mxu0 %v1171
  %1286 = vmatpush.msra.mxu0 %v1168
  %1287 = vmatpush.msra.mxu0 %v1165
  %1288 = vmatpush.msra.mxu0 %v1162
  %1289 = vmatpush.msra.mxu0 %v1159
  %1290 = vmatpush.msra.mxu0 %v1156
  %1291 = vmatpush.msra.mxu0 %v1153
  %1292 = vmatpush.msra.mxu0 %v1150
  %1293 = vmatpush.msra.mxu0 %v1147
  %1294 = vmatpush.msra.mxu0 %v1144
  %1295 = vmatpush.msra.mxu0 %v1141
  %1296 = vmatpush.msra.mxu0 %v1138
  %1297 = vmatpush.msra.mxu0 %v1135
  %1298 = vmatpush.msra.mxu0 %v1132
  %1299 = vmatmul.f32.gmra.mxu0 %v1210
  %v1300 = vpop.f32.mrf.mxu0
  %v1301 = vadd.f32 0.0, %v1300
  %1302 = vmatmul.f32.gmra.mxu0 %v1215
  %v1303 = vpop.f32.mrf.mxu0
  %v1304 = vadd.f32 0.0, %v1303
  %1305 = vmatmul.f32.gmra.mxu0 %v1219
  %v1306 = vpop.f32.mrf.mxu0
  %v1307 = vadd.f32 0.0, %v1306
  %1308 = vdwg.mxu0
  %1309 = vmatpush.msra.mxu0 0.0
  %1310 = vmatpush.msra.mxu0 0.0
  %1311 = vmatpush.msra.mxu0 0.0
  %1312 = vmatpush.msra.mxu0 0.0
  %1313 = vmatpush.msra.mxu0 0.0
  %1314 = vmatpush.msra.mxu0 0.0
  %1315 = vmatpush.msra.mxu0 0.0
  %1316 = vmatpush.msra.mxu0 0.0
  %1317 = vmatpush.msra.mxu0 %v1201
  %1318 = vmatpush.msra.mxu0 %v1198
  %1319 = vmatpush.msra.mxu0 %v1195
  %1320 = vmatpush.msra.mxu0 %v1192
  %1321 = vmatpush.msra.mxu0 %v1189
  %1322 = vmatpush.msra.mxu0 %v1186
  %1323 = vmatpush.msra.mxu0 %v1183
  %1324 = vmatpush.msra.mxu0 %v1180
  %1325 = vmatmul.f32.gmra.mxu0 %v1225
  %v1326 = vpop.f32.mrf.mxu0
  %v1327 = vadd.f32 %v1301, %v1326
  %1328 = vmatmul.f32.gmra.mxu0 %v1227
  %v1329 = vpop.f32.mrf.mxu0
  %v1330 = vadd.f32 %v1304, %v1329
  %1331 = vmatmul.f32.gmra.mxu0 %v1229
  %v1332 = vpop.f32.mrf.mxu0
  %v1333 = vadd.f32 %v1307, %v1332
  %1334 = vdwg.mxu0
  %1335 = vmatpush.msra.mxu0 %v1178
  %1336 = vmatpush.msra.mxu0 %v1175
  %1337 = vmatpush.msra.mxu0 %v1172
  %1338 = vmatpush.msra.mxu0 %v1169
  %1339 = vmatpush.msra.mxu0 %v1166
  %1340 = vmatpush.msra.mxu0 %v1163
  %1341 = vmatpush.msra.mxu0 %v1160
  %1342 = vmatpush.msra.mxu0 %v1157
  %1343 = vmatpush.msra.mxu0 %v1154
  %1344 = vmatpush.msra.mxu0 %v1151
  %1345 = vmatpush.msra.mxu0 %v1148
  %1346 = vmatpush.msra.mxu0 %v1145
  %1347 = vmatpush.msra.mxu0 %v1142
  %1348 = vmatpush.msra.mxu0 %v1139
  %1349 = vmatpush.msra.mxu0 %v1136
  %1350 = vmatpush.msra.mxu0 %v1133
  %1351 = vmatmul.f32.gmra.mxu0 %v1210
  %v1352 = vpop.f32.mrf.mxu0
  %v1353 = vadd.f32 0.0, %v1352
  %1354 = vmatmul.f32.gmra.mxu0 %v1215
  %v1355 = vpop.f32.mrf.mxu0
  %v1356 = vadd.f32 0.0, %v1355
  %1357 = vmatmul.f32.gmra.mxu0 %v1219
  %v1358 = vpop.f32.mrf.mxu0
  %v1359 = vadd.f32 0.0, %v1358
  %1360 = vdwg.mxu0
  %1361 = vmatpush.msra.mxu0 0.0
  %1362 = vmatpush.msra.mxu0 0.0
  %1363 = vmatpush.msra.mxu0 0.0
  %1364 = vmatpush.msra.mxu0 0.0
  %1365 = vmatpush.msra.mxu0 0.0
  %1366 = vmatpush.msra.mxu0 0.0
  %1367 = vmatpush.msra.mxu0 0.0
  %1368 = vmatpush.msra.mxu0 0.0
  %1369 = vmatpush.msra.mxu0 %v1202
  %1370 = vmatpush.msra.mxu0 %v1199
  %1371 = vmatpush.msra.mxu0 %v1196
  %1372 = vmatpush.msra.mxu0 %v1193
  %1373 = vmatpush.msra.mxu0 %v1190
  %1374 = vmatpush.msra.mxu0 %v1187
  %1375 = vmatpush.msra.mxu0 %v1184
  %1376 = vmatpush.msra.mxu0 %v1181
  %1377 = vmatmul.f32.gmra.mxu0 %v1225
  %v1378 = vpop.f32.mrf.mxu0
  %v1379 = vadd.f32 %v1353, %v1378
  %1380 = vmatmul.f32.gmra.mxu0 %v1227
  %v1381 = vpop.f32.mrf.mxu0
  %v1382 = vadd.f32 %v1356, %v1381
  %1383 = vmatmul.f32.gmra.mxu0 %v1229
  %v1384 = vpop.f32.mrf.mxu0
  %v1385 = vadd.f32 %v1359, %v1384
  %1386 = vdwg.mxu0
  %v1387 = vadd.f32 %v1014, %v1275
  %v1388 = vadd.f32 %v1066, %v1327
  %v1389 = vadd.f32 %v1118, %v1379
  %v1390 = vadd.f32 %v1017, %v1278
  %v1391 = vadd.f32 %v1069, %v1330
  %v1392 = vadd.f32 %v1121, %v1382
  %v1393 = vadd.f32 %v1020, %v1281
  %v1394 = vadd.f32 %v1072, %v1333
  %v1395 = vadd.f32 %v1124, %v1385
  %v1397 = vperm.slane %v97, 0
  %v1398 = vperm.slane %v97, 1
  %v1399 = vperm.slane %v97, 2
  %v1403 = vadd.f32 %v1387, %v1397
  %v1404 = vadd.f32 %v1388, %v1398
  %v1405 = vadd.f32 %v1389, %v1399
  %v1406 = vadd.f32 %v1390, %v1397
  %v1407 = vadd.f32 %v1391, %v1398
  %v1408 = vadd.f32 %v1392, %v1399
  %v1409 = vadd.f32 %v1393, %v1397
  %v1410 = vadd.f32 %v1394, %v1398
  %v1411 = vadd.f32 %v1395, %v1399
  %v1412 = vmax.f32 %v1403, 0.0
  %v1413 = vmax.f32 %v1404, 0.0
  %v1414 = vmax.f32 %v1405, 0.0
  %v1415 = vmax.f32 %v1406, 0.0
  %v1416 = vmax.f32 %v1407, 0.0
  %v1417 = vmax.f32 %v1408, 0.0
  %v1418 = vmax.f32 %v1409, 0.0
  %v1419 = vmax.f32 %v1410, 0.0
  %v1420 = vmax.f32 %v1411, 0.0
  %vm1421 = vcmp.lt.s32.totalorder %v575, 384
  %vm1422 = vmand %vm576, %vm1421
  %1423 = vst.msk [vmem:[#allocation3] ss:$8 sm:$0x7] %vm1422, 0.0
  %1424 = vst.msk [vmem:[#allocation3] ss:$8 sm:$0x0] %vm1422, 0.0
  %s1425 = scalar_lea.vmem [#allocation3], 73
  %1426 = vst.msk [vmem:[%s1425] ss:$8 sm:$0x7] %vm1422, 0.0
  %1427 = vst.msk [vmem:[%s1425] ss:$8 sm:$0x0] %vm1422, 0.0
  %v1437 = vrot.slane %v1412, 7
  %v1438 = vrot.slane %v1413, 7
  %v1439 = vrot.slane %v1414, 7
  %v1440 = vrot.slane %v1415, 7
  %v1441 = vsel %vm590, %v1437, %v1440
  %v1442 = vrot.slane %v1416, 7
  %v1443 = vsel %vm590, %v1438, %v1442
  %v1444 = vrot.slane %v1417, 7
  %v1445 = vsel %vm590, %v1439, %v1444
  %v1446 = vrot.slane %v1418, 7
  %v1447 = vsel %vm590, %v1440, %v1446
  %v1448 = vrot.slane %v1419, 7
  %v1449 = vsel %vm590, %v1442, %v1448
  %v1450 = vrot.slane %v1420, 7
  %v1451 = vsel %vm590, %v1444, %v1450
  %1464 = vst [vmem:[#allocation3] sm:$0xfe] %v1437
  %1465 = vst [vmem:[#allocation3 + $0x8] sm:$0xfe] %v1438
  %1466 = vst [vmem:[#allocation3 + $0x10] sm:$0xfe] %v1439
  %1467 = vst [vmem:[#allocation3 + $0x18] sm:$0xff] %v1441
  %1468 = vst [vmem:[#allocation3 + $0x20] sm:$0xff] %v1443
  %1469 = vst [vmem:[#allocation3 + $0x28] sm:$0xff] %v1445
  %1470 = vst [vmem:[#allocation3 + $0x30] sm:$0xff] %v1447
  %1471 = vst [vmem:[#allocation3 + $0x38] sm:$0xff] %v1449
  %1472 = vst [vmem:[#allocation3 + $0x40] sm:$0xff] %v1451
  %1473 = vst [vmem:[#allocation3 + $0x48] sm:$0x1] %v1446
  %1474 = vst [vmem:[#allocation3 + $0x50] sm:$0x1] %v1448
  %1475 = vst [vmem:[#allocation3 + $0x58] sm:$0x1] %v1450
  %v1476 = vld [vmem:[#allocation3] sm:$0xff]
  %v1477 = vld [vmem:[#allocation3 + $0x8] sm:$0xff]
  %v1478 = vld [vmem:[#allocation3 + $0x10] sm:$0xff]
  %v1479 = vld [vmem:[#allocation3 + $0x18] sm:$0xff]
  %v1480 = vld [vmem:[#allocation3 + $0x20] sm:$0xff]
  %v1481 = vld [vmem:[#allocation3 + $0x28] sm:$0xff]
  %v1482 = vld [vmem:[#allocation3 + $0x30] sm:$0xff]
  %v1483 = vld [vmem:[#allocation3 + $0x38] sm:$0xff]
  %v1484 = vld [vmem:[#allocation3 + $0x40] sm:$0xff]
  %v1485 = vld [vmem:[%s5] sm:$0xff]
  %v1486 = vld [vmem:[%s5 + $0x8] sm:$0xff]
  %v1487 = vld [vmem:[%s5 + $0x10] sm:$0xff]
  %v1488 = vld [vmem:[%s5 + $0x18] sm:$0xff]
  %v1489 = vld [vmem:[%s5 + $0x20] sm:$0xff]
  %v1490 = vld [vmem:[%s5 + $0x28] sm:$0xff]
  %v1491 = vld [vmem:[%s5 + $0x30] sm:$0xff]
  %v1492 = vld [vmem:[%s5 + $0x38] sm:$0xff]
  %v1493 = vld [vmem:[%s5 + $0x40] sm:$0xff]
  %v1494 = vld [vmem:[%s5 + $0x48] sm:$0xff]
  %v1495 = vld [vmem:[%s5 + $0x50] sm:$0xff]
  %v1496 = vld [vmem:[%s5 + $0x58] sm:$0xff]
  %v1497 = vld [vmem:[%s5 + $0x60] sm:$0xff]
  %v1498 = vld [vmem:[%s5 + $0x68] sm:$0xff]
  %v1499 = vld [vmem:[%s5 + $0x70] sm:$0xff]
  %v1500 = vld [vmem:[%s5 + $0x78] sm:$0xff]
  %v1501 = vld [vmem:[%s5 + $0x80] sm:$0xff]
  %v1502 = vld [vmem:[%s5 + $0x88] sm:$0xff]
  %v1503 = vld [vmem:[%s5 + $0x90] sm:$0xff]
  %v1504 = vld [vmem:[%s5 + $0x98] sm:$0xff]
  %v1505 = vld [vmem:[%s5 + $0xa0] sm:$0xff]
  %v1506 = vld [vmem:[%s5 + $0xa8] sm:$0xff]
  %v1507 = vld [vmem:[%s5 + $0xb0] sm:$0xff]
  %v1508 = vld [vmem:[%s5 + $0xb8] sm:$0xff]
  %v1509 = vld [vmem:[%s5 + $0xc0] sm:$0xff]
  %v1510 = vld [vmem:[%s5 + $0xc8] sm:$0xff]
  %v1511 = vld [vmem:[%s5 + $0xd0] sm:$0xff]
  %v1512 = vld [vmem:[%s5 + $0xd8] sm:$0xff]
  %v1513 = vld [vmem:[%s5 + $0xe0] sm:$0xff]
  %v1514 = vld [vmem:[%s5 + $0xe8] sm:$0xff]
  %v1515 = vld [vmem:[%s5 + $0xf0] sm:$0xff]
  %v1516 = vld [vmem:[%s5 + $0xf8] sm:$0xff]
  %v1517 = vld [vmem:[%s5 + $0x100] sm:$0xff]
  %v1518 = vld [vmem:[%s5 + $0x108] sm:$0xff]
  %v1519 = vld [vmem:[%s5 + $0x110] sm:$0xff]
  %v1520 = vld [vmem:[%s5 + $0x118] sm:$0xff]
  %v1521 = vld [vmem:[%s5 + $0x120] sm:$0xff]
  %v1522 = vld [vmem:[%s5 + $0x128] sm:$0xff]
  %v1523 = vld [vmem:[%s5 + $0x130] sm:$0xff]
  %v1524 = vld [vmem:[%s5 + $0x138] sm:$0xff]
  %v1525 = vld [vmem:[%s5 + $0x140] sm:$0xff]
  %v1526 = vld [vmem:[%s5 + $0x148] sm:$0xff]
  %v1527 = vld [vmem:[%s5 + $0x150] sm:$0xff]
  %v1528 = vld [vmem:[%s5 + $0x158] sm:$0xff]
  %v1529 = vld [vmem:[%s5 + $0x160] sm:$0xff]
  %v1530 = vld [vmem:[%s5 + $0x168] sm:$0xff]
  %v1531 = vld [vmem:[%s5 + $0x170] sm:$0xff]
  %v1532 = vld [vmem:[%s5 + $0x178] sm:$0xff]
  %v1533 = vld [vmem:[%s5 + $0x180] sm:$0xff]
  %v1534 = vld [vmem:[%s5 + $0x188] sm:$0xff]
  %v1535 = vld [vmem:[%s5 + $0x190] sm:$0xff]
  %v1536 = vld [vmem:[%s5 + $0x198] sm:$0xff]
  %v1537 = vld [vmem:[%s5 + $0x1a0] sm:$0xff]
  %v1538 = vld [vmem:[%s5 + $0x1a8] sm:$0xff]
  %v1539 = vld [vmem:[%s5 + $0x1b0] sm:$0xff]
  %v1540 = vld [vmem:[%s5 + $0x1b8] sm:$0xff]
  %v1541 = vld [vmem:[%s5 + $0x1c0] sm:$0xff]
  %v1542 = vld [vmem:[%s5 + $0x1c8] sm:$0xff]
  %v1543 = vld [vmem:[%s5 + $0x1d0] sm:$0xff]
  %v1544 = vld [vmem:[%s5 + $0x1d8] sm:$0xff]
  %v1545 = vld [vmem:[%s5 + $0x1e0] sm:$0xff]
  %v1546 = vld [vmem:[%s5 + $0x1e8] sm:$0xff]
  %v1547 = vld [vmem:[%s5 + $0x1f0] sm:$0xff]
  %v1548 = vld [vmem:[%s5 + $0x1f8] sm:$0xff]
  %v1549 = vld [vmem:[%s5 + $0x200] sm:$0xff]
  %v1550 = vld [vmem:[%s5 + $0x208] sm:$0xff]
  %v1551 = vld [vmem:[%s5 + $0x210] sm:$0xff]
  %v1552 = vld [vmem:[%s5 + $0x218] sm:$0xff]
  %v1553 = vld [vmem:[%s5 + $0x220] sm:$0xff]
  %v1554 = vld [vmem:[%s5 + $0x228] sm:$0xff]
  %v1555 = vld [vmem:[%s5 + $0x230] sm:$0xff]
  %v1556 = vld [vmem:[%s5 + $0x238] sm:$0xff]
  %v1557 = vld [vmem:[%s5 + $0x240] sm:$0xff]
  %v1558 = vld [vmem:[%s5 + $0x248] sm:$0xff]
  %v1559 = vld [vmem:[%s5 + $0x250] sm:$0xff]
  %v1560 = vld [vmem:[%s5 + $0x258] sm:$0xff]
  %v1561 = vld [vmem:[%s5 + $0x260] sm:$0xff]
  %v1562 = vld [vmem:[%s5 + $0x268] sm:$0xff]
  %v1563 = vld [vmem:[%s5 + $0x270] sm:$0xff]
  %v1564 = vld [vmem:[%s5 + $0x278] sm:$0xff]
  %v1565 = vld [vmem:[%s5 + $0x280] sm:$0xff]
  %v1566 = vld [vmem:[%s5 + $0x288] sm:$0xff]
  %v1567 = vld [vmem:[%s5 + $0x290] sm:$0xff]
  %v1568 = vld [vmem:[%s5 + $0x298] sm:$0xff]
  %v1569 = vld [vmem:[%s5 + $0x2a0] sm:$0xff]
  %v1570 = vld [vmem:[%s5 + $0x2a8] sm:$0xff]
  %v1571 = vld [vmem:[%s5 + $0x2b0] sm:$0xff]
  %v1572 = vld [vmem:[%s5 + $0x2b8] sm:$0xff]
  %v1573 = vld [vmem:[%s5 + $0x2c0] sm:$0xff]
  %v1574 = vld [vmem:[%s5 + $0x2c8] sm:$0xff]
  %v1575 = vld [vmem:[%s5 + $0x2d0] sm:$0xff]
  %v1576 = vld [vmem:[%s5 + $0x2d8] sm:$0xff]
  %v1577 = vld [vmem:[%s5 + $0x2e0] sm:$0xff]
  %v1578 = vld [vmem:[%s5 + $0x2e8] sm:$0xff]
  %v1579 = vld [vmem:[%s5 + $0x2f0] sm:$0xff]
  %v1580 = vld [vmem:[%s5 + $0x2f8] sm:$0xff]
  %v1581 = vld [vmem:[#allocation3] sm:$0xfe]
  %v1582 = vld [vmem:[#allocation3 + $0x8] sm:$0xfe]
  %v1583 = vld [vmem:[#allocation3 + $0x10] sm:$0xfe]
  %v1584 = vld [vmem:[#allocation3 + $0x48] sm:$0x1]
  %v1585 = vld [vmem:[#allocation3 + $0x50] sm:$0x1]
  %v1586 = vld [vmem:[#allocation3 + $0x58] sm:$0x1]
  %s1587 = scalar_lea.vmem %s5, 768
  %v1588 = vld [vmem:[%s1587] sm:$0xff]
  %v1589 = vld [vmem:[%s1587 + $0x8] sm:$0xff]
  %v1590 = vld [vmem:[%s1587 + $0x10] sm:$0xff]
  %v1591 = vld [vmem:[%s1587 + $0x18] sm:$0xff]
  %v1592 = vld [vmem:[%s1587 + $0x20] sm:$0xff]
  %v1593 = vld [vmem:[%s1587 + $0x28] sm:$0xff]
  %v1594 = vld [vmem:[%s1587 + $0x30] sm:$0xff]
  %v1595 = vld [vmem:[%s1587 + $0x38] sm:$0xff]
  %v1596 = vld [vmem:[%s1587 + $0x40] sm:$0xff]
  %v1597 = vld [vmem:[%s1587 + $0x48] sm:$0xff]
  %v1598 = vld [vmem:[%s1587 + $0x50] sm:$0xff]
  %v1599 = vld [vmem:[%s1587 + $0x58] sm:$0xff]
  %v1600 = vld [vmem:[%s1587 + $0x60] sm:$0xff]
  %v1601 = vld [vmem:[%s1587 + $0x68] sm:$0xff]
  %v1602 = vld [vmem:[%s1587 + $0x70] sm:$0xff]
  %v1603 = vld [vmem:[%s1587 + $0x78] sm:$0xff]
  %v1604 = vld [vmem:[%s1587 + $0x80] sm:$0xff]
  %v1605 = vld [vmem:[%s1587 + $0x88] sm:$0xff]
  %v1606 = vld [vmem:[%s1587 + $0x90] sm:$0xff]
  %v1607 = vld [vmem:[%s1587 + $0x98] sm:$0xff]
  %v1608 = vld [vmem:[%s1587 + $0xa0] sm:$0xff]
  %v1609 = vld [vmem:[%s1587 + $0xa8] sm:$0xff]
  %v1610 = vld [vmem:[%s1587 + $0xb0] sm:$0xff]
  %v1611 = vld [vmem:[%s1587 + $0xb8] sm:$0xff]
  %v1612 = vld [vmem:[%s1587 + $0xc0] sm:$0xff]
  %v1613 = vld [vmem:[%s1587 + $0xc8] sm:$0xff]
  %v1614 = vld [vmem:[%s1587 + $0xd0] sm:$0xff]
  %v1615 = vld [vmem:[%s1587 + $0xd8] sm:$0xff]
  %v1616 = vld [vmem:[%s1587 + $0xe0] sm:$0xff]
  %v1617 = vld [vmem:[%s1587 + $0xe8] sm:$0xff]
  %v1618 = vld [vmem:[%s1587 + $0xf0] sm:$0xff]
  %v1619 = vld [vmem:[%s1587 + $0xf8] sm:$0xff]
  %v1620 = vld [vmem:[%s1587 + $0x100] sm:$0xff]
  %v1621 = vld [vmem:[%s1587 + $0x108] sm:$0xff]
  %v1622 = vld [vmem:[%s1587 + $0x110] sm:$0xff]
  %v1623 = vld [vmem:[%s1587 + $0x118] sm:$0xff]
  %v1624 = vld [vmem:[%s1587 + $0x120] sm:$0xff]
  %v1625 = vld [vmem:[%s1587 + $0x128] sm:$0xff]
  %v1626 = vld [vmem:[%s1587 + $0x130] sm:$0xff]
  %v1627 = vld [vmem:[%s1587 + $0x138] sm:$0xff]
  %v1628 = vld [vmem:[%s1587 + $0x140] sm:$0xff]
  %v1629 = vld [vmem:[%s1587 + $0x148] sm:$0xff]
  %v1630 = vld [vmem:[%s1587 + $0x150] sm:$0xff]
  %v1631 = vld [vmem:[%s1587 + $0x158] sm:$0xff]
  %v1632 = vld [vmem:[%s1587 + $0x160] sm:$0xff]
  %v1633 = vld [vmem:[%s1587 + $0x168] sm:$0xff]
  %v1634 = vld [vmem:[%s1587 + $0x170] sm:$0xff]
  %v1635 = vld [vmem:[%s1587 + $0x178] sm:$0xff]
  %v1636 = vld [vmem:[%s1587 + $0x180] sm:$0xff]
  %v1637 = vld [vmem:[%s1587 + $0x188] sm:$0xff]
  %v1638 = vld [vmem:[%s1587 + $0x190] sm:$0xff]
  %v1639 = vld [vmem:[%s1587 + $0x198] sm:$0xff]
  %v1640 = vld [vmem:[%s1587 + $0x1a0] sm:$0xff]
  %v1641 = vld [vmem:[%s1587 + $0x1a8] sm:$0xff]
  %v1642 = vld [vmem:[%s1587 + $0x1b0] sm:$0xff]
  %v1643 = vld [vmem:[%s1587 + $0x1b8] sm:$0xff]
  %v1644 = vld [vmem:[%s1587 + $0x1c0] sm:$0xff]
  %v1645 = vld [vmem:[%s1587 + $0x1c8] sm:$0xff]
  %v1646 = vld [vmem:[%s1587 + $0x1d0] sm:$0xff]
  %v1647 = vld [vmem:[%s1587 + $0x1d8] sm:$0xff]
  %v1648 = vld [vmem:[%s1587 + $0x1e0] sm:$0xff]
  %v1649 = vld [vmem:[%s1587 + $0x1e8] sm:$0xff]
  %v1650 = vld [vmem:[%s1587 + $0x1f0] sm:$0xff]
  %v1651 = vld [vmem:[%s1587 + $0x1f8] sm:$0xff]
  %v1652 = vld [vmem:[%s1587 + $0x200] sm:$0xff]
  %v1653 = vld [vmem:[%s1587 + $0x208] sm:$0xff]
  %v1654 = vld [vmem:[%s1587 + $0x210] sm:$0xff]
  %v1655 = vld [vmem:[%s1587 + $0x218] sm:$0xff]
  %v1656 = vld [vmem:[%s1587 + $0x220] sm:$0xff]
  %v1657 = vld [vmem:[%s1587 + $0x228] sm:$0xff]
  %v1658 = vld [vmem:[%s1587 + $0x230] sm:$0xff]
  %v1659 = vld [vmem:[%s1587 + $0x238] sm:$0xff]
  %v1660 = vld [vmem:[%s1587 + $0x240] sm:$0xff]
  %v1661 = vld [vmem:[%s1587 + $0x248] sm:$0xff]
  %v1662 = vld [vmem:[%s1587 + $0x250] sm:$0xff]
  %v1663 = vld [vmem:[%s1587 + $0x258] sm:$0xff]
  %v1664 = vld [vmem:[%s1587 + $0x260] sm:$0xff]
  %v1665 = vld [vmem:[%s1587 + $0x268] sm:$0xff]
  %v1666 = vld [vmem:[%s1587 + $0x270] sm:$0xff]
  %v1667 = vld [vmem:[%s1587 + $0x278] sm:$0xff]
  %v1668 = vld [vmem:[%s1587 + $0x280] sm:$0xff]
  %v1669 = vld [vmem:[%s1587 + $0x288] sm:$0xff]
  %v1670 = vld [vmem:[%s1587 + $0x290] sm:$0xff]
  %v1671 = vld [vmem:[%s1587 + $0x298] sm:$0xff]
  %v1672 = vld [vmem:[%s1587 + $0x2a0] sm:$0xff]
  %v1673 = vld [vmem:[%s1587 + $0x2a8] sm:$0xff]
  %v1674 = vld [vmem:[%s1587 + $0x2b0] sm:$0xff]
  %v1675 = vld [vmem:[%s1587 + $0x2b8] sm:$0xff]
  %v1676 = vld [vmem:[%s1587 + $0x2c0] sm:$0xff]
  %v1677 = vld [vmem:[%s1587 + $0x2c8] sm:$0xff]
  %v1678 = vld [vmem:[%s1587 + $0x2d0] sm:$0xff]
  %v1679 = vld [vmem:[%s1587 + $0x2d8] sm:$0xff]
  %v1680 = vld [vmem:[%s1587 + $0x2e0] sm:$0xff]
  %v1681 = vld [vmem:[%s1587 + $0x2e8] sm:$0xff]
  %v1682 = vld [vmem:[%s1587 + $0x2f0] sm:$0xff]
  %v1683 = vld [vmem:[%s1587 + $0x2f8] sm:$0xff]
  %v1696 = vrot.slane %v1581, 1
  %v1697 = vrot.slane %v1479, 1
  %v1698 = vsel %vm783, %v1696, %v1697
  %v1699 = vrot.slane %v1582, 1
  %v1700 = vrot.slane %v1480, 1
  %v1701 = vsel %vm783, %v1699, %v1700
  %v1702 = vrot.slane %v1583, 1
  %v1703 = vrot.slane %v1481, 1
  %v1704 = vsel %vm783, %v1702, %v1703
  %v1705 = vrot.slane %v1482, 1
  %v1706 = vsel %vm783, %v1697, %v1705
  %v1707 = vrot.slane %v1483, 1
  %v1708 = vsel %vm783, %v1700, %v1707
  %v1709 = vrot.slane %v1484, 1
  %v1710 = vsel %vm783, %v1703, %v1709
  %v1711 = vrot.slane %v1584, 1
  %v1712 = vsel %vm783, %v1705, %v1711
  %v1713 = vrot.slane %v1585, 1
  %v1714 = vsel %vm783, %v1707, %v1713
  %v1715 = vrot.slane %v1586, 1
  %v1716 = vsel %vm783, %v1709, %v1715
  %1726 = vmatpush.msra.mxu0 %v1618
  %1727 = vmatpush.msra.mxu0 %v1616
  %1728 = vmatpush.msra.mxu0 %v1614
  %1729 = vmatpush.msra.mxu0 %v1612
  %1730 = vmatpush.msra.mxu0 %v1610
  %1731 = vmatpush.msra.mxu0 %v1608
  %1732 = vmatpush.msra.mxu0 %v1606
  %1733 = vmatpush.msra.mxu0 %v1604
  %1734 = vmatpush.msra.mxu0 %v1602
  %1735 = vmatpush.msra.mxu0 %v1600
  %1736 = vmatpush.msra.mxu0 %v1598
  %1737 = vmatpush.msra.mxu0 %v1596
  %1738 = vmatpush.msra.mxu0 %v1594
  %1739 = vmatpush.msra.mxu0 %v1592
  %1740 = vmatpush.msra.mxu0 %v1590
  %1741 = vmatpush.msra.mxu0 %v1588
  %1742 = vmatmul.f32.gmra.mxu0 %v1698
  %v1743 = vpop.f32.mrf.mxu0
  %v1744 = vadd.f32 0.0, %v1743
  %1745 = vmatmul.f32.gmra.mxu0 %v1706
  %v1746 = vpop.f32.mrf.mxu0
  %v1747 = vadd.f32 0.0, %v1746
  %1748 = vmatmul.f32.gmra.mxu0 %v1712
  %v1749 = vpop.f32.mrf.mxu0
  %v1750 = vadd.f32 0.0, %v1749
  %1751 = vdwg.mxu0
  %1752 = vmatpush.msra.mxu0 %v1650
  %1753 = vmatpush.msra.mxu0 %v1648
  %1754 = vmatpush.msra.mxu0 %v1646
  %1755 = vmatpush.msra.mxu0 %v1644
  %1756 = vmatpush.msra.mxu0 %v1642
  %1757 = vmatpush.msra.mxu0 %v1640
  %1758 = vmatpush.msra.mxu0 %v1638
  %1759 = vmatpush.msra.mxu0 %v1636
  %1760 = vmatpush.msra.mxu0 %v1634
  %1761 = vmatpush.msra.mxu0 %v1632
  %1762 = vmatpush.msra.mxu0 %v1630
  %1763 = vmatpush.msra.mxu0 %v1628
  %1764 = vmatpush.msra.mxu0 %v1626
  %1765 = vmatpush.msra.mxu0 %v1624
  %1766 = vmatpush.msra.mxu0 %v1622
  %1767 = vmatpush.msra.mxu0 %v1620
  %1768 = vmatmul.f32.gmra.mxu0 %v1701
  %v1769 = vpop.f32.mrf.mxu0
  %v1770 = vadd.f32 %v1744, %v1769
  %1771 = vmatmul.f32.gmra.mxu0 %v1708
  %v1772 = vpop.f32.mrf.mxu0
  %v1773 = vadd.f32 %v1747, %v1772
  %1774 = vmatmul.f32.gmra.mxu0 %v1714
  %v1775 = vpop.f32.mrf.mxu0
  %v1776 = vadd.f32 %v1750, %v1775
  %1777 = vdwg.mxu0
  %1778 = vmatpush.msra.mxu0 %v1682
  %1779 = vmatpush.msra.mxu0 %v1680
  %1780 = vmatpush.msra.mxu0 %v1678
  %1781 = vmatpush.msra.mxu0 %v1676
  %1782 = vmatpush.msra.mxu0 %v1674
  %1783 = vmatpush.msra.mxu0 %v1672
  %1784 = vmatpush.msra.mxu0 %v1670
  %1785 = vmatpush.msra.mxu0 %v1668
  %1786 = vmatpush.msra.mxu0 %v1666
  %1787 = vmatpush.msra.mxu0 %v1664
  %1788 = vmatpush.msra.mxu0 %v1662
  %1789 = vmatpush.msra.mxu0 %v1660
  %1790 = vmatpush.msra.mxu0 %v1658
  %1791 = vmatpush.msra.mxu0 %v1656
  %1792 = vmatpush.msra.mxu0 %v1654
  %1793 = vmatpush.msra.mxu0 %v1652
  %1794 = vmatmul.f32.gmra.mxu0 %v1704
  %v1795 = vpop.f32.mrf.mxu0
  %v1796 = vadd.f32 %v1770, %v1795
  %1797 = vmatmul.f32.gmra.mxu0 %v1710
  %v1798 = vpop.f32.mrf.mxu0
  %v1799 = vadd.f32 %v1773, %v1798
  %1800 = vmatmul.f32.gmra.mxu0 %v1716
  %v1801 = vpop.f32.mrf.mxu0
  %v1802 = vadd.f32 %v1776, %v1801
  %1803 = vdwg.mxu0
  %1804 = vmatpush.msra.mxu0 %v1619
  %1805 = vmatpush.msra.mxu0 %v1617
  %1806 = vmatpush.msra.mxu0 %v1615
  %1807 = vmatpush.msra.mxu0 %v1613
  %1808 = vmatpush.msra.mxu0 %v1611
  %1809 = vmatpush.msra.mxu0 %v1609
  %1810 = vmatpush.msra.mxu0 %v1607
  %1811 = vmatpush.msra.mxu0 %v1605
  %1812 = vmatpush.msra.mxu0 %v1603
  %1813 = vmatpush.msra.mxu0 %v1601
  %1814 = vmatpush.msra.mxu0 %v1599
  %1815 = vmatpush.msra.mxu0 %v1597
  %1816 = vmatpush.msra.mxu0 %v1595
  %1817 = vmatpush.msra.mxu0 %v1593
  %1818 = vmatpush.msra.mxu0 %v1591
  %1819 = vmatpush.msra.mxu0 %v1589
  %1820 = vmatmul.f32.gmra.mxu0 %v1698
  %v1821 = vpop.f32.mrf.mxu0
  %v1822 = vadd.f32 0.0, %v1821
  %1823 = vmatmul.f32.gmra.mxu0 %v1706
  %v1824 = vpop.f32.mrf.mxu0
  %v1825 = vadd.f32 0.0, %v1824
  %1826 = vmatmul.f32.gmra.mxu0 %v1712
  %v1827 = vpop.f32.mrf.mxu0
  %v1828 = vadd.f32 0.0, %v1827
  %1829 = vdwg.mxu0
  %1830 = vmatpush.msra.mxu0 %v1651
  %1831 = vmatpush.msra.mxu0 %v1649
  %1832 = vmatpush.msra.mxu0 %v1647
  %1833 = vmatpush.msra.mxu0 %v1645
  %1834 = vmatpush.msra.mxu0 %v1643
  %1835 = vmatpush.msra.mxu0 %v1641
  %1836 = vmatpush.msra.mxu0 %v1639
  %1837 = vmatpush.msra.mxu0 %v1637
  %1838 = vmatpush.msra.mxu0 %v1635
  %1839 = vmatpush.msra.mxu0 %v1633
  %1840 = vmatpush.msra.mxu0 %v1631
  %1841 = vmatpush.msra.mxu0 %v1629
  %1842 = vmatpush.msra.mxu0 %v1627
  %1843 = vmatpush.msra.mxu0 %v1625
  %1844 = vmatpush.msra.mxu0 %v1623
  %1845 = vmatpush.msra.mxu0 %v1621
  %1846 = vmatmul.f32.gmra.mxu0 %v1701
  %v1847 = vpop.f32.mrf.mxu0
  %v1848 = vadd.f32 %v1822, %v1847
  %1849 = vmatmul.f32.gmra.mxu0 %v1708
  %v1850 = vpop.f32.mrf.mxu0
  %v1851 = vadd.f32 %v1825, %v1850
  %1852 = vmatmul.f32.gmra.mxu0 %v1714
  %v1853 = vpop.f32.mrf.mxu0
  %v1854 = vadd.f32 %v1828, %v1853
  %1855 = vdwg.mxu0
  %1856 = vmatpush.msra.mxu0 %v1683
  %1857 = vmatpush.msra.mxu0 %v1681
  %1858 = vmatpush.msra.mxu0 %v1679
  %1859 = vmatpush.msra.mxu0 %v1677
  %1860 = vmatpush.msra.mxu0 %v1675
  %1861 = vmatpush.msra.mxu0 %v1673
  %1862 = vmatpush.msra.mxu0 %v1671
  %1863 = vmatpush.msra.mxu0 %v1669
  %1864 = vmatpush.msra.mxu0 %v1667
  %1865 = vmatpush.msra.mxu0 %v1665
  %1866 = vmatpush.msra.mxu0 %v1663
  %1867 = vmatpush.msra.mxu0 %v1661
  %1868 = vmatpush.msra.mxu0 %v1659
  %1869 = vmatpush.msra.mxu0 %v1657
  %1870 = vmatpush.msra.mxu0 %v1655
  %1871 = vmatpush.msra.mxu0 %v1653
  %1872 = vmatmul.f32.gmra.mxu0 %v1704
  %v1873 = vpop.f32.mrf.mxu0
  %v1874 = vadd.f32 %v1848, %v1873
  %1875 = vmatmul.f32.gmra.mxu0 %v1710
  %v1876 = vpop.f32.mrf.mxu0
  %v1877 = vadd.f32 %v1851, %v1876
  %1878 = vmatmul.f32.gmra.mxu0 %v1716
  %v1879 = vpop.f32.mrf.mxu0
  %v1880 = vadd.f32 %v1854, %v1879
  %1881 = vdwg.mxu0
  %1882 = vmatpush.msra.mxu0 %v1515
  %1883 = vmatpush.msra.mxu0 %v1513
  %1884 = vmatpush.msra.mxu0 %v1511
  %1885 = vmatpush.msra.mxu0 %v1509
  %1886 = vmatpush.msra.mxu0 %v1507
  %1887 = vmatpush.msra.mxu0 %v1505
  %1888 = vmatpush.msra.mxu0 %v1503
  %1889 = vmatpush.msra.mxu0 %v1501
  %1890 = vmatpush.msra.mxu0 %v1499
  %1891 = vmatpush.msra.mxu0 %v1497
  %1892 = vmatpush.msra.mxu0 %v1495
  %1893 = vmatpush.msra.mxu0 %v1493
  %1894 = vmatpush.msra.mxu0 %v1491
  %1895 = vmatpush.msra.mxu0 %v1489
  %1896 = vmatpush.msra.mxu0 %v1487
  %1897 = vmatpush.msra.mxu0 %v1485
  %1898 = vmatmul.f32.gmra.mxu0 %v1476
  %v1899 = vpop.f32.mrf.mxu0
  %v1900 = vadd.f32 %v1796, %v1899
  %1901 = vmatmul.f32.gmra.mxu0 %v1479
  %v1902 = vpop.f32.mrf.mxu0
  %v1903 = vadd.f32 %v1799, %v1902
  %1904 = vmatmul.f32.gmra.mxu0 %v1482
  %v1905 = vpop.f32.mrf.mxu0
  %v1906 = vadd.f32 %v1802, %v1905
  %1907 = vdwg.mxu0
  %1908 = vmatpush.msra.mxu0 %v1547
  %1909 = vmatpush.msra.mxu0 %v1545
  %1910 = vmatpush.msra.mxu0 %v1543
  %1911 = vmatpush.msra.mxu0 %v1541
  %1912 = vmatpush.msra.mxu0 %v1539
  %1913 = vmatpush.msra.mxu0 %v1537
  %1914 = vmatpush.msra.mxu0 %v1535
  %1915 = vmatpush.msra.mxu0 %v1533
  %1916 = vmatpush.msra.mxu0 %v1531
  %1917 = vmatpush.msra.mxu0 %v1529
  %1918 = vmatpush.msra.mxu0 %v1527
  %1919 = vmatpush.msra.mxu0 %v1525
  %1920 = vmatpush.msra.mxu0 %v1523
  %1921 = vmatpush.msra.mxu0 %v1521
  %1922 = vmatpush.msra.mxu0 %v1519
  %1923 = vmatpush.msra.mxu0 %v1517
  %1924 = vmatmul.f32.gmra.mxu0 %v1477
  %v1925 = vpop.f32.mrf.mxu0
  %v1926 = vadd.f32 %v1900, %v1925
  %1927 = vmatmul.f32.gmra.mxu0 %v1480
  %v1928 = vpop.f32.mrf.mxu0
  %v1929 = vadd.f32 %v1903, %v1928
  %1930 = vmatmul.f32.gmra.mxu0 %v1483
  %v1931 = vpop.f32.mrf.mxu0
  %v1932 = vadd.f32 %v1906, %v1931
  %1933 = vdwg.mxu0
  %1934 = vmatpush.msra.mxu0 %v1579
  %1935 = vmatpush.msra.mxu0 %v1577
  %1936 = vmatpush.msra.mxu0 %v1575
  %1937 = vmatpush.msra.mxu0 %v1573
  %1938 = vmatpush.msra.mxu0 %v1571
  %1939 = vmatpush.msra.mxu0 %v1569
  %1940 = vmatpush.msra.mxu0 %v1567
  %1941 = vmatpush.msra.mxu0 %v1565
  %1942 = vmatpush.msra.mxu0 %v1563
  %1943 = vmatpush.msra.mxu0 %v1561
  %1944 = vmatpush.msra.mxu0 %v1559
  %1945 = vmatpush.msra.mxu0 %v1557
  %1946 = vmatpush.msra.mxu0 %v1555
  %1947 = vmatpush.msra.mxu0 %v1553
  %1948 = vmatpush.msra.mxu0 %v1551
  %1949 = vmatpush.msra.mxu0 %v1549
  %1950 = vmatmul.f32.gmra.mxu0 %v1478
  %v1951 = vpop.f32.mrf.mxu0
  %v1952 = vadd.f32 %v1926, %v1951
  %1953 = vmatmul.f32.gmra.mxu0 %v1481
  %v1954 = vpop.f32.mrf.mxu0
  %v1955 = vadd.f32 %v1929, %v1954
  %1956 = vmatmul.f32.gmra.mxu0 %v1484
  %v1957 = vpop.f32.mrf.mxu0
  %v1958 = vadd.f32 %v1932, %v1957
  %1959 = vdwg.mxu0
  %1960 = vmatpush.msra.mxu0 %v1516
  %1961 = vmatpush.msra.mxu0 %v1514
  %1962 = vmatpush.msra.mxu0 %v1512
  %1963 = vmatpush.msra.mxu0 %v1510
  %1964 = vmatpush.msra.mxu0 %v1508
  %1965 = vmatpush.msra.mxu0 %v1506
  %1966 = vmatpush.msra.mxu0 %v1504
  %1967 = vmatpush.msra.mxu0 %v1502
  %1968 = vmatpush.msra.mxu0 %v1500
  %1969 = vmatpush.msra.mxu0 %v1498
  %1970 = vmatpush.msra.mxu0 %v1496
  %1971 = vmatpush.msra.mxu0 %v1494
  %1972 = vmatpush.msra.mxu0 %v1492
  %1973 = vmatpush.msra.mxu0 %v1490
  %1974 = vmatpush.msra.mxu0 %v1488
  %1975 = vmatpush.msra.mxu0 %v1486
  %1976 = vmatmul.f32.gmra.mxu0 %v1476
  %v1977 = vpop.f32.mrf.mxu0
  %v1978 = vadd.f32 %v1874, %v1977
  %1979 = vmatmul.f32.gmra.mxu0 %v1479
  %v1980 = vpop.f32.mrf.mxu0
  %v1981 = vadd.f32 %v1877, %v1980
  %1982 = vmatmul.f32.gmra.mxu0 %v1482
  %v1983 = vpop.f32.mrf.mxu0
  %v1984 = vadd.f32 %v1880, %v1983
  %1985 = vdwg.mxu0
  %1986 = vmatpush.msra.mxu0 %v1548
  %1987 = vmatpush.msra.mxu0 %v1546
  %1988 = vmatpush.msra.mxu0 %v1544
  %1989 = vmatpush.msra.mxu0 %v1542
  %1990 = vmatpush.msra.mxu0 %v1540
  %1991 = vmatpush.msra.mxu0 %v1538
  %1992 = vmatpush.msra.mxu0 %v1536
  %1993 = vmatpush.msra.mxu0 %v1534
  %1994 = vmatpush.msra.mxu0 %v1532
  %1995 = vmatpush.msra.mxu0 %v1530
  %1996 = vmatpush.msra.mxu0 %v1528
  %1997 = vmatpush.msra.mxu0 %v1526
  %1998 = vmatpush.msra.mxu0 %v1524
  %1999 = vmatpush.msra.mxu0 %v1522
  %2000 = vmatpush.msra.mxu0 %v1520
  %2001 = vmatpush.msra.mxu0 %v1518
  %2002 = vmatmul.f32.gmra.mxu0 %v1477
  %v2003 = vpop.f32.mrf.mxu0
  %v2004 = vadd.f32 %v1978, %v2003
  %2005 = vmatmul.f32.gmra.mxu0 %v1480
  %v2006 = vpop.f32.mrf.mxu0
  %v2007 = vadd.f32 %v1981, %v2006
  %2008 = vmatmul.f32.gmra.mxu0 %v1483
  %v2009 = vpop.f32.mrf.mxu0
  %v2010 = vadd.f32 %v1984, %v2009
  %2011 = vdwg.mxu0
  %2012 = vmatpush.msra.mxu0 %v1580
  %2013 = vmatpush.msra.mxu0 %v1578
  %2014 = vmatpush.msra.mxu0 %v1576
  %2015 = vmatpush.msra.mxu0 %v1574
  %2016 = vmatpush.msra.mxu0 %v1572
  %2017 = vmatpush.msra.mxu0 %v1570
  %2018 = vmatpush.msra.mxu0 %v1568
  %2019 = vmatpush.msra.mxu0 %v1566
  %2020 = vmatpush.msra.mxu0 %v1564
  %2021 = vmatpush.msra.mxu0 %v1562
  %2022 = vmatpush.msra.mxu0 %v1560
  %2023 = vmatpush.msra.mxu0 %v1558
  %2024 = vmatpush.msra.mxu0 %v1556
  %2025 = vmatpush.msra.mxu0 %v1554
  %2026 = vmatpush.msra.mxu0 %v1552
  %2027 = vmatpush.msra.mxu0 %v1550
  %2028 = vmatmul.f32.gmra.mxu0 %v1478
  %v2029 = vpop.f32.mrf.mxu0
  %v2030 = vadd.f32 %v2004, %v2029
  %2031 = vmatmul.f32.gmra.mxu0 %v1481
  %v2032 = vpop.f32.mrf.mxu0
  %v2033 = vadd.f32 %v2007, %v2032
  %2034 = vmatmul.f32.gmra.mxu0 %v1484
  %v2035 = vpop.f32.mrf.mxu0
  %v2036 = vadd.f32 %v2010, %v2035
  %2037 = vdwg.mxu0
  %v2038 = vld [vmem:[#allocation3] sm:$0xfc]
  %v2039 = vld [vmem:[#allocation3 + $0x8] sm:$0xfc]
  %v2040 = vld [vmem:[#allocation3 + $0x10] sm:$0xfc]
  %v2041 = vld [vmem:[#allocation3 + $0x48] sm:$0x3]
  %v2042 = vld [vmem:[#allocation3 + $0x50] sm:$0x3]
  %v2043 = vld [vmem:[#allocation3 + $0x58] sm:$0x3]
  %s2044 = scalar_lea.vmem %s5, 1536
  %v2045 = vld [vmem:[%s2044] sm:$0xff]
  %v2046 = vld [vmem:[%s2044 + $0x8] sm:$0xff]
  %v2047 = vld [vmem:[%s2044 + $0x10] sm:$0xff]
  %v2048 = vld [vmem:[%s2044 + $0x18] sm:$0xff]
  %v2049 = vld [vmem:[%s2044 + $0x20] sm:$0xff]
  %v2050 = vld [vmem:[%s2044 + $0x28] sm:$0xff]
  %v2051 = vld [vmem:[%s2044 + $0x30] sm:$0xff]
  %v2052 = vld [vmem:[%s2044 + $0x38] sm:$0xff]
  %v2053 = vld [vmem:[%s2044 + $0x40] sm:$0xff]
  %v2054 = vld [vmem:[%s2044 + $0x48] sm:$0xff]
  %v2055 = vld [vmem:[%s2044 + $0x50] sm:$0xff]
  %v2056 = vld [vmem:[%s2044 + $0x58] sm:$0xff]
  %v2057 = vld [vmem:[%s2044 + $0x60] sm:$0xff]
  %v2058 = vld [vmem:[%s2044 + $0x68] sm:$0xff]
  %v2059 = vld [vmem:[%s2044 + $0x70] sm:$0xff]
  %v2060 = vld [vmem:[%s2044 + $0x78] sm:$0xff]
  %v2061 = vld [vmem:[%s2044 + $0x80] sm:$0xff]
  %v2062 = vld [vmem:[%s2044 + $0x88] sm:$0xff]
  %v2063 = vld [vmem:[%s2044 + $0x90] sm:$0xff]
  %v2064 = vld [vmem:[%s2044 + $0x98] sm:$0xff]
  %v2065 = vld [vmem:[%s2044 + $0xa0] sm:$0xff]
  %v2066 = vld [vmem:[%s2044 + $0xa8] sm:$0xff]
  %v2067 = vld [vmem:[%s2044 + $0xb0] sm:$0xff]
  %v2068 = vld [vmem:[%s2044 + $0xb8] sm:$0xff]
  %v2069 = vld [vmem:[%s2044 + $0xc0] sm:$0xff]
  %v2070 = vld [vmem:[%s2044 + $0xc8] sm:$0xff]
  %v2071 = vld [vmem:[%s2044 + $0xd0] sm:$0xff]
  %v2072 = vld [vmem:[%s2044 + $0xd8] sm:$0xff]
  %v2073 = vld [vmem:[%s2044 + $0xe0] sm:$0xff]
  %v2074 = vld [vmem:[%s2044 + $0xe8] sm:$0xff]
  %v2075 = vld [vmem:[%s2044 + $0xf0] sm:$0xff]
  %v2076 = vld [vmem:[%s2044 + $0xf8] sm:$0xff]
  %v2077 = vld [vmem:[%s2044 + $0x100] sm:$0xff]
  %v2078 = vld [vmem:[%s2044 + $0x108] sm:$0xff]
  %v2079 = vld [vmem:[%s2044 + $0x110] sm:$0xff]
  %v2080 = vld [vmem:[%s2044 + $0x118] sm:$0xff]
  %v2081 = vld [vmem:[%s2044 + $0x120] sm:$0xff]
  %v2082 = vld [vmem:[%s2044 + $0x128] sm:$0xff]
  %v2083 = vld [vmem:[%s2044 + $0x130] sm:$0xff]
  %v2084 = vld [vmem:[%s2044 + $0x138] sm:$0xff]
  %v2085 = vld [vmem:[%s2044 + $0x140] sm:$0xff]
  %v2086 = vld [vmem:[%s2044 + $0x148] sm:$0xff]
  %v2087 = vld [vmem:[%s2044 + $0x150] sm:$0xff]
  %v2088 = vld [vmem:[%s2044 + $0x158] sm:$0xff]
  %v2089 = vld [vmem:[%s2044 + $0x160] sm:$0xff]
  %v2090 = vld [vmem:[%s2044 + $0x168] sm:$0xff]
  %v2091 = vld [vmem:[%s2044 + $0x170] sm:$0xff]
  %v2092 = vld [vmem:[%s2044 + $0x178] sm:$0xff]
  %v2093 = vld [vmem:[%s2044 + $0x180] sm:$0xff]
  %v2094 = vld [vmem:[%s2044 + $0x188] sm:$0xff]
  %v2095 = vld [vmem:[%s2044 + $0x190] sm:$0xff]
  %v2096 = vld [vmem:[%s2044 + $0x198] sm:$0xff]
  %v2097 = vld [vmem:[%s2044 + $0x1a0] sm:$0xff]
  %v2098 = vld [vmem:[%s2044 + $0x1a8] sm:$0xff]
  %v2099 = vld [vmem:[%s2044 + $0x1b0] sm:$0xff]
  %v2100 = vld [vmem:[%s2044 + $0x1b8] sm:$0xff]
  %v2101 = vld [vmem:[%s2044 + $0x1c0] sm:$0xff]
  %v2102 = vld [vmem:[%s2044 + $0x1c8] sm:$0xff]
  %v2103 = vld [vmem:[%s2044 + $0x1d0] sm:$0xff]
  %v2104 = vld [vmem:[%s2044 + $0x1d8] sm:$0xff]
  %v2105 = vld [vmem:[%s2044 + $0x1e0] sm:$0xff]
  %v2106 = vld [vmem:[%s2044 + $0x1e8] sm:$0xff]
  %v2107 = vld [vmem:[%s2044 + $0x1f0] sm:$0xff]
  %v2108 = vld [vmem:[%s2044 + $0x1f8] sm:$0xff]
  %v2109 = vld [vmem:[%s2044 + $0x200] sm:$0xff]
  %v2110 = vld [vmem:[%s2044 + $0x208] sm:$0xff]
  %v2111 = vld [vmem:[%s2044 + $0x210] sm:$0xff]
  %v2112 = vld [vmem:[%s2044 + $0x218] sm:$0xff]
  %v2113 = vld [vmem:[%s2044 + $0x220] sm:$0xff]
  %v2114 = vld [vmem:[%s2044 + $0x228] sm:$0xff]
  %v2115 = vld [vmem:[%s2044 + $0x230] sm:$0xff]
  %v2116 = vld [vmem:[%s2044 + $0x238] sm:$0xff]
  %v2117 = vld [vmem:[%s2044 + $0x240] sm:$0xff]
  %v2118 = vld [vmem:[%s2044 + $0x248] sm:$0xff]
  %v2119 = vld [vmem:[%s2044 + $0x250] sm:$0xff]
  %v2120 = vld [vmem:[%s2044 + $0x258] sm:$0xff]
  %v2121 = vld [vmem:[%s2044 + $0x260] sm:$0xff]
  %v2122 = vld [vmem:[%s2044 + $0x268] sm:$0xff]
  %v2123 = vld [vmem:[%s2044 + $0x270] sm:$0xff]
  %v2124 = vld [vmem:[%s2044 + $0x278] sm:$0xff]
  %v2125 = vld [vmem:[%s2044 + $0x280] sm:$0xff]
  %v2126 = vld [vmem:[%s2044 + $0x288] sm:$0xff]
  %v2127 = vld [vmem:[%s2044 + $0x290] sm:$0xff]
  %v2128 = vld [vmem:[%s2044 + $0x298] sm:$0xff]
  %v2129 = vld [vmem:[%s2044 + $0x2a0] sm:$0xff]
  %v2130 = vld [vmem:[%s2044 + $0x2a8] sm:$0xff]
  %v2131 = vld [vmem:[%s2044 + $0x2b0] sm:$0xff]
  %v2132 = vld [vmem:[%s2044 + $0x2b8] sm:$0xff]
  %v2133 = vld [vmem:[%s2044 + $0x2c0] sm:$0xff]
  %v2134 = vld [vmem:[%s2044 + $0x2c8] sm:$0xff]
  %v2135 = vld [vmem:[%s2044 + $0x2d0] sm:$0xff]
  %v2136 = vld [vmem:[%s2044 + $0x2d8] sm:$0xff]
  %v2137 = vld [vmem:[%s2044 + $0x2e0] sm:$0xff]
  %v2138 = vld [vmem:[%s2044 + $0x2e8] sm:$0xff]
  %v2139 = vld [vmem:[%s2044 + $0x2f0] sm:$0xff]
  %v2140 = vld [vmem:[%s2044 + $0x2f8] sm:$0xff]
  %v2147 = vrot.slane %v2038, 2
  %v2148 = vrot.slane %v1479, 2
  %v2149 = vsel %vm1207, %v2147, %v2148
  %v2150 = vrot.slane %v2039, 2
  %v2151 = vrot.slane %v1480, 2
  %v2152 = vsel %vm1207, %v2150, %v2151
  %v2153 = vrot.slane %v2040, 2
  %v2154 = vrot.slane %v1481, 2
  %v2155 = vsel %vm1207, %v2153, %v2154
  %v2156 = vrot.slane %v1482, 2
  %v2157 = vsel %vm1207, %v2148, %v2156
  %v2158 = vrot.slane %v1483, 2
  %v2159 = vsel %vm1207, %v2151, %v2158
  %v2160 = vrot.slane %v1484, 2
  %v2161 = vsel %vm1207, %v2154, %v2160
  %v2162 = vrot.slane %v2041, 2
  %v2163 = vsel %vm1207, %v2156, %v2162
  %v2164 = vrot.slane %v2042, 2
  %v2165 = vsel %vm1207, %v2158, %v2164
  %v2166 = vrot.slane %v2043, 2
  %v2167 = vsel %vm1207, %v2160, %v2166
  %2177 = vmatpush.msra.mxu0 %v2075
  %2178 = vmatpush.msra.mxu0 %v2073
  %2179 = vmatpush.msra.mxu0 %v2071
  %2180 = vmatpush.msra.mxu0 %v2069
  %2181 = vmatpush.msra.mxu0 %v2067
  %2182 = vmatpush.msra.mxu0 %v2065
  %2183 = vmatpush.msra.mxu0 %v2063
  %2184 = vmatpush.msra.mxu0 %v2061
  %2185 = vmatpush.msra.mxu0 %v2059
  %2186 = vmatpush.msra.mxu0 %v2057
  %2187 = vmatpush.msra.mxu0 %v2055
  %2188 = vmatpush.msra.mxu0 %v2053
  %2189 = vmatpush.msra.mxu0 %v2051
  %2190 = vmatpush.msra.mxu0 %v2049
  %2191 = vmatpush.msra.mxu0 %v2047
  %2192 = vmatpush.msra.mxu0 %v2045
  %2193 = vmatmul.f32.gmra.mxu0 %v2149
  %v2194 = vpop.f32.mrf.mxu0
  %v2195 = vadd.f32 0.0, %v2194
  %2196 = vmatmul.f32.gmra.mxu0 %v2157
  %v2197 = vpop.f32.mrf.mxu0
  %v2198 = vadd.f32 0.0, %v2197
  %2199 = vmatmul.f32.gmra.mxu0 %v2163
  %v2200 = vpop.f32.mrf.mxu0
  %v2201 = vadd.f32 0.0, %v2200
  %2202 = vdwg.mxu0
  %2203 = vmatpush.msra.mxu0 %v2107
  %2204 = vmatpush.msra.mxu0 %v2105
  %2205 = vmatpush.msra.mxu0 %v2103
  %2206 = vmatpush.msra.mxu0 %v2101
  %2207 = vmatpush.msra.mxu0 %v2099
  %2208 = vmatpush.msra.mxu0 %v2097
  %2209 = vmatpush.msra.mxu0 %v2095
  %2210 = vmatpush.msra.mxu0 %v2093
  %2211 = vmatpush.msra.mxu0 %v2091
  %2212 = vmatpush.msra.mxu0 %v2089
  %2213 = vmatpush.msra.mxu0 %v2087
  %2214 = vmatpush.msra.mxu0 %v2085
  %2215 = vmatpush.msra.mxu0 %v2083
  %2216 = vmatpush.msra.mxu0 %v2081
  %2217 = vmatpush.msra.mxu0 %v2079
  %2218 = vmatpush.msra.mxu0 %v2077
  %2219 = vmatmul.f32.gmra.mxu0 %v2152
  %v2220 = vpop.f32.mrf.mxu0
  %v2221 = vadd.f32 %v2195, %v2220
  %2222 = vmatmul.f32.gmra.mxu0 %v2159
  %v2223 = vpop.f32.mrf.mxu0
  %v2224 = vadd.f32 %v2198, %v2223
  %2225 = vmatmul.f32.gmra.mxu0 %v2165
  %v2226 = vpop.f32.mrf.mxu0
  %v2227 = vadd.f32 %v2201, %v2226
  %2228 = vdwg.mxu0
  %2229 = vmatpush.msra.mxu0 %v2139
  %2230 = vmatpush.msra.mxu0 %v2137
  %2231 = vmatpush.msra.mxu0 %v2135
  %2232 = vmatpush.msra.mxu0 %v2133
  %2233 = vmatpush.msra.mxu0 %v2131
  %2234 = vmatpush.msra.mxu0 %v2129
  %2235 = vmatpush.msra.mxu0 %v2127
  %2236 = vmatpush.msra.mxu0 %v2125
  %2237 = vmatpush.msra.mxu0 %v2123
  %2238 = vmatpush.msra.mxu0 %v2121
  %2239 = vmatpush.msra.mxu0 %v2119
  %2240 = vmatpush.msra.mxu0 %v2117
  %2241 = vmatpush.msra.mxu0 %v2115
  %2242 = vmatpush.msra.mxu0 %v2113
  %2243 = vmatpush.msra.mxu0 %v2111
  %2244 = vmatpush.msra.mxu0 %v2109
  %2245 = vmatmul.f32.gmra.mxu0 %v2155
  %v2246 = vpop.f32.mrf.mxu0
  %v2247 = vadd.f32 %v2221, %v2246
  %2248 = vmatmul.f32.gmra.mxu0 %v2161
  %v2249 = vpop.f32.mrf.mxu0
  %v2250 = vadd.f32 %v2224, %v2249
  %2251 = vmatmul.f32.gmra.mxu0 %v2167
  %v2252 = vpop.f32.mrf.mxu0
  %v2253 = vadd.f32 %v2227, %v2252
  %2254 = vdwg.mxu0
  %2255 = vmatpush.msra.mxu0 %v2076
  %2256 = vmatpush.msra.mxu0 %v2074
  %2257 = vmatpush.msra.mxu0 %v2072
  %2258 = vmatpush.msra.mxu0 %v2070
  %2259 = vmatpush.msra.mxu0 %v2068
  %2260 = vmatpush.msra.mxu0 %v2066
  %2261 = vmatpush.msra.mxu0 %v2064
  %2262 = vmatpush.msra.mxu0 %v2062
  %2263 = vmatpush.msra.mxu0 %v2060
  %2264 = vmatpush.msra.mxu0 %v2058
  %2265 = vmatpush.msra.mxu0 %v2056
  %2266 = vmatpush.msra.mxu0 %v2054
  %2267 = vmatpush.msra.mxu0 %v2052
  %2268 = vmatpush.msra.mxu0 %v2050
  %2269 = vmatpush.msra.mxu0 %v2048
  %2270 = vmatpush.msra.mxu0 %v2046
  %2271 = vmatmul.f32.gmra.mxu0 %v2149
  %v2272 = vpop.f32.mrf.mxu0
  %v2273 = vadd.f32 0.0, %v2272
  %2274 = vmatmul.f32.gmra.mxu0 %v2157
  %v2275 = vpop.f32.mrf.mxu0
  %v2276 = vadd.f32 0.0, %v2275
  %2277 = vmatmul.f32.gmra.mxu0 %v2163
  %v2278 = vpop.f32.mrf.mxu0
  %v2279 = vadd.f32 0.0, %v2278
  %2280 = vdwg.mxu0
  %2281 = vmatpush.msra.mxu0 %v2108
  %2282 = vmatpush.msra.mxu0 %v2106
  %2283 = vmatpush.msra.mxu0 %v2104
  %2284 = vmatpush.msra.mxu0 %v2102
  %2285 = vmatpush.msra.mxu0 %v2100
  %2286 = vmatpush.msra.mxu0 %v2098
  %2287 = vmatpush.msra.mxu0 %v2096
  %2288 = vmatpush.msra.mxu0 %v2094
  %2289 = vmatpush.msra.mxu0 %v2092
  %2290 = vmatpush.msra.mxu0 %v2090
  %2291 = vmatpush.msra.mxu0 %v2088
  %2292 = vmatpush.msra.mxu0 %v2086
  %2293 = vmatpush.msra.mxu0 %v2084
  %2294 = vmatpush.msra.mxu0 %v2082
  %2295 = vmatpush.msra.mxu0 %v2080
  %2296 = vmatpush.msra.mxu0 %v2078
  %2297 = vmatmul.f32.gmra.mxu0 %v2152
  %v2298 = vpop.f32.mrf.mxu0
  %v2299 = vadd.f32 %v2273, %v2298
  %2300 = vmatmul.f32.gmra.mxu0 %v2159
  %v2301 = vpop.f32.mrf.mxu0
  %v2302 = vadd.f32 %v2276, %v2301
  %2303 = vmatmul.f32.gmra.mxu0 %v2165
  %v2304 = vpop.f32.mrf.mxu0
  %v2305 = vadd.f32 %v2279, %v2304
  %2306 = vdwg.mxu0
  %2307 = vmatpush.msra.mxu0 %v2140
  %2308 = vmatpush.msra.mxu0 %v2138
  %2309 = vmatpush.msra.mxu0 %v2136
  %2310 = vmatpush.msra.mxu0 %v2134
  %2311 = vmatpush.msra.mxu0 %v2132
  %2312 = vmatpush.msra.mxu0 %v2130
  %2313 = vmatpush.msra.mxu0 %v2128
  %2314 = vmatpush.msra.mxu0 %v2126
  %2315 = vmatpush.msra.mxu0 %v2124
  %2316 = vmatpush.msra.mxu0 %v2122
  %2317 = vmatpush.msra.mxu0 %v2120
  %2318 = vmatpush.msra.mxu0 %v2118
  %2319 = vmatpush.msra.mxu0 %v2116
  %2320 = vmatpush.msra.mxu0 %v2114
  %2321 = vmatpush.msra.mxu0 %v2112
  %2322 = vmatpush.msra.mxu0 %v2110
  %2323 = vmatmul.f32.gmra.mxu0 %v2155
  %v2324 = vpop.f32.mrf.mxu0
  %v2325 = vadd.f32 %v2299, %v2324
  %2326 = vmatmul.f32.gmra.mxu0 %v2161
  %v2327 = vpop.f32.mrf.mxu0
  %v2328 = vadd.f32 %v2302, %v2327
  %2329 = vmatmul.f32.gmra.mxu0 %v2167
  %v2330 = vpop.f32.mrf.mxu0
  %v2331 = vadd.f32 %v2305, %v2330
  %2332 = vdwg.mxu0
  %v2333 = vadd.f32 %v1952, %v2247
  %v2334 = vadd.f32 %v2030, %v2325
  %v2335 = vadd.f32 %v1955, %v2250
  %v2336 = vadd.f32 %v2033, %v2328
  %v2337 = vadd.f32 %v1958, %v2253
  %v2338 = vadd.f32 %v2036, %v2331
  %v2340 = vperm.slane %v98, 0
  %v2341 = vperm.slane %v98, 1
  %v2344 = vadd.f32 %v2333, %v2340
  %v2345 = vadd.f32 %v2334, %v2341
  %v2346 = vadd.f32 %v2335, %v2340
  %v2347 = vadd.f32 %v2336, %v2341
  %v2348 = vadd.f32 %v2337, %v2340
  %v2349 = vadd.f32 %v2338, %v2341
  %v2350 = vmax.f32 %v2344, 0.0
  %v2351 = vmax.f32 %v2345, 0.0
  %v2352 = vmax.f32 %v2346, 0.0
  %v2353 = vmax.f32 %v2347, 0.0
  %v2354 = vmax.f32 %v2348, 0.0
  %v2355 = vmax.f32 %v2349, 0.0
  %vm2356 = vcmp.lt.s32.totalorder %v575, 256
  %vm2357 = vmand %vm576, %vm2356
  %2358 = vst.msk [vmem:[#allocation4] ss:$8 sm:$0x3] %vm2357, 0.0
  %2359 = vst.msk [vmem:[#allocation4] ss:$8 sm:$0x0] %vm2357, 0.0
  %s2360 = scalar_lea.vmem [#allocation4], 49
  %2361 = vst.msk [vmem:[%s2360] ss:$8 sm:$0x3] %vm2357, 0.0
  %2362 = vst.msk [vmem:[%s2360] ss:$8 sm:$0x0] %vm2357, 0.0
  %v2369 = vrot.slane %v2350, 7
  %v2370 = vrot.slane %v2351, 7
  %v2371 = vrot.slane %v2352, 7
  %v2372 = vsel %vm590, %v2369, %v2371
  %v2373 = vrot.slane %v2353, 7
  %v2374 = vsel %vm590, %v2370, %v2373
  %v2375 = vrot.slane %v2354, 7
  %v2376 = vsel %vm590, %v2371, %v2375
  %v2377 = vrot.slane %v2355, 7
  %v2378 = vsel %vm590, %v2373, %v2377
  %2387 = vst [vmem:[#allocation4] sm:$0xfe] %v2369
  %2388 = vst [vmem:[#allocation4 + $0x8] sm:$0xfe] %v2370
  %2389 = vst [vmem:[#allocation4 + $0x10] sm:$0xff] %v2372
  %2390 = vst [vmem:[#allocation4 + $0x18] sm:$0xff] %v2374
  %2391 = vst [vmem:[#allocation4 + $0x20] sm:$0xff] %v2376
  %2392 = vst [vmem:[#allocation4 + $0x28] sm:$0xff] %v2378
  %2393 = vst [vmem:[#allocation4 + $0x30] sm:$0x1] %v2375
  %2394 = vst [vmem:[#allocation4 + $0x38] sm:$0x1] %v2377
  %v2395 = vld [vmem:[#allocation4] sm:$0xff]
  %v2396 = vld [vmem:[#allocation4 + $0x8] sm:$0xff]
  %v2397 = vld [vmem:[#allocation4 + $0x10] sm:$0xff]
  %v2398 = vld [vmem:[#allocation4 + $0x18] sm:$0xff]
  %v2399 = vld [vmem:[#allocation4 + $0x20] sm:$0xff]
  %v2400 = vld [vmem:[#allocation4 + $0x28] sm:$0xff]
  %v2401 = vld [vmem:[%s7] sm:$0xff]
  %v2402 = vld [vmem:[%s7 + $0x8] sm:$0xff]
  %v2403 = vld [vmem:[%s7 + $0x10] sm:$0xff]
  %v2404 = vld [vmem:[%s7 + $0x18] sm:$0xff]
  %v2405 = vld [vmem:[%s7 + $0x20] sm:$0xff]
  %v2406 = vld [vmem:[%s7 + $0x28] sm:$0xff]
  %v2407 = vld [vmem:[%s7 + $0x30] sm:$0xff]
  %v2408 = vld [vmem:[%s7 + $0x38] sm:$0xff]
  %v2409 = vld [vmem:[%s7 + $0x40] sm:$0xff]
  %v2410 = vld [vmem:[%s7 + $0x48] sm:$0xff]
  %v2411 = vld [vmem:[%s7 + $0x50] sm:$0xff]
  %v2412 = vld [vmem:[%s7 + $0x58] sm:$0xff]
  %v2413 = vld [vmem:[%s7 + $0x60] sm:$0xff]
  %v2414 = vld [vmem:[%s7 + $0x68] sm:$0xff]
  %v2415 = vld [vmem:[%s7 + $0x70] sm:$0xff]
  %v2416 = vld [vmem:[%s7 + $0x78] sm:$0xff]
  %v2417 = vld [vmem:[%s7 + $0x80] sm:$0xff]
  %v2418 = vld [vmem:[%s7 + $0x88] sm:$0xff]
  %v2419 = vld [vmem:[%s7 + $0x90] sm:$0xff]
  %v2420 = vld [vmem:[%s7 + $0x98] sm:$0xff]
  %v2421 = vld [vmem:[%s7 + $0xa0] sm:$0xff]
  %v2422 = vld [vmem:[%s7 + $0xa8] sm:$0xff]
  %v2423 = vld [vmem:[%s7 + $0xb0] sm:$0xff]
  %v2424 = vld [vmem:[%s7 + $0xb8] sm:$0xff]
  %v2425 = vld [vmem:[%s7 + $0xc0] sm:$0xff]
  %v2426 = vld [vmem:[%s7 + $0xc8] sm:$0xff]
  %v2427 = vld [vmem:[%s7 + $0xd0] sm:$0xff]
  %v2428 = vld [vmem:[%s7 + $0xd8] sm:$0xff]
  %v2429 = vld [vmem:[%s7 + $0xe0] sm:$0xff]
  %v2430 = vld [vmem:[%s7 + $0xe8] sm:$0xff]
  %v2431 = vld [vmem:[%s7 + $0xf0] sm:$0xff]
  %v2432 = vld [vmem:[%s7 + $0xf8] sm:$0xff]
  %v2433 = vld [vmem:[%s7 + $0x100] sm:$0xff]
  %v2434 = vld [vmem:[%s7 + $0x108] sm:$0xff]
  %v2435 = vld [vmem:[%s7 + $0x110] sm:$0xff]
  %v2436 = vld [vmem:[%s7 + $0x118] sm:$0xff]
  %v2437 = vld [vmem:[%s7 + $0x120] sm:$0xff]
  %v2438 = vld [vmem:[%s7 + $0x128] sm:$0xff]
  %v2439 = vld [vmem:[%s7 + $0x130] sm:$0xff]
  %v2440 = vld [vmem:[%s7 + $0x138] sm:$0xff]
  %v2441 = vld [vmem:[%s7 + $0x140] sm:$0xff]
  %v2442 = vld [vmem:[%s7 + $0x148] sm:$0xff]
  %v2443 = vld [vmem:[%s7 + $0x150] sm:$0xff]
  %v2444 = vld [vmem:[%s7 + $0x158] sm:$0xff]
  %v2445 = vld [vmem:[%s7 + $0x160] sm:$0xff]
  %v2446 = vld [vmem:[%s7 + $0x168] sm:$0xff]
  %v2447 = vld [vmem:[%s7 + $0x170] sm:$0xff]
  %v2448 = vld [vmem:[%s7 + $0x178] sm:$0xff]
  %v2449 = vld [vmem:[%s7 + $0x180] sm:$0xff]
  %v2450 = vld [vmem:[%s7 + $0x188] sm:$0xff]
  %v2451 = vld [vmem:[%s7 + $0x190] sm:$0xff]
  %v2452 = vld [vmem:[%s7 + $0x198] sm:$0xff]
  %v2453 = vld [vmem:[%s7 + $0x1a0] sm:$0xff]
  %v2454 = vld [vmem:[%s7 + $0x1a8] sm:$0xff]
  %v2455 = vld [vmem:[%s7 + $0x1b0] sm:$0xff]
  %v2456 = vld [vmem:[%s7 + $0x1b8] sm:$0xff]
  %v2457 = vld [vmem:[%s7 + $0x1c0] sm:$0xff]
  %v2458 = vld [vmem:[%s7 + $0x1c8] sm:$0xff]
  %v2459 = vld [vmem:[%s7 + $0x1d0] sm:$0xff]
  %v2460 = vld [vmem:[%s7 + $0x1d8] sm:$0xff]
  %v2461 = vld [vmem:[%s7 + $0x1e0] sm:$0xff]
  %v2462 = vld [vmem:[%s7 + $0x1e8] sm:$0xff]
  %v2463 = vld [vmem:[%s7 + $0x1f0] sm:$0xff]
  %v2464 = vld [vmem:[%s7 + $0x1f8] sm:$0xff]
  %v2465 = vld [vmem:[#allocation4] sm:$0xfe]
  %v2466 = vld [vmem:[#allocation4 + $0x8] sm:$0xfe]
  %v2467 = vld [vmem:[#allocation4 + $0x30] sm:$0x1]
  %v2468 = vld [vmem:[#allocation4 + $0x38] sm:$0x1]
  %s2469 = scalar_lea.vmem %s7, 512
  %v2470 = vld [vmem:[%s2469] sm:$0xff]
  %v2471 = vld [vmem:[%s2469 + $0x8] sm:$0xff]
  %v2472 = vld [vmem:[%s2469 + $0x10] sm:$0xff]
  %v2473 = vld [vmem:[%s2469 + $0x18] sm:$0xff]
  %v2474 = vld [vmem:[%s2469 + $0x20] sm:$0xff]
  %v2475 = vld [vmem:[%s2469 + $0x28] sm:$0xff]
  %v2476 = vld [vmem:[%s2469 + $0x30] sm:$0xff]
  %v2477 = vld [vmem:[%s2469 + $0x38] sm:$0xff]
  %v2478 = vld [vmem:[%s2469 + $0x40] sm:$0xff]
  %v2479 = vld [vmem:[%s2469 + $0x48] sm:$0xff]
  %v2480 = vld [vmem:[%s2469 + $0x50] sm:$0xff]
  %v2481 = vld [vmem:[%s2469 + $0x58] sm:$0xff]
  %v2482 = vld [vmem:[%s2469 + $0x60] sm:$0xff]
  %v2483 = vld [vmem:[%s2469 + $0x68] sm:$0xff]
  %v2484 = vld [vmem:[%s2469 + $0x70] sm:$0xff]
  %v2485 = vld [vmem:[%s2469 + $0x78] sm:$0xff]
  %v2486 = vld [vmem:[%s2469 + $0x80] sm:$0xff]
  %v2487 = vld [vmem:[%s2469 + $0x88] sm:$0xff]
  %v2488 = vld [vmem:[%s2469 + $0x90] sm:$0xff]
  %v2489 = vld [vmem:[%s2469 + $0x98] sm:$0xff]
  %v2490 = vld [vmem:[%s2469 + $0xa0] sm:$0xff]
  %v2491 = vld [vmem:[%s2469 + $0xa8] sm:$0xff]
  %v2492 = vld [vmem:[%s2469 + $0xb0] sm:$0xff]
  %v2493 = vld [vmem:[%s2469 + $0xb8] sm:$0xff]
  %v2494 = vld [vmem:[%s2469 + $0xc0] sm:$0xff]
  %v2495 = vld [vmem:[%s2469 + $0xc8] sm:$0xff]
  %v2496 = vld [vmem:[%s2469 + $0xd0] sm:$0xff]
  %v2497 = vld [vmem:[%s2469 + $0xd8] sm:$0xff]
  %v2498 = vld [vmem:[%s2469 + $0xe0] sm:$0xff]
  %v2499 = vld [vmem:[%s2469 + $0xe8] sm:$0xff]
  %v2500 = vld [vmem:[%s2469 + $0xf0] sm:$0xff]
  %v2501 = vld [vmem:[%s2469 + $0xf8] sm:$0xff]
  %v2502 = vld [vmem:[%s2469 + $0x100] sm:$0xff]
  %v2503 = vld [vmem:[%s2469 + $0x108] sm:$0xff]
  %v2504 = vld [vmem:[%s2469 + $0x110] sm:$0xff]
  %v2505 = vld [vmem:[%s2469 + $0x118] sm:$0xff]
  %v2506 = vld [vmem:[%s2469 + $0x120] sm:$0xff]
  %v2507 = vld [vmem:[%s2469 + $0x128] sm:$0xff]
  %v2508 = vld [vmem:[%s2469 + $0x130] sm:$0xff]
  %v2509 = vld [vmem:[%s2469 + $0x138] sm:$0xff]
  %v2510 = vld [vmem:[%s2469 + $0x140] sm:$0xff]
  %v2511 = vld [vmem:[%s2469 + $0x148] sm:$0xff]
  %v2512 = vld [vmem:[%s2469 + $0x150] sm:$0xff]
  %v2513 = vld [vmem:[%s2469 + $0x158] sm:$0xff]
  %v2514 = vld [vmem:[%s2469 + $0x160] sm:$0xff]
  %v2515 = vld [vmem:[%s2469 + $0x168] sm:$0xff]
  %v2516 = vld [vmem:[%s2469 + $0x170] sm:$0xff]
  %v2517 = vld [vmem:[%s2469 + $0x178] sm:$0xff]
  %v2518 = vld [vmem:[%s2469 + $0x180] sm:$0xff]
  %v2519 = vld [vmem:[%s2469 + $0x188] sm:$0xff]
  %v2520 = vld [vmem:[%s2469 + $0x190] sm:$0xff]
  %v2521 = vld [vmem:[%s2469 + $0x198] sm:$0xff]
  %v2522 = vld [vmem:[%s2469 + $0x1a0] sm:$0xff]
  %v2523 = vld [vmem:[%s2469 + $0x1a8] sm:$0xff]
  %v2524 = vld [vmem:[%s2469 + $0x1b0] sm:$0xff]
  %v2525 = vld [vmem:[%s2469 + $0x1b8] sm:$0xff]
  %v2526 = vld [vmem:[%s2469 + $0x1c0] sm:$0xff]
  %v2527 = vld [vmem:[%s2469 + $0x1c8] sm:$0xff]
  %v2528 = vld [vmem:[%s2469 + $0x1d0] sm:$0xff]
  %v2529 = vld [vmem:[%s2469 + $0x1d8] sm:$0xff]
  %v2530 = vld [vmem:[%s2469 + $0x1e0] sm:$0xff]
  %v2531 = vld [vmem:[%s2469 + $0x1e8] sm:$0xff]
  %v2532 = vld [vmem:[%s2469 + $0x1f0] sm:$0xff]
  %v2533 = vld [vmem:[%s2469 + $0x1f8] sm:$0xff]
  %v2542 = vrot.slane %v2465, 1
  %v2543 = vrot.slane %v2397, 1
  %v2544 = vsel %vm783, %v2542, %v2543
  %v2545 = vrot.slane %v2466, 1
  %v2546 = vrot.slane %v2398, 1
  %v2547 = vsel %vm783, %v2545, %v2546
  %v2548 = vrot.slane %v2399, 1
  %v2549 = vsel %vm783, %v2543, %v2548
  %v2550 = vrot.slane %v2400, 1
  %v2551 = vsel %vm783, %v2546, %v2550
  %v2552 = vrot.slane %v2467, 1
  %v2553 = vsel %vm783, %v2548, %v2552
  %v2554 = vrot.slane %v2468, 1
  %v2555 = vsel %vm783, %v2550, %v2554
  %2562 = vmatpush.msra.mxu0 %v2500
  %2563 = vmatpush.msra.mxu0 %v2498
  %2564 = vmatpush.msra.mxu0 %v2496
  %2565 = vmatpush.msra.mxu0 %v2494
  %2566 = vmatpush.msra.mxu0 %v2492
  %2567 = vmatpush.msra.mxu0 %v2490
  %2568 = vmatpush.msra.mxu0 %v2488
  %2569 = vmatpush.msra.mxu0 %v2486
  %2570 = vmatpush.msra.mxu0 %v2484
  %2571 = vmatpush.msra.mxu0 %v2482
  %2572 = vmatpush.msra.mxu0 %v2480
  %2573 = vmatpush.msra.mxu0 %v2478
  %2574 = vmatpush.msra.mxu0 %v2476
  %2575 = vmatpush.msra.mxu0 %v2474
  %2576 = vmatpush.msra.mxu0 %v2472
  %2577 = vmatpush.msra.mxu0 %v2470
  %2578 = vmatmul.f32.gmra.mxu0 %v2544
  %v2579 = vpop.f32.mrf.mxu0
  %v2580 = vadd.f32 0.0, %v2579
  %2581 = vmatmul.f32.gmra.mxu0 %v2549
  %v2582 = vpop.f32.mrf.mxu0
  %v2583 = vadd.f32 0.0, %v2582
  %2584 = vmatmul.f32.gmra.mxu0 %v2553
  %v2585 = vpop.f32.mrf.mxu0
  %v2586 = vadd.f32 0.0, %v2585
  %2587 = vdwg.mxu0
  %2588 = vmatpush.msra.mxu0 %v2532
  %2589 = vmatpush.msra.mxu0 %v2530
  %2590 = vmatpush.msra.mxu0 %v2528
  %2591 = vmatpush.msra.mxu0 %v2526
  %2592 = vmatpush.msra.mxu0 %v2524
  %2593 = vmatpush.msra.mxu0 %v2522
  %2594 = vmatpush.msra.mxu0 %v2520
  %2595 = vmatpush.msra.mxu0 %v2518
  %2596 = vmatpush.msra.mxu0 %v2516
  %2597 = vmatpush.msra.mxu0 %v2514
  %2598 = vmatpush.msra.mxu0 %v2512
  %2599 = vmatpush.msra.mxu0 %v2510
  %2600 = vmatpush.msra.mxu0 %v2508
  %2601 = vmatpush.msra.mxu0 %v2506
  %2602 = vmatpush.msra.mxu0 %v2504
  %2603 = vmatpush.msra.mxu0 %v2502
  %2604 = vmatmul.f32.gmra.mxu0 %v2547
  %v2605 = vpop.f32.mrf.mxu0
  %v2606 = vadd.f32 %v2580, %v2605
  %2607 = vmatmul.f32.gmra.mxu0 %v2551
  %v2608 = vpop.f32.mrf.mxu0
  %v2609 = vadd.f32 %v2583, %v2608
  %2610 = vmatmul.f32.gmra.mxu0 %v2555
  %v2611 = vpop.f32.mrf.mxu0
  %v2612 = vadd.f32 %v2586, %v2611
  %2613 = vdwg.mxu0
  %2614 = vmatpush.msra.mxu0 %v2501
  %2615 = vmatpush.msra.mxu0 %v2499
  %2616 = vmatpush.msra.mxu0 %v2497
  %2617 = vmatpush.msra.mxu0 %v2495
  %2618 = vmatpush.msra.mxu0 %v2493
  %2619 = vmatpush.msra.mxu0 %v2491
  %2620 = vmatpush.msra.mxu0 %v2489
  %2621 = vmatpush.msra.mxu0 %v2487
  %2622 = vmatpush.msra.mxu0 %v2485
  %2623 = vmatpush.msra.mxu0 %v2483
  %2624 = vmatpush.msra.mxu0 %v2481
  %2625 = vmatpush.msra.mxu0 %v2479
  %2626 = vmatpush.msra.mxu0 %v2477
  %2627 = vmatpush.msra.mxu0 %v2475
  %2628 = vmatpush.msra.mxu0 %v2473
  %2629 = vmatpush.msra.mxu0 %v2471
  %2630 = vmatmul.f32.gmra.mxu0 %v2544
  %v2631 = vpop.f32.mrf.mxu0
  %v2632 = vadd.f32 0.0, %v2631
  %2633 = vmatmul.f32.gmra.mxu0 %v2549
  %v2634 = vpop.f32.mrf.mxu0
  %v2635 = vadd.f32 0.0, %v2634
  %2636 = vmatmul.f32.gmra.mxu0 %v2553
  %v2637 = vpop.f32.mrf.mxu0
  %v2638 = vadd.f32 0.0, %v2637
  %2639 = vdwg.mxu0
  %2640 = vmatpush.msra.mxu0 %v2533
  %2641 = vmatpush.msra.mxu0 %v2531
  %2642 = vmatpush.msra.mxu0 %v2529
  %2643 = vmatpush.msra.mxu0 %v2527
  %2644 = vmatpush.msra.mxu0 %v2525
  %2645 = vmatpush.msra.mxu0 %v2523
  %2646 = vmatpush.msra.mxu0 %v2521
  %2647 = vmatpush.msra.mxu0 %v2519
  %2648 = vmatpush.msra.mxu0 %v2517
  %2649 = vmatpush.msra.mxu0 %v2515
  %2650 = vmatpush.msra.mxu0 %v2513
  %2651 = vmatpush.msra.mxu0 %v2511
  %2652 = vmatpush.msra.mxu0 %v2509
  %2653 = vmatpush.msra.mxu0 %v2507
  %2654 = vmatpush.msra.mxu0 %v2505
  %2655 = vmatpush.msra.mxu0 %v2503
  %2656 = vmatmul.f32.gmra.mxu0 %v2547
  %v2657 = vpop.f32.mrf.mxu0
  %v2658 = vadd.f32 %v2632, %v2657
  %2659 = vmatmul.f32.gmra.mxu0 %v2551
  %v2660 = vpop.f32.mrf.mxu0
  %v2661 = vadd.f32 %v2635, %v2660
  %2662 = vmatmul.f32.gmra.mxu0 %v2555
  %v2663 = vpop.f32.mrf.mxu0
  %v2664 = vadd.f32 %v2638, %v2663
  %2665 = vdwg.mxu0
  %2666 = vmatpush.msra.mxu0 %v2431
  %2667 = vmatpush.msra.mxu0 %v2429
  %2668 = vmatpush.msra.mxu0 %v2427
  %2669 = vmatpush.msra.mxu0 %v2425
  %2670 = vmatpush.msra.mxu0 %v2423
  %2671 = vmatpush.msra.mxu0 %v2421
  %2672 = vmatpush.msra.mxu0 %v2419
  %2673 = vmatpush.msra.mxu0 %v2417
  %2674 = vmatpush.msra.mxu0 %v2415
  %2675 = vmatpush.msra.mxu0 %v2413
  %2676 = vmatpush.msra.mxu0 %v2411
  %2677 = vmatpush.msra.mxu0 %v2409
  %2678 = vmatpush.msra.mxu0 %v2407
  %2679 = vmatpush.msra.mxu0 %v2405
  %2680 = vmatpush.msra.mxu0 %v2403
  %2681 = vmatpush.msra.mxu0 %v2401
  %2682 = vmatmul.f32.gmra.mxu0 %v2395
  %v2683 = vpop.f32.mrf.mxu0
  %v2684 = vadd.f32 %v2606, %v2683
  %2685 = vmatmul.f32.gmra.mxu0 %v2397
  %v2686 = vpop.f32.mrf.mxu0
  %v2687 = vadd.f32 %v2609, %v2686
  %2688 = vmatmul.f32.gmra.mxu0 %v2399
  %v2689 = vpop.f32.mrf.mxu0
  %v2690 = vadd.f32 %v2612, %v2689
  %2691 = vdwg.mxu0
  %2692 = vmatpush.msra.mxu0 %v2463
  %2693 = vmatpush.msra.mxu0 %v2461
  %2694 = vmatpush.msra.mxu0 %v2459
  %2695 = vmatpush.msra.mxu0 %v2457
  %2696 = vmatpush.msra.mxu0 %v2455
  %2697 = vmatpush.msra.mxu0 %v2453
  %2698 = vmatpush.msra.mxu0 %v2451
  %2699 = vmatpush.msra.mxu0 %v2449
  %2700 = vmatpush.msra.mxu0 %v2447
  %2701 = vmatpush.msra.mxu0 %v2445
  %2702 = vmatpush.msra.mxu0 %v2443
  %2703 = vmatpush.msra.mxu0 %v2441
  %2704 = vmatpush.msra.mxu0 %v2439
  %2705 = vmatpush.msra.mxu0 %v2437
  %2706 = vmatpush.msra.mxu0 %v2435
  %2707 = vmatpush.msra.mxu0 %v2433
  %2708 = vmatmul.f32.gmra.mxu0 %v2396
  %v2709 = vpop.f32.mrf.mxu0
  %v2710 = vadd.f32 %v2684, %v2709
  %2711 = vmatmul.f32.gmra.mxu0 %v2398
  %v2712 = vpop.f32.mrf.mxu0
  %v2713 = vadd.f32 %v2687, %v2712
  %2714 = vmatmul.f32.gmra.mxu0 %v2400
  %v2715 = vpop.f32.mrf.mxu0
  %v2716 = vadd.f32 %v2690, %v2715
  %2717 = vdwg.mxu0
  %2718 = vmatpush.msra.mxu0 %v2432
  %2719 = vmatpush.msra.mxu0 %v2430
  %2720 = vmatpush.msra.mxu0 %v2428
  %2721 = vmatpush.msra.mxu0 %v2426
  %2722 = vmatpush.msra.mxu0 %v2424
  %2723 = vmatpush.msra.mxu0 %v2422
  %2724 = vmatpush.msra.mxu0 %v2420
  %2725 = vmatpush.msra.mxu0 %v2418
  %2726 = vmatpush.msra.mxu0 %v2416
  %2727 = vmatpush.msra.mxu0 %v2414
  %2728 = vmatpush.msra.mxu0 %v2412
  %2729 = vmatpush.msra.mxu0 %v2410
  %2730 = vmatpush.msra.mxu0 %v2408
  %2731 = vmatpush.msra.mxu0 %v2406
  %2732 = vmatpush.msra.mxu0 %v2404
  %2733 = vmatpush.msra.mxu0 %v2402
  %2734 = vmatmul.f32.gmra.mxu0 %v2395
  %v2735 = vpop.f32.mrf.mxu0
  %v2736 = vadd.f32 %v2658, %v2735
  %2737 = vmatmul.f32.gmra.mxu0 %v2397
  %v2738 = vpop.f32.mrf.mxu0
  %v2739 = vadd.f32 %v2661, %v2738
  %2740 = vmatmul.f32.gmra.mxu0 %v2399
  %v2741 = vpop.f32.mrf.mxu0
  %v2742 = vadd.f32 %v2664, %v2741
  %2743 = vdwg.mxu0
  %2744 = vmatpush.msra.mxu0 %v2464
  %2745 = vmatpush.msra.mxu0 %v2462
  %2746 = vmatpush.msra.mxu0 %v2460
  %2747 = vmatpush.msra.mxu0 %v2458
  %2748 = vmatpush.msra.mxu0 %v2456
  %2749 = vmatpush.msra.mxu0 %v2454
  %2750 = vmatpush.msra.mxu0 %v2452
  %2751 = vmatpush.msra.mxu0 %v2450
  %2752 = vmatpush.msra.mxu0 %v2448
  %2753 = vmatpush.msra.mxu0 %v2446
  %2754 = vmatpush.msra.mxu0 %v2444
  %2755 = vmatpush.msra.mxu0 %v2442
  %2756 = vmatpush.msra.mxu0 %v2440
  %2757 = vmatpush.msra.mxu0 %v2438
  %2758 = vmatpush.msra.mxu0 %v2436
  %2759 = vmatpush.msra.mxu0 %v2434
  %2760 = vmatmul.f32.gmra.mxu0 %v2396
  %v2761 = vpop.f32.mrf.mxu0
  %v2762 = vadd.f32 %v2736, %v2761
  %2763 = vmatmul.f32.gmra.mxu0 %v2398
  %v2764 = vpop.f32.mrf.mxu0
  %v2765 = vadd.f32 %v2739, %v2764
  %2766 = vmatmul.f32.gmra.mxu0 %v2400
  %v2767 = vpop.f32.mrf.mxu0
  %v2768 = vadd.f32 %v2742, %v2767
  %2769 = vdwg.mxu0
  %v2770 = vld [vmem:[#allocation4] sm:$0xfc]
  %v2771 = vld [vmem:[#allocation4 + $0x8] sm:$0xfc]
  %v2772 = vld [vmem:[#allocation4 + $0x30] sm:$0x3]
  %v2773 = vld [vmem:[#allocation4 + $0x38] sm:$0x3]
  %s2774 = scalar_lea.vmem %s7, 1024
  %v2775 = vld [vmem:[%s2774] sm:$0xff]
  %v2776 = vld [vmem:[%s2774 + $0x8] sm:$0xff]
  %v2777 = vld [vmem:[%s2774 + $0x10] sm:$0xff]
  %v2778 = vld [vmem:[%s2774 + $0x18] sm:$0xff]
  %v2779 = vld [vmem:[%s2774 + $0x20] sm:$0xff]
  %v2780 = vld [vmem:[%s2774 + $0x28] sm:$0xff]
  %v2781 = vld [vmem:[%s2774 + $0x30] sm:$0xff]
  %v2782 = vld [vmem:[%s2774 + $0x38] sm:$0xff]
  %v2783 = vld [vmem:[%s2774 + $0x40] sm:$0xff]
  %v2784 = vld [vmem:[%s2774 + $0x48] sm:$0xff]
  %v2785 = vld [vmem:[%s2774 + $0x50] sm:$0xff]
  %v2786 = vld [vmem:[%s2774 + $0x58] sm:$0xff]
  %v2787 = vld [vmem:[%s2774 + $0x60] sm:$0xff]
  %v2788 = vld [vmem:[%s2774 + $0x68] sm:$0xff]
  %v2789 = vld [vmem:[%s2774 + $0x70] sm:$0xff]
  %v2790 = vld [vmem:[%s2774 + $0x78] sm:$0xff]
  %v2791 = vld [vmem:[%s2774 + $0x80] sm:$0xff]
  %v2792 = vld [vmem:[%s2774 + $0x88] sm:$0xff]
  %v2793 = vld [vmem:[%s2774 + $0x90] sm:$0xff]
  %v2794 = vld [vmem:[%s2774 + $0x98] sm:$0xff]
  %v2795 = vld [vmem:[%s2774 + $0xa0] sm:$0xff]
  %v2796 = vld [vmem:[%s2774 + $0xa8] sm:$0xff]
  %v2797 = vld [vmem:[%s2774 + $0xb0] sm:$0xff]
  %v2798 = vld [vmem:[%s2774 + $0xb8] sm:$0xff]
  %v2799 = vld [vmem:[%s2774 + $0xc0] sm:$0xff]
  %v2800 = vld [vmem:[%s2774 + $0xc8] sm:$0xff]
  %v2801 = vld [vmem:[%s2774 + $0xd0] sm:$0xff]
  %v2802 = vld [vmem:[%s2774 + $0xd8] sm:$0xff]
  %v2803 = vld [vmem:[%s2774 + $0xe0] sm:$0xff]
  %v2804 = vld [vmem:[%s2774 + $0xe8] sm:$0xff]
  %v2805 = vld [vmem:[%s2774 + $0xf0] sm:$0xff]
  %v2806 = vld [vmem:[%s2774 + $0xf8] sm:$0xff]
  %v2807 = vld [vmem:[%s2774 + $0x100] sm:$0xff]
  %v2808 = vld [vmem:[%s2774 + $0x108] sm:$0xff]
  %v2809 = vld [vmem:[%s2774 + $0x110] sm:$0xff]
  %v2810 = vld [vmem:[%s2774 + $0x118] sm:$0xff]
  %v2811 = vld [vmem:[%s2774 + $0x120] sm:$0xff]
  %v2812 = vld [vmem:[%s2774 + $0x128] sm:$0xff]
  %v2813 = vld [vmem:[%s2774 + $0x130] sm:$0xff]
  %v2814 = vld [vmem:[%s2774 + $0x138] sm:$0xff]
  %v2815 = vld [vmem:[%s2774 + $0x140] sm:$0xff]
  %v2816 = vld [vmem:[%s2774 + $0x148] sm:$0xff]
  %v2817 = vld [vmem:[%s2774 + $0x150] sm:$0xff]
  %v2818 = vld [vmem:[%s2774 + $0x158] sm:$0xff]
  %v2819 = vld [vmem:[%s2774 + $0x160] sm:$0xff]
  %v2820 = vld [vmem:[%s2774 + $0x168] sm:$0xff]
  %v2821 = vld [vmem:[%s2774 + $0x170] sm:$0xff]
  %v2822 = vld [vmem:[%s2774 + $0x178] sm:$0xff]
  %v2823 = vld [vmem:[%s2774 + $0x180] sm:$0xff]
  %v2824 = vld [vmem:[%s2774 + $0x188] sm:$0xff]
  %v2825 = vld [vmem:[%s2774 + $0x190] sm:$0xff]
  %v2826 = vld [vmem:[%s2774 + $0x198] sm:$0xff]
  %v2827 = vld [vmem:[%s2774 + $0x1a0] sm:$0xff]
  %v2828 = vld [vmem:[%s2774 + $0x1a8] sm:$0xff]
  %v2829 = vld [vmem:[%s2774 + $0x1b0] sm:$0xff]
  %v2830 = vld [vmem:[%s2774 + $0x1b8] sm:$0xff]
  %v2831 = vld [vmem:[%s2774 + $0x1c0] sm:$0xff]
  %v2832 = vld [vmem:[%s2774 + $0x1c8] sm:$0xff]
  %v2833 = vld [vmem:[%s2774 + $0x1d0] sm:$0xff]
  %v2834 = vld [vmem:[%s2774 + $0x1d8] sm:$0xff]
  %v2835 = vld [vmem:[%s2774 + $0x1e0] sm:$0xff]
  %v2836 = vld [vmem:[%s2774 + $0x1e8] sm:$0xff]
  %v2837 = vld [vmem:[%s2774 + $0x1f0] sm:$0xff]
  %v2838 = vld [vmem:[%s2774 + $0x1f8] sm:$0xff]
  %v2843 = vrot.slane %v2770, 2
  %v2844 = vrot.slane %v2397, 2
  %v2845 = vsel %vm1207, %v2843, %v2844
  %v2846 = vrot.slane %v2771, 2
  %v2847 = vrot.slane %v2398, 2
  %v2848 = vsel %vm1207, %v2846, %v2847
  %v2849 = vrot.slane %v2399, 2
  %v2850 = vsel %vm1207, %v2844, %v2849
  %v2851 = vrot.slane %v2400, 2
  %v2852 = vsel %vm1207, %v2847, %v2851
  %v2853 = vrot.slane %v2772, 2
  %v2854 = vsel %vm1207, %v2849, %v2853
  %v2855 = vrot.slane %v2773, 2
  %v2856 = vsel %vm1207, %v2851, %v2855
  %2863 = vmatpush.msra.mxu0 %v2805
  %2864 = vmatpush.msra.mxu0 %v2803
  %2865 = vmatpush.msra.mxu0 %v2801
  %2866 = vmatpush.msra.mxu0 %v2799
  %2867 = vmatpush.msra.mxu0 %v2797
  %2868 = vmatpush.msra.mxu0 %v2795
  %2869 = vmatpush.msra.mxu0 %v2793
  %2870 = vmatpush.msra.mxu0 %v2791
  %2871 = vmatpush.msra.mxu0 %v2789
  %2872 = vmatpush.msra.mxu0 %v2787
  %2873 = vmatpush.msra.mxu0 %v2785
  %2874 = vmatpush.msra.mxu0 %v2783
  %2875 = vmatpush.msra.mxu0 %v2781
  %2876 = vmatpush.msra.mxu0 %v2779
  %2877 = vmatpush.msra.mxu0 %v2777
  %2878 = vmatpush.msra.mxu0 %v2775
  %2879 = vmatmul.f32.gmra.mxu0 %v2845
  %v2880 = vpop.f32.mrf.mxu0
  %v2881 = vadd.f32 0.0, %v2880
  %2882 = vmatmul.f32.gmra.mxu0 %v2850
  %v2883 = vpop.f32.mrf.mxu0
  %v2884 = vadd.f32 0.0, %v2883
  %2885 = vmatmul.f32.gmra.mxu0 %v2854
  %v2886 = vpop.f32.mrf.mxu0
  %v2887 = vadd.f32 0.0, %v2886
  %2888 = vdwg.mxu0
  %2889 = vmatpush.msra.mxu0 %v2837
  %2890 = vmatpush.msra.mxu0 %v2835
  %2891 = vmatpush.msra.mxu0 %v2833
  %2892 = vmatpush.msra.mxu0 %v2831
  %2893 = vmatpush.msra.mxu0 %v2829
  %2894 = vmatpush.msra.mxu0 %v2827
  %2895 = vmatpush.msra.mxu0 %v2825
  %2896 = vmatpush.msra.mxu0 %v2823
  %2897 = vmatpush.msra.mxu0 %v2821
  %2898 = vmatpush.msra.mxu0 %v2819
  %2899 = vmatpush.msra.mxu0 %v2817
  %2900 = vmatpush.msra.mxu0 %v2815
  %2901 = vmatpush.msra.mxu0 %v2813
  %2902 = vmatpush.msra.mxu0 %v2811
  %2903 = vmatpush.msra.mxu0 %v2809
  %2904 = vmatpush.msra.mxu0 %v2807
  %2905 = vmatmul.f32.gmra.mxu0 %v2848
  %v2906 = vpop.f32.mrf.mxu0
  %v2907 = vadd.f32 %v2881, %v2906
  %2908 = vmatmul.f32.gmra.mxu0 %v2852
  %v2909 = vpop.f32.mrf.mxu0
  %v2910 = vadd.f32 %v2884, %v2909
  %2911 = vmatmul.f32.gmra.mxu0 %v2856
  %v2912 = vpop.f32.mrf.mxu0
  %v2913 = vadd.f32 %v2887, %v2912
  %2914 = vdwg.mxu0
  %2915 = vmatpush.msra.mxu0 %v2806
  %2916 = vmatpush.msra.mxu0 %v2804
  %2917 = vmatpush.msra.mxu0 %v2802
  %2918 = vmatpush.msra.mxu0 %v2800
  %2919 = vmatpush.msra.mxu0 %v2798
  %2920 = vmatpush.msra.mxu0 %v2796
  %2921 = vmatpush.msra.mxu0 %v2794
  %2922 = vmatpush.msra.mxu0 %v2792
  %2923 = vmatpush.msra.mxu0 %v2790
  %2924 = vmatpush.msra.mxu0 %v2788
  %2925 = vmatpush.msra.mxu0 %v2786
  %2926 = vmatpush.msra.mxu0 %v2784
  %2927 = vmatpush.msra.mxu0 %v2782
  %2928 = vmatpush.msra.mxu0 %v2780
  %2929 = vmatpush.msra.mxu0 %v2778
  %2930 = vmatpush.msra.mxu0 %v2776
  %2931 = vmatmul.f32.gmra.mxu0 %v2845
  %v2932 = vpop.f32.mrf.mxu0
  %v2933 = vadd.f32 0.0, %v2932
  %2934 = vmatmul.f32.gmra.mxu0 %v2850
  %v2935 = vpop.f32.mrf.mxu0
  %v2936 = vadd.f32 0.0, %v2935
  %2937 = vmatmul.f32.gmra.mxu0 %v2854
  %v2938 = vpop.f32.mrf.mxu0
  %v2939 = vadd.f32 0.0, %v2938
  %2940 = vdwg.mxu0
  %2941 = vmatpush.msra.mxu0 %v2838
  %2942 = vmatpush.msra.mxu0 %v2836
  %2943 = vmatpush.msra.mxu0 %v2834
  %2944 = vmatpush.msra.mxu0 %v2832
  %2945 = vmatpush.msra.mxu0 %v2830
  %2946 = vmatpush.msra.mxu0 %v2828
  %2947 = vmatpush.msra.mxu0 %v2826
  %2948 = vmatpush.msra.mxu0 %v2824
  %2949 = vmatpush.msra.mxu0 %v2822
  %2950 = vmatpush.msra.mxu0 %v2820
  %2951 = vmatpush.msra.mxu0 %v2818
  %2952 = vmatpush.msra.mxu0 %v2816
  %2953 = vmatpush.msra.mxu0 %v2814
  %2954 = vmatpush.msra.mxu0 %v2812
  %2955 = vmatpush.msra.mxu0 %v2810
  %2956 = vmatpush.msra.mxu0 %v2808
  %2957 = vmatmul.f32.gmra.mxu0 %v2848
  %v2958 = vpop.f32.mrf.mxu0
  %v2959 = vadd.f32 %v2933, %v2958
  %2960 = vmatmul.f32.gmra.mxu0 %v2852
  %v2961 = vpop.f32.mrf.mxu0
  %v2962 = vadd.f32 %v2936, %v2961
  %2963 = vmatmul.f32.gmra.mxu0 %v2856
  %v2964 = vpop.f32.mrf.mxu0
  %v2965 = vadd.f32 %v2939, %v2964
  %2966 = vdwg.mxu0
  %v2967 = vadd.f32 %v2710, %v2907
  %v2968 = vadd.f32 %v2762, %v2959
  %v2969 = vadd.f32 %v2713, %v2910
  %v2970 = vadd.f32 %v2765, %v2962
  %v2971 = vadd.f32 %v2716, %v2913
  %v2972 = vadd.f32 %v2768, %v2965
  %v2974 = vperm.slane %v99, 0
  %v2975 = vperm.slane %v99, 1
  %v2978 = vadd.f32 %v2967, %v2974
  %v2979 = vadd.f32 %v2968, %v2975
  %v2980 = vadd.f32 %v2969, %v2974
  %v2981 = vadd.f32 %v2970, %v2975
  %v2982 = vadd.f32 %v2971, %v2974
  %v2983 = vadd.f32 %v2972, %v2975
  %v2984 = vmax.f32 %v2978, 0.0
  %v2985 = vmax.f32 %v2979, 0.0
  %v2986 = vmax.f32 %v2980, 0.0
  %v2987 = vmax.f32 %v2981, 0.0
  %v2988 = vmax.f32 %v2982, 0.0
  %v2989 = vmax.f32 %v2983, 0.0
  %2990 = vst [vmem:[%s9] sm:$0xff] %v2984
  %2991 = vst [vmem:[%s9 + $0x8] sm:$0xff] %v2985
  %2992 = vst [vmem:[%s9 + $0x10] sm:$0xff] %v2986
  %2993 = vst [vmem:[%s9 + $0x18] sm:$0xff] %v2987
  %2994 = vst [vmem:[%s9 + $0x20] sm:$0xff] %v2988
  %2995 = vst [vmem:[%s9 + $0x28] sm:$0xff] %v2989
  %s2996 = scalar_lea.vmem %s0, 192
  %v2997 = vld [vmem:[%s2996] sm:$0xff]
  %v2998 = vld [vmem:[%s2996 + $0x8] sm:$0xff]
  %v2999 = vld [vmem:[%s2996 + $0x10] sm:$0xff]
  %v3000 = vld [vmem:[%s2996 + $0x18] sm:$0xff]
  %v3001 = vld [vmem:[%s2996 + $0x20] sm:$0xff]
  %v3002 = vld [vmem:[%s2996 + $0x28] sm:$0xff]
  %v3003 = vld [vmem:[%s2996 + $0x30] sm:$0xff]
  %v3004 = vld [vmem:[%s2996 + $0x38] sm:$0xff]
  %v3005 = vld [vmem:[%s2996 + $0x40] sm:$0xff]
  %v3006 = vld [vmem:[%s2996 + $0x48] sm:$0xff]
  %v3007 = vld [vmem:[%s2996 + $0x50] sm:$0xff]
  %v3008 = vld [vmem:[%s2996 + $0x58] sm:$0xff]
  %v3009 = vld [vmem:[%s2996 + $0x60] sm:$0xff]
  %v3010 = vld [vmem:[%s2996 + $0x68] sm:$0xff]
  %v3011 = vld [vmem:[%s2996 + $0x70] sm:$0xff]
  %v3012 = vld [vmem:[%s2996 + $0x78] sm:$0xff]
  %v3013 = vld [vmem:[%s2996 + $0x80] sm:$0xff]
  %v3014 = vld [vmem:[%s2996 + $0x88] sm:$0xff]
  %v3015 = vld [vmem:[%s2996 + $0x90] sm:$0xff]
  %v3016 = vld [vmem:[%s2996 + $0x98] sm:$0xff]
  %v3017 = vld [vmem:[%s2996 + $0xa0] sm:$0xff]
  %v3018 = vld [vmem:[%s2996 + $0xa8] sm:$0xff]
  %v3019 = vld [vmem:[%s2996 + $0xb0] sm:$0xff]
  %v3020 = vld [vmem:[%s2996 + $0xb8] sm:$0xff]
  %3021 = vmatpush.msra.mxu0 %v62
  %3022 = vmatpush.msra.mxu0 %v60
  %3023 = vmatpush.msra.mxu0 %v58
  %3024 = vmatpush.msra.mxu0 %v56
  %3025 = vmatpush.msra.mxu0 %v54
  %3026 = vmatpush.msra.mxu0 %v52
  %3027 = vmatpush.msra.mxu0 %v50
  %3028 = vmatpush.msra.mxu0 %v48
  %3029 = vmatpush.msra.mxu0 %v46
  %3030 = vmatpush.msra.mxu0 %v44
  %3031 = vmatpush.msra.mxu0 %v42
  %3032 = vmatpush.msra.mxu0 %v40
  %3033 = vmatpush.msra.mxu0 %v38
  %3034 = vmatpush.msra.mxu0 %v36
  %3035 = vmatpush.msra.mxu0 %v34
  %3036 = vmatpush.msra.mxu0 %v32
  %3037 = vmatmul.f32.gmra.mxu0 %v2997
  %v3038 = vpop.f32.mrf.mxu0
  %v3039 = vadd.f32 0.0, %v3038
  %3040 = vmatmul.f32.gmra.mxu0 %v3005
  %v3041 = vpop.f32.mrf.mxu0
  %v3042 = vadd.f32 0.0, %v3041
  %3043 = vmatmul.f32.gmra.mxu0 %v3013
  %v3044 = vpop.f32.mrf.mxu0
  %v3045 = vadd.f32 0.0, %v3044
  %3046 = vdwg.mxu0
  %3047 = vmatpush.msra.mxu0 %v94
  %3048 = vmatpush.msra.mxu0 %v92
  %3049 = vmatpush.msra.mxu0 %v90
  %3050 = vmatpush.msra.mxu0 %v88
  %3051 = vmatpush.msra.mxu0 %v86
  %3052 = vmatpush.msra.mxu0 %v84
  %3053 = vmatpush.msra.mxu0 %v82
  %3054 = vmatpush.msra.mxu0 %v80
  %3055 = vmatpush.msra.mxu0 %v78
  %3056 = vmatpush.msra.mxu0 %v76
  %3057 = vmatpush.msra.mxu0 %v74
  %3058 = vmatpush.msra.mxu0 %v72
  %3059 = vmatpush.msra.mxu0 %v70
  %3060 = vmatpush.msra.mxu0 %v68
  %3061 = vmatpush.msra.mxu0 %v66
  %3062 = vmatpush.msra.mxu0 %v64
  %3063 = vmatmul.f32.gmra.mxu0 %v2998
  %v3064 = vpop.f32.mrf.mxu0
  %v3065 = vadd.f32 %v3039, %v3064
  %3066 = vmatmul.f32.gmra.mxu0 %v3006
  %v3067 = vpop.f32.mrf.mxu0
  %v3068 = vadd.f32 %v3042, %v3067
  %3069 = vmatmul.f32.gmra.mxu0 %v3014
  %v3070 = vpop.f32.mrf.mxu0
  %v3071 = vadd.f32 %v3045, %v3070
  %3072 = vdwg.mxu0
  %3073 = vmatpush.msra.mxu0 %v63
  %3074 = vmatpush.msra.mxu0 %v61
  %3075 = vmatpush.msra.mxu0 %v59
  %3076 = vmatpush.msra.mxu0 %v57
  %3077 = vmatpush.msra.mxu0 %v55
  %3078 = vmatpush.msra.mxu0 %v53
  %3079 = vmatpush.msra.mxu0 %v51
  %3080 = vmatpush.msra.mxu0 %v49
  %3081 = vmatpush.msra.mxu0 %v47
  %3082 = vmatpush.msra.mxu0 %v45
  %3083 = vmatpush.msra.mxu0 %v43
  %3084 = vmatpush.msra.mxu0 %v41
  %3085 = vmatpush.msra.mxu0 %v39
  %3086 = vmatpush.msra.mxu0 %v37
  %3087 = vmatpush.msra.mxu0 %v35
  %3088 = vmatpush.msra.mxu0 %v33
  %3089 = vmatmul.f32.gmra.mxu0 %v2997
  %v3090 = vpop.f32.mrf.mxu0
  %v3091 = vadd.f32 0.0, %v3090
  %3092 = vmatmul.f32.gmra.mxu0 %v3005
  %v3093 = vpop.f32.mrf.mxu0
  %v3094 = vadd.f32 0.0, %v3093
  %3095 = vmatmul.f32.gmra.mxu0 %v3013
  %v3096 = vpop.f32.mrf.mxu0
  %v3097 = vadd.f32 0.0, %v3096
  %3098 = vdwg.mxu0
  %3099 = vmatpush.msra.mxu0 %v95
  %3100 = vmatpush.msra.mxu0 %v93
  %3101 = vmatpush.msra.mxu0 %v91
  %3102 = vmatpush.msra.mxu0 %v89
  %3103 = vmatpush.msra.mxu0 %v87
  %3104 = vmatpush.msra.mxu0 %v85
  %3105 = vmatpush.msra.mxu0 %v83
  %3106 = vmatpush.msra.mxu0 %v81
  %3107 = vmatpush.msra.mxu0 %v79
  %3108 = vmatpush.msra.mxu0 %v77
  %3109 = vmatpush.msra.mxu0 %v75
  %3110 = vmatpush.msra.mxu0 %v73
  %3111 = vmatpush.msra.mxu0 %v71
  %3112 = vmatpush.msra.mxu0 %v69
  %3113 = vmatpush.msra.mxu0 %v67
  %3114 = vmatpush.msra.mxu0 %v65
  %3115 = vmatmul.f32.gmra.mxu0 %v2998
  %v3116 = vpop.f32.mrf.mxu0
  %v3117 = vadd.f32 %v3091, %v3116
  %3118 = vmatmul.f32.gmra.mxu0 %v3006
  %v3119 = vpop.f32.mrf.mxu0
  %v3120 = vadd.f32 %v3094, %v3119
  %3121 = vmatmul.f32.gmra.mxu0 %v3014
  %v3122 = vpop.f32.mrf.mxu0
  %v3123 = vadd.f32 %v3097, %v3122
  %3124 = vdwg.mxu0
  %3125 = vmatpush.msra.mxu0 %v62
  %3126 = vmatpush.msra.mxu0 %v60
  %3127 = vmatpush.msra.mxu0 %v58
  %3128 = vmatpush.msra.mxu0 %v56
  %3129 = vmatpush.msra.mxu0 %v54
  %3130 = vmatpush.msra.mxu0 %v52
  %3131 = vmatpush.msra.mxu0 %v50
  %3132 = vmatpush.msra.mxu0 %v48
  %3133 = vmatpush.msra.mxu0 %v46
  %3134 = vmatpush.msra.mxu0 %v44
  %3135 = vmatpush.msra.mxu0 %v42
  %3136 = vmatpush.msra.mxu0 %v40
  %3137 = vmatpush.msra.mxu0 %v38
  %3138 = vmatpush.msra.mxu0 %v36
  %3139 = vmatpush.msra.mxu0 %v34
  %3140 = vmatpush.msra.mxu0 %v32
  %3141 = vmatmul.f32.gmra.mxu0 %v2999
  %v3142 = vpop.f32.mrf.mxu0
  %v3143 = vadd.f32 0.0, %v3142
  %3144 = vmatmul.f32.gmra.mxu0 %v3007
  %v3145 = vpop.f32.mrf.mxu0
  %v3146 = vadd.f32 0.0, %v3145
  %3147 = vmatmul.f32.gmra.mxu0 %v3015
  %v3148 = vpop.f32.mrf.mxu0
  %v3149 = vadd.f32 0.0, %v3148
  %3150 = vdwg.mxu0
  %3151 = vmatpush.msra.mxu0 %v94
  %3152 = vmatpush.msra.mxu0 %v92
  %3153 = vmatpush.msra.mxu0 %v90
  %3154 = vmatpush.msra.mxu0 %v88
  %3155 = vmatpush.msra.mxu0 %v86
  %3156 = vmatpush.msra.mxu0 %v84
  %3157 = vmatpush.msra.mxu0 %v82
  %3158 = vmatpush.msra.mxu0 %v80
  %3159 = vmatpush.msra.mxu0 %v78
  %3160 = vmatpush.msra.mxu0 %v76
  %3161 = vmatpush.msra.mxu0 %v74
  %3162 = vmatpush.msra.mxu0 %v72
  %3163 = vmatpush.msra.mxu0 %v70
  %3164 = vmatpush.msra.mxu0 %v68
  %3165 = vmatpush.msra.mxu0 %v66
  %3166 = vmatpush.msra.mxu0 %v64
  %3167 = vmatmul.f32.gmra.mxu0 %v3000
  %v3168 = vpop.f32.mrf.mxu0
  %v3169 = vadd.f32 %v3143, %v3168
  %3170 = vmatmul.f32.gmra.mxu0 %v3008
  %v3171 = vpop.f32.mrf.mxu0
  %v3172 = vadd.f32 %v3146, %v3171
  %3173 = vmatmul.f32.gmra.mxu0 %v3016
  %v3174 = vpop.f32.mrf.mxu0
  %v3175 = vadd.f32 %v3149, %v3174
  %3176 = vdwg.mxu0
  %3177 = vmatpush.msra.mxu0 %v63
  %3178 = vmatpush.msra.mxu0 %v61
  %3179 = vmatpush.msra.mxu0 %v59
  %3180 = vmatpush.msra.mxu0 %v57
  %3181 = vmatpush.msra.mxu0 %v55
  %3182 = vmatpush.msra.mxu0 %v53
  %3183 = vmatpush.msra.mxu0 %v51
  %3184 = vmatpush.msra.mxu0 %v49
  %3185 = vmatpush.msra.mxu0 %v47
  %3186 = vmatpush.msra.mxu0 %v45
  %3187 = vmatpush.msra.mxu0 %v43
  %3188 = vmatpush.msra.mxu0 %v41
  %3189 = vmatpush.msra.mxu0 %v39
  %3190 = vmatpush.msra.mxu0 %v37
  %3191 = vmatpush.msra.mxu0 %v35
  %3192 = vmatpush.msra.mxu0 %v33
  %3193 = vmatmul.f32.gmra.mxu0 %v2999
  %v3194 = vpop.f32.mrf.mxu0
  %v3195 = vadd.f32 0.0, %v3194
  %3196 = vmatmul.f32.gmra.mxu0 %v3007
  %v3197 = vpop.f32.mrf.mxu0
  %v3198 = vadd.f32 0.0, %v3197
  %3199 = vmatmul.f32.gmra.mxu0 %v3015
  %v3200 = vpop.f32.mrf.mxu0
  %v3201 = vadd.f32 0.0, %v3200
  %3202 = vdwg.mxu0
  %3203 = vmatpush.msra.mxu0 %v95
  %3204 = vmatpush.msra.mxu0 %v93
  %3205 = vmatpush.msra.mxu0 %v91
  %3206 = vmatpush.msra.mxu0 %v89
  %3207 = vmatpush.msra.mxu0 %v87
  %3208 = vmatpush.msra.mxu0 %v85
  %3209 = vmatpush.msra.mxu0 %v83
  %3210 = vmatpush.msra.mxu0 %v81
  %3211 = vmatpush.msra.mxu0 %v79
  %3212 = vmatpush.msra.mxu0 %v77
  %3213 = vmatpush.msra.mxu0 %v75
  %3214 = vmatpush.msra.mxu0 %v73
  %3215 = vmatpush.msra.mxu0 %v71
  %3216 = vmatpush.msra.mxu0 %v69
  %3217 = vmatpush.msra.mxu0 %v67
  %3218 = vmatpush.msra.mxu0 %v65
  %3219 = vmatmul.f32.gmra.mxu0 %v3000
  %v3220 = vpop.f32.mrf.mxu0
  %v3221 = vadd.f32 %v3195, %v3220
  %3222 = vmatmul.f32.gmra.mxu0 %v3008
  %v3223 = vpop.f32.mrf.mxu0
  %v3224 = vadd.f32 %v3198, %v3223
  %3225 = vmatmul.f32.gmra.mxu0 %v3016
  %v3226 = vpop.f32.mrf.mxu0
  %v3227 = vadd.f32 %v3201, %v3226
  %3228 = vdwg.mxu0
  %v3229 = vmax.f32 %v3065, %v3169
  %v3230 = vmax.f32 %v3117, %v3221
  %v3231 = vmax.f32 %v3068, %v3172
  %v3232 = vmax.f32 %v3120, %v3224
  %v3233 = vmax.f32 %v3071, %v3175
  %v3234 = vmax.f32 %v3123, %v3227
  %3235 = vmatpush.msra.mxu0 %v62
  %3236 = vmatpush.msra.mxu0 %v60
  %3237 = vmatpush.msra.mxu0 %v58
  %3238 = vmatpush.msra.mxu0 %v56
  %3239 = vmatpush.msra.mxu0 %v54
  %3240 = vmatpush.msra.mxu0 %v52
  %3241 = vmatpush.msra.mxu0 %v50
  %3242 = vmatpush.msra.mxu0 %v48
  %3243 = vmatpush.msra.mxu0 %v46
  %3244 = vmatpush.msra.mxu0 %v44
  %3245 = vmatpush.msra.mxu0 %v42
  %3246 = vmatpush.msra.mxu0 %v40
  %3247 = vmatpush.msra.mxu0 %v38
  %3248 = vmatpush.msra.mxu0 %v36
  %3249 = vmatpush.msra.mxu0 %v34
  %3250 = vmatpush.msra.mxu0 %v32
  %3251 = vmatmul.f32.gmra.mxu0 %v3001
  %v3252 = vpop.f32.mrf.mxu0
  %v3253 = vadd.f32 0.0, %v3252
  %3254 = vmatmul.f32.gmra.mxu0 %v3009
  %v3255 = vpop.f32.mrf.mxu0
  %v3256 = vadd.f32 0.0, %v3255
  %3257 = vmatmul.f32.gmra.mxu0 %v3017
  %v3258 = vpop.f32.mrf.mxu0
  %v3259 = vadd.f32 0.0, %v3258
  %3260 = vdwg.mxu0
  %3261 = vmatpush.msra.mxu0 %v94
  %3262 = vmatpush.msra.mxu0 %v92
  %3263 = vmatpush.msra.mxu0 %v90
  %3264 = vmatpush.msra.mxu0 %v88
  %3265 = vmatpush.msra.mxu0 %v86
  %3266 = vmatpush.msra.mxu0 %v84
  %3267 = vmatpush.msra.mxu0 %v82
  %3268 = vmatpush.msra.mxu0 %v80
  %3269 = vmatpush.msra.mxu0 %v78
  %3270 = vmatpush.msra.mxu0 %v76
  %3271 = vmatpush.msra.mxu0 %v74
  %3272 = vmatpush.msra.mxu0 %v72
  %3273 = vmatpush.msra.mxu0 %v70
  %3274 = vmatpush.msra.mxu0 %v68
  %3275 = vmatpush.msra.mxu0 %v66
  %3276 = vmatpush.msra.mxu0 %v64
  %3277 = vmatmul.f32.gmra.mxu0 %v3002
  %v3278 = vpop.f32.mrf.mxu0
  %v3279 = vadd.f32 %v3253, %v3278
  %3280 = vmatmul.f32.gmra.mxu0 %v3010
  %v3281 = vpop.f32.mrf.mxu0
  %v3282 = vadd.f32 %v3256, %v3281
  %3283 = vmatmul.f32.gmra.mxu0 %v3018
  %v3284 = vpop.f32.mrf.mxu0
  %v3285 = vadd.f32 %v3259, %v3284
  %3286 = vdwg.mxu0
  %3287 = vmatpush.msra.mxu0 %v63
  %3288 = vmatpush.msra.mxu0 %v61
  %3289 = vmatpush.msra.mxu0 %v59
  %3290 = vmatpush.msra.mxu0 %v57
  %3291 = vmatpush.msra.mxu0 %v55
  %3292 = vmatpush.msra.mxu0 %v53
  %3293 = vmatpush.msra.mxu0 %v51
  %3294 = vmatpush.msra.mxu0 %v49
  %3295 = vmatpush.msra.mxu0 %v47
  %3296 = vmatpush.msra.mxu0 %v45
  %3297 = vmatpush.msra.mxu0 %v43
  %3298 = vmatpush.msra.mxu0 %v41
  %3299 = vmatpush.msra.mxu0 %v39
  %3300 = vmatpush.msra.mxu0 %v37
  %3301 = vmatpush.msra.mxu0 %v35
  %3302 = vmatpush.msra.mxu0 %v33
  %3303 = vmatmul.f32.gmra.mxu0 %v3001
  %v3304 = vpop.f32.mrf.mxu0
  %v3305 = vadd.f32 0.0, %v3304
  %3306 = vmatmul.f32.gmra.mxu0 %v3009
  %v3307 = vpop.f32.mrf.mxu0
  %v3308 = vadd.f32 0.0, %v3307
  %3309 = vmatmul.f32.gmra.mxu0 %v3017
  %v3310 = vpop.f32.mrf.mxu0
  %v3311 = vadd.f32 0.0, %v3310
  %3312 = vdwg.mxu0
  %3313 = vmatpush.msra.mxu0 %v95
  %3314 = vmatpush.msra.mxu0 %v93
  %3315 = vmatpush.msra.mxu0 %v91
  %3316 = vmatpush.msra.mxu0 %v89
  %3317 = vmatpush.msra.mxu0 %v87
  %3318 = vmatpush.msra.mxu0 %v85
  %3319 = vmatpush.msra.mxu0 %v83
  %3320 = vmatpush.msra.mxu0 %v81
  %3321 = vmatpush.msra.mxu0 %v79
  %3322 = vmatpush.msra.mxu0 %v77
  %3323 = vmatpush.msra.mxu0 %v75
  %3324 = vmatpush.msra.mxu0 %v73
  %3325 = vmatpush.msra.mxu0 %v71
  %3326 = vmatpush.msra.mxu0 %v69
  %3327 = vmatpush.msra.mxu0 %v67
  %3328 = vmatpush.msra.mxu0 %v65
  %3329 = vmatmul.f32.gmra.mxu0 %v3002
  %v3330 = vpop.f32.mrf.mxu0
  %v3331 = vadd.f32 %v3305, %v3330
  %3332 = vmatmul.f32.gmra.mxu0 %v3010
  %v3333 = vpop.f32.mrf.mxu0
  %v3334 = vadd.f32 %v3308, %v3333
  %3335 = vmatmul.f32.gmra.mxu0 %v3018
  %v3336 = vpop.f32.mrf.mxu0
  %v3337 = vadd.f32 %v3311, %v3336
  %3338 = vdwg.mxu0
  %v3339 = vmax.f32 %v3229, %v3279
  %v3340 = vmax.f32 %v3230, %v3331
  %v3341 = vmax.f32 %v3231, %v3282
  %v3342 = vmax.f32 %v3232, %v3334
  %v3343 = vmax.f32 %v3233, %v3285
  %v3344 = vmax.f32 %v3234, %v3337
  %3345 = vmatpush.msra.mxu0 %v62
  %3346 = vmatpush.msra.mxu0 %v60
  %3347 = vmatpush.msra.mxu0 %v58
  %3348 = vmatpush.msra.mxu0 %v56
  %3349 = vmatpush.msra.mxu0 %v54
  %3350 = vmatpush.msra.mxu0 %v52
  %3351 = vmatpush.msra.mxu0 %v50
  %3352 = vmatpush.msra.mxu0 %v48
  %3353 = vmatpush.msra.mxu0 %v46
  %3354 = vmatpush.msra.mxu0 %v44
  %3355 = vmatpush.msra.mxu0 %v42
  %3356 = vmatpush.msra.mxu0 %v40
  %3357 = vmatpush.msra.mxu0 %v38
  %3358 = vmatpush.msra.mxu0 %v36
  %3359 = vmatpush.msra.mxu0 %v34
  %3360 = vmatpush.msra.mxu0 %v32
  %3361 = vmatmul.f32.gmra.mxu0 %v3003
  %v3362 = vpop.f32.mrf.mxu0
  %v3363 = vadd.f32 0.0, %v3362
  %3364 = vmatmul.f32.gmra.mxu0 %v3011
  %v3365 = vpop.f32.mrf.mxu0
  %v3366 = vadd.f32 0.0, %v3365
  %3367 = vmatmul.f32.gmra.mxu0 %v3019
  %v3368 = vpop.f32.mrf.mxu0
  %v3369 = vadd.f32 0.0, %v3368
  %3370 = vdwg.mxu0
  %3371 = vmatpush.msra.mxu0 %v94
  %3372 = vmatpush.msra.mxu0 %v92
  %3373 = vmatpush.msra.mxu0 %v90
  %3374 = vmatpush.msra.mxu0 %v88
  %3375 = vmatpush.msra.mxu0 %v86
  %3376 = vmatpush.msra.mxu0 %v84
  %3377 = vmatpush.msra.mxu0 %v82
  %3378 = vmatpush.msra.mxu0 %v80
  %3379 = vmatpush.msra.mxu0 %v78
  %3380 = vmatpush.msra.mxu0 %v76
  %3381 = vmatpush.msra.mxu0 %v74
  %3382 = vmatpush.msra.mxu0 %v72
  %3383 = vmatpush.msra.mxu0 %v70
  %3384 = vmatpush.msra.mxu0 %v68
  %3385 = vmatpush.msra.mxu0 %v66
  %3386 = vmatpush.msra.mxu0 %v64
  %3387 = vmatmul.f32.gmra.mxu0 %v3004
  %v3388 = vpop.f32.mrf.mxu0
  %v3389 = vadd.f32 %v3363, %v3388
  %3390 = vmatmul.f32.gmra.mxu0 %v3012
  %v3391 = vpop.f32.mrf.mxu0
  %v3392 = vadd.f32 %v3366, %v3391
  %3393 = vmatmul.f32.gmra.mxu0 %v3020
  %v3394 = vpop.f32.mrf.mxu0
  %v3395 = vadd.f32 %v3369, %v3394
  %3396 = vdwg.mxu0
  %3397 = vmatpush.msra.mxu0 %v63
  %3398 = vmatpush.msra.mxu0 %v61
  %3399 = vmatpush.msra.mxu0 %v59
  %3400 = vmatpush.msra.mxu0 %v57
  %3401 = vmatpush.msra.mxu0 %v55
  %3402 = vmatpush.msra.mxu0 %v53
  %3403 = vmatpush.msra.mxu0 %v51
  %3404 = vmatpush.msra.mxu0 %v49
  %3405 = vmatpush.msra.mxu0 %v47
  %3406 = vmatpush.msra.mxu0 %v45
  %3407 = vmatpush.msra.mxu0 %v43
  %3408 = vmatpush.msra.mxu0 %v41
  %3409 = vmatpush.msra.mxu0 %v39
  %3410 = vmatpush.msra.mxu0 %v37
  %3411 = vmatpush.msra.mxu0 %v35
  %3412 = vmatpush.msra.mxu0 %v33
  %3413 = vmatmul.f32.gmra.mxu0 %v3003
  %v3414 = vpop.f32.mrf.mxu0
  %v3415 = vadd.f32 0.0, %v3414
  %3416 = vmatmul.f32.gmra.mxu0 %v3011
  %v3417 = vpop.f32.mrf.mxu0
  %v3418 = vadd.f32 0.0, %v3417
  %3419 = vmatmul.f32.gmra.mxu0 %v3019
  %v3420 = vpop.f32.mrf.mxu0
  %v3421 = vadd.f32 0.0, %v3420
  %3422 = vdwg.mxu0
  %3423 = vmatpush.msra.mxu0 %v95
  %3424 = vmatpush.msra.mxu0 %v93
  %3425 = vmatpush.msra.mxu0 %v91
  %3426 = vmatpush.msra.mxu0 %v89
  %3427 = vmatpush.msra.mxu0 %v87
  %3428 = vmatpush.msra.mxu0 %v85
  %3429 = vmatpush.msra.mxu0 %v83
  %3430 = vmatpush.msra.mxu0 %v81
  %3431 = vmatpush.msra.mxu0 %v79
  %3432 = vmatpush.msra.mxu0 %v77
  %3433 = vmatpush.msra.mxu0 %v75
  %3434 = vmatpush.msra.mxu0 %v73
  %3435 = vmatpush.msra.mxu0 %v71
  %3436 = vmatpush.msra.mxu0 %v69
  %3437 = vmatpush.msra.mxu0 %v67
  %3438 = vmatpush.msra.mxu0 %v65
  %3439 = vmatmul.f32.gmra.mxu0 %v3004
  %v3440 = vpop.f32.mrf.mxu0
  %v3441 = vadd.f32 %v3415, %v3440
  %3442 = vmatmul.f32.gmra.mxu0 %v3012
  %v3443 = vpop.f32.mrf.mxu0
  %v3444 = vadd.f32 %v3418, %v3443
  %3445 = vmatmul.f32.gmra.mxu0 %v3020
  %v3446 = vpop.f32.mrf.mxu0
  %v3447 = vadd.f32 %v3421, %v3446
  %3448 = vdwg.mxu0
  %v3449 = vmax.f32 %v3339, %v3389
  %v3450 = vmax.f32 %v3340, %v3441
  %v3451 = vmax.f32 %v3341, %v3392
  %v3452 = vmax.f32 %v3342, %v3444
  %v3453 = vmax.f32 %v3343, %v3395
  %v3454 = vmax.f32 %v3344, %v3447
  %v3455 = vadd.f32 %v3449, %v559
  %v3456 = vadd.f32 %v3450, %v560
  %v3457 = vadd.f32 %v3451, %v559
  %v3458 = vadd.f32 %v3452, %v560
  %v3459 = vadd.f32 %v3453, %v559
  %v3460 = vadd.f32 %v3454, %v560
  %v3461 = vmax.f32 %v3455, 0.0
  %v3462 = vmax.f32 %v3456, 0.0
  %v3463 = vmax.f32 %v3457, 0.0
  %v3464 = vmax.f32 %v3458, 0.0
  %v3465 = vmax.f32 %v3459, 0.0
  %v3466 = vmax.f32 %v3460, 0.0
  %s3467 = scalar_lea.vmem [#allocation2], 50
  %3468 = vst.msk [vmem:[%s3467] ss:$8 sm:$0x3] %vm578, 0.0
  %3469 = vst.msk [vmem:[%s3467] ss:$8 sm:$0x0] %vm578, 0.0
  %s3470 = scalar_lea.vmem [#allocation2], 99
  %3471 = vst.msk [vmem:[%s3470] ss:$8 sm:$0x3] %vm578, 0.0
  %3472 = vst.msk [vmem:[%s3470] ss:$8 sm:$0x0] %vm578, 0.0
  %vm3479 = vcmask 1042432
  %v3480 = vrot.slane %v3461, 5
  %v3481 = vrot.slane %v3462, 5
  %v3482 = vrot.slane %v3463, 5
  %v3483 = vsel %vm3479, %v3480, %v3482
  %v3484 = vrot.slane %v3464, 5
  %v3485 = vsel %vm3479, %v3481, %v3484
  %v3486 = vrot.slane %v3465, 5
  %v3487 = vsel %vm3479, %v3482, %v3486
  %v3488 = vrot.slane %v3466, 5
  %v3489 = vsel %vm3479, %v3484, %v3488
  %3498 = vst [vmem:[#allocation2 + $0x30] sm:$0xf8] %v3480
  %vm3499 = vcmask 523267
  %3500 = vst.msk [vmem:[#allocation2 + $0x38] sm:$0xf8] %vm3499, %v3481
  %3501 = vst [vmem:[#allocation2 + $0x40] sm:$0xff] %v3483
  %3502 = vst.msk [vmem:[#allocation2 + $0x48] sm:$0xff] %vm613, %v3485
  %3503 = vst [vmem:[#allocation2 + $0x50] sm:$0xff] %v3487
  %3504 = vst.msk [vmem:[#allocation2 + $0x58] sm:$0xff] %vm613, %v3489
  %3505 = vst [vmem:[#allocation2 + $0x60] sm:$0x7] %v3486
  %vm3506 = vcmask 518144
  %3507 = vst.msk [vmem:[#allocation2 + $0x68] sm:$0x7] %vm3506, %v3488
  %v3508 = vld [vmem:[#allocation2 + $0x30] sm:$0xfc]
  %v3509 = vld [vmem:[#allocation2 + $0x38] sm:$0xfc]
  %v3510 = vld [vmem:[#allocation2 + $0x40] sm:$0xff]
  %v3511 = vld [vmem:[#allocation2 + $0x48] sm:$0xff]
  %v3512 = vld [vmem:[#allocation2 + $0x50] sm:$0xff]
  %v3513 = vld [vmem:[#allocation2 + $0x58] sm:$0xff]
  %v3514 = vld [vmem:[#allocation2 + $0x60] sm:$0x3]
  %v3515 = vld [vmem:[#allocation2 + $0x68] sm:$0x3]
  %v3516 = vld [vmem:[%s3] sm:$0xff]
  %v3517 = vld [vmem:[%s3 + $0x8] sm:$0xff]
  %v3518 = vld [vmem:[%s3 + $0x10] sm:$0xff]
  %v3519 = vld [vmem:[%s3 + $0x18] sm:$0xff]
  %v3520 = vld [vmem:[%s3 + $0x20] sm:$0xff]
  %v3521 = vld [vmem:[%s3 + $0x28] sm:$0xff]
  %v3522 = vld [vmem:[%s3 + $0x30] sm:$0xff]
  %v3523 = vld [vmem:[%s3 + $0x38] sm:$0xff]
  %v3524 = vld [vmem:[%s3 + $0x40] sm:$0xff]
  %v3525 = vld [vmem:[%s3 + $0x48] sm:$0xff]
  %v3526 = vld [vmem:[%s3 + $0x50] sm:$0xff]
  %v3527 = vld [vmem:[%s3 + $0x58] sm:$0xff]
  %v3528 = vld [vmem:[%s3 + $0x60] sm:$0xff]
  %v3529 = vld [vmem:[%s3 + $0x68] sm:$0xff]
  %v3530 = vld [vmem:[%s3 + $0x70] sm:$0xff]
  %v3531 = vld [vmem:[%s3 + $0x78] sm:$0xff]
  %v3532 = vld [vmem:[%s3 + $0x80] sm:$0xff]
  %v3533 = vld [vmem:[%s3 + $0x88] sm:$0xff]
  %v3534 = vld [vmem:[%s3 + $0x90] sm:$0xff]
  %v3535 = vld [vmem:[%s3 + $0x98] sm:$0xff]
  %v3536 = vld [vmem:[%s3 + $0xa0] sm:$0xff]
  %v3537 = vld [vmem:[%s3 + $0xa8] sm:$0xff]
  %v3538 = vld [vmem:[%s3 + $0xb0] sm:$0xff]
  %v3539 = vld [vmem:[%s3 + $0xb8] sm:$0xff]
  %v3540 = vld [vmem:[%s3 + $0xc0] sm:$0xff]
  %v3541 = vld [vmem:[%s3 + $0xc8] sm:$0xff]
  %v3542 = vld [vmem:[%s3 + $0xd0] sm:$0xff]
  %v3543 = vld [vmem:[%s3 + $0xd8] sm:$0xff]
  %v3544 = vld [vmem:[%s3 + $0xe0] sm:$0xff]
  %v3545 = vld [vmem:[%s3 + $0xe8] sm:$0xff]
  %v3546 = vld [vmem:[%s3 + $0xf0] sm:$0xff]
  %v3547 = vld [vmem:[%s3 + $0xf8] sm:$0xff]
  %v3548 = vld [vmem:[%s3 + $0x100] sm:$0xff]
  %v3549 = vld [vmem:[%s3 + $0x108] sm:$0xff]
  %v3550 = vld [vmem:[%s3 + $0x110] sm:$0xff]
  %v3551 = vld [vmem:[%s3 + $0x118] sm:$0xff]
  %v3552 = vld [vmem:[%s3 + $0x120] sm:$0xff]
  %v3553 = vld [vmem:[%s3 + $0x128] sm:$0xff]
  %v3554 = vld [vmem:[%s3 + $0x130] sm:$0xff]
  %v3555 = vld [vmem:[%s3 + $0x138] sm:$0xff]
  %v3556 = vld [vmem:[%s3 + $0x140] sm:$0xff]
  %v3557 = vld [vmem:[%s3 + $0x148] sm:$0xff]
  %v3558 = vld [vmem:[%s3 + $0x150] sm:$0xff]
  %v3559 = vld [vmem:[%s3 + $0x158] sm:$0xff]
  %v3560 = vld [vmem:[%s3 + $0x160] sm:$0xff]
  %v3561 = vld [vmem:[%s3 + $0x168] sm:$0xff]
  %v3562 = vld [vmem:[%s3 + $0x170] sm:$0xff]
  %v3563 = vld [vmem:[%s3 + $0x178] sm:$0xff]
  %v3564 = vld [vmem:[%s3 + $0x180] sm:$0xff]
  %v3565 = vld [vmem:[%s3 + $0x188] sm:$0xff]
  %v3566 = vld [vmem:[%s3 + $0x190] sm:$0xff]
  %v3567 = vld [vmem:[%s3 + $0x198] sm:$0xff]
  %v3568 = vld [vmem:[%s3 + $0x1a0] sm:$0xff]
  %v3569 = vld [vmem:[%s3 + $0x1a8] sm:$0xff]
  %v3570 = vld [vmem:[%s3 + $0x1b0] sm:$0xff]
  %v3571 = vld [vmem:[%s3 + $0x1b8] sm:$0xff]
  %v3572 = vld [vmem:[%s3 + $0x1c0] sm:$0xff]
  %v3573 = vld [vmem:[%s3 + $0x1c8] sm:$0xff]
  %v3574 = vld [vmem:[%s3 + $0x1d0] sm:$0xff]
  %v3575 = vld [vmem:[%s3 + $0x1d8] sm:$0xff]
  %v3576 = vld [vmem:[%s3 + $0x1e0] sm:$0xff]
  %v3577 = vld [vmem:[%s3 + $0x1e8] sm:$0xff]
  %v3578 = vld [vmem:[%s3 + $0x1f0] sm:$0xff]
  %v3579 = vld [vmem:[%s3 + $0x1f8] sm:$0xff]
  %v3580 = vld [vmem:[%s3 + $0x200] sm:$0xff]
  %v3581 = vld [vmem:[%s3 + $0x208] sm:$0xff]
  %v3582 = vld [vmem:[%s3 + $0x210] sm:$0xff]
  %v3583 = vld [vmem:[%s3 + $0x218] sm:$0xff]
  %v3584 = vld [vmem:[%s3 + $0x220] sm:$0xff]
  %v3585 = vld [vmem:[%s3 + $0x228] sm:$0xff]
  %v3586 = vld [vmem:[%s3 + $0x230] sm:$0xff]
  %v3587 = vld [vmem:[%s3 + $0x238] sm:$0xff]
  %v3588 = vld [vmem:[#allocation2 + $0x30] sm:$0xf8]
  %v3589 = vld [vmem:[#allocation2 + $0x38] sm:$0xf8]
  %v3590 = vld [vmem:[#allocation2 + $0x60] sm:$0x7]
  %v3591 = vld [vmem:[#allocation2 + $0x68] sm:$0x7]
  %v3592 = vld [vmem:[%s702] sm:$0xff]
  %v3593 = vld [vmem:[%s702 + $0x8] sm:$0xff]
  %v3594 = vld [vmem:[%s702 + $0x10] sm:$0xff]
  %v3595 = vld [vmem:[%s702 + $0x18] sm:$0xff]
  %v3596 = vld [vmem:[%s702 + $0x20] sm:$0xff]
  %v3597 = vld [vmem:[%s702 + $0x28] sm:$0xff]
  %v3598 = vld [vmem:[%s702 + $0x30] sm:$0xff]
  %v3599 = vld [vmem:[%s702 + $0x38] sm:$0xff]
  %v3600 = vld [vmem:[%s702 + $0x40] sm:$0xff]
  %v3601 = vld [vmem:[%s702 + $0x48] sm:$0xff]
  %v3602 = vld [vmem:[%s702 + $0x50] sm:$0xff]
  %v3603 = vld [vmem:[%s702 + $0x58] sm:$0xff]
  %v3604 = vld [vmem:[%s702 + $0x60] sm:$0xff]
  %v3605 = vld [vmem:[%s702 + $0x68] sm:$0xff]
  %v3606 = vld [vmem:[%s702 + $0x70] sm:$0xff]
  %v3607 = vld [vmem:[%s702 + $0x78] sm:$0xff]
  %v3608 = vld [vmem:[%s702 + $0x80] sm:$0xff]
  %v3609 = vld [vmem:[%s702 + $0x88] sm:$0xff]
  %v3610 = vld [vmem:[%s702 + $0x90] sm:$0xff]
  %v3611 = vld [vmem:[%s702 + $0x98] sm:$0xff]
  %v3612 = vld [vmem:[%s702 + $0xa0] sm:$0xff]
  %v3613 = vld [vmem:[%s702 + $0xa8] sm:$0xff]
  %v3614 = vld [vmem:[%s702 + $0xb0] sm:$0xff]
  %v3615 = vld [vmem:[%s702 + $0xb8] sm:$0xff]
  %v3616 = vld [vmem:[%s702 + $0xc0] sm:$0xff]
  %v3617 = vld [vmem:[%s702 + $0xc8] sm:$0xff]
  %v3618 = vld [vmem:[%s702 + $0xd0] sm:$0xff]
  %v3619 = vld [vmem:[%s702 + $0xd8] sm:$0xff]
  %v3620 = vld [vmem:[%s702 + $0xe0] sm:$0xff]
  %v3621 = vld [vmem:[%s702 + $0xe8] sm:$0xff]
  %v3622 = vld [vmem:[%s702 + $0xf0] sm:$0xff]
  %v3623 = vld [vmem:[%s702 + $0xf8] sm:$0xff]
  %v3624 = vld [vmem:[%s702 + $0x100] sm:$0xff]
  %v3625 = vld [vmem:[%s702 + $0x108] sm:$0xff]
  %v3626 = vld [vmem:[%s702 + $0x110] sm:$0xff]
  %v3627 = vld [vmem:[%s702 + $0x118] sm:$0xff]
  %v3628 = vld [vmem:[%s702 + $0x120] sm:$0xff]
  %v3629 = vld [vmem:[%s702 + $0x128] sm:$0xff]
  %v3630 = vld [vmem:[%s702 + $0x130] sm:$0xff]
  %v3631 = vld [vmem:[%s702 + $0x138] sm:$0xff]
  %v3632 = vld [vmem:[%s702 + $0x140] sm:$0xff]
  %v3633 = vld [vmem:[%s702 + $0x148] sm:$0xff]
  %v3634 = vld [vmem:[%s702 + $0x150] sm:$0xff]
  %v3635 = vld [vmem:[%s702 + $0x158] sm:$0xff]
  %v3636 = vld [vmem:[%s702 + $0x160] sm:$0xff]
  %v3637 = vld [vmem:[%s702 + $0x168] sm:$0xff]
  %v3638 = vld [vmem:[%s702 + $0x170] sm:$0xff]
  %v3639 = vld [vmem:[%s702 + $0x178] sm:$0xff]
  %v3640 = vld [vmem:[%s702 + $0x180] sm:$0xff]
  %v3641 = vld [vmem:[%s702 + $0x188] sm:$0xff]
  %v3642 = vld [vmem:[%s702 + $0x190] sm:$0xff]
  %v3643 = vld [vmem:[%s702 + $0x198] sm:$0xff]
  %v3644 = vld [vmem:[%s702 + $0x1a0] sm:$0xff]
  %v3645 = vld [vmem:[%s702 + $0x1a8] sm:$0xff]
  %v3646 = vld [vmem:[%s702 + $0x1b0] sm:$0xff]
  %v3647 = vld [vmem:[%s702 + $0x1b8] sm:$0xff]
  %v3648 = vld [vmem:[%s702 + $0x1c0] sm:$0xff]
  %v3649 = vld [vmem:[%s702 + $0x1c8] sm:$0xff]
  %v3650 = vld [vmem:[%s702 + $0x1d0] sm:$0xff]
  %v3651 = vld [vmem:[%s702 + $0x1d8] sm:$0xff]
  %v3652 = vld [vmem:[%s702 + $0x1e0] sm:$0xff]
  %v3653 = vld [vmem:[%s702 + $0x1e8] sm:$0xff]
  %v3654 = vld [vmem:[%s702 + $0x1f0] sm:$0xff]
  %v3655 = vld [vmem:[%s702 + $0x1f8] sm:$0xff]
  %v3656 = vld [vmem:[%s702 + $0x200] sm:$0xff]
  %v3657 = vld [vmem:[%s702 + $0x208] sm:$0xff]
  %v3658 = vld [vmem:[%s702 + $0x210] sm:$0xff]
  %v3659 = vld [vmem:[%s702 + $0x218] sm:$0xff]
  %v3660 = vld [vmem:[%s702 + $0x220] sm:$0xff]
  %v3661 = vld [vmem:[%s702 + $0x228] sm:$0xff]
  %v3662 = vld [vmem:[%s702 + $0x230] sm:$0xff]
  %v3663 = vld [vmem:[%s702 + $0x238] sm:$0xff]
  %vm3672 = vcmask 1044480
  %v3673 = vrot.slane %v3588, 3
  %v3674 = vrot.slane %v3510, 3
  %v3675 = vsel %vm3672, %v3673, %v3674
  %v3676 = vrot.slane %v3589, 3
  %v3677 = vrot.slane %v3511, 3
  %v3678 = vsel %vm3672, %v3676, %v3677
  %v3679 = vrot.slane %v3512, 3
  %v3680 = vsel %vm3672, %v3674, %v3679
  %v3681 = vrot.slane %v3513, 3
  %v3682 = vsel %vm3672, %v3677, %v3681
  %v3683 = vrot.slane %v3590, 3
  %v3684 = vsel %vm3672, %v3679, %v3683
  %v3685 = vrot.slane %v3591, 3
  %v3686 = vsel %vm3672, %v3681, %v3685
  %v3690 = vsel %vm613, %v3678, 0
  %v3692 = vsel %vm613, %v3682, 0
  %v3694 = vsel %vm613, %v3686, 0
  %3696 = vmatpush.msra.mxu0 %v3637
  %3697 = vmatpush.msra.mxu0 %v3634
  %3698 = vmatpush.msra.mxu0 %v3631
  %3699 = vmatpush.msra.mxu0 %v3628
  %3700 = vmatpush.msra.mxu0 %v3625
  %3701 = vmatpush.msra.mxu0 %v3622
  %3702 = vmatpush.msra.mxu0 %v3619
  %3703 = vmatpush.msra.mxu0 %v3616
  %3704 = vmatpush.msra.mxu0 %v3613
  %3705 = vmatpush.msra.mxu0 %v3610
  %3706 = vmatpush.msra.mxu0 %v3607
  %3707 = vmatpush.msra.mxu0 %v3604
  %3708 = vmatpush.msra.mxu0 %v3601
  %3709 = vmatpush.msra.mxu0 %v3598
  %3710 = vmatpush.msra.mxu0 %v3595
  %3711 = vmatpush.msra.mxu0 %v3592
  %3712 = vmatmul.f32.gmra.mxu0 %v3675
  %v3713 = vpop.f32.mrf.mxu0
  %v3714 = vadd.f32 0.0, %v3713
  %3715 = vmatmul.f32.gmra.mxu0 %v3680
  %v3716 = vpop.f32.mrf.mxu0
  %v3717 = vadd.f32 0.0, %v3716
  %3718 = vmatmul.f32.gmra.mxu0 %v3684
  %v3719 = vpop.f32.mrf.mxu0
  %v3720 = vadd.f32 0.0, %v3719
  %3721 = vdwg.mxu0
  %3722 = vmatpush.msra.mxu0 0.0
  %3723 = vmatpush.msra.mxu0 0.0
  %3724 = vmatpush.msra.mxu0 0.0
  %3725 = vmatpush.msra.mxu0 0.0
  %3726 = vmatpush.msra.mxu0 0.0
  %3727 = vmatpush.msra.mxu0 0.0
  %3728 = vmatpush.msra.mxu0 0.0
  %3729 = vmatpush.msra.mxu0 0.0
  %3730 = vmatpush.msra.mxu0 %v3661
  %3731 = vmatpush.msra.mxu0 %v3658
  %3732 = vmatpush.msra.mxu0 %v3655
  %3733 = vmatpush.msra.mxu0 %v3652
  %3734 = vmatpush.msra.mxu0 %v3649
  %3735 = vmatpush.msra.mxu0 %v3646
  %3736 = vmatpush.msra.mxu0 %v3643
  %3737 = vmatpush.msra.mxu0 %v3640
  %3738 = vmatmul.f32.gmra.mxu0 %v3690
  %v3739 = vpop.f32.mrf.mxu0
  %v3740 = vadd.f32 %v3714, %v3739
  %3741 = vmatmul.f32.gmra.mxu0 %v3692
  %v3742 = vpop.f32.mrf.mxu0
  %v3743 = vadd.f32 %v3717, %v3742
  %3744 = vmatmul.f32.gmra.mxu0 %v3694
  %v3745 = vpop.f32.mrf.mxu0
  %v3746 = vadd.f32 %v3720, %v3745
  %3747 = vdwg.mxu0
  %3748 = vmatpush.msra.mxu0 %v3638
  %3749 = vmatpush.msra.mxu0 %v3635
  %3750 = vmatpush.msra.mxu0 %v3632
  %3751 = vmatpush.msra.mxu0 %v3629
  %3752 = vmatpush.msra.mxu0 %v3626
  %3753 = vmatpush.msra.mxu0 %v3623
  %3754 = vmatpush.msra.mxu0 %v3620
  %3755 = vmatpush.msra.mxu0 %v3617
  %3756 = vmatpush.msra.mxu0 %v3614
  %3757 = vmatpush.msra.mxu0 %v3611
  %3758 = vmatpush.msra.mxu0 %v3608
  %3759 = vmatpush.msra.mxu0 %v3605
  %3760 = vmatpush.msra.mxu0 %v3602
  %3761 = vmatpush.msra.mxu0 %v3599
  %3762 = vmatpush.msra.mxu0 %v3596
  %3763 = vmatpush.msra.mxu0 %v3593
  %3764 = vmatmul.f32.gmra.mxu0 %v3675
  %v3765 = vpop.f32.mrf.mxu0
  %v3766 = vadd.f32 0.0, %v3765
  %3767 = vmatmul.f32.gmra.mxu0 %v3680
  %v3768 = vpop.f32.mrf.mxu0
  %v3769 = vadd.f32 0.0, %v3768
  %3770 = vmatmul.f32.gmra.mxu0 %v3684
  %v3771 = vpop.f32.mrf.mxu0
  %v3772 = vadd.f32 0.0, %v3771
  %3773 = vdwg.mxu0
  %3774 = vmatpush.msra.mxu0 0.0
  %3775 = vmatpush.msra.mxu0 0.0
  %3776 = vmatpush.msra.mxu0 0.0
  %3777 = vmatpush.msra.mxu0 0.0
  %3778 = vmatpush.msra.mxu0 0.0
  %3779 = vmatpush.msra.mxu0 0.0
  %3780 = vmatpush.msra.mxu0 0.0
  %3781 = vmatpush.msra.mxu0 0.0
  %3782 = vmatpush.msra.mxu0 %v3662
  %3783 = vmatpush.msra.mxu0 %v3659
  %3784 = vmatpush.msra.mxu0 %v3656
  %3785 = vmatpush.msra.mxu0 %v3653
  %3786 = vmatpush.msra.mxu0 %v3650
  %3787 = vmatpush.msra.mxu0 %v3647
  %3788 = vmatpush.msra.mxu0 %v3644
  %3789 = vmatpush.msra.mxu0 %v3641
  %3790 = vmatmul.f32.gmra.mxu0 %v3690
  %v3791 = vpop.f32.mrf.mxu0
  %v3792 = vadd.f32 %v3766, %v3791
  %3793 = vmatmul.f32.gmra.mxu0 %v3692
  %v3794 = vpop.f32.mrf.mxu0
  %v3795 = vadd.f32 %v3769, %v3794
  %3796 = vmatmul.f32.gmra.mxu0 %v3694
  %v3797 = vpop.f32.mrf.mxu0
  %v3798 = vadd.f32 %v3772, %v3797
  %3799 = vdwg.mxu0
  %3800 = vmatpush.msra.mxu0 %v3639
  %3801 = vmatpush.msra.mxu0 %v3636
  %3802 = vmatpush.msra.mxu0 %v3633
  %3803 = vmatpush.msra.mxu0 %v3630
  %3804 = vmatpush.msra.mxu0 %v3627
  %3805 = vmatpush.msra.mxu0 %v3624
  %3806 = vmatpush.msra.mxu0 %v3621
  %3807 = vmatpush.msra.mxu0 %v3618
  %3808 = vmatpush.msra.mxu0 %v3615
  %3809 = vmatpush.msra.mxu0 %v3612
  %3810 = vmatpush.msra.mxu0 %v3609
  %3811 = vmatpush.msra.mxu0 %v3606
  %3812 = vmatpush.msra.mxu0 %v3603
  %3813 = vmatpush.msra.mxu0 %v3600
  %3814 = vmatpush.msra.mxu0 %v3597
  %3815 = vmatpush.msra.mxu0 %v3594
  %3816 = vmatmul.f32.gmra.mxu0 %v3675
  %v3817 = vpop.f32.mrf.mxu0
  %v3818 = vadd.f32 0.0, %v3817
  %3819 = vmatmul.f32.gmra.mxu0 %v3680
  %v3820 = vpop.f32.mrf.mxu0
  %v3821 = vadd.f32 0.0, %v3820
  %3822 = vmatmul.f32.gmra.mxu0 %v3684
  %v3823 = vpop.f32.mrf.mxu0
  %v3824 = vadd.f32 0.0, %v3823
  %3825 = vdwg.mxu0
  %3826 = vmatpush.msra.mxu0 0.0
  %3827 = vmatpush.msra.mxu0 0.0
  %3828 = vmatpush.msra.mxu0 0.0
  %3829 = vmatpush.msra.mxu0 0.0
  %3830 = vmatpush.msra.mxu0 0.0
  %3831 = vmatpush.msra.mxu0 0.0
  %3832 = vmatpush.msra.mxu0 0.0
  %3833 = vmatpush.msra.mxu0 0.0
  %3834 = vmatpush.msra.mxu0 %v3663
  %3835 = vmatpush.msra.mxu0 %v3660
  %3836 = vmatpush.msra.mxu0 %v3657
  %3837 = vmatpush.msra.mxu0 %v3654
  %3838 = vmatpush.msra.mxu0 %v3651
  %3839 = vmatpush.msra.mxu0 %v3648
  %3840 = vmatpush.msra.mxu0 %v3645
  %3841 = vmatpush.msra.mxu0 %v3642
  %3842 = vmatmul.f32.gmra.mxu0 %v3690
  %v3843 = vpop.f32.mrf.mxu0
  %v3844 = vadd.f32 %v3818, %v3843
  %3845 = vmatmul.f32.gmra.mxu0 %v3692
  %v3846 = vpop.f32.mrf.mxu0
  %v3847 = vadd.f32 %v3821, %v3846
  %3848 = vmatmul.f32.gmra.mxu0 %v3694
  %v3849 = vpop.f32.mrf.mxu0
  %v3850 = vadd.f32 %v3824, %v3849
  %3851 = vdwg.mxu0
  %v3856 = vrot.slane %v3508, 2
  %v3857 = vrot.slane %v3510, 2
  %v3858 = vsel %vm1207, %v3856, %v3857
  %v3859 = vrot.slane %v3509, 2
  %v3860 = vrot.slane %v3511, 2
  %v3861 = vsel %vm1207, %v3859, %v3860
  %v3862 = vrot.slane %v3512, 2
  %v3863 = vsel %vm1207, %v3857, %v3862
  %v3864 = vrot.slane %v3513, 2
  %v3865 = vsel %vm1207, %v3860, %v3864
  %v3866 = vrot.slane %v3514, 2
  %v3867 = vsel %vm1207, %v3862, %v3866
  %v3868 = vrot.slane %v3515, 2
  %v3869 = vsel %vm1207, %v3864, %v3868
  %v3873 = vsel %vm613, %v3861, 0
  %v3875 = vsel %vm613, %v3865, 0
  %v3877 = vsel %vm613, %v3869, 0
  %3879 = vmatpush.msra.mxu0 %v3561
  %3880 = vmatpush.msra.mxu0 %v3558
  %3881 = vmatpush.msra.mxu0 %v3555
  %3882 = vmatpush.msra.mxu0 %v3552
  %3883 = vmatpush.msra.mxu0 %v3549
  %3884 = vmatpush.msra.mxu0 %v3546
  %3885 = vmatpush.msra.mxu0 %v3543
  %3886 = vmatpush.msra.mxu0 %v3540
  %3887 = vmatpush.msra.mxu0 %v3537
  %3888 = vmatpush.msra.mxu0 %v3534
  %3889 = vmatpush.msra.mxu0 %v3531
  %3890 = vmatpush.msra.mxu0 %v3528
  %3891 = vmatpush.msra.mxu0 %v3525
  %3892 = vmatpush.msra.mxu0 %v3522
  %3893 = vmatpush.msra.mxu0 %v3519
  %3894 = vmatpush.msra.mxu0 %v3516
  %3895 = vmatmul.f32.gmra.mxu0 %v3858
  %v3896 = vpop.f32.mrf.mxu0
  %v3897 = vadd.f32 %v3740, %v3896
  %3898 = vmatmul.f32.gmra.mxu0 %v3863
  %v3899 = vpop.f32.mrf.mxu0
  %v3900 = vadd.f32 %v3743, %v3899
  %3901 = vmatmul.f32.gmra.mxu0 %v3867
  %v3902 = vpop.f32.mrf.mxu0
  %v3903 = vadd.f32 %v3746, %v3902
  %3904 = vdwg.mxu0
  %3905 = vmatpush.msra.mxu0 0.0
  %3906 = vmatpush.msra.mxu0 0.0
  %3907 = vmatpush.msra.mxu0 0.0
  %3908 = vmatpush.msra.mxu0 0.0
  %3909 = vmatpush.msra.mxu0 0.0
  %3910 = vmatpush.msra.mxu0 0.0
  %3911 = vmatpush.msra.mxu0 0.0
  %3912 = vmatpush.msra.mxu0 0.0
  %3913 = vmatpush.msra.mxu0 %v3585
  %3914 = vmatpush.msra.mxu0 %v3582
  %3915 = vmatpush.msra.mxu0 %v3579
  %3916 = vmatpush.msra.mxu0 %v3576
  %3917 = vmatpush.msra.mxu0 %v3573
  %3918 = vmatpush.msra.mxu0 %v3570
  %3919 = vmatpush.msra.mxu0 %v3567
  %3920 = vmatpush.msra.mxu0 %v3564
  %3921 = vmatmul.f32.gmra.mxu0 %v3873
  %v3922 = vpop.f32.mrf.mxu0
  %v3923 = vadd.f32 %v3897, %v3922
  %3924 = vmatmul.f32.gmra.mxu0 %v3875
  %v3925 = vpop.f32.mrf.mxu0
  %v3926 = vadd.f32 %v3900, %v3925
  %3927 = vmatmul.f32.gmra.mxu0 %v3877
  %v3928 = vpop.f32.mrf.mxu0
  %v3929 = vadd.f32 %v3903, %v3928
  %3930 = vdwg.mxu0
  %3931 = vmatpush.msra.mxu0 %v3562
  %3932 = vmatpush.msra.mxu0 %v3559
  %3933 = vmatpush.msra.mxu0 %v3556
  %3934 = vmatpush.msra.mxu0 %v3553
  %3935 = vmatpush.msra.mxu0 %v3550
  %3936 = vmatpush.msra.mxu0 %v3547
  %3937 = vmatpush.msra.mxu0 %v3544
  %3938 = vmatpush.msra.mxu0 %v3541
  %3939 = vmatpush.msra.mxu0 %v3538
  %3940 = vmatpush.msra.mxu0 %v3535
  %3941 = vmatpush.msra.mxu0 %v3532
  %3942 = vmatpush.msra.mxu0 %v3529
  %3943 = vmatpush.msra.mxu0 %v3526
  %3944 = vmatpush.msra.mxu0 %v3523
  %3945 = vmatpush.msra.mxu0 %v3520
  %3946 = vmatpush.msra.mxu0 %v3517
  %3947 = vmatmul.f32.gmra.mxu0 %v3858
  %v3948 = vpop.f32.mrf.mxu0
  %v3949 = vadd.f32 %v3792, %v3948
  %3950 = vmatmul.f32.gmra.mxu0 %v3863
  %v3951 = vpop.f32.mrf.mxu0
  %v3952 = vadd.f32 %v3795, %v3951
  %3953 = vmatmul.f32.gmra.mxu0 %v3867
  %v3954 = vpop.f32.mrf.mxu0
  %v3955 = vadd.f32 %v3798, %v3954
  %3956 = vdwg.mxu0
  %3957 = vmatpush.msra.mxu0 0.0
  %3958 = vmatpush.msra.mxu0 0.0
  %3959 = vmatpush.msra.mxu0 0.0
  %3960 = vmatpush.msra.mxu0 0.0
  %3961 = vmatpush.msra.mxu0 0.0
  %3962 = vmatpush.msra.mxu0 0.0
  %3963 = vmatpush.msra.mxu0 0.0
  %3964 = vmatpush.msra.mxu0 0.0
  %3965 = vmatpush.msra.mxu0 %v3586
  %3966 = vmatpush.msra.mxu0 %v3583
  %3967 = vmatpush.msra.mxu0 %v3580
  %3968 = vmatpush.msra.mxu0 %v3577
  %3969 = vmatpush.msra.mxu0 %v3574
  %3970 = vmatpush.msra.mxu0 %v3571
  %3971 = vmatpush.msra.mxu0 %v3568
  %3972 = vmatpush.msra.mxu0 %v3565
  %3973 = vmatmul.f32.gmra.mxu0 %v3873
  %v3974 = vpop.f32.mrf.mxu0
  %v3975 = vadd.f32 %v3949, %v3974
  %3976 = vmatmul.f32.gmra.mxu0 %v3875
  %v3977 = vpop.f32.mrf.mxu0
  %v3978 = vadd.f32 %v3952, %v3977
  %3979 = vmatmul.f32.gmra.mxu0 %v3877
  %v3980 = vpop.f32.mrf.mxu0
  %v3981 = vadd.f32 %v3955, %v3980
  %3982 = vdwg.mxu0
  %3983 = vmatpush.msra.mxu0 %v3563
  %3984 = vmatpush.msra.mxu0 %v3560
  %3985 = vmatpush.msra.mxu0 %v3557
  %3986 = vmatpush.msra.mxu0 %v3554
  %3987 = vmatpush.msra.mxu0 %v3551
  %3988 = vmatpush.msra.mxu0 %v3548
  %3989 = vmatpush.msra.mxu0 %v3545
  %3990 = vmatpush.msra.mxu0 %v3542
  %3991 = vmatpush.msra.mxu0 %v3539
  %3992 = vmatpush.msra.mxu0 %v3536
  %3993 = vmatpush.msra.mxu0 %v3533
  %3994 = vmatpush.msra.mxu0 %v3530
  %3995 = vmatpush.msra.mxu0 %v3527
  %3996 = vmatpush.msra.mxu0 %v3524
  %3997 = vmatpush.msra.mxu0 %v3521
  %3998 = vmatpush.msra.mxu0 %v3518
  %3999 = vmatmul.f32.gmra.mxu0 %v3858
  %v4000 = vpop.f32.mrf.mxu0
  %v4001 = vadd.f32 %v3844, %v4000
  %4002 = vmatmul.f32.gmra.mxu0 %v3863
  %v4003 = vpop.f32.mrf.mxu0
  %v4004 = vadd.f32 %v3847, %v4003
  %4005 = vmatmul.f32.gmra.mxu0 %v3867
  %v4006 = vpop.f32.mrf.mxu0
  %v4007 = vadd.f32 %v3850, %v4006
  %4008 = vdwg.mxu0
  %4009 = vmatpush.msra.mxu0 0.0
  %4010 = vmatpush.msra.mxu0 0.0
  %4011 = vmatpush.msra.mxu0 0.0
  %4012 = vmatpush.msra.mxu0 0.0
  %4013 = vmatpush.msra.mxu0 0.0
  %4014 = vmatpush.msra.mxu0 0.0
  %4015 = vmatpush.msra.mxu0 0.0
  %4016 = vmatpush.msra.mxu0 0.0
  %4017 = vmatpush.msra.mxu0 %v3587
  %4018 = vmatpush.msra.mxu0 %v3584
  %4019 = vmatpush.msra.mxu0 %v3581
  %4020 = vmatpush.msra.mxu0 %v3578
  %4021 = vmatpush.msra.mxu0 %v3575
  %4022 = vmatpush.msra.mxu0 %v3572
  %4023 = vmatpush.msra.mxu0 %v3569
  %4024 = vmatpush.msra.mxu0 %v3566
  %4025 = vmatmul.f32.gmra.mxu0 %v3873
  %v4026 = vpop.f32.mrf.mxu0
  %v4027 = vadd.f32 %v4001, %v4026
  %4028 = vmatmul.f32.gmra.mxu0 %v3875
  %v4029 = vpop.f32.mrf.mxu0
  %v4030 = vadd.f32 %v4004, %v4029
  %4031 = vmatmul.f32.gmra.mxu0 %v3877
  %v4032 = vpop.f32.mrf.mxu0
  %v4033 = vadd.f32 %v4007, %v4032
  %4034 = vdwg.mxu0
  %v4035 = vld [vmem:[#allocation2 + $0x30] sm:$0xf0]
  %v4036 = vld [vmem:[#allocation2 + $0x38] sm:$0xf0]
  %v4037 = vld [vmem:[#allocation2 + $0x60] sm:$0xf]
  %v4038 = vld [vmem:[#allocation2 + $0x68] sm:$0xf]
  %v4039 = vld [vmem:[%s1130] sm:$0xff]
  %v4040 = vld [vmem:[%s1130 + $0x8] sm:$0xff]
  %v4041 = vld [vmem:[%s1130 + $0x10] sm:$0xff]
  %v4042 = vld [vmem:[%s1130 + $0x18] sm:$0xff]
  %v4043 = vld [vmem:[%s1130 + $0x20] sm:$0xff]
  %v4044 = vld [vmem:[%s1130 + $0x28] sm:$0xff]
  %v4045 = vld [vmem:[%s1130 + $0x30] sm:$0xff]
  %v4046 = vld [vmem:[%s1130 + $0x38] sm:$0xff]
  %v4047 = vld [vmem:[%s1130 + $0x40] sm:$0xff]
  %v4048 = vld [vmem:[%s1130 + $0x48] sm:$0xff]
  %v4049 = vld [vmem:[%s1130 + $0x50] sm:$0xff]
  %v4050 = vld [vmem:[%s1130 + $0x58] sm:$0xff]
  %v4051 = vld [vmem:[%s1130 + $0x60] sm:$0xff]
  %v4052 = vld [vmem:[%s1130 + $0x68] sm:$0xff]
  %v4053 = vld [vmem:[%s1130 + $0x70] sm:$0xff]
  %v4054 = vld [vmem:[%s1130 + $0x78] sm:$0xff]
  %v4055 = vld [vmem:[%s1130 + $0x80] sm:$0xff]
  %v4056 = vld [vmem:[%s1130 + $0x88] sm:$0xff]
  %v4057 = vld [vmem:[%s1130 + $0x90] sm:$0xff]
  %v4058 = vld [vmem:[%s1130 + $0x98] sm:$0xff]
  %v4059 = vld [vmem:[%s1130 + $0xa0] sm:$0xff]
  %v4060 = vld [vmem:[%s1130 + $0xa8] sm:$0xff]
  %v4061 = vld [vmem:[%s1130 + $0xb0] sm:$0xff]
  %v4062 = vld [vmem:[%s1130 + $0xb8] sm:$0xff]
  %v4063 = vld [vmem:[%s1130 + $0xc0] sm:$0xff]
  %v4064 = vld [vmem:[%s1130 + $0xc8] sm:$0xff]
  %v4065 = vld [vmem:[%s1130 + $0xd0] sm:$0xff]
  %v4066 = vld [vmem:[%s1130 + $0xd8] sm:$0xff]
  %v4067 = vld [vmem:[%s1130 + $0xe0] sm:$0xff]
  %v4068 = vld [vmem:[%s1130 + $0xe8] sm:$0xff]
  %v4069 = vld [vmem:[%s1130 + $0xf0] sm:$0xff]
  %v4070 = vld [vmem:[%s1130 + $0xf8] sm:$0xff]
  %v4071 = vld [vmem:[%s1130 + $0x100] sm:$0xff]
  %v4072 = vld [vmem:[%s1130 + $0x108] sm:$0xff]
  %v4073 = vld [vmem:[%s1130 + $0x110] sm:$0xff]
  %v4074 = vld [vmem:[%s1130 + $0x118] sm:$0xff]
  %v4075 = vld [vmem:[%s1130 + $0x120] sm:$0xff]
  %v4076 = vld [vmem:[%s1130 + $0x128] sm:$0xff]
  %v4077 = vld [vmem:[%s1130 + $0x130] sm:$0xff]
  %v4078 = vld [vmem:[%s1130 + $0x138] sm:$0xff]
  %v4079 = vld [vmem:[%s1130 + $0x140] sm:$0xff]
  %v4080 = vld [vmem:[%s1130 + $0x148] sm:$0xff]
  %v4081 = vld [vmem:[%s1130 + $0x150] sm:$0xff]
  %v4082 = vld [vmem:[%s1130 + $0x158] sm:$0xff]
  %v4083 = vld [vmem:[%s1130 + $0x160] sm:$0xff]
  %v4084 = vld [vmem:[%s1130 + $0x168] sm:$0xff]
  %v4085 = vld [vmem:[%s1130 + $0x170] sm:$0xff]
  %v4086 = vld [vmem:[%s1130 + $0x178] sm:$0xff]
  %v4087 = vld [vmem:[%s1130 + $0x180] sm:$0xff]
  %v4088 = vld [vmem:[%s1130 + $0x188] sm:$0xff]
  %v4089 = vld [vmem:[%s1130 + $0x190] sm:$0xff]
  %v4090 = vld [vmem:[%s1130 + $0x198] sm:$0xff]
  %v4091 = vld [vmem:[%s1130 + $0x1a0] sm:$0xff]
  %v4092 = vld [vmem:[%s1130 + $0x1a8] sm:$0xff]
  %v4093 = vld [vmem:[%s1130 + $0x1b0] sm:$0xff]
  %v4094 = vld [vmem:[%s1130 + $0x1b8] sm:$0xff]
  %v4095 = vld [vmem:[%s1130 + $0x1c0] sm:$0xff]
  %v4096 = vld [vmem:[%s1130 + $0x1c8] sm:$0xff]
  %v4097 = vld [vmem:[%s1130 + $0x1d0] sm:$0xff]
  %v4098 = vld [vmem:[%s1130 + $0x1d8] sm:$0xff]
  %v4099 = vld [vmem:[%s1130 + $0x1e0] sm:$0xff]
  %v4100 = vld [vmem:[%s1130 + $0x1e8] sm:$0xff]
  %v4101 = vld [vmem:[%s1130 + $0x1f0] sm:$0xff]
  %v4102 = vld [vmem:[%s1130 + $0x1f8] sm:$0xff]
  %v4103 = vld [vmem:[%s1130 + $0x200] sm:$0xff]
  %v4104 = vld [vmem:[%s1130 + $0x208] sm:$0xff]
  %v4105 = vld [vmem:[%s1130 + $0x210] sm:$0xff]
  %v4106 = vld [vmem:[%s1130 + $0x218] sm:$0xff]
  %v4107 = vld [vmem:[%s1130 + $0x220] sm:$0xff]
  %v4108 = vld [vmem:[%s1130 + $0x228] sm:$0xff]
  %v4109 = vld [vmem:[%s1130 + $0x230] sm:$0xff]
  %v4110 = vld [vmem:[%s1130 + $0x238] sm:$0xff]
  %vm4115 = vcmask 1043456
  %v4116 = vrot.slane %v4035, 4
  %v4117 = vrot.slane %v3510, 4
  %v4118 = vsel %vm4115, %v4116, %v4117
  %v4119 = vrot.slane %v4036, 4
  %v4120 = vrot.slane %v3511, 4
  %v4121 = vsel %vm4115, %v4119, %v4120
  %v4122 = vrot.slane %v3512, 4
  %v4123 = vsel %vm4115, %v4117, %v4122
  %v4124 = vrot.slane %v3513, 4
  %v4125 = vsel %vm4115, %v4120, %v4124
  %v4126 = vrot.slane %v4037, 4
  %v4127 = vsel %vm4115, %v4122, %v4126
  %v4128 = vrot.slane %v4038, 4
  %v4129 = vsel %vm4115, %v4124, %v4128
  %v4133 = vsel %vm613, %v4121, 0
  %v4135 = vsel %vm613, %v4125, 0
  %v4137 = vsel %vm613, %v4129, 0
  %4139 = vmatpush.msra.mxu0 %v4084
  %4140 = vmatpush.msra.mxu0 %v4081
  %4141 = vmatpush.msra.mxu0 %v4078
  %4142 = vmatpush.msra.mxu0 %v4075
  %4143 = vmatpush.msra.mxu0 %v4072
  %4144 = vmatpush.msra.mxu0 %v4069
  %4145 = vmatpush.msra.mxu0 %v4066
  %4146 = vmatpush.msra.mxu0 %v4063
  %4147 = vmatpush.msra.mxu0 %v4060
  %4148 = vmatpush.msra.mxu0 %v4057
  %4149 = vmatpush.msra.mxu0 %v4054
  %4150 = vmatpush.msra.mxu0 %v4051
  %4151 = vmatpush.msra.mxu0 %v4048
  %4152 = vmatpush.msra.mxu0 %v4045
  %4153 = vmatpush.msra.mxu0 %v4042
  %4154 = vmatpush.msra.mxu0 %v4039
  %4155 = vmatmul.f32.gmra.mxu0 %v4118
  %v4156 = vpop.f32.mrf.mxu0
  %v4157 = vadd.f32 0.0, %v4156
  %4158 = vmatmul.f32.gmra.mxu0 %v4123
  %v4159 = vpop.f32.mrf.mxu0
  %v4160 = vadd.f32 0.0, %v4159
  %4161 = vmatmul.f32.gmra.mxu0 %v4127
  %v4162 = vpop.f32.mrf.mxu0
  %v4163 = vadd.f32 0.0, %v4162
  %4164 = vdwg.mxu0
  %4165 = vmatpush.msra.mxu0 0.0
  %4166 = vmatpush.msra.mxu0 0.0
  %4167 = vmatpush.msra.mxu0 0.0
  %4168 = vmatpush.msra.mxu0 0.0
  %4169 = vmatpush.msra.mxu0 0.0
  %4170 = vmatpush.msra.mxu0 0.0
  %4171 = vmatpush.msra.mxu0 0.0
  %4172 = vmatpush.msra.mxu0 0.0
  %4173 = vmatpush.msra.mxu0 %v4108
  %4174 = vmatpush.msra.mxu0 %v4105
  %4175 = vmatpush.msra.mxu0 %v4102
  %4176 = vmatpush.msra.mxu0 %v4099
  %4177 = vmatpush.msra.mxu0 %v4096
  %4178 = vmatpush.msra.mxu0 %v4093
  %4179 = vmatpush.msra.mxu0 %v4090
  %4180 = vmatpush.msra.mxu0 %v4087
  %4181 = vmatmul.f32.gmra.mxu0 %v4133
  %v4182 = vpop.f32.mrf.mxu0
  %v4183 = vadd.f32 %v4157, %v4182
  %4184 = vmatmul.f32.gmra.mxu0 %v4135
  %v4185 = vpop.f32.mrf.mxu0
  %v4186 = vadd.f32 %v4160, %v4185
  %4187 = vmatmul.f32.gmra.mxu0 %v4137
  %v4188 = vpop.f32.mrf.mxu0
  %v4189 = vadd.f32 %v4163, %v4188
  %4190 = vdwg.mxu0
  %4191 = vmatpush.msra.mxu0 %v4085
  %4192 = vmatpush.msra.mxu0 %v4082
  %4193 = vmatpush.msra.mxu0 %v4079
  %4194 = vmatpush.msra.mxu0 %v4076
  %4195 = vmatpush.msra.mxu0 %v4073
  %4196 = vmatpush.msra.mxu0 %v4070
  %4197 = vmatpush.msra.mxu0 %v4067
  %4198 = vmatpush.msra.mxu0 %v4064
  %4199 = vmatpush.msra.mxu0 %v4061
  %4200 = vmatpush.msra.mxu0 %v4058
  %4201 = vmatpush.msra.mxu0 %v4055
  %4202 = vmatpush.msra.mxu0 %v4052
  %4203 = vmatpush.msra.mxu0 %v4049
  %4204 = vmatpush.msra.mxu0 %v4046
  %4205 = vmatpush.msra.mxu0 %v4043
  %4206 = vmatpush.msra.mxu0 %v4040
  %4207 = vmatmul.f32.gmra.mxu0 %v4118
  %v4208 = vpop.f32.mrf.mxu0
  %v4209 = vadd.f32 0.0, %v4208
  %4210 = vmatmul.f32.gmra.mxu0 %v4123
  %v4211 = vpop.f32.mrf.mxu0
  %v4212 = vadd.f32 0.0, %v4211
  %4213 = vmatmul.f32.gmra.mxu0 %v4127
  %v4214 = vpop.f32.mrf.mxu0
  %v4215 = vadd.f32 0.0, %v4214
  %4216 = vdwg.mxu0
  %4217 = vmatpush.msra.mxu0 0.0
  %4218 = vmatpush.msra.mxu0 0.0
  %4219 = vmatpush.msra.mxu0 0.0
  %4220 = vmatpush.msra.mxu0 0.0
  %4221 = vmatpush.msra.mxu0 0.0
  %4222 = vmatpush.msra.mxu0 0.0
  %4223 = vmatpush.msra.mxu0 0.0
  %4224 = vmatpush.msra.mxu0 0.0
  %4225 = vmatpush.msra.mxu0 %v4109
  %4226 = vmatpush.msra.mxu0 %v4106
  %4227 = vmatpush.msra.mxu0 %v4103
  %4228 = vmatpush.msra.mxu0 %v4100
  %4229 = vmatpush.msra.mxu0 %v4097
  %4230 = vmatpush.msra.mxu0 %v4094
  %4231 = vmatpush.msra.mxu0 %v4091
  %4232 = vmatpush.msra.mxu0 %v4088
  %4233 = vmatmul.f32.gmra.mxu0 %v4133
  %v4234 = vpop.f32.mrf.mxu0
  %v4235 = vadd.f32 %v4209, %v4234
  %4236 = vmatmul.f32.gmra.mxu0 %v4135
  %v4237 = vpop.f32.mrf.mxu0
  %v4238 = vadd.f32 %v4212, %v4237
  %4239 = vmatmul.f32.gmra.mxu0 %v4137
  %v4240 = vpop.f32.mrf.mxu0
  %v4241 = vadd.f32 %v4215, %v4240
  %4242 = vdwg.mxu0
  %4243 = vmatpush.msra.mxu0 %v4086
  %4244 = vmatpush.msra.mxu0 %v4083
  %4245 = vmatpush.msra.mxu0 %v4080
  %4246 = vmatpush.msra.mxu0 %v4077
  %4247 = vmatpush.msra.mxu0 %v4074
  %4248 = vmatpush.msra.mxu0 %v4071
  %4249 = vmatpush.msra.mxu0 %v4068
  %4250 = vmatpush.msra.mxu0 %v4065
  %4251 = vmatpush.msra.mxu0 %v4062
  %4252 = vmatpush.msra.mxu0 %v4059
  %4253 = vmatpush.msra.mxu0 %v4056
  %4254 = vmatpush.msra.mxu0 %v4053
  %4255 = vmatpush.msra.mxu0 %v4050
  %4256 = vmatpush.msra.mxu0 %v4047
  %4257 = vmatpush.msra.mxu0 %v4044
  %4258 = vmatpush.msra.mxu0 %v4041
  %4259 = vmatmul.f32.gmra.mxu0 %v4118
  %v4260 = vpop.f32.mrf.mxu0
  %v4261 = vadd.f32 0.0, %v4260
  %4262 = vmatmul.f32.gmra.mxu0 %v4123
  %v4263 = vpop.f32.mrf.mxu0
  %v4264 = vadd.f32 0.0, %v4263
  %4265 = vmatmul.f32.gmra.mxu0 %v4127
  %v4266 = vpop.f32.mrf.mxu0
  %v4267 = vadd.f32 0.0, %v4266
  %4268 = vdwg.mxu0
  %4269 = vmatpush.msra.mxu0 0.0
  %4270 = vmatpush.msra.mxu0 0.0
  %4271 = vmatpush.msra.mxu0 0.0
  %4272 = vmatpush.msra.mxu0 0.0
  %4273 = vmatpush.msra.mxu0 0.0
  %4274 = vmatpush.msra.mxu0 0.0
  %4275 = vmatpush.msra.mxu0 0.0
  %4276 = vmatpush.msra.mxu0 0.0
  %4277 = vmatpush.msra.mxu0 %v4110
  %4278 = vmatpush.msra.mxu0 %v4107
  %4279 = vmatpush.msra.mxu0 %v4104
  %4280 = vmatpush.msra.mxu0 %v4101
  %4281 = vmatpush.msra.mxu0 %v4098
  %4282 = vmatpush.msra.mxu0 %v4095
  %4283 = vmatpush.msra.mxu0 %v4092
  %4284 = vmatpush.msra.mxu0 %v4089
  %4285 = vmatmul.f32.gmra.mxu0 %v4133
  %v4286 = vpop.f32.mrf.mxu0
  %v4287 = vadd.f32 %v4261, %v4286
  %4288 = vmatmul.f32.gmra.mxu0 %v4135
  %v4289 = vpop.f32.mrf.mxu0
  %v4290 = vadd.f32 %v4264, %v4289
  %4291 = vmatmul.f32.gmra.mxu0 %v4137
  %v4292 = vpop.f32.mrf.mxu0
  %v4293 = vadd.f32 %v4267, %v4292
  %4294 = vdwg.mxu0
  %v4295 = vadd.f32 %v3923, %v4183
  %v4296 = vadd.f32 %v3975, %v4235
  %v4297 = vadd.f32 %v4027, %v4287
  %v4298 = vadd.f32 %v3926, %v4186
  %v4299 = vadd.f32 %v3978, %v4238
  %v4300 = vadd.f32 %v4030, %v4290
  %v4301 = vadd.f32 %v3929, %v4189
  %v4302 = vadd.f32 %v3981, %v4241
  %v4303 = vadd.f32 %v4033, %v4293
  %v4304 = vadd.f32 %v4295, %v1397
  %v4305 = vadd.f32 %v4296, %v1398
  %v4306 = vadd.f32 %v4297, %v1399
  %v4307 = vadd.f32 %v4298, %v1397
  %v4308 = vadd.f32 %v4299, %v1398
  %v4309 = vadd.f32 %v4300, %v1399
  %v4310 = vadd.f32 %v4301, %v1397
  %v4311 = vadd.f32 %v4302, %v1398
  %v4312 = vadd.f32 %v4303, %v1399
  %v4313 = vmax.f32 %v4304, 0.0
  %v4314 = vmax.f32 %v4305, 0.0
  %v4315 = vmax.f32 %v4306, 0.0
  %v4316 = vmax.f32 %v4307, 0.0
  %v4317 = vmax.f32 %v4308, 0.0
  %v4318 = vmax.f32 %v4309, 0.0
  %v4319 = vmax.f32 %v4310, 0.0
  %v4320 = vmax.f32 %v4311, 0.0
  %v4321 = vmax.f32 %v4312, 0.0
  %s4322 = scalar_lea.vmem [#allocation3], 74
  %4323 = vst.msk [vmem:[%s4322] ss:$8 sm:$0x7] %vm1422, 0.0
  %4324 = vst.msk [vmem:[%s4322] ss:$8 sm:$0x0] %vm1422, 0.0
  %s4325 = scalar_lea.vmem [#allocation3], 147
  %4326 = vst.msk [vmem:[%s4325] ss:$8 sm:$0x7] %vm1422, 0.0
  %4327 = vst.msk [vmem:[%s4325] ss:$8 sm:$0x0] %vm1422, 0.0
  %v4337 = vrot.slane %v4313, 5
  %v4338 = vrot.slane %v4314, 5
  %v4339 = vrot.slane %v4315, 5
  %v4340 = vrot.slane %v4316, 5
  %v4341 = vsel %vm3479, %v4337, %v4340
  %v4342 = vrot.slane %v4317, 5
  %v4343 = vsel %vm3479, %v4338, %v4342
  %v4344 = vrot.slane %v4318, 5
  %v4345 = vsel %vm3479, %v4339, %v4344
  %v4346 = vrot.slane %v4319, 5
  %v4347 = vsel %vm3479, %v4340, %v4346
  %v4348 = vrot.slane %v4320, 5
  %v4349 = vsel %vm3479, %v4342, %v4348
  %v4350 = vrot.slane %v4321, 5
  %v4351 = vsel %vm3479, %v4344, %v4350
  %4364 = vst [vmem:[#allocation3 + $0x48] sm:$0xf8] %v4337
  %4365 = vst [vmem:[#allocation3 + $0x50] sm:$0xf8] %v4338
  %4366 = vst [vmem:[#allocation3 + $0x58] sm:$0xf8] %v4339
  %4367 = vst [vmem:[#allocation3 + $0x60] sm:$0xff] %v4341
  %4368 = vst [vmem:[#allocation3 + $0x68] sm:$0xff] %v4343
  %4369 = vst [vmem:[#allocation3 + $0x70] sm:$0xff] %v4345
  %4370 = vst [vmem:[#allocation3 + $0x78] sm:$0xff] %v4347
  %4371 = vst [vmem:[#allocation3 + $0x80] sm:$0xff] %v4349
  %4372 = vst [vmem:[#allocation3 + $0x88] sm:$0xff] %v4351
  %4373 = vst [vmem:[#allocation3 + $0x90] sm:$0x7] %v4346
  %4374 = vst [vmem:[#allocation3 + $0x98] sm:$0x7] %v4348
  %4375 = vst [vmem:[#allocation3 + $0xa0] sm:$0x7] %v4350
  %v4376 = vld [vmem:[#allocation3 + $0x48] sm:$0xfc]
  %v4377 = vld [vmem:[#allocation3 + $0x50] sm:$0xfc]
  %v4378 = vld [vmem:[#allocation3 + $0x58] sm:$0xfc]
  %v4379 = vld [vmem:[#allocation3 + $0x60] sm:$0xff]
  %v4380 = vld [vmem:[#allocation3 + $0x68] sm:$0xff]
  %v4381 = vld [vmem:[#allocation3 + $0x70] sm:$0xff]
  %v4382 = vld [vmem:[#allocation3 + $0x78] sm:$0xff]
  %v4383 = vld [vmem:[#allocation3 + $0x80] sm:$0xff]
  %v4384 = vld [vmem:[#allocation3 + $0x88] sm:$0xff]
  %v4385 = vld [vmem:[#allocation3 + $0x90] sm:$0x3]
  %v4386 = vld [vmem:[#allocation3 + $0x98] sm:$0x3]
  %v4387 = vld [vmem:[#allocation3 + $0xa0] sm:$0x3]
  %v4388 = vld [vmem:[%s5] sm:$0xff]
  %v4389 = vld [vmem:[%s5 + $0x8] sm:$0xff]
  %v4390 = vld [vmem:[%s5 + $0x10] sm:$0xff]
  %v4391 = vld [vmem:[%s5 + $0x18] sm:$0xff]
  %v4392 = vld [vmem:[%s5 + $0x20] sm:$0xff]
  %v4393 = vld [vmem:[%s5 + $0x28] sm:$0xff]
  %v4394 = vld [vmem:[%s5 + $0x30] sm:$0xff]
  %v4395 = vld [vmem:[%s5 + $0x38] sm:$0xff]
  %v4396 = vld [vmem:[%s5 + $0x40] sm:$0xff]
  %v4397 = vld [vmem:[%s5 + $0x48] sm:$0xff]
  %v4398 = vld [vmem:[%s5 + $0x50] sm:$0xff]
  %v4399 = vld [vmem:[%s5 + $0x58] sm:$0xff]
  %v4400 = vld [vmem:[%s5 + $0x60] sm:$0xff]
  %v4401 = vld [vmem:[%s5 + $0x68] sm:$0xff]
  %v4402 = vld [vmem:[%s5 + $0x70] sm:$0xff]
  %v4403 = vld [vmem:[%s5 + $0x78] sm:$0xff]
  %v4404 = vld [vmem:[%s5 + $0x80] sm:$0xff]
  %v4405 = vld [vmem:[%s5 + $0x88] sm:$0xff]
  %v4406 = vld [vmem:[%s5 + $0x90] sm:$0xff]
  %v4407 = vld [vmem:[%s5 + $0x98] sm:$0xff]
  %v4408 = vld [vmem:[%s5 + $0xa0] sm:$0xff]
  %v4409 = vld [vmem:[%s5 + $0xa8] sm:$0xff]
  %v4410 = vld [vmem:[%s5 + $0xb0] sm:$0xff]
  %v4411 = vld [vmem:[%s5 + $0xb8] sm:$0xff]
  %v4412 = vld [vmem:[%s5 + $0xc0] sm:$0xff]
  %v4413 = vld [vmem:[%s5 + $0xc8] sm:$0xff]
  %v4414 = vld [vmem:[%s5 + $0xd0] sm:$0xff]
  %v4415 = vld [vmem:[%s5 + $0xd8] sm:$0xff]
  %v4416 = vld [vmem:[%s5 + $0xe0] sm:$0xff]
  %v4417 = vld [vmem:[%s5 + $0xe8] sm:$0xff]
  %v4418 = vld [vmem:[%s5 + $0xf0] sm:$0xff]
  %v4419 = vld [vmem:[%s5 + $0xf8] sm:$0xff]
  %v4420 = vld [vmem:[%s5 + $0x100] sm:$0xff]
  %v4421 = vld [vmem:[%s5 + $0x108] sm:$0xff]
  %v4422 = vld [vmem:[%s5 + $0x110] sm:$0xff]
  %v4423 = vld [vmem:[%s5 + $0x118] sm:$0xff]
  %v4424 = vld [vmem:[%s5 + $0x120] sm:$0xff]
  %v4425 = vld [vmem:[%s5 + $0x128] sm:$0xff]
  %v4426 = vld [vmem:[%s5 + $0x130] sm:$0xff]
  %v4427 = vld [vmem:[%s5 + $0x138] sm:$0xff]
  %v4428 = vld [vmem:[%s5 + $0x140] sm:$0xff]
  %v4429 = vld [vmem:[%s5 + $0x148] sm:$0xff]
  %v4430 = vld [vmem:[%s5 + $0x150] sm:$0xff]
  %v4431 = vld [vmem:[%s5 + $0x158] sm:$0xff]
  %v4432 = vld [vmem:[%s5 + $0x160] sm:$0xff]
  %v4433 = vld [vmem:[%s5 + $0x168] sm:$0xff]
  %v4434 = vld [vmem:[%s5 + $0x170] sm:$0xff]
  %v4435 = vld [vmem:[%s5 + $0x178] sm:$0xff]
  %v4436 = vld [vmem:[%s5 + $0x180] sm:$0xff]
  %v4437 = vld [vmem:[%s5 + $0x188] sm:$0xff]
  %v4438 = vld [vmem:[%s5 + $0x190] sm:$0xff]
  %v4439 = vld [vmem:[%s5 + $0x198] sm:$0xff]
  %v4440 = vld [vmem:[%s5 + $0x1a0] sm:$0xff]
  %v4441 = vld [vmem:[%s5 + $0x1a8] sm:$0xff]
  %v4442 = vld [vmem:[%s5 + $0x1b0] sm:$0xff]
  %v4443 = vld [vmem:[%s5 + $0x1b8] sm:$0xff]
  %v4444 = vld [vmem:[%s5 + $0x1c0] sm:$0xff]
  %v4445 = vld [vmem:[%s5 + $0x1c8] sm:$0xff]
  %v4446 = vld [vmem:[%s5 + $0x1d0] sm:$0xff]
  %v4447 = vld [vmem:[%s5 + $0x1d8] sm:$0xff]
  %v4448 = vld [vmem:[%s5 + $0x1e0] sm:$0xff]
  %v4449 = vld [vmem:[%s5 + $0x1e8] sm:$0xff]
  %v4450 = vld [vmem:[%s5 + $0x1f0] sm:$0xff]
  %v4451 = vld [vmem:[%s5 + $0x1f8] sm:$0xff]
  %v4452 = vld [vmem:[%s5 + $0x200] sm:$0xff]
  %v4453 = vld [vmem:[%s5 + $0x208] sm:$0xff]
  %v4454 = vld [vmem:[%s5 + $0x210] sm:$0xff]
  %v4455 = vld [vmem:[%s5 + $0x218] sm:$0xff]
  %v4456 = vld [vmem:[%s5 + $0x220] sm:$0xff]
  %v4457 = vld [vmem:[%s5 + $0x228] sm:$0xff]
  %v4458 = vld [vmem:[%s5 + $0x230] sm:$0xff]
  %v4459 = vld [vmem:[%s5 + $0x238] sm:$0xff]
  %v4460 = vld [vmem:[%s5 + $0x240] sm:$0xff]
  %v4461 = vld [vmem:[%s5 + $0x248] sm:$0xff]
  %v4462 = vld [vmem:[%s5 + $0x250] sm:$0xff]
  %v4463 = vld [vmem:[%s5 + $0x258] sm:$0xff]
  %v4464 = vld [vmem:[%s5 + $0x260] sm:$0xff]
  %v4465 = vld [vmem:[%s5 + $0x268] sm:$0xff]
  %v4466 = vld [vmem:[%s5 + $0x270] sm:$0xff]
  %v4467 = vld [vmem:[%s5 + $0x278] sm:$0xff]
  %v4468 = vld [vmem:[%s5 + $0x280] sm:$0xff]
  %v4469 = vld [vmem:[%s5 + $0x288] sm:$0xff]
  %v4470 = vld [vmem:[%s5 + $0x290] sm:$0xff]
  %v4471 = vld [vmem:[%s5 + $0x298] sm:$0xff]
  %v4472 = vld [vmem:[%s5 + $0x2a0] sm:$0xff]
  %v4473 = vld [vmem:[%s5 + $0x2a8] sm:$0xff]
  %v4474 = vld [vmem:[%s5 + $0x2b0] sm:$0xff]
  %v4475 = vld [vmem:[%s5 + $0x2b8] sm:$0xff]
  %v4476 = vld [vmem:[%s5 + $0x2c0] sm:$0xff]
  %v4477 = vld [vmem:[%s5 + $0x2c8] sm:$0xff]
  %v4478 = vld [vmem:[%s5 + $0x2d0] sm:$0xff]
  %v4479 = vld [vmem:[%s5 + $0x2d8] sm:$0xff]
  %v4480 = vld [vmem:[%s5 + $0x2e0] sm:$0xff]
  %v4481 = vld [vmem:[%s5 + $0x2e8] sm:$0xff]
  %v4482 = vld [vmem:[%s5 + $0x2f0] sm:$0xff]
  %v4483 = vld [vmem:[%s5 + $0x2f8] sm:$0xff]
  %v4484 = vld [vmem:[#allocation3 + $0x48] sm:$0xf8]
  %v4485 = vld [vmem:[#allocation3 + $0x50] sm:$0xf8]
  %v4486 = vld [vmem:[#allocation3 + $0x58] sm:$0xf8]
  %v4487 = vld [vmem:[#allocation3 + $0x90] sm:$0x7]
  %v4488 = vld [vmem:[#allocation3 + $0x98] sm:$0x7]
  %v4489 = vld [vmem:[#allocation3 + $0xa0] sm:$0x7]
  %v4490 = vld [vmem:[%s1587] sm:$0xff]
  %v4491 = vld [vmem:[%s1587 + $0x8] sm:$0xff]
  %v4492 = vld [vmem:[%s1587 + $0x10] sm:$0xff]
  %v4493 = vld [vmem:[%s1587 + $0x18] sm:$0xff]
  %v4494 = vld [vmem:[%s1587 + $0x20] sm:$0xff]
  %v4495 = vld [vmem:[%s1587 + $0x28] sm:$0xff]
  %v4496 = vld [vmem:[%s1587 + $0x30] sm:$0xff]
  %v4497 = vld [vmem:[%s1587 + $0x38] sm:$0xff]
  %v4498 = vld [vmem:[%s1587 + $0x40] sm:$0xff]
  %v4499 = vld [vmem:[%s1587 + $0x48] sm:$0xff]
  %v4500 = vld [vmem:[%s1587 + $0x50] sm:$0xff]
  %v4501 = vld [vmem:[%s1587 + $0x58] sm:$0xff]
  %v4502 = vld [vmem:[%s1587 + $0x60] sm:$0xff]
  %v4503 = vld [vmem:[%s1587 + $0x68] sm:$0xff]
  %v4504 = vld [vmem:[%s1587 + $0x70] sm:$0xff]
  %v4505 = vld [vmem:[%s1587 + $0x78] sm:$0xff]
  %v4506 = vld [vmem:[%s1587 + $0x80] sm:$0xff]
  %v4507 = vld [vmem:[%s1587 + $0x88] sm:$0xff]
  %v4508 = vld [vmem:[%s1587 + $0x90] sm:$0xff]
  %v4509 = vld [vmem:[%s1587 + $0x98] sm:$0xff]
  %v4510 = vld [vmem:[%s1587 + $0xa0] sm:$0xff]
  %v4511 = vld [vmem:[%s1587 + $0xa8] sm:$0xff]
  %v4512 = vld [vmem:[%s1587 + $0xb0] sm:$0xff]
  %v4513 = vld [vmem:[%s1587 + $0xb8] sm:$0xff]
  %v4514 = vld [vmem:[%s1587 + $0xc0] sm:$0xff]
  %v4515 = vld [vmem:[%s1587 + $0xc8] sm:$0xff]
  %v4516 = vld [vmem:[%s1587 + $0xd0] sm:$0xff]
  %v4517 = vld [vmem:[%s1587 + $0xd8] sm:$0xff]
  %v4518 = vld [vmem:[%s1587 + $0xe0] sm:$0xff]
  %v4519 = vld [vmem:[%s1587 + $0xe8] sm:$0xff]
  %v4520 = vld [vmem:[%s1587 + $0xf0] sm:$0xff]
  %v4521 = vld [vmem:[%s1587 + $0xf8] sm:$0xff]
  %v4522 = vld [vmem:[%s1587 + $0x100] sm:$0xff]
  %v4523 = vld [vmem:[%s1587 + $0x108] sm:$0xff]
  %v4524 = vld [vmem:[%s1587 + $0x110] sm:$0xff]
  %v4525 = vld [vmem:[%s1587 + $0x118] sm:$0xff]
  %v4526 = vld [vmem:[%s1587 + $0x120] sm:$0xff]
  %v4527 = vld [vmem:[%s1587 + $0x128] sm:$0xff]
  %v4528 = vld [vmem:[%s1587 + $0x130] sm:$0xff]
  %v4529 = vld [vmem:[%s1587 + $0x138] sm:$0xff]
  %v4530 = vld [vmem:[%s1587 + $0x140] sm:$0xff]
  %v4531 = vld [vmem:[%s1587 + $0x148] sm:$0xff]
  %v4532 = vld [vmem:[%s1587 + $0x150] sm:$0xff]
  %v4533 = vld [vmem:[%s1587 + $0x158] sm:$0xff]
  %v4534 = vld [vmem:[%s1587 + $0x160] sm:$0xff]
  %v4535 = vld [vmem:[%s1587 + $0x168] sm:$0xff]
  %v4536 = vld [vmem:[%s1587 + $0x170] sm:$0xff]
  %v4537 = vld [vmem:[%s1587 + $0x178] sm:$0xff]
  %v4538 = vld [vmem:[%s1587 + $0x180] sm:$0xff]
  %v4539 = vld [vmem:[%s1587 + $0x188] sm:$0xff]
  %v4540 = vld [vmem:[%s1587 + $0x190] sm:$0xff]
  %v4541 = vld [vmem:[%s1587 + $0x198] sm:$0xff]
  %v4542 = vld [vmem:[%s1587 + $0x1a0] sm:$0xff]
  %v4543 = vld [vmem:[%s1587 + $0x1a8] sm:$0xff]
  %v4544 = vld [vmem:[%s1587 + $0x1b0] sm:$0xff]
  %v4545 = vld [vmem:[%s1587 + $0x1b8] sm:$0xff]
  %v4546 = vld [vmem:[%s1587 + $0x1c0] sm:$0xff]
  %v4547 = vld [vmem:[%s1587 + $0x1c8] sm:$0xff]
  %v4548 = vld [vmem:[%s1587 + $0x1d0] sm:$0xff]
  %v4549 = vld [vmem:[%s1587 + $0x1d8] sm:$0xff]
  %v4550 = vld [vmem:[%s1587 + $0x1e0] sm:$0xff]
  %v4551 = vld [vmem:[%s1587 + $0x1e8] sm:$0xff]
  %v4552 = vld [vmem:[%s1587 + $0x1f0] sm:$0xff]
  %v4553 = vld [vmem:[%s1587 + $0x1f8] sm:$0xff]
  %v4554 = vld [vmem:[%s1587 + $0x200] sm:$0xff]
  %v4555 = vld [vmem:[%s1587 + $0x208] sm:$0xff]
  %v4556 = vld [vmem:[%s1587 + $0x210] sm:$0xff]
  %v4557 = vld [vmem:[%s1587 + $0x218] sm:$0xff]
  %v4558 = vld [vmem:[%s1587 + $0x220] sm:$0xff]
  %v4559 = vld [vmem:[%s1587 + $0x228] sm:$0xff]
  %v4560 = vld [vmem:[%s1587 + $0x230] sm:$0xff]
  %v4561 = vld [vmem:[%s1587 + $0x238] sm:$0xff]
  %v4562 = vld [vmem:[%s1587 + $0x240] sm:$0xff]
  %v4563 = vld [vmem:[%s1587 + $0x248] sm:$0xff]
  %v4564 = vld [vmem:[%s1587 + $0x250] sm:$0xff]
  %v4565 = vld [vmem:[%s1587 + $0x258] sm:$0xff]
  %v4566 = vld [vmem:[%s1587 + $0x260] sm:$0xff]
  %v4567 = vld [vmem:[%s1587 + $0x268] sm:$0xff]
  %v4568 = vld [vmem:[%s1587 + $0x270] sm:$0xff]
  %v4569 = vld [vmem:[%s1587 + $0x278] sm:$0xff]
  %v4570 = vld [vmem:[%s1587 + $0x280] sm:$0xff]
  %v4571 = vld [vmem:[%s1587 + $0x288] sm:$0xff]
  %v4572 = vld [vmem:[%s1587 + $0x290] sm:$0xff]
  %v4573 = vld [vmem:[%s1587 + $0x298] sm:$0xff]
  %v4574 = vld [vmem:[%s1587 + $0x2a0] sm:$0xff]
  %v4575 = vld [vmem:[%s1587 + $0x2a8] sm:$0xff]
  %v4576 = vld [vmem:[%s1587 + $0x2b0] sm:$0xff]
  %v4577 = vld [vmem:[%s1587 + $0x2b8] sm:$0xff]
  %v4578 = vld [vmem:[%s1587 + $0x2c0] sm:$0xff]
  %v4579 = vld [vmem:[%s1587 + $0x2c8] sm:$0xff]
  %v4580 = vld [vmem:[%s1587 + $0x2d0] sm:$0xff]
  %v4581 = vld [vmem:[%s1587 + $0x2d8] sm:$0xff]
  %v4582 = vld [vmem:[%s1587 + $0x2e0] sm:$0xff]
  %v4583 = vld [vmem:[%s1587 + $0x2e8] sm:$0xff]
  %v4584 = vld [vmem:[%s1587 + $0x2f0] sm:$0xff]
  %v4585 = vld [vmem:[%s1587 + $0x2f8] sm:$0xff]
  %v4598 = vrot.slane %v4484, 3
  %v4599 = vrot.slane %v4379, 3
  %v4600 = vsel %vm3672, %v4598, %v4599
  %v4601 = vrot.slane %v4485, 3
  %v4602 = vrot.slane %v4380, 3
  %v4603 = vsel %vm3672, %v4601, %v4602
  %v4604 = vrot.slane %v4486, 3
  %v4605 = vrot.slane %v4381, 3
  %v4606 = vsel %vm3672, %v4604, %v4605
  %v4607 = vrot.slane %v4382, 3
  %v4608 = vsel %vm3672, %v4599, %v4607
  %v4609 = vrot.slane %v4383, 3
  %v4610 = vsel %vm3672, %v4602, %v4609
  %v4611 = vrot.slane %v4384, 3
  %v4612 = vsel %vm3672, %v4605, %v4611
  %v4613 = vrot.slane %v4487, 3
  %v4614 = vsel %vm3672, %v4607, %v4613
  %v4615 = vrot.slane %v4488, 3
  %v4616 = vsel %vm3672, %v4609, %v4615
  %v4617 = vrot.slane %v4489, 3
  %v4618 = vsel %vm3672, %v4611, %v4617
  %4628 = vmatpush.msra.mxu0 %v4520
  %4629 = vmatpush.msra.mxu0 %v4518
  %4630 = vmatpush.msra.mxu0 %v4516
  %4631 = vmatpush.msra.mxu0 %v4514
  %4632 = vmatpush.msra.mxu0 %v4512
  %4633 = vmatpush.msra.mxu0 %v4510
  %4634 = vmatpush.msra.mxu0 %v4508
  %4635 = vmatpush.msra.mxu0 %v4506
  %4636 = vmatpush.msra.mxu0 %v4504
  %4637 = vmatpush.msra.mxu0 %v4502
  %4638 = vmatpush.msra.mxu0 %v4500
  %4639 = vmatpush.msra.mxu0 %v4498
  %4640 = vmatpush.msra.mxu0 %v4496
  %4641 = vmatpush.msra.mxu0 %v4494
  %4642 = vmatpush.msra.mxu0 %v4492
  %4643 = vmatpush.msra.mxu0 %v4490
  %4644 = vmatmul.f32.gmra.mxu0 %v4600
  %v4645 = vpop.f32.mrf.mxu0
  %v4646 = vadd.f32 0.0, %v4645
  %4647 = vmatmul.f32.gmra.mxu0 %v4608
  %v4648 = vpop.f32.mrf.mxu0
  %v4649 = vadd.f32 0.0, %v4648
  %4650 = vmatmul.f32.gmra.mxu0 %v4614
  %v4651 = vpop.f32.mrf.mxu0
  %v4652 = vadd.f32 0.0, %v4651
  %4653 = vdwg.mxu0
  %4654 = vmatpush.msra.mxu0 %v4552
  %4655 = vmatpush.msra.mxu0 %v4550
  %4656 = vmatpush.msra.mxu0 %v4548
  %4657 = vmatpush.msra.mxu0 %v4546
  %4658 = vmatpush.msra.mxu0 %v4544
  %4659 = vmatpush.msra.mxu0 %v4542
  %4660 = vmatpush.msra.mxu0 %v4540
  %4661 = vmatpush.msra.mxu0 %v4538
  %4662 = vmatpush.msra.mxu0 %v4536
  %4663 = vmatpush.msra.mxu0 %v4534
  %4664 = vmatpush.msra.mxu0 %v4532
  %4665 = vmatpush.msra.mxu0 %v4530
  %4666 = vmatpush.msra.mxu0 %v4528
  %4667 = vmatpush.msra.mxu0 %v4526
  %4668 = vmatpush.msra.mxu0 %v4524
  %4669 = vmatpush.msra.mxu0 %v4522
  %4670 = vmatmul.f32.gmra.mxu0 %v4603
  %v4671 = vpop.f32.mrf.mxu0
  %v4672 = vadd.f32 %v4646, %v4671
  %4673 = vmatmul.f32.gmra.mxu0 %v4610
  %v4674 = vpop.f32.mrf.mxu0
  %v4675 = vadd.f32 %v4649, %v4674
  %4676 = vmatmul.f32.gmra.mxu0 %v4616
  %v4677 = vpop.f32.mrf.mxu0
  %v4678 = vadd.f32 %v4652, %v4677
  %4679 = vdwg.mxu0
  %4680 = vmatpush.msra.mxu0 %v4584
  %4681 = vmatpush.msra.mxu0 %v4582
  %4682 = vmatpush.msra.mxu0 %v4580
  %4683 = vmatpush.msra.mxu0 %v4578
  %4684 = vmatpush.msra.mxu0 %v4576
  %4685 = vmatpush.msra.mxu0 %v4574
  %4686 = vmatpush.msra.mxu0 %v4572
  %4687 = vmatpush.msra.mxu0 %v4570
  %4688 = vmatpush.msra.mxu0 %v4568
  %4689 = vmatpush.msra.mxu0 %v4566
  %4690 = vmatpush.msra.mxu0 %v4564
  %4691 = vmatpush.msra.mxu0 %v4562
  %4692 = vmatpush.msra.mxu0 %v4560
  %4693 = vmatpush.msra.mxu0 %v4558
  %4694 = vmatpush.msra.mxu0 %v4556
  %4695 = vmatpush.msra.mxu0 %v4554
  %4696 = vmatmul.f32.gmra.mxu0 %v4606
  %v4697 = vpop.f32.mrf.mxu0
  %v4698 = vadd.f32 %v4672, %v4697
  %4699 = vmatmul.f32.gmra.mxu0 %v4612
  %v4700 = vpop.f32.mrf.mxu0
  %v4701 = vadd.f32 %v4675, %v4700
  %4702 = vmatmul.f32.gmra.mxu0 %v4618
  %v4703 = vpop.f32.mrf.mxu0
  %v4704 = vadd.f32 %v4678, %v4703
  %4705 = vdwg.mxu0
  %4706 = vmatpush.msra.mxu0 %v4521
  %4707 = vmatpush.msra.mxu0 %v4519
  %4708 = vmatpush.msra.mxu0 %v4517
  %4709 = vmatpush.msra.mxu0 %v4515
  %4710 = vmatpush.msra.mxu0 %v4513
  %4711 = vmatpush.msra.mxu0 %v4511
  %4712 = vmatpush.msra.mxu0 %v4509
  %4713 = vmatpush.msra.mxu0 %v4507
  %4714 = vmatpush.msra.mxu0 %v4505
  %4715 = vmatpush.msra.mxu0 %v4503
  %4716 = vmatpush.msra.mxu0 %v4501
  %4717 = vmatpush.msra.mxu0 %v4499
  %4718 = vmatpush.msra.mxu0 %v4497
  %4719 = vmatpush.msra.mxu0 %v4495
  %4720 = vmatpush.msra.mxu0 %v4493
  %4721 = vmatpush.msra.mxu0 %v4491
  %4722 = vmatmul.f32.gmra.mxu0 %v4600
  %v4723 = vpop.f32.mrf.mxu0
  %v4724 = vadd.f32 0.0, %v4723
  %4725 = vmatmul.f32.gmra.mxu0 %v4608
  %v4726 = vpop.f32.mrf.mxu0
  %v4727 = vadd.f32 0.0, %v4726
  %4728 = vmatmul.f32.gmra.mxu0 %v4614
  %v4729 = vpop.f32.mrf.mxu0
  %v4730 = vadd.f32 0.0, %v4729
  %4731 = vdwg.mxu0
  %4732 = vmatpush.msra.mxu0 %v4553
  %4733 = vmatpush.msra.mxu0 %v4551
  %4734 = vmatpush.msra.mxu0 %v4549
  %4735 = vmatpush.msra.mxu0 %v4547
  %4736 = vmatpush.msra.mxu0 %v4545
  %4737 = vmatpush.msra.mxu0 %v4543
  %4738 = vmatpush.msra.mxu0 %v4541
  %4739 = vmatpush.msra.mxu0 %v4539
  %4740 = vmatpush.msra.mxu0 %v4537
  %4741 = vmatpush.msra.mxu0 %v4535
  %4742 = vmatpush.msra.mxu0 %v4533
  %4743 = vmatpush.msra.mxu0 %v4531
  %4744 = vmatpush.msra.mxu0 %v4529
  %4745 = vmatpush.msra.mxu0 %v4527
  %4746 = vmatpush.msra.mxu0 %v4525
  %4747 = vmatpush.msra.mxu0 %v4523
  %4748 = vmatmul.f32.gmra.mxu0 %v4603
  %v4749 = vpop.f32.mrf.mxu0
  %v4750 = vadd.f32 %v4724, %v4749
  %4751 = vmatmul.f32.gmra.mxu0 %v4610
  %v4752 = vpop.f32.mrf.mxu0
  %v4753 = vadd.f32 %v4727, %v4752
  %4754 = vmatmul.f32.gmra.mxu0 %v4616
  %v4755 = vpop.f32.mrf.mxu0
  %v4756 = vadd.f32 %v4730, %v4755
  %4757 = vdwg.mxu0
  %4758 = vmatpush.msra.mxu0 %v4585
  %4759 = vmatpush.msra.mxu0 %v4583
  %4760 = vmatpush.msra.mxu0 %v4581
  %4761 = vmatpush.msra.mxu0 %v4579
  %4762 = vmatpush.msra.mxu0 %v4577
  %4763 = vmatpush.msra.mxu0 %v4575
  %4764 = vmatpush.msra.mxu0 %v4573
  %4765 = vmatpush.msra.mxu0 %v4571
  %4766 = vmatpush.msra.mxu0 %v4569
  %4767 = vmatpush.msra.mxu0 %v4567
  %4768 = vmatpush.msra.mxu0 %v4565
  %4769 = vmatpush.msra.mxu0 %v4563
  %4770 = vmatpush.msra.mxu0 %v4561
  %4771 = vmatpush.msra.mxu0 %v4559
  %4772 = vmatpush.msra.mxu0 %v4557
  %4773 = vmatpush.msra.mxu0 %v4555
  %4774 = vmatmul.f32.gmra.mxu0 %v4606
  %v4775 = vpop.f32.mrf.mxu0
  %v4776 = vadd.f32 %v4750, %v4775
  %4777 = vmatmul.f32.gmra.mxu0 %v4612
  %v4778 = vpop.f32.mrf.mxu0
  %v4779 = vadd.f32 %v4753, %v4778
  %4780 = vmatmul.f32.gmra.mxu0 %v4618
  %v4781 = vpop.f32.mrf.mxu0
  %v4782 = vadd.f32 %v4756, %v4781
  %4783 = vdwg.mxu0
  %v4790 = vrot.slane %v4376, 2
  %v4791 = vrot.slane %v4379, 2
  %v4792 = vsel %vm1207, %v4790, %v4791
  %v4793 = vrot.slane %v4377, 2
  %v4794 = vrot.slane %v4380, 2
  %v4795 = vsel %vm1207, %v4793, %v4794
  %v4796 = vrot.slane %v4378, 2
  %v4797 = vrot.slane %v4381, 2
  %v4798 = vsel %vm1207, %v4796, %v4797
  %v4799 = vrot.slane %v4382, 2
  %v4800 = vsel %vm1207, %v4791, %v4799
  %v4801 = vrot.slane %v4383, 2
  %v4802 = vsel %vm1207, %v4794, %v4801
  %v4803 = vrot.slane %v4384, 2
  %v4804 = vsel %vm1207, %v4797, %v4803
  %v4805 = vrot.slane %v4385, 2
  %v4806 = vsel %vm1207, %v4799, %v4805
  %v4807 = vrot.slane %v4386, 2
  %v4808 = vsel %vm1207, %v4801, %v4807
  %v4809 = vrot.slane %v4387, 2
  %v4810 = vsel %vm1207, %v4803, %v4809
  %4820 = vmatpush.msra.mxu0 %v4418
  %4821 = vmatpush.msra.mxu0 %v4416
  %4822 = vmatpush.msra.mxu0 %v4414
  %4823 = vmatpush.msra.mxu0 %v4412
  %4824 = vmatpush.msra.mxu0 %v4410
  %4825 = vmatpush.msra.mxu0 %v4408
  %4826 = vmatpush.msra.mxu0 %v4406
  %4827 = vmatpush.msra.mxu0 %v4404
  %4828 = vmatpush.msra.mxu0 %v4402
  %4829 = vmatpush.msra.mxu0 %v4400
  %4830 = vmatpush.msra.mxu0 %v4398
  %4831 = vmatpush.msra.mxu0 %v4396
  %4832 = vmatpush.msra.mxu0 %v4394
  %4833 = vmatpush.msra.mxu0 %v4392
  %4834 = vmatpush.msra.mxu0 %v4390
  %4835 = vmatpush.msra.mxu0 %v4388
  %4836 = vmatmul.f32.gmra.mxu0 %v4792
  %v4837 = vpop.f32.mrf.mxu0
  %v4838 = vadd.f32 %v4698, %v4837
  %4839 = vmatmul.f32.gmra.mxu0 %v4800
  %v4840 = vpop.f32.mrf.mxu0
  %v4841 = vadd.f32 %v4701, %v4840
  %4842 = vmatmul.f32.gmra.mxu0 %v4806
  %v4843 = vpop.f32.mrf.mxu0
  %v4844 = vadd.f32 %v4704, %v4843
  %4845 = vdwg.mxu0
  %4846 = vmatpush.msra.mxu0 %v4450
  %4847 = vmatpush.msra.mxu0 %v4448
  %4848 = vmatpush.msra.mxu0 %v4446
  %4849 = vmatpush.msra.mxu0 %v4444
  %4850 = vmatpush.msra.mxu0 %v4442
  %4851 = vmatpush.msra.mxu0 %v4440
  %4852 = vmatpush.msra.mxu0 %v4438
  %4853 = vmatpush.msra.mxu0 %v4436
  %4854 = vmatpush.msra.mxu0 %v4434
  %4855 = vmatpush.msra.mxu0 %v4432
  %4856 = vmatpush.msra.mxu0 %v4430
  %4857 = vmatpush.msra.mxu0 %v4428
  %4858 = vmatpush.msra.mxu0 %v4426
  %4859 = vmatpush.msra.mxu0 %v4424
  %4860 = vmatpush.msra.mxu0 %v4422
  %4861 = vmatpush.msra.mxu0 %v4420
  %4862 = vmatmul.f32.gmra.mxu0 %v4795
  %v4863 = vpop.f32.mrf.mxu0
  %v4864 = vadd.f32 %v4838, %v4863
  %4865 = vmatmul.f32.gmra.mxu0 %v4802
  %v4866 = vpop.f32.mrf.mxu0
  %v4867 = vadd.f32 %v4841, %v4866
  %4868 = vmatmul.f32.gmra.mxu0 %v4808
  %v4869 = vpop.f32.mrf.mxu0
  %v4870 = vadd.f32 %v4844, %v4869
  %4871 = vdwg.mxu0
  %4872 = vmatpush.msra.mxu0 %v4482
  %4873 = vmatpush.msra.mxu0 %v4480
  %4874 = vmatpush.msra.mxu0 %v4478
  %4875 = vmatpush.msra.mxu0 %v4476
  %4876 = vmatpush.msra.mxu0 %v4474
  %4877 = vmatpush.msra.mxu0 %v4472
  %4878 = vmatpush.msra.mxu0 %v4470
  %4879 = vmatpush.msra.mxu0 %v4468
  %4880 = vmatpush.msra.mxu0 %v4466
  %4881 = vmatpush.msra.mxu0 %v4464
  %4882 = vmatpush.msra.mxu0 %v4462
  %4883 = vmatpush.msra.mxu0 %v4460
  %4884 = vmatpush.msra.mxu0 %v4458
  %4885 = vmatpush.msra.mxu0 %v4456
  %4886 = vmatpush.msra.mxu0 %v4454
  %4887 = vmatpush.msra.mxu0 %v4452
  %4888 = vmatmul.f32.gmra.mxu0 %v4798
  %v4889 = vpop.f32.mrf.mxu0
  %v4890 = vadd.f32 %v4864, %v4889
  %4891 = vmatmul.f32.gmra.mxu0 %v4804
  %v4892 = vpop.f32.mrf.mxu0
  %v4893 = vadd.f32 %v4867, %v4892
  %4894 = vmatmul.f32.gmra.mxu0 %v4810
  %v4895 = vpop.f32.mrf.mxu0
  %v4896 = vadd.f32 %v4870, %v4895
  %4897 = vdwg.mxu0
  %4898 = vmatpush.msra.mxu0 %v4419
  %4899 = vmatpush.msra.mxu0 %v4417
  %4900 = vmatpush.msra.mxu0 %v4415
  %4901 = vmatpush.msra.mxu0 %v4413
  %4902 = vmatpush.msra.mxu0 %v4411
  %4903 = vmatpush.msra.mxu0 %v4409
  %4904 = vmatpush.msra.mxu0 %v4407
  %4905 = vmatpush.msra.mxu0 %v4405
  %4906 = vmatpush.msra.mxu0 %v4403
  %4907 = vmatpush.msra.mxu0 %v4401
  %4908 = vmatpush.msra.mxu0 %v4399
  %4909 = vmatpush.msra.mxu0 %v4397
  %4910 = vmatpush.msra.mxu0 %v4395
  %4911 = vmatpush.msra.mxu0 %v4393
  %4912 = vmatpush.msra.mxu0 %v4391
  %4913 = vmatpush.msra.mxu0 %v4389
  %4914 = vmatmul.f32.gmra.mxu0 %v4792
  %v4915 = vpop.f32.mrf.mxu0
  %v4916 = vadd.f32 %v4776, %v4915
  %4917 = vmatmul.f32.gmra.mxu0 %v4800
  %v4918 = vpop.f32.mrf.mxu0
  %v4919 = vadd.f32 %v4779, %v4918
  %4920 = vmatmul.f32.gmra.mxu0 %v4806
  %v4921 = vpop.f32.mrf.mxu0
  %v4922 = vadd.f32 %v4782, %v4921
  %4923 = vdwg.mxu0
  %4924 = vmatpush.msra.mxu0 %v4451
  %4925 = vmatpush.msra.mxu0 %v4449
  %4926 = vmatpush.msra.mxu0 %v4447
  %4927 = vmatpush.msra.mxu0 %v4445
  %4928 = vmatpush.msra.mxu0 %v4443
  %4929 = vmatpush.msra.mxu0 %v4441
  %4930 = vmatpush.msra.mxu0 %v4439
  %4931 = vmatpush.msra.mxu0 %v4437
  %4932 = vmatpush.msra.mxu0 %v4435
  %4933 = vmatpush.msra.mxu0 %v4433
  %4934 = vmatpush.msra.mxu0 %v4431
  %4935 = vmatpush.msra.mxu0 %v4429
  %4936 = vmatpush.msra.mxu0 %v4427
  %4937 = vmatpush.msra.mxu0 %v4425
  %4938 = vmatpush.msra.mxu0 %v4423
  %4939 = vmatpush.msra.mxu0 %v4421
  %4940 = vmatmul.f32.gmra.mxu0 %v4795
  %v4941 = vpop.f32.mrf.mxu0
  %v4942 = vadd.f32 %v4916, %v4941
  %4943 = vmatmul.f32.gmra.mxu0 %v4802
  %v4944 = vpop.f32.mrf.mxu0
  %v4945 = vadd.f32 %v4919, %v4944
  %4946 = vmatmul.f32.gmra.mxu0 %v4808
  %v4947 = vpop.f32.mrf.mxu0
  %v4948 = vadd.f32 %v4922, %v4947
  %4949 = vdwg.mxu0
  %4950 = vmatpush.msra.mxu0 %v4483
  %4951 = vmatpush.msra.mxu0 %v4481
  %4952 = vmatpush.msra.mxu0 %v4479
  %4953 = vmatpush.msra.mxu0 %v4477
  %4954 = vmatpush.msra.mxu0 %v4475
  %4955 = vmatpush.msra.mxu0 %v4473
  %4956 = vmatpush.msra.mxu0 %v4471
  %4957 = vmatpush.msra.mxu0 %v4469
  %4958 = vmatpush.msra.mxu0 %v4467
  %4959 = vmatpush.msra.mxu0 %v4465
  %4960 = vmatpush.msra.mxu0 %v4463
  %4961 = vmatpush.msra.mxu0 %v4461
  %4962 = vmatpush.msra.mxu0 %v4459
  %4963 = vmatpush.msra.mxu0 %v4457
  %4964 = vmatpush.msra.mxu0 %v4455
  %4965 = vmatpush.msra.mxu0 %v4453
  %4966 = vmatmul.f32.gmra.mxu0 %v4798
  %v4967 = vpop.f32.mrf.mxu0
  %v4968 = vadd.f32 %v4942, %v4967
  %4969 = vmatmul.f32.gmra.mxu0 %v4804
  %v4970 = vpop.f32.mrf.mxu0
  %v4971 = vadd.f32 %v4945, %v4970
  %4972 = vmatmul.f32.gmra.mxu0 %v4810
  %v4973 = vpop.f32.mrf.mxu0
  %v4974 = vadd.f32 %v4948, %v4973
  %4975 = vdwg.mxu0
  %v4976 = vld [vmem:[#allocation3 + $0x48] sm:$0xf0]
  %v4977 = vld [vmem:[#allocation3 + $0x50] sm:$0xf0]
  %v4978 = vld [vmem:[#allocation3 + $0x58] sm:$0xf0]
  %v4979 = vld [vmem:[#allocation3 + $0x90] sm:$0xf]
  %v4980 = vld [vmem:[#allocation3 + $0x98] sm:$0xf]
  %v4981 = vld [vmem:[#allocation3 + $0xa0] sm:$0xf]
  %v4982 = vld [vmem:[%s2044] sm:$0xff]
  %v4983 = vld [vmem:[%s2044 + $0x8] sm:$0xff]
  %v4984 = vld [vmem:[%s2044 + $0x10] sm:$0xff]
  %v4985 = vld [vmem:[%s2044 + $0x18] sm:$0xff]
  %v4986 = vld [vmem:[%s2044 + $0x20] sm:$0xff]
  %v4987 = vld [vmem:[%s2044 + $0x28] sm:$0xff]
  %v4988 = vld [vmem:[%s2044 + $0x30] sm:$0xff]
  %v4989 = vld [vmem:[%s2044 + $0x38] sm:$0xff]
  %v4990 = vld [vmem:[%s2044 + $0x40] sm:$0xff]
  %v4991 = vld [vmem:[%s2044 + $0x48] sm:$0xff]
  %v4992 = vld [vmem:[%s2044 + $0x50] sm:$0xff]
  %v4993 = vld [vmem:[%s2044 + $0x58] sm:$0xff]
  %v4994 = vld [vmem:[%s2044 + $0x60] sm:$0xff]
  %v4995 = vld [vmem:[%s2044 + $0x68] sm:$0xff]
  %v4996 = vld [vmem:[%s2044 + $0x70] sm:$0xff]
  %v4997 = vld [vmem:[%s2044 + $0x78] sm:$0xff]
  %v4998 = vld [vmem:[%s2044 + $0x80] sm:$0xff]
  %v4999 = vld [vmem:[%s2044 + $0x88] sm:$0xff]
  %v5000 = vld [vmem:[%s2044 + $0x90] sm:$0xff]
  %v5001 = vld [vmem:[%s2044 + $0x98] sm:$0xff]
  %v5002 = vld [vmem:[%s2044 + $0xa0] sm:$0xff]
  %v5003 = vld [vmem:[%s2044 + $0xa8] sm:$0xff]
  %v5004 = vld [vmem:[%s2044 + $0xb0] sm:$0xff]
  %v5005 = vld [vmem:[%s2044 + $0xb8] sm:$0xff]
  %v5006 = vld [vmem:[%s2044 + $0xc0] sm:$0xff]
  %v5007 = vld [vmem:[%s2044 + $0xc8] sm:$0xff]
  %v5008 = vld [vmem:[%s2044 + $0xd0] sm:$0xff]
  %v5009 = vld [vmem:[%s2044 + $0xd8] sm:$0xff]
  %v5010 = vld [vmem:[%s2044 + $0xe0] sm:$0xff]
  %v5011 = vld [vmem:[%s2044 + $0xe8] sm:$0xff]
  %v5012 = vld [vmem:[%s2044 + $0xf0] sm:$0xff]
  %v5013 = vld [vmem:[%s2044 + $0xf8] sm:$0xff]
  %v5014 = vld [vmem:[%s2044 + $0x100] sm:$0xff]
  %v5015 = vld [vmem:[%s2044 + $0x108] sm:$0xff]
  %v5016 = vld [vmem:[%s2044 + $0x110] sm:$0xff]
  %v5017 = vld [vmem:[%s2044 + $0x118] sm:$0xff]
  %v5018 = vld [vmem:[%s2044 + $0x120] sm:$0xff]
  %v5019 = vld [vmem:[%s2044 + $0x128] sm:$0xff]
  %v5020 = vld [vmem:[%s2044 + $0x130] sm:$0xff]
  %v5021 = vld [vmem:[%s2044 + $0x138] sm:$0xff]
  %v5022 = vld [vmem:[%s2044 + $0x140] sm:$0xff]
  %v5023 = vld [vmem:[%s2044 + $0x148] sm:$0xff]
  %v5024 = vld [vmem:[%s2044 + $0x150] sm:$0xff]
  %v5025 = vld [vmem:[%s2044 + $0x158] sm:$0xff]
  %v5026 = vld [vmem:[%s2044 + $0x160] sm:$0xff]
  %v5027 = vld [vmem:[%s2044 + $0x168] sm:$0xff]
  %v5028 = vld [vmem:[%s2044 + $0x170] sm:$0xff]
  %v5029 = vld [vmem:[%s2044 + $0x178] sm:$0xff]
  %v5030 = vld [vmem:[%s2044 + $0x180] sm:$0xff]
  %v5031 = vld [vmem:[%s2044 + $0x188] sm:$0xff]
  %v5032 = vld [vmem:[%s2044 + $0x190] sm:$0xff]
  %v5033 = vld [vmem:[%s2044 + $0x198] sm:$0xff]
  %v5034 = vld [vmem:[%s2044 + $0x1a0] sm:$0xff]
  %v5035 = vld [vmem:[%s2044 + $0x1a8] sm:$0xff]
  %v5036 = vld [vmem:[%s2044 + $0x1b0] sm:$0xff]
  %v5037 = vld [vmem:[%s2044 + $0x1b8] sm:$0xff]
  %v5038 = vld [vmem:[%s2044 + $0x1c0] sm:$0xff]
  %v5039 = vld [vmem:[%s2044 + $0x1c8] sm:$0xff]
  %v5040 = vld [vmem:[%s2044 + $0x1d0] sm:$0xff]
  %v5041 = vld [vmem:[%s2044 + $0x1d8] sm:$0xff]
  %v5042 = vld [vmem:[%s2044 + $0x1e0] sm:$0xff]
  %v5043 = vld [vmem:[%s2044 + $0x1e8] sm:$0xff]
  %v5044 = vld [vmem:[%s2044 + $0x1f0] sm:$0xff]
  %v5045 = vld [vmem:[%s2044 + $0x1f8] sm:$0xff]
  %v5046 = vld [vmem:[%s2044 + $0x200] sm:$0xff]
  %v5047 = vld [vmem:[%s2044 + $0x208] sm:$0xff]
  %v5048 = vld [vmem:[%s2044 + $0x210] sm:$0xff]
  %v5049 = vld [vmem:[%s2044 + $0x218] sm:$0xff]
  %v5050 = vld [vmem:[%s2044 + $0x220] sm:$0xff]
  %v5051 = vld [vmem:[%s2044 + $0x228] sm:$0xff]
  %v5052 = vld [vmem:[%s2044 + $0x230] sm:$0xff]
  %v5053 = vld [vmem:[%s2044 + $0x238] sm:$0xff]
  %v5054 = vld [vmem:[%s2044 + $0x240] sm:$0xff]
  %v5055 = vld [vmem:[%s2044 + $0x248] sm:$0xff]
  %v5056 = vld [vmem:[%s2044 + $0x250] sm:$0xff]
  %v5057 = vld [vmem:[%s2044 + $0x258] sm:$0xff]
  %v5058 = vld [vmem:[%s2044 + $0x260] sm:$0xff]
  %v5059 = vld [vmem:[%s2044 + $0x268] sm:$0xff]
  %v5060 = vld [vmem:[%s2044 + $0x270] sm:$0xff]
  %v5061 = vld [vmem:[%s2044 + $0x278] sm:$0xff]
  %v5062 = vld [vmem:[%s2044 + $0x280] sm:$0xff]
  %v5063 = vld [vmem:[%s2044 + $0x288] sm:$0xff]
  %v5064 = vld [vmem:[%s2044 + $0x290] sm:$0xff]
  %v5065 = vld [vmem:[%s2044 + $0x298] sm:$0xff]
  %v5066 = vld [vmem:[%s2044 + $0x2a0] sm:$0xff]
  %v5067 = vld [vmem:[%s2044 + $0x2a8] sm:$0xff]
  %v5068 = vld [vmem:[%s2044 + $0x2b0] sm:$0xff]
  %v5069 = vld [vmem:[%s2044 + $0x2b8] sm:$0xff]
  %v5070 = vld [vmem:[%s2044 + $0x2c0] sm:$0xff]
  %v5071 = vld [vmem:[%s2044 + $0x2c8] sm:$0xff]
  %v5072 = vld [vmem:[%s2044 + $0x2d0] sm:$0xff]
  %v5073 = vld [vmem:[%s2044 + $0x2d8] sm:$0xff]
  %v5074 = vld [vmem:[%s2044 + $0x2e0] sm:$0xff]
  %v5075 = vld [vmem:[%s2044 + $0x2e8] sm:$0xff]
  %v5076 = vld [vmem:[%s2044 + $0x2f0] sm:$0xff]
  %v5077 = vld [vmem:[%s2044 + $0x2f8] sm:$0xff]
  %v5084 = vrot.slane %v4976, 4
  %v5085 = vrot.slane %v4379, 4
  %v5086 = vsel %vm4115, %v5084, %v5085
  %v5087 = vrot.slane %v4977, 4
  %v5088 = vrot.slane %v4380, 4
  %v5089 = vsel %vm4115, %v5087, %v5088
  %v5090 = vrot.slane %v4978, 4
  %v5091 = vrot.slane %v4381, 4
  %v5092 = vsel %vm4115, %v5090, %v5091
  %v5093 = vrot.slane %v4382, 4
  %v5094 = vsel %vm4115, %v5085, %v5093
  %v5095 = vrot.slane %v4383, 4
  %v5096 = vsel %vm4115, %v5088, %v5095
  %v5097 = vrot.slane %v4384, 4
  %v5098 = vsel %vm4115, %v5091, %v5097
  %v5099 = vrot.slane %v4979, 4
  %v5100 = vsel %vm4115, %v5093, %v5099
  %v5101 = vrot.slane %v4980, 4
  %v5102 = vsel %vm4115, %v5095, %v5101
  %v5103 = vrot.slane %v4981, 4
  %v5104 = vsel %vm4115, %v5097, %v5103
  %5114 = vmatpush.msra.mxu0 %v5012
  %5115 = vmatpush.msra.mxu0 %v5010
  %5116 = vmatpush.msra.mxu0 %v5008
  %5117 = vmatpush.msra.mxu0 %v5006
  %5118 = vmatpush.msra.mxu0 %v5004
  %5119 = vmatpush.msra.mxu0 %v5002
  %5120 = vmatpush.msra.mxu0 %v5000
  %5121 = vmatpush.msra.mxu0 %v4998
  %5122 = vmatpush.msra.mxu0 %v4996
  %5123 = vmatpush.msra.mxu0 %v4994
  %5124 = vmatpush.msra.mxu0 %v4992
  %5125 = vmatpush.msra.mxu0 %v4990
  %5126 = vmatpush.msra.mxu0 %v4988
  %5127 = vmatpush.msra.mxu0 %v4986
  %5128 = vmatpush.msra.mxu0 %v4984
  %5129 = vmatpush.msra.mxu0 %v4982
  %5130 = vmatmul.f32.gmra.mxu0 %v5086
  %v5131 = vpop.f32.mrf.mxu0
  %v5132 = vadd.f32 0.0, %v5131
  %5133 = vmatmul.f32.gmra.mxu0 %v5094
  %v5134 = vpop.f32.mrf.mxu0
  %v5135 = vadd.f32 0.0, %v5134
  %5136 = vmatmul.f32.gmra.mxu0 %v5100
  %v5137 = vpop.f32.mrf.mxu0
  %v5138 = vadd.f32 0.0, %v5137
  %5139 = vdwg.mxu0
  %5140 = vmatpush.msra.mxu0 %v5044
  %5141 = vmatpush.msra.mxu0 %v5042
  %5142 = vmatpush.msra.mxu0 %v5040
  %5143 = vmatpush.msra.mxu0 %v5038
  %5144 = vmatpush.msra.mxu0 %v5036
  %5145 = vmatpush.msra.mxu0 %v5034
  %5146 = vmatpush.msra.mxu0 %v5032
  %5147 = vmatpush.msra.mxu0 %v5030
  %5148 = vmatpush.msra.mxu0 %v5028
  %5149 = vmatpush.msra.mxu0 %v5026
  %5150 = vmatpush.msra.mxu0 %v5024
  %5151 = vmatpush.msra.mxu0 %v5022
  %5152 = vmatpush.msra.mxu0 %v5020
  %5153 = vmatpush.msra.mxu0 %v5018
  %5154 = vmatpush.msra.mxu0 %v5016
  %5155 = vmatpush.msra.mxu0 %v5014
  %5156 = vmatmul.f32.gmra.mxu0 %v5089
  %v5157 = vpop.f32.mrf.mxu0
  %v5158 = vadd.f32 %v5132, %v5157
  %5159 = vmatmul.f32.gmra.mxu0 %v5096
  %v5160 = vpop.f32.mrf.mxu0
  %v5161 = vadd.f32 %v5135, %v5160
  %5162 = vmatmul.f32.gmra.mxu0 %v5102
  %v5163 = vpop.f32.mrf.mxu0
  %v5164 = vadd.f32 %v5138, %v5163
  %5165 = vdwg.mxu0
  %5166 = vmatpush.msra.mxu0 %v5076
  %5167 = vmatpush.msra.mxu0 %v5074
  %5168 = vmatpush.msra.mxu0 %v5072
  %5169 = vmatpush.msra.mxu0 %v5070
  %5170 = vmatpush.msra.mxu0 %v5068
  %5171 = vmatpush.msra.mxu0 %v5066
  %5172 = vmatpush.msra.mxu0 %v5064
  %5173 = vmatpush.msra.mxu0 %v5062
  %5174 = vmatpush.msra.mxu0 %v5060
  %5175 = vmatpush.msra.mxu0 %v5058
  %5176 = vmatpush.msra.mxu0 %v5056
  %5177 = vmatpush.msra.mxu0 %v5054
  %5178 = vmatpush.msra.mxu0 %v5052
  %5179 = vmatpush.msra.mxu0 %v5050
  %5180 = vmatpush.msra.mxu0 %v5048
  %5181 = vmatpush.msra.mxu0 %v5046
  %5182 = vmatmul.f32.gmra.mxu0 %v5092
  %v5183 = vpop.f32.mrf.mxu0
  %v5184 = vadd.f32 %v5158, %v5183
  %5185 = vmatmul.f32.gmra.mxu0 %v5098
  %v5186 = vpop.f32.mrf.mxu0
  %v5187 = vadd.f32 %v5161, %v5186
  %5188 = vmatmul.f32.gmra.mxu0 %v5104
  %v5189 = vpop.f32.mrf.mxu0
  %v5190 = vadd.f32 %v5164, %v5189
  %5191 = vdwg.mxu0
  %5192 = vmatpush.msra.mxu0 %v5013
  %5193 = vmatpush.msra.mxu0 %v5011
  %5194 = vmatpush.msra.mxu0 %v5009
  %5195 = vmatpush.msra.mxu0 %v5007
  %5196 = vmatpush.msra.mxu0 %v5005
  %5197 = vmatpush.msra.mxu0 %v5003
  %5198 = vmatpush.msra.mxu0 %v5001
  %5199 = vmatpush.msra.mxu0 %v4999
  %5200 = vmatpush.msra.mxu0 %v4997
  %5201 = vmatpush.msra.mxu0 %v4995
  %5202 = vmatpush.msra.mxu0 %v4993
  %5203 = vmatpush.msra.mxu0 %v4991
  %5204 = vmatpush.msra.mxu0 %v4989
  %5205 = vmatpush.msra.mxu0 %v4987
  %5206 = vmatpush.msra.mxu0 %v4985
  %5207 = vmatpush.msra.mxu0 %v4983
  %5208 = vmatmul.f32.gmra.mxu0 %v5086
  %v5209 = vpop.f32.mrf.mxu0
  %v5210 = vadd.f32 0.0, %v5209
  %5211 = vmatmul.f32.gmra.mxu0 %v5094
  %v5212 = vpop.f32.mrf.mxu0
  %v5213 = vadd.f32 0.0, %v5212
  %5214 = vmatmul.f32.gmra.mxu0 %v5100
  %v5215 = vpop.f32.mrf.mxu0
  %v5216 = vadd.f32 0.0, %v5215
  %5217 = vdwg.mxu0
  %5218 = vmatpush.msra.mxu0 %v5045
  %5219 = vmatpush.msra.mxu0 %v5043
  %5220 = vmatpush.msra.mxu0 %v5041
  %5221 = vmatpush.msra.mxu0 %v5039
  %5222 = vmatpush.msra.mxu0 %v5037
  %5223 = vmatpush.msra.mxu0 %v5035
  %5224 = vmatpush.msra.mxu0 %v5033
  %5225 = vmatpush.msra.mxu0 %v5031
  %5226 = vmatpush.msra.mxu0 %v5029
  %5227 = vmatpush.msra.mxu0 %v5027
  %5228 = vmatpush.msra.mxu0 %v5025
  %5229 = vmatpush.msra.mxu0 %v5023
  %5230 = vmatpush.msra.mxu0 %v5021
  %5231 = vmatpush.msra.mxu0 %v5019
  %5232 = vmatpush.msra.mxu0 %v5017
  %5233 = vmatpush.msra.mxu0 %v5015
  %5234 = vmatmul.f32.gmra.mxu0 %v5089
  %v5235 = vpop.f32.mrf.mxu0
  %v5236 = vadd.f32 %v5210, %v5235
  %5237 = vmatmul.f32.gmra.mxu0 %v5096
  %v5238 = vpop.f32.mrf.mxu0
  %v5239 = vadd.f32 %v5213, %v5238
  %5240 = vmatmul.f32.gmra.mxu0 %v5102
  %v5241 = vpop.f32.mrf.mxu0
  %v5242 = vadd.f32 %v5216, %v5241
  %5243 = vdwg.mxu0
  %5244 = vmatpush.msra.mxu0 %v5077
  %5245 = vmatpush.msra.mxu0 %v5075
  %5246 = vmatpush.msra.mxu0 %v5073
  %5247 = vmatpush.msra.mxu0 %v5071
  %5248 = vmatpush.msra.mxu0 %v5069
  %5249 = vmatpush.msra.mxu0 %v5067
  %5250 = vmatpush.msra.mxu0 %v5065
  %5251 = vmatpush.msra.mxu0 %v5063
  %5252 = vmatpush.msra.mxu0 %v5061
  %5253 = vmatpush.msra.mxu0 %v5059
  %5254 = vmatpush.msra.mxu0 %v5057
  %5255 = vmatpush.msra.mxu0 %v5055
  %5256 = vmatpush.msra.mxu0 %v5053
  %5257 = vmatpush.msra.mxu0 %v5051
  %5258 = vmatpush.msra.mxu0 %v5049
  %5259 = vmatpush.msra.mxu0 %v5047
  %5260 = vmatmul.f32.gmra.mxu0 %v5092
  %v5261 = vpop.f32.mrf.mxu0
  %v5262 = vadd.f32 %v5236, %v5261
  %5263 = vmatmul.f32.gmra.mxu0 %v5098
  %v5264 = vpop.f32.mrf.mxu0
  %v5265 = vadd.f32 %v5239, %v5264
  %5266 = vmatmul.f32.gmra.mxu0 %v5104
  %v5267 = vpop.f32.mrf.mxu0
  %v5268 = vadd.f32 %v5242, %v5267
  %5269 = vdwg.mxu0
  %v5270 = vadd.f32 %v4890, %v5184
  %v5271 = vadd.f32 %v4968, %v5262
  %v5272 = vadd.f32 %v4893, %v5187
  %v5273 = vadd.f32 %v4971, %v5265
  %v5274 = vadd.f32 %v4896, %v5190
  %v5275 = vadd.f32 %v4974, %v5268
  %v5276 = vadd.f32 %v5270, %v2340
  %v5277 = vadd.f32 %v5271, %v2341
  %v5278 = vadd.f32 %v5272, %v2340
  %v5279 = vadd.f32 %v5273, %v2341
  %v5280 = vadd.f32 %v5274, %v2340
  %v5281 = vadd.f32 %v5275, %v2341
  %v5282 = vmax.f32 %v5276, 0.0
  %v5283 = vmax.f32 %v5277, 0.0
  %v5284 = vmax.f32 %v5278, 0.0
  %v5285 = vmax.f32 %v5279, 0.0
  %v5286 = vmax.f32 %v5280, 0.0
  %v5287 = vmax.f32 %v5281, 0.0
  %s5288 = scalar_lea.vmem [#allocation4], 50
  %5289 = vst.msk [vmem:[%s5288] ss:$8 sm:$0x3] %vm2357, 0.0
  %5290 = vst.msk [vmem:[%s5288] ss:$8 sm:$0x0] %vm2357, 0.0
  %s5291 = scalar_lea.vmem [#allocation4], 99
  %5292 = vst.msk [vmem:[%s5291] ss:$8 sm:$0x3] %vm2357, 0.0
  %5293 = vst.msk [vmem:[%s5291] ss:$8 sm:$0x0] %vm2357, 0.0
  %v5300 = vrot.slane %v5282, 5
  %v5301 = vrot.slane %v5283, 5
  %v5302 = vrot.slane %v5284, 5
  %v5303 = vsel %vm3479, %v5300, %v5302
  %v5304 = vrot.slane %v5285, 5
  %v5305 = vsel %vm3479, %v5301, %v5304
  %v5306 = vrot.slane %v5286, 5
  %v5307 = vsel %vm3479, %v5302, %v5306
  %v5308 = vrot.slane %v5287, 5
  %v5309 = vsel %vm3479, %v5304, %v5308
  %5318 = vst [vmem:[#allocation4 + $0x30] sm:$0xf8] %v5300
  %5319 = vst [vmem:[#allocation4 + $0x38] sm:$0xf8] %v5301
  %5320 = vst [vmem:[#allocation4 + $0x40] sm:$0xff] %v5303
  %5321 = vst [vmem:[#allocation4 + $0x48] sm:$0xff] %v5305
  %5322 = vst [vmem:[#allocation4 + $0x50] sm:$0xff] %v5307
  %5323 = vst [vmem:[#allocation4 + $0x58] sm:$0xff] %v5309
  %5324 = vst [vmem:[#allocation4 + $0x60] sm:$0x7] %v5306
  %5325 = vst [vmem:[#allocation4 + $0x68] sm:$0x7] %v5308
  %v5326 = vld [vmem:[#allocation4 + $0x30] sm:$0xfc]
  %v5327 = vld [vmem:[#allocation4 + $0x38] sm:$0xfc]
  %v5328 = vld [vmem:[#allocation4 + $0x40] sm:$0xff]
  %v5329 = vld [vmem:[#allocation4 + $0x48] sm:$0xff]
  %v5330 = vld [vmem:[#allocation4 + $0x50] sm:$0xff]
  %v5331 = vld [vmem:[#allocation4 + $0x58] sm:$0xff]
  %v5332 = vld [vmem:[#allocation4 + $0x60] sm:$0x3]
  %v5333 = vld [vmem:[#allocation4 + $0x68] sm:$0x3]
  %v5334 = vld [vmem:[%s7] sm:$0xff]
  %v5335 = vld [vmem:[%s7 + $0x8] sm:$0xff]
  %v5336 = vld [vmem:[%s7 + $0x10] sm:$0xff]
  %v5337 = vld [vmem:[%s7 + $0x18] sm:$0xff]
  %v5338 = vld [vmem:[%s7 + $0x20] sm:$0xff]
  %v5339 = vld [vmem:[%s7 + $0x28] sm:$0xff]
  %v5340 = vld [vmem:[%s7 + $0x30] sm:$0xff]
  %v5341 = vld [vmem:[%s7 + $0x38] sm:$0xff]
  %v5342 = vld [vmem:[%s7 + $0x40] sm:$0xff]
  %v5343 = vld [vmem:[%s7 + $0x48] sm:$0xff]
  %v5344 = vld [vmem:[%s7 + $0x50] sm:$0xff]
  %v5345 = vld [vmem:[%s7 + $0x58] sm:$0xff]
  %v5346 = vld [vmem:[%s7 + $0x60] sm:$0xff]
  %v5347 = vld [vmem:[%s7 + $0x68] sm:$0xff]
  %v5348 = vld [vmem:[%s7 + $0x70] sm:$0xff]
  %v5349 = vld [vmem:[%s7 + $0x78] sm:$0xff]
  %v5350 = vld [vmem:[%s7 + $0x80] sm:$0xff]
  %v5351 = vld [vmem:[%s7 + $0x88] sm:$0xff]
  %v5352 = vld [vmem:[%s7 + $0x90] sm:$0xff]
  %v5353 = vld [vmem:[%s7 + $0x98] sm:$0xff]
  %v5354 = vld [vmem:[%s7 + $0xa0] sm:$0xff]
  %v5355 = vld [vmem:[%s7 + $0xa8] sm:$0xff]
  %v5356 = vld [vmem:[%s7 + $0xb0] sm:$0xff]
  %v5357 = vld [vmem:[%s7 + $0xb8] sm:$0xff]
  %v5358 = vld [vmem:[%s7 + $0xc0] sm:$0xff]
  %v5359 = vld [vmem:[%s7 + $0xc8] sm:$0xff]
  %v5360 = vld [vmem:[%s7 + $0xd0] sm:$0xff]
  %v5361 = vld [vmem:[%s7 + $0xd8] sm:$0xff]
  %v5362 = vld [vmem:[%s7 + $0xe0] sm:$0xff]
  %v5363 = vld [vmem:[%s7 + $0xe8] sm:$0xff]
  %v5364 = vld [vmem:[%s7 + $0xf0] sm:$0xff]
  %v5365 = vld [vmem:[%s7 + $0xf8] sm:$0xff]
  %v5366 = vld [vmem:[%s7 + $0x100] sm:$0xff]
  %v5367 = vld [vmem:[%s7 + $0x108] sm:$0xff]
  %v5368 = vld [vmem:[%s7 + $0x110] sm:$0xff]
  %v5369 = vld [vmem:[%s7 + $0x118] sm:$0xff]
  %v5370 = vld [vmem:[%s7 + $0x120] sm:$0xff]
  %v5371 = vld [vmem:[%s7 + $0x128] sm:$0xff]
  %v5372 = vld [vmem:[%s7 + $0x130] sm:$0xff]
  %v5373 = vld [vmem:[%s7 + $0x138] sm:$0xff]
  %v5374 = vld [vmem:[%s7 + $0x140] sm:$0xff]
  %v5375 = vld [vmem:[%s7 + $0x148] sm:$0xff]
  %v5376 = vld [vmem:[%s7 + $0x150] sm:$0xff]
  %v5377 = vld [vmem:[%s7 + $0x158] sm:$0xff]
  %v5378 = vld [vmem:[%s7 + $0x160] sm:$0xff]
  %v5379 = vld [vmem:[%s7 + $0x168] sm:$0xff]
  %v5380 = vld [vmem:[%s7 + $0x170] sm:$0xff]
  %v5381 = vld [vmem:[%s7 + $0x178] sm:$0xff]
  %v5382 = vld [vmem:[%s7 + $0x180] sm:$0xff]
  %v5383 = vld [vmem:[%s7 + $0x188] sm:$0xff]
  %v5384 = vld [vmem:[%s7 + $0x190] sm:$0xff]
  %v5385 = vld [vmem:[%s7 + $0x198] sm:$0xff]
  %v5386 = vld [vmem:[%s7 + $0x1a0] sm:$0xff]
  %v5387 = vld [vmem:[%s7 + $0x1a8] sm:$0xff]
  %v5388 = vld [vmem:[%s7 + $0x1b0] sm:$0xff]
  %v5389 = vld [vmem:[%s7 + $0x1b8] sm:$0xff]
  %v5390 = vld [vmem:[%s7 + $0x1c0] sm:$0xff]
  %v5391 = vld [vmem:[%s7 + $0x1c8] sm:$0xff]
  %v5392 = vld [vmem:[%s7 + $0x1d0] sm:$0xff]
  %v5393 = vld [vmem:[%s7 + $0x1d8] sm:$0xff]
  %v5394 = vld [vmem:[%s7 + $0x1e0] sm:$0xff]
  %v5395 = vld [vmem:[%s7 + $0x1e8] sm:$0xff]
  %v5396 = vld [vmem:[%s7 + $0x1f0] sm:$0xff]
  %v5397 = vld [vmem:[%s7 + $0x1f8] sm:$0xff]
  %v5398 = vld [vmem:[#allocation4 + $0x30] sm:$0xf8]
  %v5399 = vld [vmem:[#allocation4 + $0x38] sm:$0xf8]
  %v5400 = vld [vmem:[#allocation4 + $0x60] sm:$0x7]
  %v5401 = vld [vmem:[#allocation4 + $0x68] sm:$0x7]
  %v5402 = vld [vmem:[%s2469] sm:$0xff]
  %v5403 = vld [vmem:[%s2469 + $0x8] sm:$0xff]
  %v5404 = vld [vmem:[%s2469 + $0x10] sm:$0xff]
  %v5405 = vld [vmem:[%s2469 + $0x18] sm:$0xff]
  %v5406 = vld [vmem:[%s2469 + $0x20] sm:$0xff]
  %v5407 = vld [vmem:[%s2469 + $0x28] sm:$0xff]
  %v5408 = vld [vmem:[%s2469 + $0x30] sm:$0xff]
  %v5409 = vld [vmem:[%s2469 + $0x38] sm:$0xff]
  %v5410 = vld [vmem:[%s2469 + $0x40] sm:$0xff]
  %v5411 = vld [vmem:[%s2469 + $0x48] sm:$0xff]
  %v5412 = vld [vmem:[%s2469 + $0x50] sm:$0xff]
  %v5413 = vld [vmem:[%s2469 + $0x58] sm:$0xff]
  %v5414 = vld [vmem:[%s2469 + $0x60] sm:$0xff]
  %v5415 = vld [vmem:[%s2469 + $0x68] sm:$0xff]
  %v5416 = vld [vmem:[%s2469 + $0x70] sm:$0xff]
  %v5417 = vld [vmem:[%s2469 + $0x78] sm:$0xff]
  %v5418 = vld [vmem:[%s2469 + $0x80] sm:$0xff]
  %v5419 = vld [vmem:[%s2469 + $0x88] sm:$0xff]
  %v5420 = vld [vmem:[%s2469 + $0x90] sm:$0xff]
  %v5421 = vld [vmem:[%s2469 + $0x98] sm:$0xff]
  %v5422 = vld [vmem:[%s2469 + $0xa0] sm:$0xff]
  %v5423 = vld [vmem:[%s2469 + $0xa8] sm:$0xff]
  %v5424 = vld [vmem:[%s2469 + $0xb0] sm:$0xff]
  %v5425 = vld [vmem:[%s2469 + $0xb8] sm:$0xff]
  %v5426 = vld [vmem:[%s2469 + $0xc0] sm:$0xff]
  %v5427 = vld [vmem:[%s2469 + $0xc8] sm:$0xff]
  %v5428 = vld [vmem:[%s2469 + $0xd0] sm:$0xff]
  %v5429 = vld [vmem:[%s2469 + $0xd8] sm:$0xff]
  %v5430 = vld [vmem:[%s2469 + $0xe0] sm:$0xff]
  %v5431 = vld [vmem:[%s2469 + $0xe8] sm:$0xff]
  %v5432 = vld [vmem:[%s2469 + $0xf0] sm:$0xff]
  %v5433 = vld [vmem:[%s2469 + $0xf8] sm:$0xff]
  %v5434 = vld [vmem:[%s2469 + $0x100] sm:$0xff]
  %v5435 = vld [vmem:[%s2469 + $0x108] sm:$0xff]
  %v5436 = vld [vmem:[%s2469 + $0x110] sm:$0xff]
  %v5437 = vld [vmem:[%s2469 + $0x118] sm:$0xff]
  %v5438 = vld [vmem:[%s2469 + $0x120] sm:$0xff]
  %v5439 = vld [vmem:[%s2469 + $0x128] sm:$0xff]
  %v5440 = vld [vmem:[%s2469 + $0x130] sm:$0xff]
  %v5441 = vld [vmem:[%s2469 + $0x138] sm:$0xff]
  %v5442 = vld [vmem:[%s2469 + $0x140] sm:$0xff]
  %v5443 = vld [vmem:[%s2469 + $0x148] sm:$0xff]
  %v5444 = vld [vmem:[%s2469 + $0x150] sm:$0xff]
  %v5445 = vld [vmem:[%s2469 + $0x158] sm:$0xff]
  %v5446 = vld [vmem:[%s2469 + $0x160] sm:$0xff]
  %v5447 = vld [vmem:[%s2469 + $0x168] sm:$0xff]
  %v5448 = vld [vmem:[%s2469 + $0x170] sm:$0xff]
  %v5449 = vld [vmem:[%s2469 + $0x178] sm:$0xff]
  %v5450 = vld [vmem:[%s2469 + $0x180] sm:$0xff]
  %v5451 = vld [vmem:[%s2469 + $0x188] sm:$0xff]
  %v5452 = vld [vmem:[%s2469 + $0x190] sm:$0xff]
  %v5453 = vld [vmem:[%s2469 + $0x198] sm:$0xff]
  %v5454 = vld [vmem:[%s2469 + $0x1a0] sm:$0xff]
  %v5455 = vld [vmem:[%s2469 + $0x1a8] sm:$0xff]
  %v5456 = vld [vmem:[%s2469 + $0x1b0] sm:$0xff]
  %v5457 = vld [vmem:[%s2469 + $0x1b8] sm:$0xff]
  %v5458 = vld [vmem:[%s2469 + $0x1c0] sm:$0xff]
  %v5459 = vld [vmem:[%s2469 + $0x1c8] sm:$0xff]
  %v5460 = vld [vmem:[%s2469 + $0x1d0] sm:$0xff]
  %v5461 = vld [vmem:[%s2469 + $0x1d8] sm:$0xff]
  %v5462 = vld [vmem:[%s2469 + $0x1e0] sm:$0xff]
  %v5463 = vld [vmem:[%s2469 + $0x1e8] sm:$0xff]
  %v5464 = vld [vmem:[%s2469 + $0x1f0] sm:$0xff]
  %v5465 = vld [vmem:[%s2469 + $0x1f8] sm:$0xff]
  %v5474 = vrot.slane %v5398, 3
  %v5475 = vrot.slane %v5328, 3
  %v5476 = vsel %vm3672, %v5474, %v5475
  %v5477 = vrot.slane %v5399, 3
  %v5478 = vrot.slane %v5329, 3
  %v5479 = vsel %vm3672, %v5477, %v5478
  %v5480 = vrot.slane %v5330, 3
  %v5481 = vsel %vm3672, %v5475, %v5480
  %v5482 = vrot.slane %v5331, 3
  %v5483 = vsel %vm3672, %v5478, %v5482
  %v5484 = vrot.slane %v5400, 3
  %v5485 = vsel %vm3672, %v5480, %v5484
  %v5486 = vrot.slane %v5401, 3
  %v5487 = vsel %vm3672, %v5482, %v5486
  %5494 = vmatpush.msra.mxu0 %v5432
  %5495 = vmatpush.msra.mxu0 %v5430
  %5496 = vmatpush.msra.mxu0 %v5428
  %5497 = vmatpush.msra.mxu0 %v5426
  %5498 = vmatpush.msra.mxu0 %v5424
  %5499 = vmatpush.msra.mxu0 %v5422
  %5500 = vmatpush.msra.mxu0 %v5420
  %5501 = vmatpush.msra.mxu0 %v5418
  %5502 = vmatpush.msra.mxu0 %v5416
  %5503 = vmatpush.msra.mxu0 %v5414
  %5504 = vmatpush.msra.mxu0 %v5412
  %5505 = vmatpush.msra.mxu0 %v5410
  %5506 = vmatpush.msra.mxu0 %v5408
  %5507 = vmatpush.msra.mxu0 %v5406
  %5508 = vmatpush.msra.mxu0 %v5404
  %5509 = vmatpush.msra.mxu0 %v5402
  %5510 = vmatmul.f32.gmra.mxu0 %v5476
  %v5511 = vpop.f32.mrf.mxu0
  %v5512 = vadd.f32 0.0, %v5511
  %5513 = vmatmul.f32.gmra.mxu0 %v5481
  %v5514 = vpop.f32.mrf.mxu0
  %v5515 = vadd.f32 0.0, %v5514
  %5516 = vmatmul.f32.gmra.mxu0 %v5485
  %v5517 = vpop.f32.mrf.mxu0
  %v5518 = vadd.f32 0.0, %v5517
  %5519 = vdwg.mxu0
  %5520 = vmatpush.msra.mxu0 %v5464
  %5521 = vmatpush.msra.mxu0 %v5462
  %5522 = vmatpush.msra.mxu0 %v5460
  %5523 = vmatpush.msra.mxu0 %v5458
  %5524 = vmatpush.msra.mxu0 %v5456
  %5525 = vmatpush.msra.mxu0 %v5454
  %5526 = vmatpush.msra.mxu0 %v5452
  %5527 = vmatpush.msra.mxu0 %v5450
  %5528 = vmatpush.msra.mxu0 %v5448
  %5529 = vmatpush.msra.mxu0 %v5446
  %5530 = vmatpush.msra.mxu0 %v5444
  %5531 = vmatpush.msra.mxu0 %v5442
  %5532 = vmatpush.msra.mxu0 %v5440
  %5533 = vmatpush.msra.mxu0 %v5438
  %5534 = vmatpush.msra.mxu0 %v5436
  %5535 = vmatpush.msra.mxu0 %v5434
  %5536 = vmatmul.f32.gmra.mxu0 %v5479
  %v5537 = vpop.f32.mrf.mxu0
  %v5538 = vadd.f32 %v5512, %v5537
  %5539 = vmatmul.f32.gmra.mxu0 %v5483
  %v5540 = vpop.f32.mrf.mxu0
  %v5541 = vadd.f32 %v5515, %v5540
  %5542 = vmatmul.f32.gmra.mxu0 %v5487
  %v5543 = vpop.f32.mrf.mxu0
  %v5544 = vadd.f32 %v5518, %v5543
  %5545 = vdwg.mxu0
  %5546 = vmatpush.msra.mxu0 %v5433
  %5547 = vmatpush.msra.mxu0 %v5431
  %5548 = vmatpush.msra.mxu0 %v5429
  %5549 = vmatpush.msra.mxu0 %v5427
  %5550 = vmatpush.msra.mxu0 %v5425
  %5551 = vmatpush.msra.mxu0 %v5423
  %5552 = vmatpush.msra.mxu0 %v5421
  %5553 = vmatpush.msra.mxu0 %v5419
  %5554 = vmatpush.msra.mxu0 %v5417
  %5555 = vmatpush.msra.mxu0 %v5415
  %5556 = vmatpush.msra.mxu0 %v5413
  %5557 = vmatpush.msra.mxu0 %v5411
  %5558 = vmatpush.msra.mxu0 %v5409
  %5559 = vmatpush.msra.mxu0 %v5407
  %5560 = vmatpush.msra.mxu0 %v5405
  %5561 = vmatpush.msra.mxu0 %v5403
  %5562 = vmatmul.f32.gmra.mxu0 %v5476
  %v5563 = vpop.f32.mrf.mxu0
  %v5564 = vadd.f32 0.0, %v5563
  %5565 = vmatmul.f32.gmra.mxu0 %v5481
  %v5566 = vpop.f32.mrf.mxu0
  %v5567 = vadd.f32 0.0, %v5566
  %5568 = vmatmul.f32.gmra.mxu0 %v5485
  %v5569 = vpop.f32.mrf.mxu0
  %v5570 = vadd.f32 0.0, %v5569
  %5571 = vdwg.mxu0
  %5572 = vmatpush.msra.mxu0 %v5465
  %5573 = vmatpush.msra.mxu0 %v5463
  %5574 = vmatpush.msra.mxu0 %v5461
  %5575 = vmatpush.msra.mxu0 %v5459
  %5576 = vmatpush.msra.mxu0 %v5457
  %5577 = vmatpush.msra.mxu0 %v5455
  %5578 = vmatpush.msra.mxu0 %v5453
  %5579 = vmatpush.msra.mxu0 %v5451
  %5580 = vmatpush.msra.mxu0 %v5449
  %5581 = vmatpush.msra.mxu0 %v5447
  %5582 = vmatpush.msra.mxu0 %v5445
  %5583 = vmatpush.msra.mxu0 %v5443
  %5584 = vmatpush.msra.mxu0 %v5441
  %5585 = vmatpush.msra.mxu0 %v5439
  %5586 = vmatpush.msra.mxu0 %v5437
  %5587 = vmatpush.msra.mxu0 %v5435
  %5588 = vmatmul.f32.gmra.mxu0 %v5479
  %v5589 = vpop.f32.mrf.mxu0
  %v5590 = vadd.f32 %v5564, %v5589
  %5591 = vmatmul.f32.gmra.mxu0 %v5483
  %v5592 = vpop.f32.mrf.mxu0
  %v5593 = vadd.f32 %v5567, %v5592
  %5594 = vmatmul.f32.gmra.mxu0 %v5487
  %v5595 = vpop.f32.mrf.mxu0
  %v5596 = vadd.f32 %v5570, %v5595
  %5597 = vdwg.mxu0
  %v5602 = vrot.slane %v5326, 2
  %v5603 = vrot.slane %v5328, 2
  %v5604 = vsel %vm1207, %v5602, %v5603
  %v5605 = vrot.slane %v5327, 2
  %v5606 = vrot.slane %v5329, 2
  %v5607 = vsel %vm1207, %v5605, %v5606
  %v5608 = vrot.slane %v5330, 2
  %v5609 = vsel %vm1207, %v5603, %v5608
  %v5610 = vrot.slane %v5331, 2
  %v5611 = vsel %vm1207, %v5606, %v5610
  %v5612 = vrot.slane %v5332, 2
  %v5613 = vsel %vm1207, %v5608, %v5612
  %v5614 = vrot.slane %v5333, 2
  %v5615 = vsel %vm1207, %v5610, %v5614
  %5622 = vmatpush.msra.mxu0 %v5364
  %5623 = vmatpush.msra.mxu0 %v5362
  %5624 = vmatpush.msra.mxu0 %v5360
  %5625 = vmatpush.msra.mxu0 %v5358
  %5626 = vmatpush.msra.mxu0 %v5356
  %5627 = vmatpush.msra.mxu0 %v5354
  %5628 = vmatpush.msra.mxu0 %v5352
  %5629 = vmatpush.msra.mxu0 %v5350
  %5630 = vmatpush.msra.mxu0 %v5348
  %5631 = vmatpush.msra.mxu0 %v5346
  %5632 = vmatpush.msra.mxu0 %v5344
  %5633 = vmatpush.msra.mxu0 %v5342
  %5634 = vmatpush.msra.mxu0 %v5340
  %5635 = vmatpush.msra.mxu0 %v5338
  %5636 = vmatpush.msra.mxu0 %v5336
  %5637 = vmatpush.msra.mxu0 %v5334
  %5638 = vmatmul.f32.gmra.mxu0 %v5604
  %v5639 = vpop.f32.mrf.mxu0
  %v5640 = vadd.f32 %v5538, %v5639
  %5641 = vmatmul.f32.gmra.mxu0 %v5609
  %v5642 = vpop.f32.mrf.mxu0
  %v5643 = vadd.f32 %v5541, %v5642
  %5644 = vmatmul.f32.gmra.mxu0 %v5613
  %v5645 = vpop.f32.mrf.mxu0
  %v5646 = vadd.f32 %v5544, %v5645
  %5647 = vdwg.mxu0
  %5648 = vmatpush.msra.mxu0 %v5396
  %5649 = vmatpush.msra.mxu0 %v5394
  %5650 = vmatpush.msra.mxu0 %v5392
  %5651 = vmatpush.msra.mxu0 %v5390
  %5652 = vmatpush.msra.mxu0 %v5388
  %5653 = vmatpush.msra.mxu0 %v5386
  %5654 = vmatpush.msra.mxu0 %v5384
  %5655 = vmatpush.msra.mxu0 %v5382
  %5656 = vmatpush.msra.mxu0 %v5380
  %5657 = vmatpush.msra.mxu0 %v5378
  %5658 = vmatpush.msra.mxu0 %v5376
  %5659 = vmatpush.msra.mxu0 %v5374
  %5660 = vmatpush.msra.mxu0 %v5372
  %5661 = vmatpush.msra.mxu0 %v5370
  %5662 = vmatpush.msra.mxu0 %v5368
  %5663 = vmatpush.msra.mxu0 %v5366
  %5664 = vmatmul.f32.gmra.mxu0 %v5607
  %v5665 = vpop.f32.mrf.mxu0
  %v5666 = vadd.f32 %v5640, %v5665
  %5667 = vmatmul.f32.gmra.mxu0 %v5611
  %v5668 = vpop.f32.mrf.mxu0
  %v5669 = vadd.f32 %v5643, %v5668
  %5670 = vmatmul.f32.gmra.mxu0 %v5615
  %v5671 = vpop.f32.mrf.mxu0
  %v5672 = vadd.f32 %v5646, %v5671
  %5673 = vdwg.mxu0
  %5674 = vmatpush.msra.mxu0 %v5365
  %5675 = vmatpush.msra.mxu0 %v5363
  %5676 = vmatpush.msra.mxu0 %v5361
  %5677 = vmatpush.msra.mxu0 %v5359
  %5678 = vmatpush.msra.mxu0 %v5357
  %5679 = vmatpush.msra.mxu0 %v5355
  %5680 = vmatpush.msra.mxu0 %v5353
  %5681 = vmatpush.msra.mxu0 %v5351
  %5682 = vmatpush.msra.mxu0 %v5349
  %5683 = vmatpush.msra.mxu0 %v5347
  %5684 = vmatpush.msra.mxu0 %v5345
  %5685 = vmatpush.msra.mxu0 %v5343
  %5686 = vmatpush.msra.mxu0 %v5341
  %5687 = vmatpush.msra.mxu0 %v5339
  %5688 = vmatpush.msra.mxu0 %v5337
  %5689 = vmatpush.msra.mxu0 %v5335
  %5690 = vmatmul.f32.gmra.mxu0 %v5604
  %v5691 = vpop.f32.mrf.mxu0
  %v5692 = vadd.f32 %v5590, %v5691
  %5693 = vmatmul.f32.gmra.mxu0 %v5609
  %v5694 = vpop.f32.mrf.mxu0
  %v5695 = vadd.f32 %v5593, %v5694
  %5696 = vmatmul.f32.gmra.mxu0 %v5613
  %v5697 = vpop.f32.mrf.mxu0
  %v5698 = vadd.f32 %v5596, %v5697
  %5699 = vdwg.mxu0
  %5700 = vmatpush.msra.mxu0 %v5397
  %5701 = vmatpush.msra.mxu0 %v5395
  %5702 = vmatpush.msra.mxu0 %v5393
  %5703 = vmatpush.msra.mxu0 %v5391
  %5704 = vmatpush.msra.mxu0 %v5389
  %5705 = vmatpush.msra.mxu0 %v5387
  %5706 = vmatpush.msra.mxu0 %v5385
  %5707 = vmatpush.msra.mxu0 %v5383
  %5708 = vmatpush.msra.mxu0 %v5381
  %5709 = vmatpush.msra.mxu0 %v5379
  %5710 = vmatpush.msra.mxu0 %v5377
  %5711 = vmatpush.msra.mxu0 %v5375
  %5712 = vmatpush.msra.mxu0 %v5373
  %5713 = vmatpush.msra.mxu0 %v5371
  %5714 = vmatpush.msra.mxu0 %v5369
  %5715 = vmatpush.msra.mxu0 %v5367
  %5716 = vmatmul.f32.gmra.mxu0 %v5607
  %v5717 = vpop.f32.mrf.mxu0
  %v5718 = vadd.f32 %v5692, %v5717
  %5719 = vmatmul.f32.gmra.mxu0 %v5611
  %v5720 = vpop.f32.mrf.mxu0
  %v5721 = vadd.f32 %v5695, %v5720
  %5722 = vmatmul.f32.gmra.mxu0 %v5615
  %v5723 = vpop.f32.mrf.mxu0
  %v5724 = vadd.f32 %v5698, %v5723
  %5725 = vdwg.mxu0
  %v5726 = vld [vmem:[#allocation4 + $0x30] sm:$0xf0]
  %v5727 = vld [vmem:[#allocation4 + $0x38] sm:$0xf0]
  %v5728 = vld [vmem:[#allocation4 + $0x60] sm:$0xf]
  %v5729 = vld [vmem:[#allocation4 + $0x68] sm:$0xf]
  %v5730 = vld [vmem:[%s2774] sm:$0xff]
  %v5731 = vld [vmem:[%s2774 + $0x8] sm:$0xff]
  %v5732 = vld [vmem:[%s2774 + $0x10] sm:$0xff]
  %v5733 = vld [vmem:[%s2774 + $0x18] sm:$0xff]
  %v5734 = vld [vmem:[%s2774 + $0x20] sm:$0xff]
  %v5735 = vld [vmem:[%s2774 + $0x28] sm:$0xff]
  %v5736 = vld [vmem:[%s2774 + $0x30] sm:$0xff]
  %v5737 = vld [vmem:[%s2774 + $0x38] sm:$0xff]
  %v5738 = vld [vmem:[%s2774 + $0x40] sm:$0xff]
  %v5739 = vld [vmem:[%s2774 + $0x48] sm:$0xff]
  %v5740 = vld [vmem:[%s2774 + $0x50] sm:$0xff]
  %v5741 = vld [vmem:[%s2774 + $0x58] sm:$0xff]
  %v5742 = vld [vmem:[%s2774 + $0x60] sm:$0xff]
  %v5743 = vld [vmem:[%s2774 + $0x68] sm:$0xff]
  %v5744 = vld [vmem:[%s2774 + $0x70] sm:$0xff]
  %v5745 = vld [vmem:[%s2774 + $0x78] sm:$0xff]
  %v5746 = vld [vmem:[%s2774 + $0x80] sm:$0xff]
  %v5747 = vld [vmem:[%s2774 + $0x88] sm:$0xff]
  %v5748 = vld [vmem:[%s2774 + $0x90] sm:$0xff]
  %v5749 = vld [vmem:[%s2774 + $0x98] sm:$0xff]
  %v5750 = vld [vmem:[%s2774 + $0xa0] sm:$0xff]
  %v5751 = vld [vmem:[%s2774 + $0xa8] sm:$0xff]
  %v5752 = vld [vmem:[%s2774 + $0xb0] sm:$0xff]
  %v5753 = vld [vmem:[%s2774 + $0xb8] sm:$0xff]
  %v5754 = vld [vmem:[%s2774 + $0xc0] sm:$0xff]
  %v5755 = vld [vmem:[%s2774 + $0xc8] sm:$0xff]
  %v5756 = vld [vmem:[%s2774 + $0xd0] sm:$0xff]
  %v5757 = vld [vmem:[%s2774 + $0xd8] sm:$0xff]
  %v5758 = vld [vmem:[%s2774 + $0xe0] sm:$0xff]
  %v5759 = vld [vmem:[%s2774 + $0xe8] sm:$0xff]
  %v5760 = vld [vmem:[%s2774 + $0xf0] sm:$0xff]
  %v5761 = vld [vmem:[%s2774 + $0xf8] sm:$0xff]
  %v5762 = vld [vmem:[%s2774 + $0x100] sm:$0xff]
  %v5763 = vld [vmem:[%s2774 + $0x108] sm:$0xff]
  %v5764 = vld [vmem:[%s2774 + $0x110] sm:$0xff]
  %v5765 = vld [vmem:[%s2774 + $0x118] sm:$0xff]
  %v5766 = vld [vmem:[%s2774 + $0x120] sm:$0xff]
  %v5767 = vld [vmem:[%s2774 + $0x128] sm:$0xff]
  %v5768 = vld [vmem:[%s2774 + $0x130] sm:$0xff]
  %v5769 = vld [vmem:[%s2774 + $0x138] sm:$0xff]
  %v5770 = vld [vmem:[%s2774 + $0x140] sm:$0xff]
  %v5771 = vld [vmem:[%s2774 + $0x148] sm:$0xff]
  %v5772 = vld [vmem:[%s2774 + $0x150] sm:$0xff]
  %v5773 = vld [vmem:[%s2774 + $0x158] sm:$0xff]
  %v5774 = vld [vmem:[%s2774 + $0x160] sm:$0xff]
  %v5775 = vld [vmem:[%s2774 + $0x168] sm:$0xff]
  %v5776 = vld [vmem:[%s2774 + $0x170] sm:$0xff]
  %v5777 = vld [vmem:[%s2774 + $0x178] sm:$0xff]
  %v5778 = vld [vmem:[%s2774 + $0x180] sm:$0xff]
  %v5779 = vld [vmem:[%s2774 + $0x188] sm:$0xff]
  %v5780 = vld [vmem:[%s2774 + $0x190] sm:$0xff]
  %v5781 = vld [vmem:[%s2774 + $0x198] sm:$0xff]
  %v5782 = vld [vmem:[%s2774 + $0x1a0] sm:$0xff]
  %v5783 = vld [vmem:[%s2774 + $0x1a8] sm:$0xff]
  %v5784 = vld [vmem:[%s2774 + $0x1b0] sm:$0xff]
  %v5785 = vld [vmem:[%s2774 + $0x1b8] sm:$0xff]
  %v5786 = vld [vmem:[%s2774 + $0x1c0] sm:$0xff]
  %v5787 = vld [vmem:[%s2774 + $0x1c8] sm:$0xff]
  %v5788 = vld [vmem:[%s2774 + $0x1d0] sm:$0xff]
  %v5789 = vld [vmem:[%s2774 + $0x1d8] sm:$0xff]
  %v5790 = vld [vmem:[%s2774 + $0x1e0] sm:$0xff]
  %v5791 = vld [vmem:[%s2774 + $0x1e8] sm:$0xff]
  %v5792 = vld [vmem:[%s2774 + $0x1f0] sm:$0xff]
  %v5793 = vld [vmem:[%s2774 + $0x1f8] sm:$0xff]
  %v5798 = vrot.slane %v5726, 4
  %v5799 = vrot.slane %v5328, 4
  %v5800 = vsel %vm4115, %v5798, %v5799
  %v5801 = vrot.slane %v5727, 4
  %v5802 = vrot.slane %v5329, 4
  %v5803 = vsel %vm4115, %v5801, %v5802
  %v5804 = vrot.slane %v5330, 4
  %v5805 = vsel %vm4115, %v5799, %v5804
  %v5806 = vrot.slane %v5331, 4
  %v5807 = vsel %vm4115, %v5802, %v5806
  %v5808 = vrot.slane %v5728, 4
  %v5809 = vsel %vm4115, %v5804, %v5808
  %v5810 = vrot.slane %v5729, 4
  %v5811 = vsel %vm4115, %v5806, %v5810
  %5818 = vmatpush.msra.mxu0 %v5760
  %5819 = vmatpush.msra.mxu0 %v5758
  %5820 = vmatpush.msra.mxu0 %v5756
  %5821 = vmatpush.msra.mxu0 %v5754
  %5822 = vmatpush.msra.mxu0 %v5752
  %5823 = vmatpush.msra.mxu0 %v5750
  %5824 = vmatpush.msra.mxu0 %v5748
  %5825 = vmatpush.msra.mxu0 %v5746
  %5826 = vmatpush.msra.mxu0 %v5744
  %5827 = vmatpush.msra.mxu0 %v5742
  %5828 = vmatpush.msra.mxu0 %v5740
  %5829 = vmatpush.msra.mxu0 %v5738
  %5830 = vmatpush.msra.mxu0 %v5736
  %5831 = vmatpush.msra.mxu0 %v5734
  %5832 = vmatpush.msra.mxu0 %v5732
  %5833 = vmatpush.msra.mxu0 %v5730
  %5834 = vmatmul.f32.gmra.mxu0 %v5800
  %v5835 = vpop.f32.mrf.mxu0
  %v5836 = vadd.f32 0.0, %v5835
  %5837 = vmatmul.f32.gmra.mxu0 %v5805
  %v5838 = vpop.f32.mrf.mxu0
  %v5839 = vadd.f32 0.0, %v5838
  %5840 = vmatmul.f32.gmra.mxu0 %v5809
  %v5841 = vpop.f32.mrf.mxu0
  %v5842 = vadd.f32 0.0, %v5841
  %5843 = vdwg.mxu0
  %5844 = vmatpush.msra.mxu0 %v5792
  %5845 = vmatpush.msra.mxu0 %v5790
  %5846 = vmatpush.msra.mxu0 %v5788
  %5847 = vmatpush.msra.mxu0 %v5786
  %5848 = vmatpush.msra.mxu0 %v5784
  %5849 = vmatpush.msra.mxu0 %v5782
  %5850 = vmatpush.msra.mxu0 %v5780
  %5851 = vmatpush.msra.mxu0 %v5778
  %5852 = vmatpush.msra.mxu0 %v5776
  %5853 = vmatpush.msra.mxu0 %v5774
  %5854 = vmatpush.msra.mxu0 %v5772
  %5855 = vmatpush.msra.mxu0 %v5770
  %5856 = vmatpush.msra.mxu0 %v5768
  %5857 = vmatpush.msra.mxu0 %v5766
  %5858 = vmatpush.msra.mxu0 %v5764
  %5859 = vmatpush.msra.mxu0 %v5762
  %5860 = vmatmul.f32.gmra.mxu0 %v5803
  %v5861 = vpop.f32.mrf.mxu0
  %v5862 = vadd.f32 %v5836, %v5861
  %5863 = vmatmul.f32.gmra.mxu0 %v5807
  %v5864 = vpop.f32.mrf.mxu0
  %v5865 = vadd.f32 %v5839, %v5864
  %5866 = vmatmul.f32.gmra.mxu0 %v5811
  %v5867 = vpop.f32.mrf.mxu0
  %v5868 = vadd.f32 %v5842, %v5867
  %5869 = vdwg.mxu0
  %5870 = vmatpush.msra.mxu0 %v5761
  %5871 = vmatpush.msra.mxu0 %v5759
  %5872 = vmatpush.msra.mxu0 %v5757
  %5873 = vmatpush.msra.mxu0 %v5755
  %5874 = vmatpush.msra.mxu0 %v5753
  %5875 = vmatpush.msra.mxu0 %v5751
  %5876 = vmatpush.msra.mxu0 %v5749
  %5877 = vmatpush.msra.mxu0 %v5747
  %5878 = vmatpush.msra.mxu0 %v5745
  %5879 = vmatpush.msra.mxu0 %v5743
  %5880 = vmatpush.msra.mxu0 %v5741
  %5881 = vmatpush.msra.mxu0 %v5739
  %5882 = vmatpush.msra.mxu0 %v5737
  %5883 = vmatpush.msra.mxu0 %v5735
  %5884 = vmatpush.msra.mxu0 %v5733
  %5885 = vmatpush.msra.mxu0 %v5731
  %5886 = vmatmul.f32.gmra.mxu0 %v5800
  %v5887 = vpop.f32.mrf.mxu0
  %v5888 = vadd.f32 0.0, %v5887
  %5889 = vmatmul.f32.gmra.mxu0 %v5805
  %v5890 = vpop.f32.mrf.mxu0
  %v5891 = vadd.f32 0.0, %v5890
  %5892 = vmatmul.f32.gmra.mxu0 %v5809
  %v5893 = vpop.f32.mrf.mxu0
  %v5894 = vadd.f32 0.0, %v5893
  %5895 = vdwg.mxu0
  %5896 = vmatpush.msra.mxu0 %v5793
  %5897 = vmatpush.msra.mxu0 %v5791
  %5898 = vmatpush.msra.mxu0 %v5789
  %5899 = vmatpush.msra.mxu0 %v5787
  %5900 = vmatpush.msra.mxu0 %v5785
  %5901 = vmatpush.msra.mxu0 %v5783
  %5902 = vmatpush.msra.mxu0 %v5781
  %5903 = vmatpush.msra.mxu0 %v5779
  %5904 = vmatpush.msra.mxu0 %v5777
  %5905 = vmatpush.msra.mxu0 %v5775
  %5906 = vmatpush.msra.mxu0 %v5773
  %5907 = vmatpush.msra.mxu0 %v5771
  %5908 = vmatpush.msra.mxu0 %v5769
  %5909 = vmatpush.msra.mxu0 %v5767
  %5910 = vmatpush.msra.mxu0 %v5765
  %5911 = vmatpush.msra.mxu0 %v5763
  %5912 = vmatmul.f32.gmra.mxu0 %v5803
  %v5913 = vpop.f32.mrf.mxu0
  %v5914 = vadd.f32 %v5888, %v5913
  %5915 = vmatmul.f32.gmra.mxu0 %v5807
  %v5916 = vpop.f32.mrf.mxu0
  %v5917 = vadd.f32 %v5891, %v5916
  %5918 = vmatmul.f32.gmra.mxu0 %v5811
  %v5919 = vpop.f32.mrf.mxu0
  %v5920 = vadd.f32 %v5894, %v5919
  %5921 = vdwg.mxu0
  %v5922 = vadd.f32 %v5666, %v5862
  %v5923 = vadd.f32 %v5718, %v5914
  %v5924 = vadd.f32 %v5669, %v5865
  %v5925 = vadd.f32 %v5721, %v5917
  %v5926 = vadd.f32 %v5672, %v5868
  %v5927 = vadd.f32 %v5724, %v5920
  %v5928 = vadd.f32 %v5922, %v2974
  %v5929 = vadd.f32 %v5923, %v2975
  %v5930 = vadd.f32 %v5924, %v2974
  %v5931 = vadd.f32 %v5925, %v2975
  %v5932 = vadd.f32 %v5926, %v2974
  %v5933 = vadd.f32 %v5927, %v2975
  %v5934 = vmax.f32 %v5928, 0.0
  %v5935 = vmax.f32 %v5929, 0.0
  %v5936 = vmax.f32 %v5930, 0.0
  %v5937 = vmax.f32 %v5931, 0.0
  %v5938 = vmax.f32 %v5932, 0.0
  %v5939 = vmax.f32 %v5933, 0.0
  %s5940 = scalar_lea.vmem %s9, 48
  %5941 = vst [vmem:[%s5940] sm:$0xff] %v5934
  %5942 = vst [vmem:[%s5940 + $0x8] sm:$0xff] %v5935
  %5943 = vst [vmem:[%s5940 + $0x10] sm:$0xff] %v5936
  %5944 = vst [vmem:[%s5940 + $0x18] sm:$0xff] %v5937
  %5945 = vst [vmem:[%s5940 + $0x20] sm:$0xff] %v5938
  %5946 = vst [vmem:[%s5940 + $0x28] sm:$0xff] %v5939
  // Predicated region
  $region38: #{conv_classifier_forward.4} parent=0 // pred_check
    _
  $region39: #{conv_classifier_forward.4} parent=0 // pred_check_branch
    %5948 = sbr.rel (0) target = $region41
  $region40: #{conv_classifier_forward.4} parent=0 // pred_region
    _
  $region41: #{conv_classifier_forward.4} parent=0 // pred_fallthru
    _
  // Predicated region
  $region42: #{conv_classifier_forward.4} parent=0 // pred_check
    _
  $region43: #{conv_classifier_forward.4} parent=0 // pred_check_branch
    %5950 = sbr.rel (0) target = $region45
  $region44: #{conv_classifier_forward.4} parent=0 // pred_region
    _
  $region45: #{conv_classifier_forward.4} parent=0 // pred_fallthru
    _

</llo_original>
